<compile_context>
chip_gen: v7x
topology: tpu7x:2x2x1
jax: 0.10.0
libtpu: 0.0.40
codegen_flags: <defaults>
</compile_context>

<pallas_src>
import numpy as np
import jax
import jax.numpy as jnp
from jax import lax
from jax.experimental import pallas as pl
from jax.experimental.pallas import tpu as pltpu

H = 32            # hidden_size
G3 = 3 * H        # packed GRU gate width [r | z | n] (parameter storage)
GP = 128          # lane pitch per gate inside the kernel (lane-aligned gate slots)
G3P = 3 * GP
V_IN = 16         # encoder vocab
V_OUT = 16        # decoder vocab
S = 8             # encoder sequence length
T = 8             # decoder target length
B = 16            # sentences per call
SOS_TOKEN = 0
NEG_INF = -1e9


def _num_sentence_blocks():
    """2 'parallel' grid blocks only on chips with 2 TensorCores per device
    (v4/v5p megacore, v7x); collapse to one block on single-TC v5e/v6e."""
    try:
        kind = jax.devices()[0].device_kind.lower()
    except Exception:
        return 1
    return 2 if any(tag in kind for tag in ("v4", "v5p", "v7", "7x")) else 1


NB = _num_sentence_blocks()
BBLK = B // NB            # sentences per grid block (8 or 16; sublane-aligned)


def _make_attn_bias():
    # bias[j, s*BBLK + k] = 0 if k == j else -inf, so one (BBLK, S*BBLK) MXU score
    # matrix softmaxes to each sentence's own S-way attention distribution.
    bias = np.full((BBLK, S * BBLK), NEG_INF, np.float32)
    for j in range(BBLK):
        bias[j, j::BBLK] = 0.0
    return bias


_ATTN_BIAS = _make_attn_bias()


# ----------------------------------------------------------------------------
# Fused kernel: encoder GRU over S steps -> attention energies -> decoder GRU +
# attention + output projection over T steps.  One grid step = one block of
# BBLK sentences; all weights resident in VMEM.
# Block-internal data layout: row index = t*BBLK + j (j = sentence in block).
# ----------------------------------------------------------------------------
def _gru_update(gi, gh, h_prev):
    """nn.GRU cell from lane-padded gate pre-activations ([r|z|n] at lane 0/128/256)."""
    r = jax.nn.sigmoid(gi[:, 0:H] + gh[:, 0:H])
    z = jax.nn.sigmoid(gi[:, GP:GP + H] + gh[:, GP:GP + H])
    n = jnp.tanh(gi[:, 2 * GP:2 * GP + H] + r * gh[:, 2 * GP:2 * GP + H])
    return (1.0 - z) * n + z * h_prev


def _copynet_kernel(x_emb_ref, y_emb_ref, bias_ref,
                    enc_wi_ref, enc_wh_ref, enc_bi_ref, enc_bh_ref,
                    dec_wie_ref, dec_wic_ref, dec_wh_ref, dec_bi_ref, dec_bh_ref,
                    wa_ref, ba_ref, wo_ref, bo_ref,
                    logp_ref,
                    enc_scr, en_scr, gie_scr, gid_scr):
    dot = lambda a, b: jnp.dot(a, b, preferred_element_type=jnp.float32)
    nt = (((1,), (1,)), ((), ()))     # contract last dims of both operands (A @ B.T)

    # ---------------- encoder ----------------
    # Input-side gate projections for the whole sequence in one MXU call -> scratch.
    gie_scr[...] = dot(x_emb_ref[...], enc_wi_ref[...]) + enc_bi_ref[...]     # (S*BBLK, 3*GP)
    enc_bh_b = jnp.broadcast_to(enc_bh_ref[...], (BBLK, G3P))                 # hoisted bcast

    h = jnp.zeros((BBLK, H), jnp.float32)
    for t in range(S):                                                        # unrolled
        gh = dot(h, enc_wh_ref[...]) + enc_bh_b
        h = _gru_update(gie_scr[t * BBLK:(t + 1) * BBLK, :], gh, h)
        enc_scr[t * BBLK:(t + 1) * BBLK, :] = h                               # encoder outputs

    # Step-invariant Luong-"general" attention energies, hoisted out of the decoder loop.
    en_scr[...] = dot(enc_scr[...], wa_ref[...]) + ba_ref[...]                # (S*BBLK, H)

    # ---------------- decoder ----------------
    gid_scr[...] = dot(y_emb_ref[...], dec_wie_ref[...]) + dec_bi_ref[...]    # (T*BBLK, 3*GP)
    dec_bh_b = jnp.broadcast_to(dec_bh_ref[...], (BBLK, G3P))
    bo_b = jnp.broadcast_to(bo_ref[...], (BBLK, V_OUT))

    dh = h                                    # decoder_hidden = final encoder hidden
    ctx = jnp.zeros((BBLK, H), jnp.float32)   # internal context carry
    for t in range(T):
        # GRU on concat(embedded, prev_context): input weight split into emb/ctx halves.
        gi = gid_scr[t * BBLK:(t + 1) * BBLK, :] + dot(ctx, dec_wic_ref[...])
        gh = dot(dh, dec_wh_ref[...]) + dec_bh_b
        dh = _gru_update(gi, gh, dh)

        # Attention on the MXU: full (BBLK, S*BBLK) score matrix, per-sentence rows
        # selected with an additive -inf mask, softmax over lanes, context via one matmul.
        sc = lax.dot_general(dh, en_scr[...], nt,
                             preferred_element_type=jnp.float32) + bias_ref[...]
        m = jnp.max(sc, axis=-1, keepdims=True)
        ex = jnp.exp(sc - m)
        attn = ex * pl.reciprocal(jnp.sum(ex, axis=-1, keepdims=True), approx=True)
        ctx = dot(attn, enc_scr[...])                                         # (BBLK, H)

        # Fused output projection on concat(hidden, context) + log_softmax.
        logits = dot(jnp.concatenate([dh, ctx], axis=-1), wo_ref[...]) + bo_b
        lmax = jnp.max(logits, axis=-1, keepdims=True)
        lse = lmax + jnp.log(jnp.sum(jnp.exp(logits - lmax), axis=-1, keepdims=True))
        # Lane-dense output: step t occupies lanes [t*V_OUT, (t+1)*V_OUT).
        logp_ref[:, t * V_OUT:(t + 1) * V_OUT] = logits - lse


# ----------------------------------------------------------------------------
# Host-side wrapper: embedding lookups, weight packing, block layout, one
# pallas_call, un-blocking of outputs, NLL loss.
# ----------------------------------------------------------------------------
def _to_blocks(x):
    """(B, L, F) -> (NB, L*BBLK, F) with row index t*BBLK + j inside a block."""
    _, L, F = x.shape
    return x.reshape(NB, BBLK, L, F).transpose(0, 2, 1, 3).reshape(NB, L * BBLK, F)


def _pad_gates(w):
    """Packed [r|z|n] (in, 3H) -> lane-aligned (in, 3*GP): gate g at lane offset g*GP."""
    parts = [jnp.pad(w[:, g * H:(g + 1) * H], ((0, 0), (0, GP - H))) for g in range(3)]
    return jnp.concatenate(parts, axis=-1)


def copynet_run(input_tokens, target_tokens, enc_p, dec_p):
    # Deterministic teacher forcing.
    # TODO(synk): the 50/50 teacher-forcing coin flip and decoder-embedding dropout
    # (dropout_p) are host-side training randomness; skipped (inference semantics).
    x_emb = jnp.take(enc_p["emb"], input_tokens, axis=0)                      # (B, S, H)
    dec_in = jnp.concatenate(
        [jnp.full((B, 1), SOS_TOKEN, jnp.int32), target_tokens[:, :T - 1]], axis=1)
    y_emb = jnp.take(dec_p["emb"], dec_in, axis=0)                            # (B, T, H)

    ins = (_to_blocks(x_emb), _to_blocks(y_emb), jnp.asarray(_ATTN_BIAS),
           _pad_gates(enc_p["wi"]), _pad_gates(enc_p["wh"]),
           _pad_gates(enc_p["bi"]), _pad_gates(enc_p["bh"]),
           _pad_gates(dec_p["wie"]), _pad_gates(dec_p["wic"]), _pad_gates(dec_p["wh"]),
           _pad_gates(dec_p["bi"]), _pad_gates(dec_p["bh"]),
           dec_p["wa"], dec_p["ba"],
           jnp.concatenate([dec_p["woh"], dec_p["woc"]], axis=0), dec_p["bo"])

    data_spec = lambda rows, cols: pl.BlockSpec((None, rows, cols), lambda i: (i, 0, 0))
    w_spec = lambda a: pl.BlockSpec(a.shape, lambda i: (0, 0))   # resident across grid steps

    in_specs = [data_spec(S * BBLK, H), data_spec(T * BBLK, H)]
    in_specs += [w_spec(a) for a in ins[2:]]

    logp_blk = pl.pallas_call(
        _copynet_kernel,
        grid=(NB,),
        in_specs=in_specs,
        out_specs=pl.BlockSpec((None, BBLK, T * V_OUT), lambda i: (i, 0, 0)),
        out_shape=jax.ShapeDtypeStruct((NB, BBLK, T * V_OUT), jnp.float32),
        scratch_shapes=[pltpu.VMEM((S * BBLK, H), jnp.float32),      # encoder outputs
                        pltpu.VMEM((S * BBLK, H), jnp.float32),      # attention energies
                        pltpu.VMEM((S * BBLK, G3P), jnp.float32),    # enc input-side gates
                        pltpu.VMEM((T * BBLK, G3P), jnp.float32)],   # dec emb-side gates
        compiler_params=pltpu.CompilerParams(dimension_semantics=("parallel",)),
    )(*ins)

    # (NB, BBLK, T*V) -> (B, T, V); sentence b = block*BBLK + slot (matches _to_blocks).
    logp = logp_blk.reshape(B, T, V_OUT)
    # NLL moved out of the kernel: trivial XLA-side gather + mean.
    nll = -jnp.take_along_axis(logp, target_tokens[..., None], axis=-1)[..., 0]   # (B, T)
    losses = jnp.mean(nll, axis=-1)
    return losses, logp


def copynet_forward():
    # CopyNet.forward() in the reference module literally returns 0.
    return jnp.zeros((), jnp.float32)


# ----------------------------------------------------------------------------
# Deterministic synthetic parameters (packed-gate layout [r|z|n], width 3H).
# ----------------------------------------------------------------------------
def _init_params(key):
    def u(k, shape, scale=0.1):
        return scale * jax.random.uniform(k, shape, jnp.float32, -1.0, 1.0)

    keys = jax.random.split(key, 24)
    ki = iter(keys)
    enc = {
        "emb": u(next(ki), (V_IN, H)),
        "wi": u(next(ki), (H, G3)),    # packed [Wir | Wiz | Win]
        "wh": u(next(ki), (H, G3)),    # packed [Whr | Whz | Whn]
        "bi": u(next(ki), (1, G3)),
        "bh": u(next(ki), (1, G3)),
    }
    dec = {
        "emb": u(next(ki), (V_OUT, H)),
        "wie": u(next(ki), (H, G3)),   # embedding half of the (2H -> 3H) input weight
        "wic": u(next(ki), (H, G3)),   # context half
        "wh": u(next(ki), (H, G3)),
        "bi": u(next(ki), (1, G3)),
        "bh": u(next(ki), (1, G3)),
        "wa": u(next(ki), (H, H)),     # Luong "general" attention
        "ba": u(next(ki), (1, H)),
        "woh": u(next(ki), (H, V_OUT)),
        "woc": u(next(ki), (H, V_OUT)),
        "bo": u(next(ki), (1, V_OUT)),
    }
    return enc, dec


# ----------------------------------------------------------------------------
# Pure-JAX per-sentence reference (mirrors the PyTorch encoder/decoder math).
# ----------------------------------------------------------------------------
def _reference_losses(input_tokens, target_tokens, enc_p, dec_p):
    def gru(gi, gh, hprev):
        r = jax.nn.sigmoid(gi[:, :H] + gh[:, :H])
        z = jax.nn.sigmoid(gi[:, H:2 * H] + gh[:, H:2 * H])
        n = jnp.tanh(gi[:, 2 * H:] + r * gh[:, 2 * H:])
        return (1.0 - z) * n + z * hprev

    losses = []
    for b in range(B):
        h = jnp.zeros((1, H), jnp.float32)
        enc_outs = []
        for t in range(S):
            x = enc_p["emb"][input_tokens[b, t]][None, :]
            h = gru(x @ enc_p["wi"] + enc_p["bi"], h @ enc_p["wh"] + enc_p["bh"], h)
            enc_outs.append(h)
        enc = jnp.concatenate(enc_outs, axis=0)                       # (S, H)
        energies = enc @ dec_p["wa"] + dec_p["ba"]

        dh, ctx = h, jnp.zeros((1, H), jnp.float32)
        tok = jnp.asarray(SOS_TOKEN, jnp.int32)
        total = jnp.zeros((), jnp.float32)
        for t in range(T):
            emb = dec_p["emb"][tok][None, :]
            gi = emb @ dec_p["wie"] + ctx @ dec_p["wic"] + dec_p["bi"]
            gh = dh @ dec_p["wh"] + dec_p["bh"]
            dh = gru(gi, gh, dh)
            attn = jax.nn.softmax(dh @ energies.T, axis=-1)
            ctx = attn @ enc
            logits = dh @ dec_p["woh"] + ctx @ dec_p["woc"] + dec_p["bo"]
            logp = jax.nn.log_softmax(logits, axis=-1)
            total = total - logp[0, target_tokens[b, t]]
            tok = target_tokens[b, t]
        losses.append(total / T)
    return jnp.stack(losses)


if __name__ == "__main__":
    key = jax.random.PRNGKey(0)
    kp, ki, kt = jax.random.split(key, 3)
    enc_p, dec_p = _init_params(kp)

    input_tokens = jax.random.randint(ki, (B, S), 0, V_IN, dtype=jnp.int32)
    target_tokens = jax.random.randint(kt, (B, T), 0, V_OUT, dtype=jnp.int32)

    losses, logp = jax.jit(copynet_run)(input_tokens, target_tokens, enc_p, dec_p)
    jax.block_until_ready((losses, logp))

    ref = jax.jit(_reference_losses)(input_tokens, target_tokens, enc_p, dec_p)
    np.testing.assert_allclose(np.asarray(losses), np.asarray(ref), rtol=2e-2, atol=2e-2)

    fwd = copynet_forward()
    jax.block_until_ready(fwd)
    print("KERNEL_OK")
</pallas_src>

<mosaic_0001>
module attributes {stable_mosaic.version = 11 : i64} {
  func.func @_copynet_kernel(%arg0: i32, %arg1: memref<1x128x32xf32, #tpu.memory_space<vmem>>, %arg2: memref<1x128x32xf32, #tpu.memory_space<vmem>>, %arg3: memref<16x128xf32, #tpu.memory_space<vmem>>, %arg4: memref<32x384xf32, #tpu.memory_space<vmem>>, %arg5: memref<32x384xf32, #tpu.memory_space<vmem>>, %arg6: memref<1x384xf32, #tpu.memory_space<vmem>>, %arg7: memref<1x384xf32, #tpu.memory_space<vmem>>, %arg8: memref<32x384xf32, #tpu.memory_space<vmem>>, %arg9: memref<32x384xf32, #tpu.memory_space<vmem>>, %arg10: memref<32x384xf32, #tpu.memory_space<vmem>>, %arg11: memref<1x384xf32, #tpu.memory_space<vmem>>, %arg12: memref<1x384xf32, #tpu.memory_space<vmem>>, %arg13: memref<32x32xf32, #tpu.memory_space<vmem>>, %arg14: memref<1x32xf32, #tpu.memory_space<vmem>>, %arg15: memref<64x16xf32, #tpu.memory_space<vmem>>, %arg16: memref<1x16xf32, #tpu.memory_space<vmem>>, %arg17: memref<1x16x128xf32, #tpu.memory_space<vmem>>, %arg18: memref<128x32xf32, #tpu.memory_space<vmem>>, %arg19: memref<128x32xf32, #tpu.memory_space<vmem>>, %arg20: memref<128x384xf32, #tpu.memory_space<vmem>>, %arg21: memref<128x384xf32, #tpu.memory_space<vmem>>) attributes {dimension_semantics = [#tpu.dimension_semantics<parallel>], iteration_bounds = array<i64: 1>, scalar_prefetch = 0 : i64, scratch_operands = 4 : i64, tpu.core_type = #tpu.core_type<tc>, window_params = [{transform_indices = @transform_0, window_bounds = array<i64: 1, 128, 32>}, {transform_indices = @transform_1, window_bounds = array<i64: 1, 128, 32>}, {pipeline_mode = #tpu.pipeline_mode<synchronous>, transform_indices = @transform_2, window_bounds = array<i64: 16, 128>}, {pipeline_mode = #tpu.pipeline_mode<synchronous>, transform_indices = @transform_3, window_bounds = array<i64: 32, 384>}, {pipeline_mode = #tpu.pipeline_mode<synchronous>, transform_indices = @transform_4, window_bounds = array<i64: 32, 384>}, {pipeline_mode = #tpu.pipeline_mode<synchronous>, transform_indices = @transform_5, window_bounds = array<i64: 1, 384>}, {pipeline_mode = #tpu.pipeline_mode<synchronous>, transform_indices = @transform_6, window_bounds = array<i64: 1, 384>}, {pipeline_mode = #tpu.pipeline_mode<synchronous>, transform_indices = @transform_7, window_bounds = array<i64: 32, 384>}, {pipeline_mode = #tpu.pipeline_mode<synchronous>, transform_indices = @transform_8, window_bounds = array<i64: 32, 384>}, {pipeline_mode = #tpu.pipeline_mode<synchronous>, transform_indices = @transform_9, window_bounds = array<i64: 32, 384>}, {pipeline_mode = #tpu.pipeline_mode<synchronous>, transform_indices = @transform_10, window_bounds = array<i64: 1, 384>}, {pipeline_mode = #tpu.pipeline_mode<synchronous>, transform_indices = @transform_11, window_bounds = array<i64: 1, 384>}, {pipeline_mode = #tpu.pipeline_mode<synchronous>, transform_indices = @transform_12, window_bounds = array<i64: 32, 32>}, {pipeline_mode = #tpu.pipeline_mode<synchronous>, transform_indices = @transform_13, window_bounds = array<i64: 1, 32>}, {pipeline_mode = #tpu.pipeline_mode<synchronous>, transform_indices = @transform_14, window_bounds = array<i64: 64, 16>}, {pipeline_mode = #tpu.pipeline_mode<synchronous>, transform_indices = @transform_15, window_bounds = array<i64: 1, 16>}, {transform_indices = @transform_16, window_bounds = array<i64: 1, 16, 128>}]} {
    %c0 = arith.constant 0 : index
    %c0_0 = arith.constant 0 : index
    %c0_1 = arith.constant 0 : index
    %0 = vector.load %arg1[%c0, %c0_0, %c0_1] : memref<1x128x32xf32, #tpu.memory_space<vmem>>, vector<1x128x32xf32>
    %1 = vector.shape_cast %0 : vector<1x128x32xf32> to vector<128x32xf32>
    %c0_2 = arith.constant 0 : index
    %c0_3 = arith.constant 0 : index
    %2 = vector.load %arg4[%c0_2, %c0_3] : memref<32x384xf32, #tpu.memory_space<vmem>>, vector<32x384xf32>
    %cst = arith.constant dense<0.000000e+00> : vector<128x384xf32>
    %3 = tpu.matmul %1, %2, %cst {dimension_numbers = #tpu.dot_dimension_numbers<[1], [0], [0], [1], [0, 0, 1, 1], [], []>} : vector<128x32xf32>, vector<32x384xf32>, vector<128x384xf32> -> vector<128x384xf32>
    %c0_4 = arith.constant 0 : index
    %c0_5 = arith.constant 0 : index
    %4 = vector.load %arg6[%c0_4, %c0_5] : memref<1x384xf32, #tpu.memory_space<vmem>>, vector<1x384xf32>
    %5 = vector.broadcast %4 : vector<1x384xf32> to vector<128x384xf32>
    %6 = arith.addf %3, %5 : vector<128x384xf32>
    %c0_6 = arith.constant 0 : index
    %c0_7 = arith.constant 0 : index
    %7 = vector.load %arg20[%c0_6, %c0_7] : memref<128x384xf32, #tpu.memory_space<vmem>>, vector<128x384xf32>
    tpu.vector_store %arg20[%c0_6, %c0_7], %6 {strides = array<i32>} : memref<128x384xf32, #tpu.memory_space<vmem>>, vector<128x384xf32>,
    %c0_8 = arith.constant 0 : index
    %c0_9 = arith.constant 0 : index
    %8 = vector.load %arg7[%c0_8, %c0_9] : memref<1x384xf32, #tpu.memory_space<vmem>>, vector<1x384xf32>
    %9 = vector.shape_cast %8 : vector<1x384xf32> to vector<1x384xf32>
    %10 = vector.broadcast %9 : vector<1x384xf32> to vector<16x384xf32>
    %cst_10 = arith.constant 0.000000e+00 : f32
    %11 = vector.broadcast %cst_10 : f32 to vector<16x32xf32>
    %c0_11 = arith.constant 0 : index
    %c0_12 = arith.constant 0 : index
    %12 = vector.load %arg5[%c0_11, %c0_12] : memref<32x384xf32, #tpu.memory_space<vmem>>, vector<32x384xf32>
    %cst_13 = arith.constant dense<0.000000e+00> : vector<16x384xf32>
    %13 = tpu.matmul %11, %12, %cst_13 {dimension_numbers = #tpu.dot_dimension_numbers<[1], [0], [0], [1], [0, 0, 1, 1], [], []>} : vector<16x32xf32>, vector<32x384xf32>, vector<16x384xf32> -> vector<16x384xf32>
    %14 = arith.addf %13, %10 : vector<16x384xf32>
    %c0_14 = arith.constant 0 : index
    %c0_15 = arith.constant 0 : index
    %15 = vector.load %arg20[%c0_14, %c0_15] : memref<128x384xf32, #tpu.memory_space<vmem>>, vector<16x384xf32>
    %16 = vector.extract_strided_slice %15 {offsets = [0, 0], sizes = [16, 32], strides = [1, 1]} : vector<16x384xf32> to vector<16x32xf32>
    %17 = vector.extract_strided_slice %14 {offsets = [0, 0], sizes = [16, 32], strides = [1, 1]} : vector<16x384xf32> to vector<16x32xf32>
    %18 = arith.addf %16, %17 : vector<16x32xf32>
    %19 = arith.negf %18 : vector<16x32xf32>
    %20 = math.exp %19 : vector<16x32xf32>
    %cst_16 = arith.constant 1.000000e+00 : f32
    %21 = vector.broadcast %cst_16 : f32 to vector<16x32xf32>
    %22 = arith.addf %21, %20 : vector<16x32xf32>
    %23 = arith.divf %21, %22 : vector<16x32xf32>
    %24 = vector.extract_strided_slice %15 {offsets = [0, 128], sizes = [16, 32], strides = [1, 1]} : vector<16x384xf32> to vector<16x32xf32>
    %25 = vector.extract_strided_slice %14 {offsets = [0, 128], sizes = [16, 32], strides = [1, 1]} : vector<16x384xf32> to vector<16x32xf32>
    %26 = arith.addf %24, %25 : vector<16x32xf32>
    %27 = arith.negf %26 : vector<16x32xf32>
    %28 = math.exp %27 : vector<16x32xf32>
    %cst_17 = arith.constant 1.000000e+00 : f32
    %29 = vector.broadcast %cst_17 : f32 to vector<16x32xf32>
    %30 = arith.addf %29, %28 : vector<16x32xf32>
    %31 = arith.divf %29, %30 : vector<16x32xf32>
    %32 = vector.extract_strided_slice %15 {offsets = [0, 256], sizes = [16, 32], strides = [1, 1]} : vector<16x384xf32> to vector<16x32xf32>
    %33 = vector.extract_strided_slice %14 {offsets = [0, 256], sizes = [16, 32], strides = [1, 1]} : vector<16x384xf32> to vector<16x32xf32>
    %34 = arith.mulf %23, %33 : vector<16x32xf32>
    %35 = arith.addf %32, %34 : vector<16x32xf32>
    %36 = math.tanh %35 : vector<16x32xf32>
    %cst_18 = arith.constant 1.000000e+00 : f32
    %37 = vector.broadcast %cst_18 : f32 to vector<16x32xf32>
    %38 = arith.subf %37, %31 : vector<16x32xf32>
    %39 = arith.mulf %38, %36 : vector<16x32xf32>
    %40 = arith.mulf %31, %11 : vector<16x32xf32>
    %41 = arith.addf %39, %40 : vector<16x32xf32>
    %c0_19 = arith.constant 0 : index
    %c0_20 = arith.constant 0 : index
    %42 = vector.load %arg18[%c0_19, %c0_20] : memref<128x32xf32, #tpu.memory_space<vmem>>, vector<16x32xf32>
    tpu.vector_store %arg18[%c0_19, %c0_20], %41 {strides = array<i32>} : memref<128x32xf32, #tpu.memory_space<vmem>>, vector<16x32xf32>,
    %c0_21 = arith.constant 0 : index
    %c0_22 = arith.constant 0 : index
    %43 = vector.load %arg5[%c0_21, %c0_22] : memref<32x384xf32, #tpu.memory_space<vmem>>, vector<32x384xf32>
    %cst_23 = arith.constant dense<0.000000e+00> : vector<16x384xf32>
    %44 = tpu.matmul %41, %43, %cst_23 {dimension_numbers = #tpu.dot_dimension_numbers<[1], [0], [0], [1], [0, 0, 1, 1], [], []>} : vector<16x32xf32>, vector<32x384xf32>, vector<16x384xf32> -> vector<16x384xf32>
    %45 = arith.addf %44, %10 : vector<16x384xf32>
    %c16 = arith.constant 16 : index
    %c0_24 = arith.constant 0 : index
    %46 = vector.load %arg20[%c16, %c0_24] : memref<128x384xf32, #tpu.memory_space<vmem>>, vector<16x384xf32>
    %47 = vector.extract_strided_slice %46 {offsets = [0, 0], sizes = [16, 32], strides = [1, 1]} : vector<16x384xf32> to vector<16x32xf32>
    %48 = vector.extract_strided_slice %45 {offsets = [0, 0], sizes = [16, 32], strides = [1, 1]} : vector<16x384xf32> to vector<16x32xf32>
    %49 = arith.addf %47, %48 : vector<16x32xf32>
    %50 = arith.negf %49 : vector<16x32xf32>
    %51 = math.exp %50 : vector<16x32xf32>
    %cst_25 = arith.constant 1.000000e+00 : f32
    %52 = vector.broadcast %cst_25 : f32 to vector<16x32xf32>
    %53 = arith.addf %52, %51 : vector<16x32xf32>
    %54 = arith.divf %52, %53 : vector<16x32xf32>
    %55 = vector.extract_strided_slice %46 {offsets = [0, 128], sizes = [16, 32], strides = [1, 1]} : vector<16x384xf32> to vector<16x32xf32>
    %56 = vector.extract_strided_slice %45 {offsets = [0, 128], sizes = [16, 32], strides = [1, 1]} : vector<16x384xf32> to vector<16x32xf32>
    %57 = arith.addf %55, %56 : vector<16x32xf32>
    %58 = arith.negf %57 : vector<16x32xf32>
    %59 = math.exp %58 : vector<16x32xf32>
    %cst_26 = arith.constant 1.000000e+00 : f32
    %60 = vector.broadcast %cst_26 : f32 to vector<16x32xf32>
    %61 = arith.addf %60, %59 : vector<16x32xf32>
    %62 = arith.divf %60, %61 : vector<16x32xf32>
    %63 = vector.extract_strided_slice %46 {offsets = [0, 256], sizes = [16, 32], strides = [1, 1]} : vector<16x384xf32> to vector<16x32xf32>
    %64 = vector.extract_strided_slice %45 {offsets = [0, 256], sizes = [16, 32], strides = [1, 1]} : vector<16x384xf32> to vector<16x32xf32>
    %65 = arith.mulf %54, %64 : vector<16x32xf32>
    %66 = arith.addf %63, %65 : vector<16x32xf32>
    %67 = math.tanh %66 : vector<16x32xf32>
    %cst_27 = arith.constant 1.000000e+00 : f32
    %68 = vector.broadcast %cst_27 : f32 to vector<16x32xf32>
    %69 = arith.subf %68, %62 : vector<16x32xf32>
    %70 = arith.mulf %69, %67 : vector<16x32xf32>
    %71 = arith.mulf %62, %41 : vector<16x32xf32>
    %72 = arith.addf %70, %71 : vector<16x32xf32>
    %c16_28 = arith.constant 16 : index
    %c0_29 = arith.constant 0 : index
    %73 = vector.load %arg18[%c16_28, %c0_29] : memref<128x32xf32, #tpu.memory_space<vmem>>, vector<16x32xf32>
    tpu.vector_store %arg18[%c16_28, %c0_29], %72 {strides = array<i32>} : memref<128x32xf32, #tpu.memory_space<vmem>>, vector<16x32xf32>,
    %c0_30 = arith.constant 0 : index
    %c0_31 = arith.constant 0 : index
    %74 = vector.load %arg5[%c0_30, %c0_31] : memref<32x384xf32, #tpu.memory_space<vmem>>, vector<32x384xf32>
    %cst_32 = arith.constant dense<0.000000e+00> : vector<16x384xf32>
    %75 = tpu.matmul %72, %74, %cst_32 {dimension_numbers = #tpu.dot_dimension_numbers<[1], [0], [0], [1], [0, 0, 1, 1], [], []>} : vector<16x32xf32>, vector<32x384xf32>, vector<16x384xf32> -> vector<16x384xf32>
    %76 = arith.addf %75, %10 : vector<16x384xf32>
    %c32 = arith.constant 32 : index
    %c0_33 = arith.constant 0 : index
    %77 = vector.load %arg20[%c32, %c0_33] : memref<128x384xf32, #tpu.memory_space<vmem>>, vector<16x384xf32>
    %78 = vector.extract_strided_slice %77 {offsets = [0, 0], sizes = [16, 32], strides = [1, 1]} : vector<16x384xf32> to vector<16x32xf32>
    %79 = vector.extract_strided_slice %76 {offsets = [0, 0], sizes = [16, 32], strides = [1, 1]} : vector<16x384xf32> to vector<16x32xf32>
    %80 = arith.addf %78, %79 : vector<16x32xf32>
    %81 = arith.negf %80 : vector<16x32xf32>
    %82 = math.exp %81 : vector<16x32xf32>
    %cst_34 = arith.constant 1.000000e+00 : f32
    %83 = vector.broadcast %cst_34 : f32 to vector<16x32xf32>
    %84 = arith.addf %83, %82 : vector<16x32xf32>
    %85 = arith.divf %83, %84 : vector<16x32xf32>
    %86 = vector.extract_strided_slice %77 {offsets = [0, 128], sizes = [16, 32], strides = [1, 1]} : vector<16x384xf32> to vector<16x32xf32>
    %87 = vector.extract_strided_slice %76 {offsets = [0, 128], sizes = [16, 32], strides = [1, 1]} : vector<16x384xf32> to vector<16x32xf32>
    %88 = arith.addf %86, %87 : vector<16x32xf32>
    %89 = arith.negf %88 : vector<16x32xf32>
    %90 = math.exp %89 : vector<16x32xf32>
    %cst_35 = arith.constant 1.000000e+00 : f32
    %91 = vector.broadcast %cst_35 : f32 to vector<16x32xf32>
    %92 = arith.addf %91, %90 : vector<16x32xf32>
    %93 = arith.divf %91, %92 : vector<16x32xf32>
    %94 = vector.extract_strided_slice %77 {offsets = [0, 256], sizes = [16, 32], strides = [1, 1]} : vector<16x384xf32> to vector<16x32xf32>
    %95 = vector.extract_strided_slice %76 {offsets = [0, 256], sizes = [16, 32], strides = [1, 1]} : vector<16x384xf32> to vector<16x32xf32>
    %96 = arith.mulf %85, %95 : vector<16x32xf32>
    %97 = arith.addf %94, %96 : vector<16x32xf32>
    %98 = math.tanh %97 : vector<16x32xf32>
    %cst_36 = arith.constant 1.000000e+00 : f32
    %99 = vector.broadcast %cst_36 : f32 to vector<16x32xf32>
    %100 = arith.subf %99, %93 : vector<16x32xf32>
    %101 = arith.mulf %100, %98 : vector<16x32xf32>
    %102 = arith.mulf %93, %72 : vector<16x32xf32>
    %103 = arith.addf %101, %102 : vector<16x32xf32>
    %c32_37 = arith.constant 32 : index
    %c0_38 = arith.constant 0 : index
    %104 = vector.load %arg18[%c32_37, %c0_38] : memref<128x32xf32, #tpu.memory_space<vmem>>, vector<16x32xf32>
    tpu.vector_store %arg18[%c32_37, %c0_38], %103 {strides = array<i32>} : memref<128x32xf32, #tpu.memory_space<vmem>>, vector<16x32xf32>,
    %c0_39 = arith.constant 0 : index
    %c0_40 = arith.constant 0 : index
    %105 = vector.load %arg5[%c0_39, %c0_40] : memref<32x384xf32, #tpu.memory_space<vmem>>, vector<32x384xf32>
    %cst_41 = arith.constant dense<0.000000e+00> : vector<16x384xf32>
    %106 = tpu.matmul %103, %105, %cst_41 {dimension_numbers = #tpu.dot_dimension_numbers<[1], [0], [0], [1], [0, 0, 1, 1], [], []>} : vector<16x32xf32>, vector<32x384xf32>, vector<16x384xf32> -> vector<16x384xf32>
    %107 = arith.addf %106, %10 : vector<16x384xf32>
    %c48 = arith.constant 48 : index
    %c0_42 = arith.constant 0 : index
    %108 = vector.load %arg20[%c48, %c0_42] : memref<128x384xf32, #tpu.memory_space<vmem>>, vector<16x384xf32>
    %109 = vector.extract_strided_slice %108 {offsets = [0, 0], sizes = [16, 32], strides = [1, 1]} : vector<16x384xf32> to vector<16x32xf32>
    %110 = vector.extract_strided_slice %107 {offsets = [0, 0], sizes = [16, 32], strides = [1, 1]} : vector<16x384xf32> to vector<16x32xf32>
    %111 = arith.addf %109, %110 : vector<16x32xf32>
    %112 = arith.negf %111 : vector<16x32xf32>
    %113 = math.exp %112 : vector<16x32xf32>
    %cst_43 = arith.constant 1.000000e+00 : f32
    %114 = vector.broadcast %cst_43 : f32 to vector<16x32xf32>
    %115 = arith.addf %114, %113 : vector<16x32xf32>
    %116 = arith.divf %114, %115 : vector<16x32xf32>
    %117 = vector.extract_strided_slice %108 {offsets = [0, 128], sizes = [16, 32], strides = [1, 1]} : vector<16x384xf32> to vector<16x32xf32>
    %118 = vector.extract_strided_slice %107 {offsets = [0, 128], sizes = [16, 32], strides = [1, 1]} : vector<16x384xf32> to vector<16x32xf32>
    %119 = arith.addf %117, %118 : vector<16x32xf32>
    %120 = arith.negf %119 : vector<16x32xf32>
    %121 = math.exp %120 : vector<16x32xf32>
    %cst_44 = arith.constant 1.000000e+00 : f32
    %122 = vector.broadcast %cst_44 : f32 to vector<16x32xf32>
    %123 = arith.addf %122, %121 : vector<16x32xf32>
    %124 = arith.divf %122, %123 : vector<16x32xf32>
    %125 = vector.extract_strided_slice %108 {offsets = [0, 256], sizes = [16, 32], strides = [1, 1]} : vector<16x384xf32> to vector<16x32xf32>
    %126 = vector.extract_strided_slice %107 {offsets = [0, 256], sizes = [16, 32], strides = [1, 1]} : vector<16x384xf32> to vector<16x32xf32>
    %127 = arith.mulf %116, %126 : vector<16x32xf32>
    %128 = arith.addf %125, %127 : vector<16x32xf32>
    %129 = math.tanh %128 : vector<16x32xf32>
    %cst_45 = arith.constant 1.000000e+00 : f32
    %130 = vector.broadcast %cst_45 : f32 to vector<16x32xf32>
    %131 = arith.subf %130, %124 : vector<16x32xf32>
    %132 = arith.mulf %131, %129 : vector<16x32xf32>
    %133 = arith.mulf %124, %103 : vector<16x32xf32>
    %134 = arith.addf %132, %133 : vector<16x32xf32>
    %c48_46 = arith.constant 48 : index
    %c0_47 = arith.constant 0 : index
    %135 = vector.load %arg18[%c48_46, %c0_47] : memref<128x32xf32, #tpu.memory_space<vmem>>, vector<16x32xf32>
    tpu.vector_store %arg18[%c48_46, %c0_47], %134 {strides = array<i32>} : memref<128x32xf32, #tpu.memory_space<vmem>>, vector<16x32xf32>,
    %c0_48 = arith.constant 0 : index
    %c0_49 = arith.constant 0 : index
    %136 = vector.load %arg5[%c0_48, %c0_49] : memref<32x384xf32, #tpu.memory_space<vmem>>, vector<32x384xf32>
    %cst_50 = arith.constant dense<0.000000e+00> : vector<16x384xf32>
    %137 = tpu.matmul %134, %136, %cst_50 {dimension_numbers = #tpu.dot_dimension_numbers<[1], [0], [0], [1], [0, 0, 1, 1], [], []>} : vector<16x32xf32>, vector<32x384xf32>, vector<16x384xf32> -> vector<16x384xf32>
    %138 = arith.addf %137, %10 : vector<16x384xf32>
    %c64 = arith.constant 64 : index
    %c0_51 = arith.constant 0 : index
    %139 = vector.load %arg20[%c64, %c0_51] : memref<128x384xf32, #tpu.memory_space<vmem>>, vector<16x384xf32>
    %140 = vector.extract_strided_slice %139 {offsets = [0, 0], sizes = [16, 32], strides = [1, 1]} : vector<16x384xf32> to vector<16x32xf32>
    %141 = vector.extract_strided_slice %138 {offsets = [0, 0], sizes = [16, 32], strides = [1, 1]} : vector<16x384xf32> to vector<16x32xf32>
    %142 = arith.addf %140, %141 : vector<16x32xf32>
    %143 = arith.negf %142 : vector<16x32xf32>
    %144 = math.exp %143 : vector<16x32xf32>
    %cst_52 = arith.constant 1.000000e+00 : f32
    %145 = vector.broadcast %cst_52 : f32 to vector<16x32xf32>
    %146 = arith.addf %145, %144 : vector<16x32xf32>
    %147 = arith.divf %145, %146 : vector<16x32xf32>
    %148 = vector.extract_strided_slice %139 {offsets = [0, 128], sizes = [16, 32], strides = [1, 1]} : vector<16x384xf32> to vector<16x32xf32>
    %149 = vector.extract_strided_slice %138 {offsets = [0, 128], sizes = [16, 32], strides = [1, 1]} : vector<16x384xf32> to vector<16x32xf32>
    %150 = arith.addf %148, %149 : vector<16x32xf32>
    %151 = arith.negf %150 : vector<16x32xf32>
    %152 = math.exp %151 : vector<16x32xf32>
    %cst_53 = arith.constant 1.000000e+00 : f32
    %153 = vector.broadcast %cst_53 : f32 to vector<16x32xf32>
    %154 = arith.addf %153, %152 : vector<16x32xf32>
    %155 = arith.divf %153, %154 : vector<16x32xf32>
    %156 = vector.extract_strided_slice %139 {offsets = [0, 256], sizes = [16, 32], strides = [1, 1]} : vector<16x384xf32> to vector<16x32xf32>
    %157 = vector.extract_strided_slice %138 {offsets = [0, 256], sizes = [16, 32], strides = [1, 1]} : vector<16x384xf32> to vector<16x32xf32>
    %158 = arith.mulf %147, %157 : vector<16x32xf32>
    %159 = arith.addf %156, %158 : vector<16x32xf32>
    %160 = math.tanh %159 : vector<16x32xf32>
    %cst_54 = arith.constant 1.000000e+00 : f32
    %161 = vector.broadcast %cst_54 : f32 to vector<16x32xf32>
    %162 = arith.subf %161, %155 : vector<16x32xf32>
    %163 = arith.mulf %162, %160 : vector<16x32xf32>
    %164 = arith.mulf %155, %134 : vector<16x32xf32>
    %165 = arith.addf %163, %164 : vector<16x32xf32>
    %c64_55 = arith.constant 64 : index
    %c0_56 = arith.constant 0 : index
    %166 = vector.load %arg18[%c64_55, %c0_56] : memref<128x32xf32, #tpu.memory_space<vmem>>, vector<16x32xf32>
    tpu.vector_store %arg18[%c64_55, %c0_56], %165 {strides = array<i32>} : memref<128x32xf32, #tpu.memory_space<vmem>>, vector<16x32xf32>,
    %c0_57 = arith.constant 0 : index
    %c0_58 = arith.constant 0 : index
    %167 = vector.load %arg5[%c0_57, %c0_58] : memref<32x384xf32, #tpu.memory_space<vmem>>, vector<32x384xf32>
    %cst_59 = arith.constant dense<0.000000e+00> : vector<16x384xf32>
    %168 = tpu.matmul %165, %167, %cst_59 {dimension_numbers = #tpu.dot_dimension_numbers<[1], [0], [0], [1], [0, 0, 1, 1], [], []>} : vector<16x32xf32>, vector<32x384xf32>, vector<16x384xf32> -> vector<16x384xf32>
    %169 = arith.addf %168, %10 : vector<16x384xf32>
    %c80 = arith.constant 80 : index
    %c0_60 = arith.constant 0 : index
    %170 = vector.load %arg20[%c80, %c0_60] : memref<128x384xf32, #tpu.memory_space<vmem>>, vector<16x384xf32>
    %171 = vector.extract_strided_slice %170 {offsets = [0, 0], sizes = [16, 32], strides = [1, 1]} : vector<16x384xf32> to vector<16x32xf32>
    %172 = vector.extract_strided_slice %169 {offsets = [0, 0], sizes = [16, 32], strides = [1, 1]} : vector<16x384xf32> to vector<16x32xf32>
    %173 = arith.addf %171, %172 : vector<16x32xf32>
    %174 = arith.negf %173 : vector<16x32xf32>
    %175 = math.exp %174 : vector<16x32xf32>
    %cst_61 = arith.constant 1.000000e+00 : f32
    %176 = vector.broadcast %cst_61 : f32 to vector<16x32xf32>
    %177 = arith.addf %176, %175 : vector<16x32xf32>
    %178 = arith.divf %176, %177 : vector<16x32xf32>
    %179 = vector.extract_strided_slice %170 {offsets = [0, 128], sizes = [16, 32], strides = [1, 1]} : vector<16x384xf32> to vector<16x32xf32>
    %180 = vector.extract_strided_slice %169 {offsets = [0, 128], sizes = [16, 32], strides = [1, 1]} : vector<16x384xf32> to vector<16x32xf32>
    %181 = arith.addf %179, %180 : vector<16x32xf32>
    %182 = arith.negf %181 : vector<16x32xf32>
    %183 = math.exp %182 : vector<16x32xf32>
    %cst_62 = arith.constant 1.000000e+00 : f32
    %184 = vector.broadcast %cst_62 : f32 to vector<16x32xf32>
    %185 = arith.addf %184, %183 : vector<16x32xf32>
    %186 = arith.divf %184, %185 : vector<16x32xf32>
    %187 = vector.extract_strided_slice %170 {offsets = [0, 256], sizes = [16, 32], strides = [1, 1]} : vector<16x384xf32> to vector<16x32xf32>
    %188 = vector.extract_strided_slice %169 {offsets = [0, 256], sizes = [16, 32], strides = [1, 1]} : vector<16x384xf32> to vector<16x32xf32>
    %189 = arith.mulf %178, %188 : vector<16x32xf32>
    %190 = arith.addf %187, %189 : vector<16x32xf32>
    %191 = math.tanh %190 : vector<16x32xf32>
    %cst_63 = arith.constant 1.000000e+00 : f32
    %192 = vector.broadcast %cst_63 : f32 to vector<16x32xf32>
    %193 = arith.subf %192, %186 : vector<16x32xf32>
    %194 = arith.mulf %193, %191 : vector<16x32xf32>
    %195 = arith.mulf %186, %165 : vector<16x32xf32>
    %196 = arith.addf %194, %195 : vector<16x32xf32>
    %c80_64 = arith.constant 80 : index
    %c0_65 = arith.constant 0 : index
    %197 = vector.load %arg18[%c80_64, %c0_65] : memref<128x32xf32, #tpu.memory_space<vmem>>, vector<16x32xf32>
    tpu.vector_store %arg18[%c80_64, %c0_65], %196 {strides = array<i32>} : memref<128x32xf32, #tpu.memory_space<vmem>>, vector<16x32xf32>,
    %c0_66 = arith.constant 0 : index
    %c0_67 = arith.constant 0 : index
    %198 = vector.load %arg5[%c0_66, %c0_67] : memref<32x384xf32, #tpu.memory_space<vmem>>, vector<32x384xf32>
    %cst_68 = arith.constant dense<0.000000e+00> : vector<16x384xf32>
    %199 = tpu.matmul %196, %198, %cst_68 {dimension_numbers = #tpu.dot_dimension_numbers<[1], [0], [0], [1], [0, 0, 1, 1], [], []>} : vector<16x32xf32>, vector<32x384xf32>, vector<16x384xf32> -> vector<16x384xf32>
    %200 = arith.addf %199, %10 : vector<16x384xf32>
    %c96 = arith.constant 96 : index
    %c0_69 = arith.constant 0 : index
    %201 = vector.load %arg20[%c96, %c0_69] : memref<128x384xf32, #tpu.memory_space<vmem>>, vector<16x384xf32>
    %202 = vector.extract_strided_slice %201 {offsets = [0, 0], sizes = [16, 32], strides = [1, 1]} : vector<16x384xf32> to vector<16x32xf32>
    %203 = vector.extract_strided_slice %200 {offsets = [0, 0], sizes = [16, 32], strides = [1, 1]} : vector<16x384xf32> to vector<16x32xf32>
    %204 = arith.addf %202, %203 : vector<16x32xf32>
    %205 = arith.negf %204 : vector<16x32xf32>
    %206 = math.exp %205 : vector<16x32xf32>
    %cst_70 = arith.constant 1.000000e+00 : f32
    %207 = vector.broadcast %cst_70 : f32 to vector<16x32xf32>
    %208 = arith.addf %207, %206 : vector<16x32xf32>
    %209 = arith.divf %207, %208 : vector<16x32xf32>
    %210 = vector.extract_strided_slice %201 {offsets = [0, 128], sizes = [16, 32], strides = [1, 1]} : vector<16x384xf32> to vector<16x32xf32>
    %211 = vector.extract_strided_slice %200 {offsets = [0, 128], sizes = [16, 32], strides = [1, 1]} : vector<16x384xf32> to vector<16x32xf32>
    %212 = arith.addf %210, %211 : vector<16x32xf32>
    %213 = arith.negf %212 : vector<16x32xf32>
    %214 = math.exp %213 : vector<16x32xf32>
    %cst_71 = arith.constant 1.000000e+00 : f32
    %215 = vector.broadcast %cst_71 : f32 to vector<16x32xf32>
    %216 = arith.addf %215, %214 : vector<16x32xf32>
    %217 = arith.divf %215, %216 : vector<16x32xf32>
    %218 = vector.extract_strided_slice %201 {offsets = [0, 256], sizes = [16, 32], strides = [1, 1]} : vector<16x384xf32> to vector<16x32xf32>
    %219 = vector.extract_strided_slice %200 {offsets = [0, 256], sizes = [16, 32], strides = [1, 1]} : vector<16x384xf32> to vector<16x32xf32>
    %220 = arith.mulf %209, %219 : vector<16x32xf32>
    %221 = arith.addf %218, %220 : vector<16x32xf32>
    %222 = math.tanh %221 : vector<16x32xf32>
    %cst_72 = arith.constant 1.000000e+00 : f32
    %223 = vector.broadcast %cst_72 : f32 to vector<16x32xf32>
    %224 = arith.subf %223, %217 : vector<16x32xf32>
    %225 = arith.mulf %224, %222 : vector<16x32xf32>
    %226 = arith.mulf %217, %196 : vector<16x32xf32>
    %227 = arith.addf %225, %226 : vector<16x32xf32>
    %c96_73 = arith.constant 96 : index
    %c0_74 = arith.constant 0 : index
    %228 = vector.load %arg18[%c96_73, %c0_74] : memref<128x32xf32, #tpu.memory_space<vmem>>, vector<16x32xf32>
    tpu.vector_store %arg18[%c96_73, %c0_74], %227 {strides = array<i32>} : memref<128x32xf32, #tpu.memory_space<vmem>>, vector<16x32xf32>,
    %c0_75 = arith.constant 0 : index
    %c0_76 = arith.constant 0 : index
    %229 = vector.load %arg5[%c0_75, %c0_76] : memref<32x384xf32, #tpu.memory_space<vmem>>, vector<32x384xf32>
    %cst_77 = arith.constant dense<0.000000e+00> : vector<16x384xf32>
    %230 = tpu.matmul %227, %229, %cst_77 {dimension_numbers = #tpu.dot_dimension_numbers<[1], [0], [0], [1], [0, 0, 1, 1], [], []>} : vector<16x32xf32>, vector<32x384xf32>, vector<16x384xf32> -> vector<16x384xf32>
    %231 = arith.addf %230, %10 : vector<16x384xf32>
    %c112 = arith.constant 112 : index
    %c0_78 = arith.constant 0 : index
    %232 = vector.load %arg20[%c112, %c0_78] : memref<128x384xf32, #tpu.memory_space<vmem>>, vector<16x384xf32>
    %233 = vector.extract_strided_slice %232 {offsets = [0, 0], sizes = [16, 32], strides = [1, 1]} : vector<16x384xf32> to vector<16x32xf32>
    %234 = vector.extract_strided_slice %231 {offsets = [0, 0], sizes = [16, 32], strides = [1, 1]} : vector<16x384xf32> to vector<16x32xf32>
    %235 = arith.addf %233, %234 : vector<16x32xf32>
    %236 = arith.negf %235 : vector<16x32xf32>
    %237 = math.exp %236 : vector<16x32xf32>
    %cst_79 = arith.constant 1.000000e+00 : f32
    %238 = vector.broadcast %cst_79 : f32 to vector<16x32xf32>
    %239 = arith.addf %238, %237 : vector<16x32xf32>
    %240 = arith.divf %238, %239 : vector<16x32xf32>
    %241 = vector.extract_strided_slice %232 {offsets = [0, 128], sizes = [16, 32], strides = [1, 1]} : vector<16x384xf32> to vector<16x32xf32>
    %242 = vector.extract_strided_slice %231 {offsets = [0, 128], sizes = [16, 32], strides = [1, 1]} : vector<16x384xf32> to vector<16x32xf32>
    %243 = arith.addf %241, %242 : vector<16x32xf32>
    %244 = arith.negf %243 : vector<16x32xf32>
    %245 = math.exp %244 : vector<16x32xf32>
    %cst_80 = arith.constant 1.000000e+00 : f32
    %246 = vector.broadcast %cst_80 : f32 to vector<16x32xf32>
    %247 = arith.addf %246, %245 : vector<16x32xf32>
    %248 = arith.divf %246, %247 : vector<16x32xf32>
    %249 = vector.extract_strided_slice %232 {offsets = [0, 256], sizes = [16, 32], strides = [1, 1]} : vector<16x384xf32> to vector<16x32xf32>
    %250 = vector.extract_strided_slice %231 {offsets = [0, 256], sizes = [16, 32], strides = [1, 1]} : vector<16x384xf32> to vector<16x32xf32>
    %251 = arith.mulf %240, %250 : vector<16x32xf32>
    %252 = arith.addf %249, %251 : vector<16x32xf32>
    %253 = math.tanh %252 : vector<16x32xf32>
    %cst_81 = arith.constant 1.000000e+00 : f32
    %254 = vector.broadcast %cst_81 : f32 to vector<16x32xf32>
    %255 = arith.subf %254, %248 : vector<16x32xf32>
    %256 = arith.mulf %255, %253 : vector<16x32xf32>
    %257 = arith.mulf %248, %227 : vector<16x32xf32>
    %258 = arith.addf %256, %257 : vector<16x32xf32>
    %c112_82 = arith.constant 112 : index
    %c0_83 = arith.constant 0 : index
    %259 = vector.load %arg18[%c112_82, %c0_83] : memref<128x32xf32, #tpu.memory_space<vmem>>, vector<16x32xf32>
    tpu.vector_store %arg18[%c112_82, %c0_83], %258 {strides = array<i32>} : memref<128x32xf32, #tpu.memory_space<vmem>>, vector<16x32xf32>,
    %c0_84 = arith.constant 0 : index
    %c0_85 = arith.constant 0 : index
    %260 = vector.load %arg18[%c0_84, %c0_85] : memref<128x32xf32, #tpu.memory_space<vmem>>, vector<128x32xf32>
    %c0_86 = arith.constant 0 : index
    %c0_87 = arith.constant 0 : index
    %261 = vector.load %arg13[%c0_86, %c0_87] : memref<32x32xf32, #tpu.memory_space<vmem>>, vector<32x32xf32>
    %cst_88 = arith.constant dense<0.000000e+00> : vector<128x32xf32>
    %262 = tpu.matmul %260, %261, %cst_88 {dimension_numbers = #tpu.dot_dimension_numbers<[1], [0], [0], [1], [0, 0, 1, 1], [], []>} : vector<128x32xf32>, vector<32x32xf32>, vector<128x32xf32> -> vector<128x32xf32>
    %c0_89 = arith.constant 0 : index
    %c0_90 = arith.constant 0 : index
    %263 = vector.load %arg14[%c0_89, %c0_90] : memref<1x32xf32, #tpu.memory_space<vmem>>, vector<1x32xf32>
    %264 = vector.broadcast %263 : vector<1x32xf32> to vector<128x32xf32>
    %265 = arith.addf %262, %264 : vector<128x32xf32>
    %c0_91 = arith.constant 0 : index
    %c0_92 = arith.constant 0 : index
    %266 = vector.load %arg19[%c0_91, %c0_92] : memref<128x32xf32, #tpu.memory_space<vmem>>, vector<128x32xf32>
    tpu.vector_store %arg19[%c0_91, %c0_92], %265 {strides = array<i32>} : memref<128x32xf32, #tpu.memory_space<vmem>>, vector<128x32xf32>,
    %c0_93 = arith.constant 0 : index
    %c0_94 = arith.constant 0 : index
    %c0_95 = arith.constant 0 : index
    %267 = vector.load %arg2[%c0_93, %c0_94, %c0_95] : memref<1x128x32xf32, #tpu.memory_space<vmem>>, vector<1x128x32xf32>
    %268 = vector.shape_cast %267 : vector<1x128x32xf32> to vector<128x32xf32>
    %c0_96 = arith.constant 0 : index
    %c0_97 = arith.constant 0 : index
    %269 = vector.load %arg8[%c0_96, %c0_97] : memref<32x384xf32, #tpu.memory_space<vmem>>, vector<32x384xf32>
    %cst_98 = arith.constant dense<0.000000e+00> : vector<128x384xf32>
    %270 = tpu.matmul %268, %269, %cst_98 {dimension_numbers = #tpu.dot_dimension_numbers<[1], [0], [0], [1], [0, 0, 1, 1], [], []>} : vector<128x32xf32>, vector<32x384xf32>, vector<128x384xf32> -> vector<128x384xf32>
    %c0_99 = arith.constant 0 : index
    %c0_100 = arith.constant 0 : index
    %271 = vector.load %arg11[%c0_99, %c0_100] : memref<1x384xf32, #tpu.memory_space<vmem>>, vector<1x384xf32>
    %272 = vector.broadcast %271 : vector<1x384xf32> to vector<128x384xf32>
    %273 = arith.addf %270, %272 : vector<128x384xf32>
    %c0_101 = arith.constant 0 : index
    %c0_102 = arith.constant 0 : index
    %274 = vector.load %arg21[%c0_101, %c0_102] : memref<128x384xf32, #tpu.memory_space<vmem>>, vector<128x384xf32>
    tpu.vector_store %arg21[%c0_101, %c0_102], %273 {strides = array<i32>} : memref<128x384xf32, #tpu.memory_space<vmem>>, vector<128x384xf32>,
    %c0_103 = arith.constant 0 : index
    %c0_104 = arith.constant 0 : index
    %275 = vector.load %arg12[%c0_103, %c0_104] : memref<1x384xf32, #tpu.memory_space<vmem>>, vector<1x384xf32>
    %276 = vector.shape_cast %275 : vector<1x384xf32> to vector<1x384xf32>
    %277 = vector.broadcast %276 : vector<1x384xf32> to vector<16x384xf32>
    %c0_105 = arith.constant 0 : index
    %c0_106 = arith.constant 0 : index
    %278 = vector.load %arg16[%c0_105, %c0_106] : memref<1x16xf32, #tpu.memory_space<vmem>>, vector<1x16xf32>
    %279 = vector.shape_cast %278 : vector<1x16xf32> to vector<1x16xf32>
    %280 = vector.broadcast %279 : vector<1x16xf32> to vector<16x16xf32>
    %cst_107 = arith.constant 0.000000e+00 : f32
    %281 = vector.broadcast %cst_107 : f32 to vector<16x32xf32>
    %c0_108 = arith.constant 0 : index
    %c0_109 = arith.constant 0 : index
    %282 = vector.load %arg21[%c0_108, %c0_109] : memref<128x384xf32, #tpu.memory_space<vmem>>, vector<16x384xf32>
    %c0_110 = arith.constant 0 : index
    %c0_111 = arith.constant 0 : index
    %283 = vector.load %arg9[%c0_110, %c0_111] : memref<32x384xf32, #tpu.memory_space<vmem>>, vector<32x384xf32>
    %cst_112 = arith.constant dense<0.000000e+00> : vector<16x384xf32>
    %284 = tpu.matmul %281, %283, %cst_112 {dimension_numbers = #tpu.dot_dimension_numbers<[1], [0], [0], [1], [0, 0, 1, 1], [], []>} : vector<16x32xf32>, vector<32x384xf32>, vector<16x384xf32> -> vector<16x384xf32>
    %285 = arith.addf %282, %284 : vector<16x384xf32>
    %c0_113 = arith.constant 0 : index
    %c0_114 = arith.constant 0 : index
    %286 = vector.load %arg10[%c0_113, %c0_114] : memref<32x384xf32, #tpu.memory_space<vmem>>, vector<32x384xf32>
    %cst_115 = arith.constant dense<0.000000e+00> : vector<16x384xf32>
    %287 = tpu.matmul %258, %286, %cst_115 {dimension_numbers = #tpu.dot_dimension_numbers<[1], [0], [0], [1], [0, 0, 1, 1], [], []>} : vector<16x32xf32>, vector<32x384xf32>, vector<16x384xf32> -> vector<16x384xf32>
    %288 = arith.addf %287, %277 : vector<16x384xf32>
    %289 = vector.extract_strided_slice %285 {offsets = [0, 0], sizes = [16, 32], strides = [1, 1]} : vector<16x384xf32> to vector<16x32xf32>
    %290 = vector.extract_strided_slice %288 {offsets = [0, 0], sizes = [16, 32], strides = [1, 1]} : vector<16x384xf32> to vector<16x32xf32>
    %291 = arith.addf %289, %290 : vector<16x32xf32>
    %292 = arith.negf %291 : vector<16x32xf32>
    %293 = math.exp %292 : vector<16x32xf32>
    %cst_116 = arith.constant 1.000000e+00 : f32
    %294 = vector.broadcast %cst_116 : f32 to vector<16x32xf32>
    %295 = arith.addf %294, %293 : vector<16x32xf32>
    %296 = arith.divf %294, %295 : vector<16x32xf32>
    %297 = vector.extract_strided_slice %285 {offsets = [0, 128], sizes = [16, 32], strides = [1, 1]} : vector<16x384xf32> to vector<16x32xf32>
    %298 = vector.extract_strided_slice %288 {offsets = [0, 128], sizes = [16, 32], strides = [1, 1]} : vector<16x384xf32> to vector<16x32xf32>
    %299 = arith.addf %297, %298 : vector<16x32xf32>
    %300 = arith.negf %299 : vector<16x32xf32>
    %301 = math.exp %300 : vector<16x32xf32>
    %cst_117 = arith.constant 1.000000e+00 : f32
    %302 = vector.broadcast %cst_117 : f32 to vector<16x32xf32>
    %303 = arith.addf %302, %301 : vector<16x32xf32>
    %304 = arith.divf %302, %303 : vector<16x32xf32>
    %305 = vector.extract_strided_slice %285 {offsets = [0, 256], sizes = [16, 32], strides = [1, 1]} : vector<16x384xf32> to vector<16x32xf32>
    %306 = vector.extract_strided_slice %288 {offsets = [0, 256], sizes = [16, 32], strides = [1, 1]} : vector<16x384xf32> to vector<16x32xf32>
    %307 = arith.mulf %296, %306 : vector<16x32xf32>
    %308 = arith.addf %305, %307 : vector<16x32xf32>
    %309 = math.tanh %308 : vector<16x32xf32>
    %cst_118 = arith.constant 1.000000e+00 : f32
    %310 = vector.broadcast %cst_118 : f32 to vector<16x32xf32>
    %311 = arith.subf %310, %304 : vector<16x32xf32>
    %312 = arith.mulf %311, %309 : vector<16x32xf32>
    %313 = arith.mulf %304, %258 : vector<16x32xf32>
    %314 = arith.addf %312, %313 : vector<16x32xf32>
    %c0_119 = arith.constant 0 : index
    %c0_120 = arith.constant 0 : index
    %315 = vector.load %arg19[%c0_119, %c0_120] : memref<128x32xf32, #tpu.memory_space<vmem>>, vector<128x32xf32>
    %cst_121 = arith.constant dense<0.000000e+00> : vector<16x128xf32>
    %316 = tpu.matmul %314, %315, %cst_121 {dimension_numbers = #tpu.dot_dimension_numbers<[1], [1], [0], [0], [0, 0, 1, 0], [], []>} : vector<16x32xf32>, vector<128x32xf32>, vector<16x128xf32> -> vector<16x128xf32>
    %c0_122 = arith.constant 0 : index
    %c0_123 = arith.constant 0 : index
    %317 = vector.load %arg3[%c0_122, %c0_123] : memref<16x128xf32, #tpu.memory_space<vmem>>, vector<16x128xf32>
    %318 = arith.addf %316, %317 : vector<16x128xf32>
    %cst_124 = arith.constant dense<0xFF800000> : vector<16xf32>
    %319 = vector.multi_reduction <maximumf>, %318, %cst_124 [1] : vector<16x128xf32> to vector<16xf32>
    %320 = vector.shape_cast %319 : vector<16xf32> to vector<16x1xf32>
    %321 = vector.broadcast %320 : vector<16x1xf32> to vector<16x128xf32>
    %322 = arith.subf %318, %321 : vector<16x128xf32>
    %323 = math.exp %322 : vector<16x128xf32>
    %cst_125 = arith.constant dense<0.000000e+00> : vector<16xf32>
    %324 = vector.multi_reduction <add>, %323, %cst_125 [1] : vector<16x128xf32> to vector<16xf32>
    %325 = vector.shape_cast %324 : vector<16xf32> to vector<16x1xf32>
    %326 = tpu.reciprocal %325 {approx = true} : vector<16x1xf32> -> vector<16x1xf32>
    %327 = vector.broadcast %326 : vector<16x1xf32> to vector<16x128xf32>
    %328 = arith.mulf %323, %327 : vector<16x128xf32>
    %c0_126 = arith.constant 0 : index
    %c0_127 = arith.constant 0 : index
    %329 = vector.load %arg18[%c0_126, %c0_127] : memref<128x32xf32, #tpu.memory_space<vmem>>, vector<128x32xf32>
    %cst_128 = arith.constant dense<0.000000e+00> : vector<16x32xf32>
    %330 = tpu.matmul %328, %329, %cst_128 {dimension_numbers = #tpu.dot_dimension_numbers<[1], [0], [0], [1], [0, 0, 1, 1], [], []>} : vector<16x128xf32>, vector<128x32xf32>, vector<16x32xf32> -> vector<16x32xf32>
    %331 = tpu.concatenate %314, %330 in 1 : vector<16x32xf32>, vector<16x32xf32> -> vector<16x64xf32>
    %c0_129 = arith.constant 0 : index
    %c0_130 = arith.constant 0 : index
    %332 = vector.load %arg15[%c0_129, %c0_130] : memref<64x16xf32, #tpu.memory_space<vmem>>, vector<64x16xf32>
    %cst_131 = arith.constant dense<0.000000e+00> : vector<16x16xf32>
    %333 = tpu.matmul %331, %332, %cst_131 {dimension_numbers = #tpu.dot_dimension_numbers<[1], [0], [0], [1], [0, 0, 1, 1], [], []>} : vector<16x64xf32>, vector<64x16xf32>, vector<16x16xf32> -> vector<16x16xf32>
    %334 = arith.addf %333, %280 : vector<16x16xf32>
    %cst_132 = arith.constant dense<0xFF800000> : vector<16xf32>
    %335 = vector.multi_reduction <maximumf>, %334, %cst_132 [1] : vector<16x16xf32> to vector<16xf32>
    %336 = vector.shape_cast %335 : vector<16xf32> to vector<16x1xf32>
    %337 = vector.broadcast %336 : vector<16x1xf32> to vector<16x16xf32>
    %338 = arith.subf %334, %337 : vector<16x16xf32>
    %339 = math.exp %338 : vector<16x16xf32>
    %cst_133 = arith.constant dense<0.000000e+00> : vector<16xf32>
    %340 = vector.multi_reduction <add>, %339, %cst_133 [1] : vector<16x16xf32> to vector<16xf32>
    %341 = vector.shape_cast %340 : vector<16xf32> to vector<16x1xf32>
    %342 = math.log %341 : vector<16x1xf32>
    %343 = arith.addf %336, %342 : vector<16x1xf32>
    %344 = vector.broadcast %343 : vector<16x1xf32> to vector<16x16xf32>
    %345 = arith.subf %334, %344 : vector<16x16xf32>
    %c0_134 = arith.constant 0 : index
    %c0_135 = arith.constant 0 : index
    %c0_136 = arith.constant 0 : index
    %346 = vector.load %arg17[%c0_134, %c0_135, %c0_136] : memref<1x16x128xf32, #tpu.memory_space<vmem>>, vector<1x16x16xf32>
    %347 = vector.shape_cast %346 : vector<1x16x16xf32> to vector<16x16xf32>
    %348 = vector.shape_cast %345 : vector<16x16xf32> to vector<1x16x16xf32>
    tpu.vector_store %arg17[%c0_134, %c0_135, %c0_136], %348 {strides = array<i32>} : memref<1x16x128xf32, #tpu.memory_space<vmem>>, vector<1x16x16xf32>,
    %c16_137 = arith.constant 16 : index
    %c0_138 = arith.constant 0 : index
    %349 = vector.load %arg21[%c16_137, %c0_138] : memref<128x384xf32, #tpu.memory_space<vmem>>, vector<16x384xf32>
    %c0_139 = arith.constant 0 : index
    %c0_140 = arith.constant 0 : index
    %350 = vector.load %arg9[%c0_139, %c0_140] : memref<32x384xf32, #tpu.memory_space<vmem>>, vector<32x384xf32>
    %cst_141 = arith.constant dense<0.000000e+00> : vector<16x384xf32>
    %351 = tpu.matmul %330, %350, %cst_141 {dimension_numbers = #tpu.dot_dimension_numbers<[1], [0], [0], [1], [0, 0, 1, 1], [], []>} : vector<16x32xf32>, vector<32x384xf32>, vector<16x384xf32> -> vector<16x384xf32>
    %352 = arith.addf %349, %351 : vector<16x384xf32>
    %c0_142 = arith.constant 0 : index
    %c0_143 = arith.constant 0 : index
    %353 = vector.load %arg10[%c0_142, %c0_143] : memref<32x384xf32, #tpu.memory_space<vmem>>, vector<32x384xf32>
    %cst_144 = arith.constant dense<0.000000e+00> : vector<16x384xf32>
    %354 = tpu.matmul %314, %353, %cst_144 {dimension_numbers = #tpu.dot_dimension_numbers<[1], [0], [0], [1], [0, 0, 1, 1], [], []>} : vector<16x32xf32>, vector<32x384xf32>, vector<16x384xf32> -> vector<16x384xf32>
    %355 = arith.addf %354, %277 : vector<16x384xf32>
    %356 = vector.extract_strided_slice %352 {offsets = [0, 0], sizes = [16, 32], strides = [1, 1]} : vector<16x384xf32> to vector<16x32xf32>
    %357 = vector.extract_strided_slice %355 {offsets = [0, 0], sizes = [16, 32], strides = [1, 1]} : vector<16x384xf32> to vector<16x32xf32>
    %358 = arith.addf %356, %357 : vector<16x32xf32>
    %359 = arith.negf %358 : vector<16x32xf32>
    %360 = math.exp %359 : vector<16x32xf32>
    %cst_145 = arith.constant 1.000000e+00 : f32
    %361 = vector.broadcast %cst_145 : f32 to vector<16x32xf32>
    %362 = arith.addf %361, %360 : vector<16x32xf32>
    %363 = arith.divf %361, %362 : vector<16x32xf32>
    %364 = vector.extract_strided_slice %352 {offsets = [0, 128], sizes = [16, 32], strides = [1, 1]} : vector<16x384xf32> to vector<16x32xf32>
    %365 = vector.extract_strided_slice %355 {offsets = [0, 128], sizes = [16, 32], strides = [1, 1]} : vector<16x384xf32> to vector<16x32xf32>
    %366 = arith.addf %364, %365 : vector<16x32xf32>
    %367 = arith.negf %366 : vector<16x32xf32>
    %368 = math.exp %367 : vector<16x32xf32>
    %cst_146 = arith.constant 1.000000e+00 : f32
    %369 = vector.broadcast %cst_146 : f32 to vector<16x32xf32>
    %370 = arith.addf %369, %368 : vector<16x32xf32>
    %371 = arith.divf %369, %370 : vector<16x32xf32>
    %372 = vector.extract_strided_slice %352 {offsets = [0, 256], sizes = [16, 32], strides = [1, 1]} : vector<16x384xf32> to vector<16x32xf32>
    %373 = vector.extract_strided_slice %355 {offsets = [0, 256], sizes = [16, 32], strides = [1, 1]} : vector<16x384xf32> to vector<16x32xf32>
    %374 = arith.mulf %363, %373 : vector<16x32xf32>
    %375 = arith.addf %372, %374 : vector<16x32xf32>
    %376 = math.tanh %375 : vector<16x32xf32>
    %cst_147 = arith.constant 1.000000e+00 : f32
    %377 = vector.broadcast %cst_147 : f32 to vector<16x32xf32>
    %378 = arith.subf %377, %371 : vector<16x32xf32>
    %379 = arith.mulf %378, %376 : vector<16x32xf32>
    %380 = arith.mulf %371, %314 : vector<16x32xf32>
    %381 = arith.addf %379, %380 : vector<16x32xf32>
    %c0_148 = arith.constant 0 : index
    %c0_149 = arith.constant 0 : index
    %382 = vector.load %arg19[%c0_148, %c0_149] : memref<128x32xf32, #tpu.memory_space<vmem>>, vector<128x32xf32>
    %cst_150 = arith.constant dense<0.000000e+00> : vector<16x128xf32>
    %383 = tpu.matmul %381, %382, %cst_150 {dimension_numbers = #tpu.dot_dimension_numbers<[1], [1], [0], [0], [0, 0, 1, 0], [], []>} : vector<16x32xf32>, vector<128x32xf32>, vector<16x128xf32> -> vector<16x128xf32>
    %c0_151 = arith.constant 0 : index
    %c0_152 = arith.constant 0 : index
    %384 = vector.load %arg3[%c0_151, %c0_152] : memref<16x128xf32, #tpu.memory_space<vmem>>, vector<16x128xf32>
    %385 = arith.addf %383, %384 : vector<16x128xf32>
    %cst_153 = arith.constant dense<0xFF800000> : vector<16xf32>
    %386 = vector.multi_reduction <maximumf>, %385, %cst_153 [1] : vector<16x128xf32> to vector<16xf32>
    %387 = vector.shape_cast %386 : vector<16xf32> to vector<16x1xf32>
    %388 = vector.broadcast %387 : vector<16x1xf32> to vector<16x128xf32>
    %389 = arith.subf %385, %388 : vector<16x128xf32>
    %390 = math.exp %389 : vector<16x128xf32>
    %cst_154 = arith.constant dense<0.000000e+00> : vector<16xf32>
    %391 = vector.multi_reduction <add>, %390, %cst_154 [1] : vector<16x128xf32> to vector<16xf32>
    %392 = vector.shape_cast %391 : vector<16xf32> to vector<16x1xf32>
    %393 = tpu.reciprocal %392 {approx = true} : vector<16x1xf32> -> vector<16x1xf32>
    %394 = vector.broadcast %393 : vector<16x1xf32> to vector<16x128xf32>
    %395 = arith.mulf %390, %394 : vector<16x128xf32>
    %c0_155 = arith.constant 0 : index
    %c0_156 = arith.constant 0 : index
    %396 = vector.load %arg18[%c0_155, %c0_156] : memref<128x32xf32, #tpu.memory_space<vmem>>, vector<128x32xf32>
    %cst_157 = arith.constant dense<0.000000e+00> : vector<16x32xf32>
    %397 = tpu.matmul %395, %396, %cst_157 {dimension_numbers = #tpu.dot_dimension_numbers<[1], [0], [0], [1], [0, 0, 1, 1], [], []>} : vector<16x128xf32>, vector<128x32xf32>, vector<16x32xf32> -> vector<16x32xf32>
    %398 = tpu.concatenate %381, %397 in 1 : vector<16x32xf32>, vector<16x32xf32> -> vector<16x64xf32>
    %c0_158 = arith.constant 0 : index
    %c0_159 = arith.constant 0 : index
    %399 = vector.load %arg15[%c0_158, %c0_159] : memref<64x16xf32, #tpu.memory_space<vmem>>, vector<64x16xf32>
    %cst_160 = arith.constant dense<0.000000e+00> : vector<16x16xf32>
    %400 = tpu.matmul %398, %399, %cst_160 {dimension_numbers = #tpu.dot_dimension_numbers<[1], [0], [0], [1], [0, 0, 1, 1], [], []>} : vector<16x64xf32>, vector<64x16xf32>, vector<16x16xf32> -> vector<16x16xf32>
    %401 = arith.addf %400, %280 : vector<16x16xf32>
    %cst_161 = arith.constant dense<0xFF800000> : vector<16xf32>
    %402 = vector.multi_reduction <maximumf>, %401, %cst_161 [1] : vector<16x16xf32> to vector<16xf32>
    %403 = vector.shape_cast %402 : vector<16xf32> to vector<16x1xf32>
    %404 = vector.broadcast %403 : vector<16x1xf32> to vector<16x16xf32>
    %405 = arith.subf %401, %404 : vector<16x16xf32>
    %406 = math.exp %405 : vector<16x16xf32>
    %cst_162 = arith.constant dense<0.000000e+00> : vector<16xf32>
    %407 = vector.multi_reduction <add>, %406, %cst_162 [1] : vector<16x16xf32> to vector<16xf32>
    %408 = vector.shape_cast %407 : vector<16xf32> to vector<16x1xf32>
    %409 = math.log %408 : vector<16x1xf32>
    %410 = arith.addf %403, %409 : vector<16x1xf32>
    %411 = vector.broadcast %410 : vector<16x1xf32> to vector<16x16xf32>
    %412 = arith.subf %401, %411 : vector<16x16xf32>
    %c0_163 = arith.constant 0 : index
    %c0_164 = arith.constant 0 : index
    %c16_165 = arith.constant 16 : index
    %413 = vector.load %arg17[%c0_163, %c0_164, %c16_165] : memref<1x16x128xf32, #tpu.memory_space<vmem>>, vector<1x16x16xf32>
    %414 = vector.shape_cast %413 : vector<1x16x16xf32> to vector<16x16xf32>
    %415 = vector.shape_cast %412 : vector<16x16xf32> to vector<1x16x16xf32>
    tpu.vector_store %arg17[%c0_163, %c0_164, %c16_165], %415 {strides = array<i32>} : memref<1x16x128xf32, #tpu.memory_space<vmem>>, vector<1x16x16xf32>,
    %c32_166 = arith.constant 32 : index
    %c0_167 = arith.constant 0 : index
    %416 = vector.load %arg21[%c32_166, %c0_167] : memref<128x384xf32, #tpu.memory_space<vmem>>, vector<16x384xf32>
    %c0_168 = arith.constant 0 : index
    %c0_169 = arith.constant 0 : index
    %417 = vector.load %arg9[%c0_168, %c0_169] : memref<32x384xf32, #tpu.memory_space<vmem>>, vector<32x384xf32>
    %cst_170 = arith.constant dense<0.000000e+00> : vector<16x384xf32>
    %418 = tpu.matmul %397, %417, %cst_170 {dimension_numbers = #tpu.dot_dimension_numbers<[1], [0], [0], [1], [0, 0, 1, 1], [], []>} : vector<16x32xf32>, vector<32x384xf32>, vector<16x384xf32> -> vector<16x384xf32>
    %419 = arith.addf %416, %418 : vector<16x384xf32>
    %c0_171 = arith.constant 0 : index
    %c0_172 = arith.constant 0 : index
    %420 = vector.load %arg10[%c0_171, %c0_172] : memref<32x384xf32, #tpu.memory_space<vmem>>, vector<32x384xf32>
    %cst_173 = arith.constant dense<0.000000e+00> : vector<16x384xf32>
    %421 = tpu.matmul %381, %420, %cst_173 {dimension_numbers = #tpu.dot_dimension_numbers<[1], [0], [0], [1], [0, 0, 1, 1], [], []>} : vector<16x32xf32>, vector<32x384xf32>, vector<16x384xf32> -> vector<16x384xf32>
    %422 = arith.addf %421, %277 : vector<16x384xf32>
    %423 = vector.extract_strided_slice %419 {offsets = [0, 0], sizes = [16, 32], strides = [1, 1]} : vector<16x384xf32> to vector<16x32xf32>
    %424 = vector.extract_strided_slice %422 {offsets = [0, 0], sizes = [16, 32], strides = [1, 1]} : vector<16x384xf32> to vector<16x32xf32>
    %425 = arith.addf %423, %424 : vector<16x32xf32>
    %426 = arith.negf %425 : vector<16x32xf32>
    %427 = math.exp %426 : vector<16x32xf32>
    %cst_174 = arith.constant 1.000000e+00 : f32
    %428 = vector.broadcast %cst_174 : f32 to vector<16x32xf32>
    %429 = arith.addf %428, %427 : vector<16x32xf32>
    %430 = arith.divf %428, %429 : vector<16x32xf32>
    %431 = vector.extract_strided_slice %419 {offsets = [0, 128], sizes = [16, 32], strides = [1, 1]} : vector<16x384xf32> to vector<16x32xf32>
    %432 = vector.extract_strided_slice %422 {offsets = [0, 128], sizes = [16, 32], strides = [1, 1]} : vector<16x384xf32> to vector<16x32xf32>
    %433 = arith.addf %431, %432 : vector<16x32xf32>
    %434 = arith.negf %433 : vector<16x32xf32>
    %435 = math.exp %434 : vector<16x32xf32>
    %cst_175 = arith.constant 1.000000e+00 : f32
    %436 = vector.broadcast %cst_175 : f32 to vector<16x32xf32>
    %437 = arith.addf %436, %435 : vector<16x32xf32>
    %438 = arith.divf %436, %437 : vector<16x32xf32>
    %439 = vector.extract_strided_slice %419 {offsets = [0, 256], sizes = [16, 32], strides = [1, 1]} : vector<16x384xf32> to vector<16x32xf32>
    %440 = vector.extract_strided_slice %422 {offsets = [0, 256], sizes = [16, 32], strides = [1, 1]} : vector<16x384xf32> to vector<16x32xf32>
    %441 = arith.mulf %430, %440 : vector<16x32xf32>
    %442 = arith.addf %439, %441 : vector<16x32xf32>
    %443 = math.tanh %442 : vector<16x32xf32>
    %cst_176 = arith.constant 1.000000e+00 : f32
    %444 = vector.broadcast %cst_176 : f32 to vector<16x32xf32>
    %445 = arith.subf %444, %438 : vector<16x32xf32>
    %446 = arith.mulf %445, %443 : vector<16x32xf32>
    %447 = arith.mulf %438, %381 : vector<16x32xf32>
    %448 = arith.addf %446, %447 : vector<16x32xf32>
    %c0_177 = arith.constant 0 : index
    %c0_178 = arith.constant 0 : index
    %449 = vector.load %arg19[%c0_177, %c0_178] : memref<128x32xf32, #tpu.memory_space<vmem>>, vector<128x32xf32>
    %cst_179 = arith.constant dense<0.000000e+00> : vector<16x128xf32>
    %450 = tpu.matmul %448, %449, %cst_179 {dimension_numbers = #tpu.dot_dimension_numbers<[1], [1], [0], [0], [0, 0, 1, 0], [], []>} : vector<16x32xf32>, vector<128x32xf32>, vector<16x128xf32> -> vector<16x128xf32>
    %c0_180 = arith.constant 0 : index
    %c0_181 = arith.constant 0 : index
    %451 = vector.load %arg3[%c0_180, %c0_181] : memref<16x128xf32, #tpu.memory_space<vmem>>, vector<16x128xf32>
    %452 = arith.addf %450, %451 : vector<16x128xf32>
    %cst_182 = arith.constant dense<0xFF800000> : vector<16xf32>
    %453 = vector.multi_reduction <maximumf>, %452, %cst_182 [1] : vector<16x128xf32> to vector<16xf32>
    %454 = vector.shape_cast %453 : vector<16xf32> to vector<16x1xf32>
    %455 = vector.broadcast %454 : vector<16x1xf32> to vector<16x128xf32>
    %456 = arith.subf %452, %455 : vector<16x128xf32>
    %457 = math.exp %456 : vector<16x128xf32>
    %cst_183 = arith.constant dense<0.000000e+00> : vector<16xf32>
    %458 = vector.multi_reduction <add>, %457, %cst_183 [1] : vector<16x128xf32> to vector<16xf32>
    %459 = vector.shape_cast %458 : vector<16xf32> to vector<16x1xf32>
    %460 = tpu.reciprocal %459 {approx = true} : vector<16x1xf32> -> vector<16x1xf32>
    %461 = vector.broadcast %460 : vector<16x1xf32> to vector<16x128xf32>
    %462 = arith.mulf %457, %461 : vector<16x128xf32>
    %c0_184 = arith.constant 0 : index
    %c0_185 = arith.constant 0 : index
    %463 = vector.load %arg18[%c0_184, %c0_185] : memref<128x32xf32, #tpu.memory_space<vmem>>, vector<128x32xf32>
    %cst_186 = arith.constant dense<0.000000e+00> : vector<16x32xf32>
    %464 = tpu.matmul %462, %463, %cst_186 {dimension_numbers = #tpu.dot_dimension_numbers<[1], [0], [0], [1], [0, 0, 1, 1], [], []>} : vector<16x128xf32>, vector<128x32xf32>, vector<16x32xf32> -> vector<16x32xf32>
    %465 = tpu.concatenate %448, %464 in 1 : vector<16x32xf32>, vector<16x32xf32> -> vector<16x64xf32>
    %c0_187 = arith.constant 0 : index
    %c0_188 = arith.constant 0 : index
    %466 = vector.load %arg15[%c0_187, %c0_188] : memref<64x16xf32, #tpu.memory_space<vmem>>, vector<64x16xf32>
    %cst_189 = arith.constant dense<0.000000e+00> : vector<16x16xf32>
    %467 = tpu.matmul %465, %466, %cst_189 {dimension_numbers = #tpu.dot_dimension_numbers<[1], [0], [0], [1], [0, 0, 1, 1], [], []>} : vector<16x64xf32>, vector<64x16xf32>, vector<16x16xf32> -> vector<16x16xf32>
    %468 = arith.addf %467, %280 : vector<16x16xf32>
    %cst_190 = arith.constant dense<0xFF800000> : vector<16xf32>
    %469 = vector.multi_reduction <maximumf>, %468, %cst_190 [1] : vector<16x16xf32> to vector<16xf32>
    %470 = vector.shape_cast %469 : vector<16xf32> to vector<16x1xf32>
    %471 = vector.broadcast %470 : vector<16x1xf32> to vector<16x16xf32>
    %472 = arith.subf %468, %471 : vector<16x16xf32>
    %473 = math.exp %472 : vector<16x16xf32>
    %cst_191 = arith.constant dense<0.000000e+00> : vector<16xf32>
    %474 = vector.multi_reduction <add>, %473, %cst_191 [1] : vector<16x16xf32> to vector<16xf32>
    %475 = vector.shape_cast %474 : vector<16xf32> to vector<16x1xf32>
    %476 = math.log %475 : vector<16x1xf32>
    %477 = arith.addf %470, %476 : vector<16x1xf32>
    %478 = vector.broadcast %477 : vector<16x1xf32> to vector<16x16xf32>
    %479 = arith.subf %468, %478 : vector<16x16xf32>
    %c0_192 = arith.constant 0 : index
    %c0_193 = arith.constant 0 : index
    %c32_194 = arith.constant 32 : index
    %480 = vector.load %arg17[%c0_192, %c0_193, %c32_194] : memref<1x16x128xf32, #tpu.memory_space<vmem>>, vector<1x16x16xf32>
    %481 = vector.shape_cast %480 : vector<1x16x16xf32> to vector<16x16xf32>
    %482 = vector.shape_cast %479 : vector<16x16xf32> to vector<1x16x16xf32>
    tpu.vector_store %arg17[%c0_192, %c0_193, %c32_194], %482 {strides = array<i32>} : memref<1x16x128xf32, #tpu.memory_space<vmem>>, vector<1x16x16xf32>,
    %c48_195 = arith.constant 48 : index
    %c0_196 = arith.constant 0 : index
    %483 = vector.load %arg21[%c48_195, %c0_196] : memref<128x384xf32, #tpu.memory_space<vmem>>, vector<16x384xf32>
    %c0_197 = arith.constant 0 : index
    %c0_198 = arith.constant 0 : index
    %484 = vector.load %arg9[%c0_197, %c0_198] : memref<32x384xf32, #tpu.memory_space<vmem>>, vector<32x384xf32>
    %cst_199 = arith.constant dense<0.000000e+00> : vector<16x384xf32>
    %485 = tpu.matmul %464, %484, %cst_199 {dimension_numbers = #tpu.dot_dimension_numbers<[1], [0], [0], [1], [0, 0, 1, 1], [], []>} : vector<16x32xf32>, vector<32x384xf32>, vector<16x384xf32> -> vector<16x384xf32>
    %486 = arith.addf %483, %485 : vector<16x384xf32>
    %c0_200 = arith.constant 0 : index
    %c0_201 = arith.constant 0 : index
    %487 = vector.load %arg10[%c0_200, %c0_201] : memref<32x384xf32, #tpu.memory_space<vmem>>, vector<32x384xf32>
    %cst_202 = arith.constant dense<0.000000e+00> : vector<16x384xf32>
    %488 = tpu.matmul %448, %487, %cst_202 {dimension_numbers = #tpu.dot_dimension_numbers<[1], [0], [0], [1], [0, 0, 1, 1], [], []>} : vector<16x32xf32>, vector<32x384xf32>, vector<16x384xf32> -> vector<16x384xf32>
    %489 = arith.addf %488, %277 : vector<16x384xf32>
    %490 = vector.extract_strided_slice %486 {offsets = [0, 0], sizes = [16, 32], strides = [1, 1]} : vector<16x384xf32> to vector<16x32xf32>
    %491 = vector.extract_strided_slice %489 {offsets = [0, 0], sizes = [16, 32], strides = [1, 1]} : vector<16x384xf32> to vector<16x32xf32>
    %492 = arith.addf %490, %491 : vector<16x32xf32>
    %493 = arith.negf %492 : vector<16x32xf32>
    %494 = math.exp %493 : vector<16x32xf32>
    %cst_203 = arith.constant 1.000000e+00 : f32
    %495 = vector.broadcast %cst_203 : f32 to vector<16x32xf32>
    %496 = arith.addf %495, %494 : vector<16x32xf32>
    %497 = arith.divf %495, %496 : vector<16x32xf32>
    %498 = vector.extract_strided_slice %486 {offsets = [0, 128], sizes = [16, 32], strides = [1, 1]} : vector<16x384xf32> to vector<16x32xf32>
    %499 = vector.extract_strided_slice %489 {offsets = [0, 128], sizes = [16, 32], strides = [1, 1]} : vector<16x384xf32> to vector<16x32xf32>
    %500 = arith.addf %498, %499 : vector<16x32xf32>
    %501 = arith.negf %500 : vector<16x32xf32>
    %502 = math.exp %501 : vector<16x32xf32>
    %cst_204 = arith.constant 1.000000e+00 : f32
    %503 = vector.broadcast %cst_204 : f32 to vector<16x32xf32>
    %504 = arith.addf %503, %502 : vector<16x32xf32>
    %505 = arith.divf %503, %504 : vector<16x32xf32>
    %506 = vector.extract_strided_slice %486 {offsets = [0, 256], sizes = [16, 32], strides = [1, 1]} : vector<16x384xf32> to vector<16x32xf32>
    %507 = vector.extract_strided_slice %489 {offsets = [0, 256], sizes = [16, 32], strides = [1, 1]} : vector<16x384xf32> to vector<16x32xf32>
    %508 = arith.mulf %497, %507 : vector<16x32xf32>
    %509 = arith.addf %506, %508 : vector<16x32xf32>
    %510 = math.tanh %509 : vector<16x32xf32>
    %cst_205 = arith.constant 1.000000e+00 : f32
    %511 = vector.broadcast %cst_205 : f32 to vector<16x32xf32>
    %512 = arith.subf %511, %505 : vector<16x32xf32>
    %513 = arith.mulf %512, %510 : vector<16x32xf32>
    %514 = arith.mulf %505, %448 : vector<16x32xf32>
    %515 = arith.addf %513, %514 : vector<16x32xf32>
    %c0_206 = arith.constant 0 : index
    %c0_207 = arith.constant 0 : index
    %516 = vector.load %arg19[%c0_206, %c0_207] : memref<128x32xf32, #tpu.memory_space<vmem>>, vector<128x32xf32>
    %cst_208 = arith.constant dense<0.000000e+00> : vector<16x128xf32>
    %517 = tpu.matmul %515, %516, %cst_208 {dimension_numbers = #tpu.dot_dimension_numbers<[1], [1], [0], [0], [0, 0, 1, 0], [], []>} : vector<16x32xf32>, vector<128x32xf32>, vector<16x128xf32> -> vector<16x128xf32>
    %c0_209 = arith.constant 0 : index
    %c0_210 = arith.constant 0 : index
    %518 = vector.load %arg3[%c0_209, %c0_210] : memref<16x128xf32, #tpu.memory_space<vmem>>, vector<16x128xf32>
    %519 = arith.addf %517, %518 : vector<16x128xf32>
    %cst_211 = arith.constant dense<0xFF800000> : vector<16xf32>
    %520 = vector.multi_reduction <maximumf>, %519, %cst_211 [1] : vector<16x128xf32> to vector<16xf32>
    %521 = vector.shape_cast %520 : vector<16xf32> to vector<16x1xf32>
    %522 = vector.broadcast %521 : vector<16x1xf32> to vector<16x128xf32>
    %523 = arith.subf %519, %522 : vector<16x128xf32>
    %524 = math.exp %523 : vector<16x128xf32>
    %cst_212 = arith.constant dense<0.000000e+00> : vector<16xf32>
    %525 = vector.multi_reduction <add>, %524, %cst_212 [1] : vector<16x128xf32> to vector<16xf32>
    %526 = vector.shape_cast %525 : vector<16xf32> to vector<16x1xf32>
    %527 = tpu.reciprocal %526 {approx = true} : vector<16x1xf32> -> vector<16x1xf32>
    %528 = vector.broadcast %527 : vector<16x1xf32> to vector<16x128xf32>
    %529 = arith.mulf %524, %528 : vector<16x128xf32>
    %c0_213 = arith.constant 0 : index
    %c0_214 = arith.constant 0 : index
    %530 = vector.load %arg18[%c0_213, %c0_214] : memref<128x32xf32, #tpu.memory_space<vmem>>, vector<128x32xf32>
    %cst_215 = arith.constant dense<0.000000e+00> : vector<16x32xf32>
    %531 = tpu.matmul %529, %530, %cst_215 {dimension_numbers = #tpu.dot_dimension_numbers<[1], [0], [0], [1], [0, 0, 1, 1], [], []>} : vector<16x128xf32>, vector<128x32xf32>, vector<16x32xf32> -> vector<16x32xf32>
    %532 = tpu.concatenate %515, %531 in 1 : vector<16x32xf32>, vector<16x32xf32> -> vector<16x64xf32>
    %c0_216 = arith.constant 0 : index
    %c0_217 = arith.constant 0 : index
    %533 = vector.load %arg15[%c0_216, %c0_217] : memref<64x16xf32, #tpu.memory_space<vmem>>, vector<64x16xf32>
    %cst_218 = arith.constant dense<0.000000e+00> : vector<16x16xf32>
    %534 = tpu.matmul %532, %533, %cst_218 {dimension_numbers = #tpu.dot_dimension_numbers<[1], [0], [0], [1], [0, 0, 1, 1], [], []>} : vector<16x64xf32>, vector<64x16xf32>, vector<16x16xf32> -> vector<16x16xf32>
    %535 = arith.addf %534, %280 : vector<16x16xf32>
    %cst_219 = arith.constant dense<0xFF800000> : vector<16xf32>
    %536 = vector.multi_reduction <maximumf>, %535, %cst_219 [1] : vector<16x16xf32> to vector<16xf32>
    %537 = vector.shape_cast %536 : vector<16xf32> to vector<16x1xf32>
    %538 = vector.broadcast %537 : vector<16x1xf32> to vector<16x16xf32>
    %539 = arith.subf %535, %538 : vector<16x16xf32>
    %540 = math.exp %539 : vector<16x16xf32>
    %cst_220 = arith.constant dense<0.000000e+00> : vector<16xf32>
    %541 = vector.multi_reduction <add>, %540, %cst_220 [1] : vector<16x16xf32> to vector<16xf32>
    %542 = vector.shape_cast %541 : vector<16xf32> to vector<16x1xf32>
    %543 = math.log %542 : vector<16x1xf32>
    %544 = arith.addf %537, %543 : vector<16x1xf32>
    %545 = vector.broadcast %544 : vector<16x1xf32> to vector<16x16xf32>
    %546 = arith.subf %535, %545 : vector<16x16xf32>
    %c0_221 = arith.constant 0 : index
    %c0_222 = arith.constant 0 : index
    %c48_223 = arith.constant 48 : index
    %547 = vector.load %arg17[%c0_221, %c0_222, %c48_223] : memref<1x16x128xf32, #tpu.memory_space<vmem>>, vector<1x16x16xf32>
    %548 = vector.shape_cast %547 : vector<1x16x16xf32> to vector<16x16xf32>
    %549 = vector.shape_cast %546 : vector<16x16xf32> to vector<1x16x16xf32>
    tpu.vector_store %arg17[%c0_221, %c0_222, %c48_223], %549 {strides = array<i32>} : memref<1x16x128xf32, #tpu.memory_space<vmem>>, vector<1x16x16xf32>,
    %c64_224 = arith.constant 64 : index
    %c0_225 = arith.constant 0 : index
    %550 = vector.load %arg21[%c64_224, %c0_225] : memref<128x384xf32, #tpu.memory_space<vmem>>, vector<16x384xf32>
    %c0_226 = arith.constant 0 : index
    %c0_227 = arith.constant 0 : index
    %551 = vector.load %arg9[%c0_226, %c0_227] : memref<32x384xf32, #tpu.memory_space<vmem>>, vector<32x384xf32>
    %cst_228 = arith.constant dense<0.000000e+00> : vector<16x384xf32>
    %552 = tpu.matmul %531, %551, %cst_228 {dimension_numbers = #tpu.dot_dimension_numbers<[1], [0], [0], [1], [0, 0, 1, 1], [], []>} : vector<16x32xf32>, vector<32x384xf32>, vector<16x384xf32> -> vector<16x384xf32>
    %553 = arith.addf %550, %552 : vector<16x384xf32>
    %c0_229 = arith.constant 0 : index
    %c0_230 = arith.constant 0 : index
    %554 = vector.load %arg10[%c0_229, %c0_230] : memref<32x384xf32, #tpu.memory_space<vmem>>, vector<32x384xf32>
    %cst_231 = arith.constant dense<0.000000e+00> : vector<16x384xf32>
    %555 = tpu.matmul %515, %554, %cst_231 {dimension_numbers = #tpu.dot_dimension_numbers<[1], [0], [0], [1], [0, 0, 1, 1], [], []>} : vector<16x32xf32>, vector<32x384xf32>, vector<16x384xf32> -> vector<16x384xf32>
    %556 = arith.addf %555, %277 : vector<16x384xf32>
    %557 = vector.extract_strided_slice %553 {offsets = [0, 0], sizes = [16, 32], strides = [1, 1]} : vector<16x384xf32> to vector<16x32xf32>
    %558 = vector.extract_strided_slice %556 {offsets = [0, 0], sizes = [16, 32], strides = [1, 1]} : vector<16x384xf32> to vector<16x32xf32>
    %559 = arith.addf %557, %558 : vector<16x32xf32>
    %560 = arith.negf %559 : vector<16x32xf32>
    %561 = math.exp %560 : vector<16x32xf32>
    %cst_232 = arith.constant 1.000000e+00 : f32
    %562 = vector.broadcast %cst_232 : f32 to vector<16x32xf32>
    %563 = arith.addf %562, %561 : vector<16x32xf32>
    %564 = arith.divf %562, %563 : vector<16x32xf32>
    %565 = vector.extract_strided_slice %553 {offsets = [0, 128], sizes = [16, 32], strides = [1, 1]} : vector<16x384xf32> to vector<16x32xf32>
    %566 = vector.extract_strided_slice %556 {offsets = [0, 128], sizes = [16, 32], strides = [1, 1]} : vector<16x384xf32> to vector<16x32xf32>
    %567 = arith.addf %565, %566 : vector<16x32xf32>
    %568 = arith.negf %567 : vector<16x32xf32>
    %569 = math.exp %568 : vector<16x32xf32>
    %cst_233 = arith.constant 1.000000e+00 : f32
    %570 = vector.broadcast %cst_233 : f32 to vector<16x32xf32>
    %571 = arith.addf %570, %569 : vector<16x32xf32>
    %572 = arith.divf %570, %571 : vector<16x32xf32>
    %573 = vector.extract_strided_slice %553 {offsets = [0, 256], sizes = [16, 32], strides = [1, 1]} : vector<16x384xf32> to vector<16x32xf32>
    %574 = vector.extract_strided_slice %556 {offsets = [0, 256], sizes = [16, 32], strides = [1, 1]} : vector<16x384xf32> to vector<16x32xf32>
    %575 = arith.mulf %564, %574 : vector<16x32xf32>
    %576 = arith.addf %573, %575 : vector<16x32xf32>
    %577 = math.tanh %576 : vector<16x32xf32>
    %cst_234 = arith.constant 1.000000e+00 : f32
    %578 = vector.broadcast %cst_234 : f32 to vector<16x32xf32>
    %579 = arith.subf %578, %572 : vector<16x32xf32>
    %580 = arith.mulf %579, %577 : vector<16x32xf32>
    %581 = arith.mulf %572, %515 : vector<16x32xf32>
    %582 = arith.addf %580, %581 : vector<16x32xf32>
    %c0_235 = arith.constant 0 : index
    %c0_236 = arith.constant 0 : index
    %583 = vector.load %arg19[%c0_235, %c0_236] : memref<128x32xf32, #tpu.memory_space<vmem>>, vector<128x32xf32>
    %cst_237 = arith.constant dense<0.000000e+00> : vector<16x128xf32>
    %584 = tpu.matmul %582, %583, %cst_237 {dimension_numbers = #tpu.dot_dimension_numbers<[1], [1], [0], [0], [0, 0, 1, 0], [], []>} : vector<16x32xf32>, vector<128x32xf32>, vector<16x128xf32> -> vector<16x128xf32>
    %c0_238 = arith.constant 0 : index
    %c0_239 = arith.constant 0 : index
    %585 = vector.load %arg3[%c0_238, %c0_239] : memref<16x128xf32, #tpu.memory_space<vmem>>, vector<16x128xf32>
    %586 = arith.addf %584, %585 : vector<16x128xf32>
    %cst_240 = arith.constant dense<0xFF800000> : vector<16xf32>
    %587 = vector.multi_reduction <maximumf>, %586, %cst_240 [1] : vector<16x128xf32> to vector<16xf32>
    %588 = vector.shape_cast %587 : vector<16xf32> to vector<16x1xf32>
    %589 = vector.broadcast %588 : vector<16x1xf32> to vector<16x128xf32>
    %590 = arith.subf %586, %589 : vector<16x128xf32>
    %591 = math.exp %590 : vector<16x128xf32>
    %cst_241 = arith.constant dense<0.000000e+00> : vector<16xf32>
    %592 = vector.multi_reduction <add>, %591, %cst_241 [1] : vector<16x128xf32> to vector<16xf32>
    %593 = vector.shape_cast %592 : vector<16xf32> to vector<16x1xf32>
    %594 = tpu.reciprocal %593 {approx = true} : vector<16x1xf32> -> vector<16x1xf32>
    %595 = vector.broadcast %594 : vector<16x1xf32> to vector<16x128xf32>
    %596 = arith.mulf %591, %595 : vector<16x128xf32>
    %c0_242 = arith.constant 0 : index
    %c0_243 = arith.constant 0 : index
    %597 = vector.load %arg18[%c0_242, %c0_243] : memref<128x32xf32, #tpu.memory_space<vmem>>, vector<128x32xf32>
    %cst_244 = arith.constant dense<0.000000e+00> : vector<16x32xf32>
    %598 = tpu.matmul %596, %597, %cst_244 {dimension_numbers = #tpu.dot_dimension_numbers<[1], [0], [0], [1], [0, 0, 1, 1], [], []>} : vector<16x128xf32>, vector<128x32xf32>, vector<16x32xf32> -> vector<16x32xf32>
    %599 = tpu.concatenate %582, %598 in 1 : vector<16x32xf32>, vector<16x32xf32> -> vector<16x64xf32>
    %c0_245 = arith.constant 0 : index
    %c0_246 = arith.constant 0 : index
    %600 = vector.load %arg15[%c0_245, %c0_246] : memref<64x16xf32, #tpu.memory_space<vmem>>, vector<64x16xf32>
    %cst_247 = arith.constant dense<0.000000e+00> : vector<16x16xf32>
    %601 = tpu.matmul %599, %600, %cst_247 {dimension_numbers = #tpu.dot_dimension_numbers<[1], [0], [0], [1], [0, 0, 1, 1], [], []>} : vector<16x64xf32>, vector<64x16xf32>, vector<16x16xf32> -> vector<16x16xf32>
    %602 = arith.addf %601, %280 : vector<16x16xf32>
    %cst_248 = arith.constant dense<0xFF800000> : vector<16xf32>
    %603 = vector.multi_reduction <maximumf>, %602, %cst_248 [1] : vector<16x16xf32> to vector<16xf32>
    %604 = vector.shape_cast %603 : vector<16xf32> to vector<16x1xf32>
    %605 = vector.broadcast %604 : vector<16x1xf32> to vector<16x16xf32>
    %606 = arith.subf %602, %605 : vector<16x16xf32>
    %607 = math.exp %606 : vector<16x16xf32>
    %cst_249 = arith.constant dense<0.000000e+00> : vector<16xf32>
    %608 = vector.multi_reduction <add>, %607, %cst_249 [1] : vector<16x16xf32> to vector<16xf32>
    %609 = vector.shape_cast %608 : vector<16xf32> to vector<16x1xf32>
    %610 = math.log %609 : vector<16x1xf32>
    %611 = arith.addf %604, %610 : vector<16x1xf32>
    %612 = vector.broadcast %611 : vector<16x1xf32> to vector<16x16xf32>
    %613 = arith.subf %602, %612 : vector<16x16xf32>
    %c0_250 = arith.constant 0 : index
    %c0_251 = arith.constant 0 : index
    %c64_252 = arith.constant 64 : index
    %614 = vector.load %arg17[%c0_250, %c0_251, %c64_252] : memref<1x16x128xf32, #tpu.memory_space<vmem>>, vector<1x16x16xf32>
    %615 = vector.shape_cast %614 : vector<1x16x16xf32> to vector<16x16xf32>
    %616 = vector.shape_cast %613 : vector<16x16xf32> to vector<1x16x16xf32>
    tpu.vector_store %arg17[%c0_250, %c0_251, %c64_252], %616 {strides = array<i32>} : memref<1x16x128xf32, #tpu.memory_space<vmem>>, vector<1x16x16xf32>,
    %c80_253 = arith.constant 80 : index
    %c0_254 = arith.constant 0 : index
    %617 = vector.load %arg21[%c80_253, %c0_254] : memref<128x384xf32, #tpu.memory_space<vmem>>, vector<16x384xf32>
    %c0_255 = arith.constant 0 : index
    %c0_256 = arith.constant 0 : index
    %618 = vector.load %arg9[%c0_255, %c0_256] : memref<32x384xf32, #tpu.memory_space<vmem>>, vector<32x384xf32>
    %cst_257 = arith.constant dense<0.000000e+00> : vector<16x384xf32>
    %619 = tpu.matmul %598, %618, %cst_257 {dimension_numbers = #tpu.dot_dimension_numbers<[1], [0], [0], [1], [0, 0, 1, 1], [], []>} : vector<16x32xf32>, vector<32x384xf32>, vector<16x384xf32> -> vector<16x384xf32>
    %620 = arith.addf %617, %619 : vector<16x384xf32>
    %c0_258 = arith.constant 0 : index
    %c0_259 = arith.constant 0 : index
    %621 = vector.load %arg10[%c0_258, %c0_259] : memref<32x384xf32, #tpu.memory_space<vmem>>, vector<32x384xf32>
    %cst_260 = arith.constant dense<0.000000e+00> : vector<16x384xf32>
    %622 = tpu.matmul %582, %621, %cst_260 {dimension_numbers = #tpu.dot_dimension_numbers<[1], [0], [0], [1], [0, 0, 1, 1], [], []>} : vector<16x32xf32>, vector<32x384xf32>, vector<16x384xf32> -> vector<16x384xf32>
    %623 = arith.addf %622, %277 : vector<16x384xf32>
    %624 = vector.extract_strided_slice %620 {offsets = [0, 0], sizes = [16, 32], strides = [1, 1]} : vector<16x384xf32> to vector<16x32xf32>
    %625 = vector.extract_strided_slice %623 {offsets = [0, 0], sizes = [16, 32], strides = [1, 1]} : vector<16x384xf32> to vector<16x32xf32>
    %626 = arith.addf %624, %625 : vector<16x32xf32>
    %627 = arith.negf %626 : vector<16x32xf32>
    %628 = math.exp %627 : vector<16x32xf32>
    %cst_261 = arith.constant 1.000000e+00 : f32
    %629 = vector.broadcast %cst_261 : f32 to vector<16x32xf32>
    %630 = arith.addf %629, %628 : vector<16x32xf32>
    %631 = arith.divf %629, %630 : vector<16x32xf32>
    %632 = vector.extract_strided_slice %620 {offsets = [0, 128], sizes = [16, 32], strides = [1, 1]} : vector<16x384xf32> to vector<16x32xf32>
    %633 = vector.extract_strided_slice %623 {offsets = [0, 128], sizes = [16, 32], strides = [1, 1]} : vector<16x384xf32> to vector<16x32xf32>
    %634 = arith.addf %632, %633 : vector<16x32xf32>
    %635 = arith.negf %634 : vector<16x32xf32>
    %636 = math.exp %635 : vector<16x32xf32>
    %cst_262 = arith.constant 1.000000e+00 : f32
    %637 = vector.broadcast %cst_262 : f32 to vector<16x32xf32>
    %638 = arith.addf %637, %636 : vector<16x32xf32>
    %639 = arith.divf %637, %638 : vector<16x32xf32>
    %640 = vector.extract_strided_slice %620 {offsets = [0, 256], sizes = [16, 32], strides = [1, 1]} : vector<16x384xf32> to vector<16x32xf32>
    %641 = vector.extract_strided_slice %623 {offsets = [0, 256], sizes = [16, 32], strides = [1, 1]} : vector<16x384xf32> to vector<16x32xf32>
    %642 = arith.mulf %631, %641 : vector<16x32xf32>
    %643 = arith.addf %640, %642 : vector<16x32xf32>
    %644 = math.tanh %643 : vector<16x32xf32>
    %cst_263 = arith.constant 1.000000e+00 : f32
    %645 = vector.broadcast %cst_263 : f32 to vector<16x32xf32>
    %646 = arith.subf %645, %639 : vector<16x32xf32>
    %647 = arith.mulf %646, %644 : vector<16x32xf32>
    %648 = arith.mulf %639, %582 : vector<16x32xf32>
    %649 = arith.addf %647, %648 : vector<16x32xf32>
    %c0_264 = arith.constant 0 : index
    %c0_265 = arith.constant 0 : index
    %650 = vector.load %arg19[%c0_264, %c0_265] : memref<128x32xf32, #tpu.memory_space<vmem>>, vector<128x32xf32>
    %cst_266 = arith.constant dense<0.000000e+00> : vector<16x128xf32>
    %651 = tpu.matmul %649, %650, %cst_266 {dimension_numbers = #tpu.dot_dimension_numbers<[1], [1], [0], [0], [0, 0, 1, 0], [], []>} : vector<16x32xf32>, vector<128x32xf32>, vector<16x128xf32> -> vector<16x128xf32>
    %c0_267 = arith.constant 0 : index
    %c0_268 = arith.constant 0 : index
    %652 = vector.load %arg3[%c0_267, %c0_268] : memref<16x128xf32, #tpu.memory_space<vmem>>, vector<16x128xf32>
    %653 = arith.addf %651, %652 : vector<16x128xf32>
    %cst_269 = arith.constant dense<0xFF800000> : vector<16xf32>
    %654 = vector.multi_reduction <maximumf>, %653, %cst_269 [1] : vector<16x128xf32> to vector<16xf32>
    %655 = vector.shape_cast %654 : vector<16xf32> to vector<16x1xf32>
    %656 = vector.broadcast %655 : vector<16x1xf32> to vector<16x128xf32>
    %657 = arith.subf %653, %656 : vector<16x128xf32>
    %658 = math.exp %657 : vector<16x128xf32>
    %cst_270 = arith.constant dense<0.000000e+00> : vector<16xf32>
    %659 = vector.multi_reduction <add>, %658, %cst_270 [1] : vector<16x128xf32> to vector<16xf32>
    %660 = vector.shape_cast %659 : vector<16xf32> to vector<16x1xf32>
    %661 = tpu.reciprocal %660 {approx = true} : vector<16x1xf32> -> vector<16x1xf32>
    %662 = vector.broadcast %661 : vector<16x1xf32> to vector<16x128xf32>
    %663 = arith.mulf %658, %662 : vector<16x128xf32>
    %c0_271 = arith.constant 0 : index
    %c0_272 = arith.constant 0 : index
    %664 = vector.load %arg18[%c0_271, %c0_272] : memref<128x32xf32, #tpu.memory_space<vmem>>, vector<128x32xf32>
    %cst_273 = arith.constant dense<0.000000e+00> : vector<16x32xf32>
    %665 = tpu.matmul %663, %664, %cst_273 {dimension_numbers = #tpu.dot_dimension_numbers<[1], [0], [0], [1], [0, 0, 1, 1], [], []>} : vector<16x128xf32>, vector<128x32xf32>, vector<16x32xf32> -> vector<16x32xf32>
    %666 = tpu.concatenate %649, %665 in 1 : vector<16x32xf32>, vector<16x32xf32> -> vector<16x64xf32>
    %c0_274 = arith.constant 0 : index
    %c0_275 = arith.constant 0 : index
    %667 = vector.load %arg15[%c0_274, %c0_275] : memref<64x16xf32, #tpu.memory_space<vmem>>, vector<64x16xf32>
    %cst_276 = arith.constant dense<0.000000e+00> : vector<16x16xf32>
    %668 = tpu.matmul %666, %667, %cst_276 {dimension_numbers = #tpu.dot_dimension_numbers<[1], [0], [0], [1], [0, 0, 1, 1], [], []>} : vector<16x64xf32>, vector<64x16xf32>, vector<16x16xf32> -> vector<16x16xf32>
    %669 = arith.addf %668, %280 : vector<16x16xf32>
    %cst_277 = arith.constant dense<0xFF800000> : vector<16xf32>
    %670 = vector.multi_reduction <maximumf>, %669, %cst_277 [1] : vector<16x16xf32> to vector<16xf32>
    %671 = vector.shape_cast %670 : vector<16xf32> to vector<16x1xf32>
    %672 = vector.broadcast %671 : vector<16x1xf32> to vector<16x16xf32>
    %673 = arith.subf %669, %672 : vector<16x16xf32>
    %674 = math.exp %673 : vector<16x16xf32>
    %cst_278 = arith.constant dense<0.000000e+00> : vector<16xf32>
    %675 = vector.multi_reduction <add>, %674, %cst_278 [1] : vector<16x16xf32> to vector<16xf32>
    %676 = vector.shape_cast %675 : vector<16xf32> to vector<16x1xf32>
    %677 = math.log %676 : vector<16x1xf32>
    %678 = arith.addf %671, %677 : vector<16x1xf32>
    %679 = vector.broadcast %678 : vector<16x1xf32> to vector<16x16xf32>
    %680 = arith.subf %669, %679 : vector<16x16xf32>
    %c0_279 = arith.constant 0 : index
    %c0_280 = arith.constant 0 : index
    %c80_281 = arith.constant 80 : index
    %681 = vector.load %arg17[%c0_279, %c0_280, %c80_281] : memref<1x16x128xf32, #tpu.memory_space<vmem>>, vector<1x16x16xf32>
    %682 = vector.shape_cast %681 : vector<1x16x16xf32> to vector<16x16xf32>
    %683 = vector.shape_cast %680 : vector<16x16xf32> to vector<1x16x16xf32>
    tpu.vector_store %arg17[%c0_279, %c0_280, %c80_281], %683 {strides = array<i32>} : memref<1x16x128xf32, #tpu.memory_space<vmem>>, vector<1x16x16xf32>,
    %c96_282 = arith.constant 96 : index
    %c0_283 = arith.constant 0 : index
    %684 = vector.load %arg21[%c96_282, %c0_283] : memref<128x384xf32, #tpu.memory_space<vmem>>, vector<16x384xf32>
    %c0_284 = arith.constant 0 : index
    %c0_285 = arith.constant 0 : index
    %685 = vector.load %arg9[%c0_284, %c0_285] : memref<32x384xf32, #tpu.memory_space<vmem>>, vector<32x384xf32>
    %cst_286 = arith.constant dense<0.000000e+00> : vector<16x384xf32>
    %686 = tpu.matmul %665, %685, %cst_286 {dimension_numbers = #tpu.dot_dimension_numbers<[1], [0], [0], [1], [0, 0, 1, 1], [], []>} : vector<16x32xf32>, vector<32x384xf32>, vector<16x384xf32> -> vector<16x384xf32>
    %687 = arith.addf %684, %686 : vector<16x384xf32>
    %c0_287 = arith.constant 0 : index
    %c0_288 = arith.constant 0 : index
    %688 = vector.load %arg10[%c0_287, %c0_288] : memref<32x384xf32, #tpu.memory_space<vmem>>, vector<32x384xf32>
    %cst_289 = arith.constant dense<0.000000e+00> : vector<16x384xf32>
    %689 = tpu.matmul %649, %688, %cst_289 {dimension_numbers = #tpu.dot_dimension_numbers<[1], [0], [0], [1], [0, 0, 1, 1], [], []>} : vector<16x32xf32>, vector<32x384xf32>, vector<16x384xf32> -> vector<16x384xf32>
    %690 = arith.addf %689, %277 : vector<16x384xf32>
    %691 = vector.extract_strided_slice %687 {offsets = [0, 0], sizes = [16, 32], strides = [1, 1]} : vector<16x384xf32> to vector<16x32xf32>
    %692 = vector.extract_strided_slice %690 {offsets = [0, 0], sizes = [16, 32], strides = [1, 1]} : vector<16x384xf32> to vector<16x32xf32>
    %693 = arith.addf %691, %692 : vector<16x32xf32>
    %694 = arith.negf %693 : vector<16x32xf32>
    %695 = math.exp %694 : vector<16x32xf32>
    %cst_290 = arith.constant 1.000000e+00 : f32
    %696 = vector.broadcast %cst_290 : f32 to vector<16x32xf32>
    %697 = arith.addf %696, %695 : vector<16x32xf32>
    %698 = arith.divf %696, %697 : vector<16x32xf32>
    %699 = vector.extract_strided_slice %687 {offsets = [0, 128], sizes = [16, 32], strides = [1, 1]} : vector<16x384xf32> to vector<16x32xf32>
    %700 = vector.extract_strided_slice %690 {offsets = [0, 128], sizes = [16, 32], strides = [1, 1]} : vector<16x384xf32> to vector<16x32xf32>
    %701 = arith.addf %699, %700 : vector<16x32xf32>
    %702 = arith.negf %701 : vector<16x32xf32>
    %703 = math.exp %702 : vector<16x32xf32>
    %cst_291 = arith.constant 1.000000e+00 : f32
    %704 = vector.broadcast %cst_291 : f32 to vector<16x32xf32>
    %705 = arith.addf %704, %703 : vector<16x32xf32>
    %706 = arith.divf %704, %705 : vector<16x32xf32>
    %707 = vector.extract_strided_slice %687 {offsets = [0, 256], sizes = [16, 32], strides = [1, 1]} : vector<16x384xf32> to vector<16x32xf32>
    %708 = vector.extract_strided_slice %690 {offsets = [0, 256], sizes = [16, 32], strides = [1, 1]} : vector<16x384xf32> to vector<16x32xf32>
    %709 = arith.mulf %698, %708 : vector<16x32xf32>
    %710 = arith.addf %707, %709 : vector<16x32xf32>
    %711 = math.tanh %710 : vector<16x32xf32>
    %cst_292 = arith.constant 1.000000e+00 : f32
    %712 = vector.broadcast %cst_292 : f32 to vector<16x32xf32>
    %713 = arith.subf %712, %706 : vector<16x32xf32>
    %714 = arith.mulf %713, %711 : vector<16x32xf32>
    %715 = arith.mulf %706, %649 : vector<16x32xf32>
    %716 = arith.addf %714, %715 : vector<16x32xf32>
    %c0_293 = arith.constant 0 : index
    %c0_294 = arith.constant 0 : index
    %717 = vector.load %arg19[%c0_293, %c0_294] : memref<128x32xf32, #tpu.memory_space<vmem>>, vector<128x32xf32>
    %cst_295 = arith.constant dense<0.000000e+00> : vector<16x128xf32>
    %718 = tpu.matmul %716, %717, %cst_295 {dimension_numbers = #tpu.dot_dimension_numbers<[1], [1], [0], [0], [0, 0, 1, 0], [], []>} : vector<16x32xf32>, vector<128x32xf32>, vector<16x128xf32> -> vector<16x128xf32>
    %c0_296 = arith.constant 0 : index
    %c0_297 = arith.constant 0 : index
    %719 = vector.load %arg3[%c0_296, %c0_297] : memref<16x128xf32, #tpu.memory_space<vmem>>, vector<16x128xf32>
    %720 = arith.addf %718, %719 : vector<16x128xf32>
    %cst_298 = arith.constant dense<0xFF800000> : vector<16xf32>
    %721 = vector.multi_reduction <maximumf>, %720, %cst_298 [1] : vector<16x128xf32> to vector<16xf32>
    %722 = vector.shape_cast %721 : vector<16xf32> to vector<16x1xf32>
    %723 = vector.broadcast %722 : vector<16x1xf32> to vector<16x128xf32>
    %724 = arith.subf %720, %723 : vector<16x128xf32>
    %725 = math.exp %724 : vector<16x128xf32>
    %cst_299 = arith.constant dense<0.000000e+00> : vector<16xf32>
    %726 = vector.multi_reduction <add>, %725, %cst_299 [1] : vector<16x128xf32> to vector<16xf32>
    %727 = vector.shape_cast %726 : vector<16xf32> to vector<16x1xf32>
    %728 = tpu.reciprocal %727 {approx = true} : vector<16x1xf32> -> vector<16x1xf32>
    %729 = vector.broadcast %728 : vector<16x1xf32> to vector<16x128xf32>
    %730 = arith.mulf %725, %729 : vector<16x128xf32>
    %c0_300 = arith.constant 0 : index
    %c0_301 = arith.constant 0 : index
    %731 = vector.load %arg18[%c0_300, %c0_301] : memref<128x32xf32, #tpu.memory_space<vmem>>, vector<128x32xf32>
    %cst_302 = arith.constant dense<0.000000e+00> : vector<16x32xf32>
    %732 = tpu.matmul %730, %731, %cst_302 {dimension_numbers = #tpu.dot_dimension_numbers<[1], [0], [0], [1], [0, 0, 1, 1], [], []>} : vector<16x128xf32>, vector<128x32xf32>, vector<16x32xf32> -> vector<16x32xf32>
    %733 = tpu.concatenate %716, %732 in 1 : vector<16x32xf32>, vector<16x32xf32> -> vector<16x64xf32>
    %c0_303 = arith.constant 0 : index
    %c0_304 = arith.constant 0 : index
    %734 = vector.load %arg15[%c0_303, %c0_304] : memref<64x16xf32, #tpu.memory_space<vmem>>, vector<64x16xf32>
    %cst_305 = arith.constant dense<0.000000e+00> : vector<16x16xf32>
    %735 = tpu.matmul %733, %734, %cst_305 {dimension_numbers = #tpu.dot_dimension_numbers<[1], [0], [0], [1], [0, 0, 1, 1], [], []>} : vector<16x64xf32>, vector<64x16xf32>, vector<16x16xf32> -> vector<16x16xf32>
    %736 = arith.addf %735, %280 : vector<16x16xf32>
    %cst_306 = arith.constant dense<0xFF800000> : vector<16xf32>
    %737 = vector.multi_reduction <maximumf>, %736, %cst_306 [1] : vector<16x16xf32> to vector<16xf32>
    %738 = vector.shape_cast %737 : vector<16xf32> to vector<16x1xf32>
    %739 = vector.broadcast %738 : vector<16x1xf32> to vector<16x16xf32>
    %740 = arith.subf %736, %739 : vector<16x16xf32>
    %741 = math.exp %740 : vector<16x16xf32>
    %cst_307 = arith.constant dense<0.000000e+00> : vector<16xf32>
    %742 = vector.multi_reduction <add>, %741, %cst_307 [1] : vector<16x16xf32> to vector<16xf32>
    %743 = vector.shape_cast %742 : vector<16xf32> to vector<16x1xf32>
    %744 = math.log %743 : vector<16x1xf32>
    %745 = arith.addf %738, %744 : vector<16x1xf32>
    %746 = vector.broadcast %745 : vector<16x1xf32> to vector<16x16xf32>
    %747 = arith.subf %736, %746 : vector<16x16xf32>
    %c0_308 = arith.constant 0 : index
    %c0_309 = arith.constant 0 : index
    %c96_310 = arith.constant 96 : index
    %748 = vector.load %arg17[%c0_308, %c0_309, %c96_310] : memref<1x16x128xf32, #tpu.memory_space<vmem>>, vector<1x16x16xf32>
    %749 = vector.shape_cast %748 : vector<1x16x16xf32> to vector<16x16xf32>
    %750 = vector.shape_cast %747 : vector<16x16xf32> to vector<1x16x16xf32>
    tpu.vector_store %arg17[%c0_308, %c0_309, %c96_310], %750 {strides = array<i32>} : memref<1x16x128xf32, #tpu.memory_space<vmem>>, vector<1x16x16xf32>,
    %c112_311 = arith.constant 112 : index
    %c0_312 = arith.constant 0 : index
    %751 = vector.load %arg21[%c112_311, %c0_312] : memref<128x384xf32, #tpu.memory_space<vmem>>, vector<16x384xf32>
    %c0_313 = arith.constant 0 : index
    %c0_314 = arith.constant 0 : index
    %752 = vector.load %arg9[%c0_313, %c0_314] : memref<32x384xf32, #tpu.memory_space<vmem>>, vector<32x384xf32>
    %cst_315 = arith.constant dense<0.000000e+00> : vector<16x384xf32>
    %753 = tpu.matmul %732, %752, %cst_315 {dimension_numbers = #tpu.dot_dimension_numbers<[1], [0], [0], [1], [0, 0, 1, 1], [], []>} : vector<16x32xf32>, vector<32x384xf32>, vector<16x384xf32> -> vector<16x384xf32>
    %754 = arith.addf %751, %753 : vector<16x384xf32>
    %c0_316 = arith.constant 0 : index
    %c0_317 = arith.constant 0 : index
    %755 = vector.load %arg10[%c0_316, %c0_317] : memref<32x384xf32, #tpu.memory_space<vmem>>, vector<32x384xf32>
    %cst_318 = arith.constant dense<0.000000e+00> : vector<16x384xf32>
    %756 = tpu.matmul %716, %755, %cst_318 {dimension_numbers = #tpu.dot_dimension_numbers<[1], [0], [0], [1], [0, 0, 1, 1], [], []>} : vector<16x32xf32>, vector<32x384xf32>, vector<16x384xf32> -> vector<16x384xf32>
    %757 = arith.addf %756, %277 : vector<16x384xf32>
    %758 = vector.extract_strided_slice %754 {offsets = [0, 0], sizes = [16, 32], strides = [1, 1]} : vector<16x384xf32> to vector<16x32xf32>
    %759 = vector.extract_strided_slice %757 {offsets = [0, 0], sizes = [16, 32], strides = [1, 1]} : vector<16x384xf32> to vector<16x32xf32>
    %760 = arith.addf %758, %759 : vector<16x32xf32>
    %761 = arith.negf %760 : vector<16x32xf32>
    %762 = math.exp %761 : vector<16x32xf32>
    %cst_319 = arith.constant 1.000000e+00 : f32
    %763 = vector.broadcast %cst_319 : f32 to vector<16x32xf32>
    %764 = arith.addf %763, %762 : vector<16x32xf32>
    %765 = arith.divf %763, %764 : vector<16x32xf32>
    %766 = vector.extract_strided_slice %754 {offsets = [0, 128], sizes = [16, 32], strides = [1, 1]} : vector<16x384xf32> to vector<16x32xf32>
    %767 = vector.extract_strided_slice %757 {offsets = [0, 128], sizes = [16, 32], strides = [1, 1]} : vector<16x384xf32> to vector<16x32xf32>
    %768 = arith.addf %766, %767 : vector<16x32xf32>
    %769 = arith.negf %768 : vector<16x32xf32>
    %770 = math.exp %769 : vector<16x32xf32>
    %cst_320 = arith.constant 1.000000e+00 : f32
    %771 = vector.broadcast %cst_320 : f32 to vector<16x32xf32>
    %772 = arith.addf %771, %770 : vector<16x32xf32>
    %773 = arith.divf %771, %772 : vector<16x32xf32>
    %774 = vector.extract_strided_slice %754 {offsets = [0, 256], sizes = [16, 32], strides = [1, 1]} : vector<16x384xf32> to vector<16x32xf32>
    %775 = vector.extract_strided_slice %757 {offsets = [0, 256], sizes = [16, 32], strides = [1, 1]} : vector<16x384xf32> to vector<16x32xf32>
    %776 = arith.mulf %765, %775 : vector<16x32xf32>
    %777 = arith.addf %774, %776 : vector<16x32xf32>
    %778 = math.tanh %777 : vector<16x32xf32>
    %cst_321 = arith.constant 1.000000e+00 : f32
    %779 = vector.broadcast %cst_321 : f32 to vector<16x32xf32>
    %780 = arith.subf %779, %773 : vector<16x32xf32>
    %781 = arith.mulf %780, %778 : vector<16x32xf32>
    %782 = arith.mulf %773, %716 : vector<16x32xf32>
    %783 = arith.addf %781, %782 : vector<16x32xf32>
    %c0_322 = arith.constant 0 : index
    %c0_323 = arith.constant 0 : index
    %784 = vector.load %arg19[%c0_322, %c0_323] : memref<128x32xf32, #tpu.memory_space<vmem>>, vector<128x32xf32>
    %cst_324 = arith.constant dense<0.000000e+00> : vector<16x128xf32>
    %785 = tpu.matmul %783, %784, %cst_324 {dimension_numbers = #tpu.dot_dimension_numbers<[1], [1], [0], [0], [0, 0, 1, 0], [], []>} : vector<16x32xf32>, vector<128x32xf32>, vector<16x128xf32> -> vector<16x128xf32>
    %c0_325 = arith.constant 0 : index
    %c0_326 = arith.constant 0 : index
    %786 = vector.load %arg3[%c0_325, %c0_326] : memref<16x128xf32, #tpu.memory_space<vmem>>, vector<16x128xf32>
    %787 = arith.addf %785, %786 : vector<16x128xf32>
    %cst_327 = arith.constant dense<0xFF800000> : vector<16xf32>
    %788 = vector.multi_reduction <maximumf>, %787, %cst_327 [1] : vector<16x128xf32> to vector<16xf32>
    %789 = vector.shape_cast %788 : vector<16xf32> to vector<16x1xf32>
    %790 = vector.broadcast %789 : vector<16x1xf32> to vector<16x128xf32>
    %791 = arith.subf %787, %790 : vector<16x128xf32>
    %792 = math.exp %791 : vector<16x128xf32>
    %cst_328 = arith.constant dense<0.000000e+00> : vector<16xf32>
    %793 = vector.multi_reduction <add>, %792, %cst_328 [1] : vector<16x128xf32> to vector<16xf32>
    %794 = vector.shape_cast %793 : vector<16xf32> to vector<16x1xf32>
    %795 = tpu.reciprocal %794 {approx = true} : vector<16x1xf32> -> vector<16x1xf32>
    %796 = vector.broadcast %795 : vector<16x1xf32> to vector<16x128xf32>
    %797 = arith.mulf %792, %796 : vector<16x128xf32>
    %c0_329 = arith.constant 0 : index
    %c0_330 = arith.constant 0 : index
    %798 = vector.load %arg18[%c0_329, %c0_330] : memref<128x32xf32, #tpu.memory_space<vmem>>, vector<128x32xf32>
    %cst_331 = arith.constant dense<0.000000e+00> : vector<16x32xf32>
    %799 = tpu.matmul %797, %798, %cst_331 {dimension_numbers = #tpu.dot_dimension_numbers<[1], [0], [0], [1], [0, 0, 1, 1], [], []>} : vector<16x128xf32>, vector<128x32xf32>, vector<16x32xf32> -> vector<16x32xf32>
    %800 = tpu.concatenate %783, %799 in 1 : vector<16x32xf32>, vector<16x32xf32> -> vector<16x64xf32>
    %c0_332 = arith.constant 0 : index
    %c0_333 = arith.constant 0 : index
    %801 = vector.load %arg15[%c0_332, %c0_333] : memref<64x16xf32, #tpu.memory_space<vmem>>, vector<64x16xf32>
    %cst_334 = arith.constant dense<0.000000e+00> : vector<16x16xf32>
    %802 = tpu.matmul %800, %801, %cst_334 {dimension_numbers = #tpu.dot_dimension_numbers<[1], [0], [0], [1], [0, 0, 1, 1], [], []>} : vector<16x64xf32>, vector<64x16xf32>, vector<16x16xf32> -> vector<16x16xf32>
    %803 = arith.addf %802, %280 : vector<16x16xf32>
    %cst_335 = arith.constant dense<0xFF800000> : vector<16xf32>
    %804 = vector.multi_reduction <maximumf>, %803, %cst_335 [1] : vector<16x16xf32> to vector<16xf32>
    %805 = vector.shape_cast %804 : vector<16xf32> to vector<16x1xf32>
    %806 = vector.broadcast %805 : vector<16x1xf32> to vector<16x16xf32>
    %807 = arith.subf %803, %806 : vector<16x16xf32>
    %808 = math.exp %807 : vector<16x16xf32>
    %cst_336 = arith.constant dense<0.000000e+00> : vector<16xf32>
    %809 = vector.multi_reduction <add>, %808, %cst_336 [1] : vector<16x16xf32> to vector<16xf32>
    %810 = vector.shape_cast %809 : vector<16xf32> to vector<16x1xf32>
    %811 = math.log %810 : vector<16x1xf32>
    %812 = arith.addf %805, %811 : vector<16x1xf32>
    %813 = vector.broadcast %812 : vector<16x1xf32> to vector<16x16xf32>
    %814 = arith.subf %803, %813 : vector<16x16xf32>
    %c0_337 = arith.constant 0 : index
    %c0_338 = arith.constant 0 : index
    %c112_339 = arith.constant 112 : index
    %815 = vector.load %arg17[%c0_337, %c0_338, %c112_339] : memref<1x16x128xf32, #tpu.memory_space<vmem>>, vector<1x16x16xf32>
    %816 = vector.shape_cast %815 : vector<1x16x16xf32> to vector<16x16xf32>
    %817 = vector.shape_cast %814 : vector<16x16xf32> to vector<1x16x16xf32>
    tpu.vector_store %arg17[%c0_337, %c0_338, %c112_339], %817 {strides = array<i32>} : memref<1x16x128xf32, #tpu.memory_space<vmem>>, vector<1x16x16xf32>,
    return
  }
  func.func @transform_0(%arg0: i32) -> (i32, i32, i32) {
    %c0_i32 = arith.constant 0 : i32
    %c0_i32_0 = arith.constant 0 : i32
    %c0_i32_1 = arith.constant 0 : i32
    return %arg0, %c0_i32, %c0_i32_0 : i32, i32, i32
  }
  func.func @transform_1(%arg0: i32) -> (i32, i32, i32) {
    %c0_i32 = arith.constant 0 : i32
    %c0_i32_0 = arith.constant 0 : i32
    %c0_i32_1 = arith.constant 0 : i32
    return %arg0, %c0_i32, %c0_i32_0 : i32, i32, i32
  }
  func.func @transform_2(%arg0: i32) -> (i32, i32) {
    %c0_i32 = arith.constant 0 : i32
    %c0_i32_0 = arith.constant 0 : i32
    %c0_i32_1 = arith.constant 0 : i32
    return %c0_i32, %c0_i32_0 : i32, i32
  }
  func.func @transform_3(%arg0: i32) -> (i32, i32) {
    %c0_i32 = arith.constant 0 : i32
    %c0_i32_0 = arith.constant 0 : i32
    %c0_i32_1 = arith.constant 0 : i32
    return %c0_i32, %c0_i32_0 : i32, i32
  }
  func.func @transform_4(%arg0: i32) -> (i32, i32) {
    %c0_i32 = arith.constant 0 : i32
    %c0_i32_0 = arith.constant 0 : i32
    %c0_i32_1 = arith.constant 0 : i32
    return %c0_i32, %c0_i32_0 : i32, i32
  }
  func.func @transform_5(%arg0: i32) -> (i32, i32) {
    %c0_i32 = arith.constant 0 : i32
    %c0_i32_0 = arith.constant 0 : i32
    %c0_i32_1 = arith.constant 0 : i32
    return %c0_i32, %c0_i32_0 : i32, i32
  }
  func.func @transform_6(%arg0: i32) -> (i32, i32) {
    %c0_i32 = arith.constant 0 : i32
    %c0_i32_0 = arith.constant 0 : i32
    %c0_i32_1 = arith.constant 0 : i32
    return %c0_i32, %c0_i32_0 : i32, i32
  }
  func.func @transform_7(%arg0: i32) -> (i32, i32) {
    %c0_i32 = arith.constant 0 : i32
    %c0_i32_0 = arith.constant 0 : i32
    %c0_i32_1 = arith.constant 0 : i32
    return %c0_i32, %c0_i32_0 : i32, i32
  }
  func.func @transform_8(%arg0: i32) -> (i32, i32) {
    %c0_i32 = arith.constant 0 : i32
    %c0_i32_0 = arith.constant 0 : i32
    %c0_i32_1 = arith.constant 0 : i32
    return %c0_i32, %c0_i32_0 : i32, i32
  }
  func.func @transform_9(%arg0: i32) -> (i32, i32) {
    %c0_i32 = arith.constant 0 : i32
    %c0_i32_0 = arith.constant 0 : i32
    %c0_i32_1 = arith.constant 0 : i32
    return %c0_i32, %c0_i32_0 : i32, i32
  }
  func.func @transform_10(%arg0: i32) -> (i32, i32) {
    %c0_i32 = arith.constant 0 : i32
    %c0_i32_0 = arith.constant 0 : i32
    %c0_i32_1 = arith.constant 0 : i32
    return %c0_i32, %c0_i32_0 : i32, i32
  }
  func.func @transform_11(%arg0: i32) -> (i32, i32) {
    %c0_i32 = arith.constant 0 : i32
    %c0_i32_0 = arith.constant 0 : i32
    %c0_i32_1 = arith.constant 0 : i32
    return %c0_i32, %c0_i32_0 : i32, i32
  }
  func.func @transform_12(%arg0: i32) -> (i32, i32) {
    %c0_i32 = arith.constant 0 : i32
    %c0_i32_0 = arith.constant 0 : i32
    %c0_i32_1 = arith.constant 0 : i32
    return %c0_i32, %c0_i32_0 : i32, i32
  }
  func.func @transform_13(%arg0: i32) -> (i32, i32) {
    %c0_i32 = arith.constant 0 : i32
    %c0_i32_0 = arith.constant 0 : i32
    %c0_i32_1 = arith.constant 0 : i32
    return %c0_i32, %c0_i32_0 : i32, i32
  }
  func.func @transform_14(%arg0: i32) -> (i32, i32) {
    %c0_i32 = arith.constant 0 : i32
    %c0_i32_0 = arith.constant 0 : i32
    %c0_i32_1 = arith.constant 0 : i32
    return %c0_i32, %c0_i32_0 : i32, i32
  }
  func.func @transform_15(%arg0: i32) -> (i32, i32) {
    %c0_i32 = arith.constant 0 : i32
    %c0_i32_0 = arith.constant 0 : i32
    %c0_i32_1 = arith.constant 0 : i32
    return %c0_i32, %c0_i32_0 : i32, i32
  }
  func.func @transform_16(%arg0: i32) -> (i32, i32, i32) {
    %c0_i32 = arith.constant 0 : i32
    %c0_i32_0 = arith.constant 0 : i32
    %c0_i32_1 = arith.constant 0 : i32
    return %arg0, %c0_i32, %c0_i32_0 : i32, i32, i32
  }
}

</mosaic_0001>

<llo_original>
// kernel: copynet_run.1
$region0: #{copynet_run.1}
  #allocation0 [shape = 'u32[]', space=smem, size = 0x4, offset = 0x4, fixed_abs, tag = 'smem constant byte address 0x4 - core index']
  #allocation1 [shape = 'u32[144,128]{1,0:T(1,128)}', space=vmem, size = 0x12000, scoped, tag = 'internal scratch']
  #allocation2 [shape = 'f32[128,32]{1,0:T(8,128)}', space=vmem, size = 0x10000, scoped, tag = 'scratch operand']
  #allocation3 [shape = 'f32[128,32]{1,0:T(8,128)}', space=vmem, size = 0x10000, scoped, tag = 'scratch operand']
  #allocation4 [shape = 'f32[128,384]{1,0:T(8,128)}', space=vmem, size = 0x30000, scoped, tag = 'scratch operand']
  #allocation5 [shape = 'f32[128,384]{1,0:T(8,128)}', space=vmem, size = 0x30000, scoped, tag = 'scratch operand']
  %s0 = inlined_call_operand.vmem [shape: f32[1,128,32], index: 0, kind: input, shape index: {}]
  %s1 = inlined_call_operand.vmem [shape: f32[1,128,32], index: 1, kind: input, shape index: {}]
  %s2 = inlined_call_operand.vmem [shape: f32[16,128], index: 2, kind: input, shape index: {}]
  %s3 = inlined_call_operand.vmem [shape: f32[32,384], index: 3, kind: input, shape index: {}]
  %s4 = inlined_call_operand.vmem [shape: f32[32,384], index: 4, kind: input, shape index: {}]
  %s5 = inlined_call_operand.vmem [shape: f32[1,384], index: 5, kind: input, shape index: {}]
  %s6 = inlined_call_operand.vmem [shape: f32[1,384], index: 6, kind: input, shape index: {}]
  %s7 = inlined_call_operand.vmem [shape: f32[32,384], index: 7, kind: input, shape index: {}]
  %s8 = inlined_call_operand.vmem [shape: f32[32,384], index: 8, kind: input, shape index: {}]
  %s9 = inlined_call_operand.vmem [shape: f32[32,384], index: 9, kind: input, shape index: {}]
  %s10 = inlined_call_operand.vmem [shape: f32[1,384], index: 10, kind: input, shape index: {}]
  %s11 = inlined_call_operand.vmem [shape: f32[1,384], index: 11, kind: input, shape index: {}]
  %s12 = inlined_call_operand.vmem [shape: f32[32,32], index: 12, kind: input, shape index: {}]
  %s13 = inlined_call_operand.vmem [shape: f32[1,32], index: 13, kind: input, shape index: {}]
  %s14 = inlined_call_operand.vmem [shape: f32[64,16], index: 14, kind: input, shape index: {}]
  %s15 = inlined_call_operand.vmem [shape: f32[1,16], index: 15, kind: input, shape index: {}]
  %s16 = inlined_call_operand.vmem [shape: f32[1,16,128], index: 16, kind: output, shape index: {}]
  %s17 = sld [smem:[#allocation0]]
  $region74: #{copynet_run.1} parent=0
    _
  %s19 = ssub.s32 1, %s17
  %s20 = scalar_select 0, %s19, %s17
  // Predicated region
  $region2: #{copynet_run.1} parent=0 // pred_check
    _
  $region3: #{copynet_run.1} parent=0 // pred_check_branch
    %22 = sbr.rel (0) target = $region5
  $region4: #{copynet_run.1} parent=0 // pred_region
    _
  $region5: #{copynet_run.1} parent=0 // pred_fallthru
    _
  // Predicated region
  $region6: #{copynet_run.1} parent=0 // pred_check
    _
  $region7: #{copynet_run.1} parent=0 // pred_check_branch
    %24 = sbr.rel (0) target = $region9
  $region8: #{copynet_run.1} parent=0 // pred_region
    _
  $region9: #{copynet_run.1} parent=0 // pred_fallthru
    _
  // Predicated region
  $region10: #{copynet_run.1} parent=0 // pred_check
    _
  $region11: #{copynet_run.1} parent=0 // pred_check_branch
    %26 = sbr.rel (0) target = $region13
  $region12: #{copynet_run.1} parent=0 // pred_region
    _
  $region13: #{copynet_run.1} parent=0 // pred_fallthru
    _
  // Predicated region
  $region14: #{copynet_run.1} parent=0 // pred_check
    _
  $region15: #{copynet_run.1} parent=0 // pred_check_branch
    %28 = sbr.rel (0) target = $region17
  $region16: #{copynet_run.1} parent=0 // pred_region
    _
  $region17: #{copynet_run.1} parent=0 // pred_fallthru
    _
  // Predicated region
  $region18: #{copynet_run.1} parent=0 // pred_check
    _
  $region19: #{copynet_run.1} parent=0 // pred_check_branch
    %30 = sbr.rel (0) target = $region21
  $region20: #{copynet_run.1} parent=0 // pred_region
    _
  $region21: #{copynet_run.1} parent=0 // pred_fallthru
    _
  // Predicated region
  $region22: #{copynet_run.1} parent=0 // pred_check
    _
  $region23: #{copynet_run.1} parent=0 // pred_check_branch
    %32 = sbr.rel (0) target = $region25
  $region24: #{copynet_run.1} parent=0 // pred_region
    _
  $region25: #{copynet_run.1} parent=0 // pred_fallthru
    _
  // Predicated region
  $region26: #{copynet_run.1} parent=0 // pred_check
    _
  $region27: #{copynet_run.1} parent=0 // pred_check_branch
    %34 = sbr.rel (0) target = $region29
  $region28: #{copynet_run.1} parent=0 // pred_region
    _
  $region29: #{copynet_run.1} parent=0 // pred_fallthru
    _
  // Predicated region
  $region30: #{copynet_run.1} parent=0 // pred_check
    _
  $region31: #{copynet_run.1} parent=0 // pred_check_branch
    %36 = sbr.rel (0) target = $region33
  $region32: #{copynet_run.1} parent=0 // pred_region
    _
  $region33: #{copynet_run.1} parent=0 // pred_fallthru
    _
  // Predicated region
  $region34: #{copynet_run.1} parent=0 // pred_check
    _
  $region35: #{copynet_run.1} parent=0 // pred_check_branch
    %38 = sbr.rel (0) target = $region37
  $region36: #{copynet_run.1} parent=0 // pred_region
    _
  $region37: #{copynet_run.1} parent=0 // pred_fallthru
    _
  // Predicated region
  $region38: #{copynet_run.1} parent=0 // pred_check
    _
  $region39: #{copynet_run.1} parent=0 // pred_check_branch
    %40 = sbr.rel (0) target = $region41
  $region40: #{copynet_run.1} parent=0 // pred_region
    _
  $region41: #{copynet_run.1} parent=0 // pred_fallthru
    _
  // Predicated region
  $region42: #{copynet_run.1} parent=0 // pred_check
    _
  $region43: #{copynet_run.1} parent=0 // pred_check_branch
    %42 = sbr.rel (0) target = $region45
  $region44: #{copynet_run.1} parent=0 // pred_region
    _
  $region45: #{copynet_run.1} parent=0 // pred_fallthru
    _
  // Predicated region
  $region46: #{copynet_run.1} parent=0 // pred_check
    _
  $region47: #{copynet_run.1} parent=0 // pred_check_branch
    %44 = sbr.rel (0) target = $region49
  $region48: #{copynet_run.1} parent=0 // pred_region
    _
  $region49: #{copynet_run.1} parent=0 // pred_fallthru
    _
  // Predicated region
  $region50: #{copynet_run.1} parent=0 // pred_check
    _
  $region51: #{copynet_run.1} parent=0 // pred_check_branch
    %46 = sbr.rel (0) target = $region53
  $region52: #{copynet_run.1} parent=0 // pred_region
    _
  $region53: #{copynet_run.1} parent=0 // pred_fallthru
    _
  // Predicated region
  $region54: #{copynet_run.1} parent=0 // pred_check
    _
  $region55: #{copynet_run.1} parent=0 // pred_check_branch
    %48 = sbr.rel (0) target = $region57
  $region56: #{copynet_run.1} parent=0 // pred_region
    _
  $region57: #{copynet_run.1} parent=0 // pred_fallthru
    _
  // Predicated region
  $region58: #{copynet_run.1} parent=0 // pred_check
    _
  $region59: #{copynet_run.1} parent=0 // pred_check_branch
    %50 = sbr.rel (0) target = $region61
  $region60: #{copynet_run.1} parent=0 // pred_region
    _
  $region61: #{copynet_run.1} parent=0 // pred_fallthru
    _
  // Predicated region
  $region62: #{copynet_run.1} parent=0 // pred_check
    _
  $region63: #{copynet_run.1} parent=0 // pred_check_branch
    %52 = sbr.rel (0) target = $region65
  $region64: #{copynet_run.1} parent=0 // pred_region
    _
  $region65: #{copynet_run.1} parent=0 // pred_fallthru
    _
  %v53 = vld [vmem:[%s0] sm:$0xff]
  %v54 = vld [vmem:[%s0 + $0x8] sm:$0xff]
  %v55 = vld [vmem:[%s0 + $0x10] sm:$0xff]
  %v56 = vld [vmem:[%s0 + $0x18] sm:$0xff]
  %v57 = vld [vmem:[%s0 + $0x20] sm:$0xff]
  %v58 = vld [vmem:[%s0 + $0x28] sm:$0xff]
  %v59 = vld [vmem:[%s0 + $0x30] sm:$0xff]
  %v60 = vld [vmem:[%s0 + $0x38] sm:$0xff]
  %v61 = vld [vmem:[%s0 + $0x40] sm:$0xff]
  %v62 = vld [vmem:[%s0 + $0x48] sm:$0xff]
  %v63 = vld [vmem:[%s0 + $0x50] sm:$0xff]
  %v64 = vld [vmem:[%s0 + $0x58] sm:$0xff]
  %v65 = vld [vmem:[%s0 + $0x60] sm:$0xff]
  %v66 = vld [vmem:[%s0 + $0x68] sm:$0xff]
  %v67 = vld [vmem:[%s0 + $0x70] sm:$0xff]
  %v68 = vld [vmem:[%s0 + $0x78] sm:$0xff]
  %v69 = vld [vmem:[%s3] sm:$0xff]
  %v70 = vld [vmem:[%s3 + $0x8] sm:$0xff]
  %v71 = vld [vmem:[%s3 + $0x10] sm:$0xff]
  %v72 = vld [vmem:[%s3 + $0x18] sm:$0xff]
  %v73 = vld [vmem:[%s3 + $0x20] sm:$0xff]
  %v74 = vld [vmem:[%s3 + $0x28] sm:$0xff]
  %v75 = vld [vmem:[%s3 + $0x30] sm:$0xff]
  %v76 = vld [vmem:[%s3 + $0x38] sm:$0xff]
  %v77 = vld [vmem:[%s3 + $0x40] sm:$0xff]
  %v78 = vld [vmem:[%s3 + $0x48] sm:$0xff]
  %v79 = vld [vmem:[%s3 + $0x50] sm:$0xff]
  %v80 = vld [vmem:[%s3 + $0x58] sm:$0xff]
  %v81 = vld [vmem:[%s5] sm:$0x7]
  %v83 = vlaneseq
  %v84 = vshrl.u32 %v83, 7
  %v85 = vsub.s32 0, %v84
  %v86 = vrot.slane %v81, %v85
  %v87 = vlaneseq
  %v88 = vshrl.u32 %v87, 7
  %v89 = vsub.s32 1, %v88
  %v90 = vrot.slane %v81, %v89
  %v91 = vlaneseq
  %v92 = vshrl.u32 %v91, 7
  %v93 = vsub.s32 2, %v92
  %v94 = vrot.slane %v81, %v93
  %vm98 = vcmask 261120
  %v100 = vsel %vm98, %v53, 0
  %v103 = vsel %vm98, %v54, 0
  %v106 = vsel %vm98, %v55, 0
  %v109 = vsel %vm98, %v56, 0
  %v112 = vsel %vm98, %v57, 0
  %v115 = vsel %vm98, %v58, 0
  %v118 = vsel %vm98, %v59, 0
  %v121 = vsel %vm98, %v60, 0
  %v124 = vsel %vm98, %v61, 0
  %v127 = vsel %vm98, %v62, 0
  %v130 = vsel %vm98, %v63, 0
  %v133 = vsel %vm98, %v64, 0
  %v136 = vsel %vm98, %v65, 0
  %v139 = vsel %vm98, %v66, 0
  %v142 = vsel %vm98, %v67, 0
  %v145 = vsel %vm98, %v68, 0
  %147 = vmatprep.subr.mxu0 %v70
  %148 = vmatpush1.msra.mxu0 %v69
  %149 = vmatprep.subr.mxu0 %v73
  %150 = vmatpush1.msra.mxu0 %v72
  %151 = vmatprep.subr.mxu0 %v76
  %152 = vmatpush1.msra.mxu0 %v75
  %153 = vmatprep.subr.mxu0 %v79
  %154 = vmatpush1.msra.mxu0 %v78
  %155 = vmatprep.subr.mxu0 0.0
  %156 = vmatpush1.msra.mxu0 0.0
  %157 = vmatprep.subr.mxu0 0.0
  %158 = vmatpush1.msra.mxu0 0.0
  %159 = vmatprep.subr.mxu0 0.0
  %160 = vmatpush1.msra.mxu0 0.0
  %161 = vmatprep.subr.mxu0 0.0
  %162 = vmatpush1.msra.mxu0 0.0
  %163 = vmatprep.subr.mxu0 0.0
  %164 = vmatpush1.msra.mxu0 0.0
  %165 = vmatprep.subr.mxu0 0.0
  %166 = vmatpush1.msra.mxu0 0.0
  %167 = vmatprep.subr.mxu0 0.0
  %168 = vmatpush1.msra.mxu0 0.0
  %169 = vmatprep.subr.mxu0 0.0
  %170 = vmatpush1.msra.mxu0 0.0
  %171 = vmatprep.subr.mxu0 0.0
  %172 = vmatpush1.msra.mxu0 0.0
  %173 = vmatprep.subr.mxu0 0.0
  %174 = vmatpush1.msra.mxu0 0.0
  %175 = vmatprep.subr.mxu0 0.0
  %176 = vmatpush1.msra.mxu0 0.0
  %177 = vmatprep.subr.mxu0 0.0
  %178 = vmatpush1.msra.mxu0 0.0
  %179 = vmatprep.subr.mxu0 0.0
  %180 = vmatpush1.msra.mxu0 0.0
  %181 = vmatprep.subr.mxu0 0.0
  %182 = vmatpush1.msra.mxu0 0.0
  %183 = vmatprep.subr.mxu0 0.0
  %184 = vmatpush1.msra.mxu0 0.0
  %185 = vmatprep.subr.mxu0 0.0
  %186 = vmatpush1.msra.mxu0 0.0
  %187 = vmatprep.subr.mxu0 0.0
  %188 = vmatpush1.msra.mxu0 0.0
  %189 = vmatprep.subr.mxu0 0.0
  %190 = vmatpush1.msra.mxu0 0.0
  %191 = vmatprep.subr.mxu0 0.0
  %192 = vmatpush1.msra.mxu0 0.0
  %193 = vmatprep.subr.mxu0 0.0
  %194 = vmatpush1.msra.mxu0 0.0
  %195 = vmatprep.subr.mxu0 0.0
  %196 = vmatpush1.msra.mxu0 0.0
  %197 = vmatprep.subr.mxu0 0.0
  %198 = vmatpush1.msra.mxu0 0.0
  %199 = vmatprep.subr.mxu0 0.0
  %200 = vmatpush1.msra.mxu0 0.0
  %201 = vmatprep.subr.mxu0 0.0
  %202 = vmatpush1.msra.mxu0 0.0
  %203 = vmatprep.subr.mxu0 0.0
  %204 = vmatpush1.msra.mxu0 0.0
  %205 = vmatprep.subr.mxu0 0.0
  %206 = vmatpush1.msra.mxu0 0.0
  %207 = vmatprep.subr.mxu0 0.0
  %208 = vmatpush1.msra.mxu0 0.0
  %209 = vmatprep.subr.mxu0 0.0
  %210 = vmatpush1.msra.mxu0 0.0
  %211 = vmatprep.mubr.f32.mxu0 0.0
  %212 = vmatmul.mubr.f32.gmra.mrb[0].mxu0 %v100
  %v213 = vpop.f32.mrb[0].mxu0
  %v214 = vadd.f32 %v86, %v213
  %v215 = vpop.f32.mrb[0].mxu0
  %v216 = vadd.f32 %v90, %v215
  %217 = vmatprep.mubr.f32.mxu0 0.0
  %218 = vmatmul.mubr.f32.gmra.mrb[0].mxu0 %v103
  %v219 = vpop.f32.mrb[0].mxu0
  %v220 = vadd.f32 %v86, %v219
  %v221 = vpop.f32.mrb[0].mxu0
  %v222 = vadd.f32 %v90, %v221
  %223 = vmatprep.mubr.f32.mxu0 0.0
  %224 = vmatmul.mubr.f32.gmra.mrb[0].mxu0 %v106
  %v225 = vpop.f32.mrb[0].mxu0
  %v226 = vadd.f32 %v86, %v225
  %v227 = vpop.f32.mrb[0].mxu0
  %v228 = vadd.f32 %v90, %v227
  %229 = vmatprep.mubr.f32.mxu0 0.0
  %230 = vmatmul.mubr.f32.gmra.mrb[0].mxu0 %v109
  %v231 = vpop.f32.mrb[0].mxu0
  %v232 = vadd.f32 %v86, %v231
  %v233 = vpop.f32.mrb[0].mxu0
  %v234 = vadd.f32 %v90, %v233
  %235 = vmatprep.mubr.f32.mxu0 0.0
  %236 = vmatmul.mubr.f32.gmra.mrb[0].mxu0 %v112
  %v237 = vpop.f32.mrb[0].mxu0
  %v238 = vadd.f32 %v86, %v237
  %v239 = vpop.f32.mrb[0].mxu0
  %v240 = vadd.f32 %v90, %v239
  %241 = vmatprep.mubr.f32.mxu0 0.0
  %242 = vmatmul.mubr.f32.gmra.mrb[0].mxu0 %v115
  %v243 = vpop.f32.mrb[0].mxu0
  %v244 = vadd.f32 %v86, %v243
  %v245 = vpop.f32.mrb[0].mxu0
  %v246 = vadd.f32 %v90, %v245
  %247 = vmatprep.mubr.f32.mxu0 0.0
  %248 = vmatmul.mubr.f32.gmra.mrb[0].mxu0 %v118
  %v249 = vpop.f32.mrb[0].mxu0
  %v250 = vadd.f32 %v86, %v249
  %v251 = vpop.f32.mrb[0].mxu0
  %v252 = vadd.f32 %v90, %v251
  %253 = vmatprep.mubr.f32.mxu0 0.0
  %254 = vmatmul.mubr.f32.gmra.mrb[0].mxu0 %v121
  %v255 = vpop.f32.mrb[0].mxu0
  %v256 = vadd.f32 %v86, %v255
  %v257 = vpop.f32.mrb[0].mxu0
  %v258 = vadd.f32 %v90, %v257
  %259 = vmatprep.mubr.f32.mxu0 0.0
  %260 = vmatmul.mubr.f32.gmra.mrb[0].mxu0 %v124
  %v261 = vpop.f32.mrb[0].mxu0
  %v262 = vadd.f32 %v86, %v261
  %v263 = vpop.f32.mrb[0].mxu0
  %v264 = vadd.f32 %v90, %v263
  %265 = vmatprep.mubr.f32.mxu0 0.0
  %266 = vmatmul.mubr.f32.gmra.mrb[0].mxu0 %v127
  %v267 = vpop.f32.mrb[0].mxu0
  %v268 = vadd.f32 %v86, %v267
  %v269 = vpop.f32.mrb[0].mxu0
  %v270 = vadd.f32 %v90, %v269
  %271 = vmatprep.mubr.f32.mxu0 0.0
  %272 = vmatmul.mubr.f32.gmra.mrb[0].mxu0 %v130
  %v273 = vpop.f32.mrb[0].mxu0
  %v274 = vadd.f32 %v86, %v273
  %v275 = vpop.f32.mrb[0].mxu0
  %v276 = vadd.f32 %v90, %v275
  %277 = vmatprep.mubr.f32.mxu0 0.0
  %278 = vmatmul.mubr.f32.gmra.mrb[0].mxu0 %v133
  %v279 = vpop.f32.mrb[0].mxu0
  %v280 = vadd.f32 %v86, %v279
  %v281 = vpop.f32.mrb[0].mxu0
  %v282 = vadd.f32 %v90, %v281
  %283 = vmatprep.mubr.f32.mxu0 0.0
  %284 = vmatmul.mubr.f32.gmra.mrb[0].mxu0 %v136
  %v285 = vpop.f32.mrb[0].mxu0
  %v286 = vadd.f32 %v86, %v285
  %v287 = vpop.f32.mrb[0].mxu0
  %v288 = vadd.f32 %v90, %v287
  %289 = vmatprep.mubr.f32.mxu0 0.0
  %290 = vmatmul.mubr.f32.gmra.mrb[0].mxu0 %v139
  %v291 = vpop.f32.mrb[0].mxu0
  %v292 = vadd.f32 %v86, %v291
  %v293 = vpop.f32.mrb[0].mxu0
  %v294 = vadd.f32 %v90, %v293
  %295 = vmatprep.mubr.f32.mxu0 0.0
  %296 = vmatmul.mubr.f32.gmra.mrb[0].mxu0 %v142
  %v297 = vpop.f32.mrb[0].mxu0
  %v298 = vadd.f32 %v86, %v297
  %v299 = vpop.f32.mrb[0].mxu0
  %v300 = vadd.f32 %v90, %v299
  %301 = vmatprep.mubr.f32.mxu0 0.0
  %302 = vmatmul.mubr.f32.gmra.mrb[0].mxu0 %v145
  %v303 = vpop.f32.mrb[0].mxu0
  %v304 = vadd.f32 %v86, %v303
  %v305 = vpop.f32.mrb[0].mxu0
  %v306 = vadd.f32 %v90, %v305
  %307 = vdwg.mxu0
  %308 = vmatprep.subr.mxu0 0.0
  %309 = vmatpush1.msra.mxu0 %v71
  %310 = vmatprep.subr.mxu0 0.0
  %311 = vmatpush1.msra.mxu0 %v74
  %312 = vmatprep.subr.mxu0 0.0
  %313 = vmatpush1.msra.mxu0 %v77
  %314 = vmatprep.subr.mxu0 0.0
  %315 = vmatpush1.msra.mxu0 %v80
  %316 = vmatprep.subr.mxu0 0.0
  %317 = vmatpush1.msra.mxu0 0.0
  %318 = vmatprep.subr.mxu0 0.0
  %319 = vmatpush1.msra.mxu0 0.0
  %320 = vmatprep.subr.mxu0 0.0
  %321 = vmatpush1.msra.mxu0 0.0
  %322 = vmatprep.subr.mxu0 0.0
  %323 = vmatpush1.msra.mxu0 0.0
  %324 = vmatprep.subr.mxu0 0.0
  %325 = vmatpush1.msra.mxu0 0.0
  %326 = vmatprep.subr.mxu0 0.0
  %327 = vmatpush1.msra.mxu0 0.0
  %328 = vmatprep.subr.mxu0 0.0
  %329 = vmatpush1.msra.mxu0 0.0
  %330 = vmatprep.subr.mxu0 0.0
  %331 = vmatpush1.msra.mxu0 0.0
  %332 = vmatprep.subr.mxu0 0.0
  %333 = vmatpush1.msra.mxu0 0.0
  %334 = vmatprep.subr.mxu0 0.0
  %335 = vmatpush1.msra.mxu0 0.0
  %336 = vmatprep.subr.mxu0 0.0
  %337 = vmatpush1.msra.mxu0 0.0
  %338 = vmatprep.subr.mxu0 0.0
  %339 = vmatpush1.msra.mxu0 0.0
  %340 = vmatprep.subr.mxu0 0.0
  %341 = vmatpush1.msra.mxu0 0.0
  %342 = vmatprep.subr.mxu0 0.0
  %343 = vmatpush1.msra.mxu0 0.0
  %344 = vmatprep.subr.mxu0 0.0
  %345 = vmatpush1.msra.mxu0 0.0
  %346 = vmatprep.subr.mxu0 0.0
  %347 = vmatpush1.msra.mxu0 0.0
  %348 = vmatprep.subr.mxu0 0.0
  %349 = vmatpush1.msra.mxu0 0.0
  %350 = vmatprep.subr.mxu0 0.0
  %351 = vmatpush1.msra.mxu0 0.0
  %352 = vmatprep.subr.mxu0 0.0
  %353 = vmatpush1.msra.mxu0 0.0
  %354 = vmatprep.subr.mxu0 0.0
  %355 = vmatpush1.msra.mxu0 0.0
  %356 = vmatprep.subr.mxu0 0.0
  %357 = vmatpush1.msra.mxu0 0.0
  %358 = vmatprep.subr.mxu0 0.0
  %359 = vmatpush1.msra.mxu0 0.0
  %360 = vmatprep.subr.mxu0 0.0
  %361 = vmatpush1.msra.mxu0 0.0
  %362 = vmatprep.subr.mxu0 0.0
  %363 = vmatpush1.msra.mxu0 0.0
  %364 = vmatprep.subr.mxu0 0.0
  %365 = vmatpush1.msra.mxu0 0.0
  %366 = vmatprep.subr.mxu0 0.0
  %367 = vmatpush1.msra.mxu0 0.0
  %368 = vmatprep.subr.mxu0 0.0
  %369 = vmatpush1.msra.mxu0 0.0
  %370 = vmatprep.subr.mxu0 0.0
  %371 = vmatpush1.msra.mxu0 0.0
  %372 = vmatprep.mubr.f32.mxu0 0.0
  %373 = vmatmul.mubr.f32.gmra.mrb[0].mxu0 %v100
  %v374 = vpop.f32.mrb[0].mxu0
  %v375 = vadd.f32 %v94, %v374
  %v376 = vpop.f32.mrb[0].mxu0
  %377 = vmatprep.mubr.f32.mxu0 0.0
  %378 = vmatmul.mubr.f32.gmra.mrb[0].mxu0 %v103
  %v379 = vpop.f32.mrb[0].mxu0
  %v380 = vadd.f32 %v94, %v379
  %v381 = vpop.f32.mrb[0].mxu0
  %382 = vmatprep.mubr.f32.mxu0 0.0
  %383 = vmatmul.mubr.f32.gmra.mrb[0].mxu0 %v106
  %v384 = vpop.f32.mrb[0].mxu0
  %v385 = vadd.f32 %v94, %v384
  %v386 = vpop.f32.mrb[0].mxu0
  %387 = vmatprep.mubr.f32.mxu0 0.0
  %388 = vmatmul.mubr.f32.gmra.mrb[0].mxu0 %v109
  %v389 = vpop.f32.mrb[0].mxu0
  %v390 = vadd.f32 %v94, %v389
  %v391 = vpop.f32.mrb[0].mxu0
  %392 = vmatprep.mubr.f32.mxu0 0.0
  %393 = vmatmul.mubr.f32.gmra.mrb[0].mxu0 %v112
  %v394 = vpop.f32.mrb[0].mxu0
  %v395 = vadd.f32 %v94, %v394
  %v396 = vpop.f32.mrb[0].mxu0
  %397 = vmatprep.mubr.f32.mxu0 0.0
  %398 = vmatmul.mubr.f32.gmra.mrb[0].mxu0 %v115
  %v399 = vpop.f32.mrb[0].mxu0
  %v400 = vadd.f32 %v94, %v399
  %v401 = vpop.f32.mrb[0].mxu0
  %402 = vmatprep.mubr.f32.mxu0 0.0
  %403 = vmatmul.mubr.f32.gmra.mrb[0].mxu0 %v118
  %v404 = vpop.f32.mrb[0].mxu0
  %v405 = vadd.f32 %v94, %v404
  %v406 = vpop.f32.mrb[0].mxu0
  %407 = vmatprep.mubr.f32.mxu0 0.0
  %408 = vmatmul.mubr.f32.gmra.mrb[0].mxu0 %v121
  %v409 = vpop.f32.mrb[0].mxu0
  %v410 = vadd.f32 %v94, %v409
  %v411 = vpop.f32.mrb[0].mxu0
  %412 = vmatprep.mubr.f32.mxu0 0.0
  %413 = vmatmul.mubr.f32.gmra.mrb[0].mxu0 %v124
  %v414 = vpop.f32.mrb[0].mxu0
  %v415 = vadd.f32 %v94, %v414
  %v416 = vpop.f32.mrb[0].mxu0
  %417 = vmatprep.mubr.f32.mxu0 0.0
  %418 = vmatmul.mubr.f32.gmra.mrb[0].mxu0 %v127
  %v419 = vpop.f32.mrb[0].mxu0
  %v420 = vadd.f32 %v94, %v419
  %v421 = vpop.f32.mrb[0].mxu0
  %422 = vmatprep.mubr.f32.mxu0 0.0
  %423 = vmatmul.mubr.f32.gmra.mrb[0].mxu0 %v130
  %v424 = vpop.f32.mrb[0].mxu0
  %v425 = vadd.f32 %v94, %v424
  %v426 = vpop.f32.mrb[0].mxu0
  %427 = vmatprep.mubr.f32.mxu0 0.0
  %428 = vmatmul.mubr.f32.gmra.mrb[0].mxu0 %v133
  %v429 = vpop.f32.mrb[0].mxu0
  %v430 = vadd.f32 %v94, %v429
  %v431 = vpop.f32.mrb[0].mxu0
  %432 = vmatprep.mubr.f32.mxu0 0.0
  %433 = vmatmul.mubr.f32.gmra.mrb[0].mxu0 %v136
  %v434 = vpop.f32.mrb[0].mxu0
  %v435 = vadd.f32 %v94, %v434
  %v436 = vpop.f32.mrb[0].mxu0
  %437 = vmatprep.mubr.f32.mxu0 0.0
  %438 = vmatmul.mubr.f32.gmra.mrb[0].mxu0 %v139
  %v439 = vpop.f32.mrb[0].mxu0
  %v440 = vadd.f32 %v94, %v439
  %v441 = vpop.f32.mrb[0].mxu0
  %442 = vmatprep.mubr.f32.mxu0 0.0
  %443 = vmatmul.mubr.f32.gmra.mrb[0].mxu0 %v142
  %v444 = vpop.f32.mrb[0].mxu0
  %v445 = vadd.f32 %v94, %v444
  %v446 = vpop.f32.mrb[0].mxu0
  %447 = vmatprep.mubr.f32.mxu0 0.0
  %448 = vmatmul.mubr.f32.gmra.mrb[0].mxu0 %v145
  %v449 = vpop.f32.mrb[0].mxu0
  %v450 = vadd.f32 %v94, %v449
  %v451 = vpop.f32.mrb[0].mxu0
  %452 = vdwg.mxu0
  %453 = vst [vmem:[#allocation4] sm:$0xff] %v214
  %454 = vst [vmem:[#allocation4 + $0x8] sm:$0xff] %v216
  %455 = vst [vmem:[#allocation4 + $0x10] sm:$0xff] %v375
  %456 = vst [vmem:[#allocation4 + $0x18] sm:$0xff] %v220
  %457 = vst [vmem:[#allocation4 + $0x20] sm:$0xff] %v222
  %458 = vst [vmem:[#allocation4 + $0x28] sm:$0xff] %v380
  %459 = vst [vmem:[#allocation4 + $0x30] sm:$0xff] %v226
  %460 = vst [vmem:[#allocation4 + $0x38] sm:$0xff] %v228
  %461 = vst [vmem:[#allocation4 + $0x40] sm:$0xff] %v385
  %462 = vst [vmem:[#allocation4 + $0x48] sm:$0xff] %v232
  %463 = vst [vmem:[#allocation4 + $0x50] sm:$0xff] %v234
  %464 = vst [vmem:[#allocation4 + $0x58] sm:$0xff] %v390
  %465 = vst [vmem:[#allocation4 + $0x60] sm:$0xff] %v238
  %466 = vst [vmem:[#allocation4 + $0x68] sm:$0xff] %v240
  %467 = vst [vmem:[#allocation4 + $0x70] sm:$0xff] %v395
  %468 = vst [vmem:[#allocation4 + $0x78] sm:$0xff] %v244
  %469 = vst [vmem:[#allocation4 + $0x80] sm:$0xff] %v246
  %470 = vst [vmem:[#allocation4 + $0x88] sm:$0xff] %v400
  %471 = vst [vmem:[#allocation4 + $0x90] sm:$0xff] %v250
  %472 = vst [vmem:[#allocation4 + $0x98] sm:$0xff] %v252
  %473 = vst [vmem:[#allocation4 + $0xa0] sm:$0xff] %v405
  %474 = vst [vmem:[#allocation4 + $0xa8] sm:$0xff] %v256
  %475 = vst [vmem:[#allocation4 + $0xb0] sm:$0xff] %v258
  %476 = vst [vmem:[#allocation4 + $0xb8] sm:$0xff] %v410
  %477 = vst [vmem:[#allocation4 + $0xc0] sm:$0xff] %v262
  %478 = vst [vmem:[#allocation4 + $0xc8] sm:$0xff] %v264
  %479 = vst [vmem:[#allocation4 + $0xd0] sm:$0xff] %v415
  %480 = vst [vmem:[#allocation4 + $0xd8] sm:$0xff] %v268
  %481 = vst [vmem:[#allocation4 + $0xe0] sm:$0xff] %v270
  %482 = vst [vmem:[#allocation4 + $0xe8] sm:$0xff] %v420
  %483 = vst [vmem:[#allocation4 + $0xf0] sm:$0xff] %v274
  %484 = vst [vmem:[#allocation4 + $0xf8] sm:$0xff] %v276
  %485 = vst [vmem:[#allocation4 + $0x100] sm:$0xff] %v425
  %486 = vst [vmem:[#allocation4 + $0x108] sm:$0xff] %v280
  %487 = vst [vmem:[#allocation4 + $0x110] sm:$0xff] %v282
  %488 = vst [vmem:[#allocation4 + $0x118] sm:$0xff] %v430
  %489 = vst [vmem:[#allocation4 + $0x120] sm:$0xff] %v286
  %490 = vst [vmem:[#allocation4 + $0x128] sm:$0xff] %v288
  %491 = vst [vmem:[#allocation4 + $0x130] sm:$0xff] %v435
  %492 = vst [vmem:[#allocation4 + $0x138] sm:$0xff] %v292
  %493 = vst [vmem:[#allocation4 + $0x140] sm:$0xff] %v294
  %494 = vst [vmem:[#allocation4 + $0x148] sm:$0xff] %v440
  %495 = vst [vmem:[#allocation4 + $0x150] sm:$0xff] %v298
  %496 = vst [vmem:[#allocation4 + $0x158] sm:$0xff] %v300
  %497 = vst [vmem:[#allocation4 + $0x160] sm:$0xff] %v445
  %498 = vst [vmem:[#allocation4 + $0x168] sm:$0xff] %v304
  %499 = vst [vmem:[#allocation4 + $0x170] sm:$0xff] %v306
  %500 = vst [vmem:[#allocation4 + $0x178] sm:$0xff] %v450
  %v501 = vld [vmem:[%s6] sm:$0x7]
  %v503 = vlaneseq
  %v504 = vshrl.u32 %v503, 7
  %v505 = vsub.s32 0, %v504
  %v506 = vrot.slane %v501, %v505
  %v507 = vlaneseq
  %v508 = vshrl.u32 %v507, 7
  %v509 = vsub.s32 1, %v508
  %v510 = vrot.slane %v501, %v509
  %v511 = vlaneseq
  %v512 = vshrl.u32 %v511, 7
  %v513 = vsub.s32 2, %v512
  %v514 = vrot.slane %v501, %v513
  %v518 = vld [vmem:[%s4] sm:$0xff]
  %v519 = vld [vmem:[%s4 + $0x8] sm:$0xff]
  %v520 = vld [vmem:[%s4 + $0x10] sm:$0xff]
  %v521 = vld [vmem:[%s4 + $0x18] sm:$0xff]
  %v522 = vld [vmem:[%s4 + $0x20] sm:$0xff]
  %v523 = vld [vmem:[%s4 + $0x28] sm:$0xff]
  %v524 = vld [vmem:[%s4 + $0x30] sm:$0xff]
  %v525 = vld [vmem:[%s4 + $0x38] sm:$0xff]
  %v526 = vld [vmem:[%s4 + $0x40] sm:$0xff]
  %v527 = vld [vmem:[%s4 + $0x48] sm:$0xff]
  %v528 = vld [vmem:[%s4 + $0x50] sm:$0xff]
  %v529 = vld [vmem:[%s4 + $0x58] sm:$0xff]
  %v531 = vsel %vm98, 0.0, 0
  %533 = vmatprep.subr.mxu0 %v519
  %534 = vmatpush1.msra.mxu0 %v518
  %535 = vmatprep.subr.mxu0 %v522
  %536 = vmatpush1.msra.mxu0 %v521
  %537 = vmatprep.subr.mxu0 %v525
  %538 = vmatpush1.msra.mxu0 %v524
  %539 = vmatprep.subr.mxu0 %v528
  %540 = vmatpush1.msra.mxu0 %v527
  %541 = vmatprep.subr.mxu0 0.0
  %542 = vmatpush1.msra.mxu0 0.0
  %543 = vmatprep.subr.mxu0 0.0
  %544 = vmatpush1.msra.mxu0 0.0
  %545 = vmatprep.subr.mxu0 0.0
  %546 = vmatpush1.msra.mxu0 0.0
  %547 = vmatprep.subr.mxu0 0.0
  %548 = vmatpush1.msra.mxu0 0.0
  %549 = vmatprep.subr.mxu0 0.0
  %550 = vmatpush1.msra.mxu0 0.0
  %551 = vmatprep.subr.mxu0 0.0
  %552 = vmatpush1.msra.mxu0 0.0
  %553 = vmatprep.subr.mxu0 0.0
  %554 = vmatpush1.msra.mxu0 0.0
  %555 = vmatprep.subr.mxu0 0.0
  %556 = vmatpush1.msra.mxu0 0.0
  %557 = vmatprep.subr.mxu0 0.0
  %558 = vmatpush1.msra.mxu0 0.0
  %559 = vmatprep.subr.mxu0 0.0
  %560 = vmatpush1.msra.mxu0 0.0
  %561 = vmatprep.subr.mxu0 0.0
  %562 = vmatpush1.msra.mxu0 0.0
  %563 = vmatprep.subr.mxu0 0.0
  %564 = vmatpush1.msra.mxu0 0.0
  %565 = vmatprep.subr.mxu0 0.0
  %566 = vmatpush1.msra.mxu0 0.0
  %567 = vmatprep.subr.mxu0 0.0
  %568 = vmatpush1.msra.mxu0 0.0
  %569 = vmatprep.subr.mxu0 0.0
  %570 = vmatpush1.msra.mxu0 0.0
  %571 = vmatprep.subr.mxu0 0.0
  %572 = vmatpush1.msra.mxu0 0.0
  %573 = vmatprep.subr.mxu0 0.0
  %574 = vmatpush1.msra.mxu0 0.0
  %575 = vmatprep.subr.mxu0 0.0
  %576 = vmatpush1.msra.mxu0 0.0
  %577 = vmatprep.subr.mxu0 0.0
  %578 = vmatpush1.msra.mxu0 0.0
  %579 = vmatprep.subr.mxu0 0.0
  %580 = vmatpush1.msra.mxu0 0.0
  %581 = vmatprep.subr.mxu0 0.0
  %582 = vmatpush1.msra.mxu0 0.0
  %583 = vmatprep.subr.mxu0 0.0
  %584 = vmatpush1.msra.mxu0 0.0
  %585 = vmatprep.subr.mxu0 0.0
  %586 = vmatpush1.msra.mxu0 0.0
  %587 = vmatprep.subr.mxu0 0.0
  %588 = vmatpush1.msra.mxu0 0.0
  %589 = vmatprep.subr.mxu0 0.0
  %590 = vmatpush1.msra.mxu0 0.0
  %591 = vmatprep.subr.mxu0 0.0
  %592 = vmatpush1.msra.mxu0 0.0
  %593 = vmatprep.subr.mxu0 0.0
  %594 = vmatpush1.msra.mxu0 0.0
  %595 = vmatprep.subr.mxu0 0.0
  %596 = vmatpush1.msra.mxu0 0.0
  %597 = vmatprep.mubr.f32.mxu0 0.0
  %598 = vmatmul.mubr.f32.gmra.mrb[0].mxu0 %v531
  %v599 = vpop.f32.mrb[0].mxu0
  %v600 = vadd.f32 %v506, %v599
  %v601 = vpop.f32.mrb[0].mxu0
  %v602 = vadd.f32 %v510, %v601
  %603 = vmatprep.mubr.f32.mxu0 0.0
  %604 = vmatmul.mubr.f32.gmra.mrb[0].mxu0 %v531
  %v605 = vpop.f32.mrb[0].mxu0
  %v606 = vadd.f32 %v506, %v605
  %v607 = vpop.f32.mrb[0].mxu0
  %v608 = vadd.f32 %v510, %v607
  %609 = vdwg.mxu0
  %610 = vmatprep.subr.mxu0 0.0
  %611 = vmatpush1.msra.mxu0 %v520
  %612 = vmatprep.subr.mxu0 0.0
  %613 = vmatpush1.msra.mxu0 %v523
  %614 = vmatprep.subr.mxu0 0.0
  %615 = vmatpush1.msra.mxu0 %v526
  %616 = vmatprep.subr.mxu0 0.0
  %617 = vmatpush1.msra.mxu0 %v529
  %618 = vmatprep.subr.mxu0 0.0
  %619 = vmatpush1.msra.mxu0 0.0
  %620 = vmatprep.subr.mxu0 0.0
  %621 = vmatpush1.msra.mxu0 0.0
  %622 = vmatprep.subr.mxu0 0.0
  %623 = vmatpush1.msra.mxu0 0.0
  %624 = vmatprep.subr.mxu0 0.0
  %625 = vmatpush1.msra.mxu0 0.0
  %626 = vmatprep.subr.mxu0 0.0
  %627 = vmatpush1.msra.mxu0 0.0
  %628 = vmatprep.subr.mxu0 0.0
  %629 = vmatpush1.msra.mxu0 0.0
  %630 = vmatprep.subr.mxu0 0.0
  %631 = vmatpush1.msra.mxu0 0.0
  %632 = vmatprep.subr.mxu0 0.0
  %633 = vmatpush1.msra.mxu0 0.0
  %634 = vmatprep.subr.mxu0 0.0
  %635 = vmatpush1.msra.mxu0 0.0
  %636 = vmatprep.subr.mxu0 0.0
  %637 = vmatpush1.msra.mxu0 0.0
  %638 = vmatprep.subr.mxu0 0.0
  %639 = vmatpush1.msra.mxu0 0.0
  %640 = vmatprep.subr.mxu0 0.0
  %641 = vmatpush1.msra.mxu0 0.0
  %642 = vmatprep.subr.mxu0 0.0
  %643 = vmatpush1.msra.mxu0 0.0
  %644 = vmatprep.subr.mxu0 0.0
  %645 = vmatpush1.msra.mxu0 0.0
  %646 = vmatprep.subr.mxu0 0.0
  %647 = vmatpush1.msra.mxu0 0.0
  %648 = vmatprep.subr.mxu0 0.0
  %649 = vmatpush1.msra.mxu0 0.0
  %650 = vmatprep.subr.mxu0 0.0
  %651 = vmatpush1.msra.mxu0 0.0
  %652 = vmatprep.subr.mxu0 0.0
  %653 = vmatpush1.msra.mxu0 0.0
  %654 = vmatprep.subr.mxu0 0.0
  %655 = vmatpush1.msra.mxu0 0.0
  %656 = vmatprep.subr.mxu0 0.0
  %657 = vmatpush1.msra.mxu0 0.0
  %658 = vmatprep.subr.mxu0 0.0
  %659 = vmatpush1.msra.mxu0 0.0
  %660 = vmatprep.subr.mxu0 0.0
  %661 = vmatpush1.msra.mxu0 0.0
  %662 = vmatprep.subr.mxu0 0.0
  %663 = vmatpush1.msra.mxu0 0.0
  %664 = vmatprep.subr.mxu0 0.0
  %665 = vmatpush1.msra.mxu0 0.0
  %666 = vmatprep.subr.mxu0 0.0
  %667 = vmatpush1.msra.mxu0 0.0
  %668 = vmatprep.subr.mxu0 0.0
  %669 = vmatpush1.msra.mxu0 0.0
  %670 = vmatprep.subr.mxu0 0.0
  %671 = vmatpush1.msra.mxu0 0.0
  %672 = vmatprep.subr.mxu0 0.0
  %673 = vmatpush1.msra.mxu0 0.0
  %674 = vmatprep.mubr.f32.mxu0 0.0
  %675 = vmatmul.mubr.f32.gmra.mrb[0].mxu0 %v531
  %v676 = vpop.f32.mrb[0].mxu0
  %v677 = vadd.f32 %v514, %v676
  %v678 = vpop.f32.mrb[0].mxu0
  %679 = vmatprep.mubr.f32.mxu0 0.0
  %680 = vmatmul.mubr.f32.gmra.mrb[0].mxu0 %v531
  %v681 = vpop.f32.mrb[0].mxu0
  %v682 = vadd.f32 %v514, %v681
  %v683 = vpop.f32.mrb[0].mxu0
  %684 = vdwg.mxu0
  %v685 = vld [vmem:[#allocation4] sm:$0xff]
  %v686 = vld [vmem:[#allocation4 + $0x8] sm:$0xff]
  %v687 = vld [vmem:[#allocation4 + $0x10] sm:$0xff]
  %v688 = vld [vmem:[#allocation4 + $0x18] sm:$0xff]
  %v689 = vld [vmem:[#allocation4 + $0x20] sm:$0xff]
  %v690 = vld [vmem:[#allocation4 + $0x28] sm:$0xff]
  %v691 = vadd.f32 %v685, %v600
  %v692 = vadd.f32 %v688, %v606
  %v693 = vxor.u32 %v691, 2147483648
  %v694 = vxor.u32 %v692, 2147483648
  %v695 = vmul.f32 %v693, 1.442695
  %v696 = vpow.pop %v695
  %v697 = vmul.f32 %v694, 1.442695
  %v698 = vpow.pop %v697
  %v699 = vadd.f32 %v696, 1.0
  %v700 = vadd.f32 %v698, 1.0
  %v701 = vrcp.pop %v699
  %v702 = vmul.f32 1.0, %v701
  %v703 = vrcp.pop %v700
  %v704 = vmul.f32 1.0, %v703
  %v705 = vadd.f32 %v686, %v602
  %v706 = vadd.f32 %v689, %v608
  %v707 = vxor.u32 %v705, 2147483648
  %v708 = vxor.u32 %v706, 2147483648
  %v709 = vmul.f32 %v707, 1.442695
  %v710 = vpow.pop %v709
  %v711 = vmul.f32 %v708, 1.442695
  %v712 = vpow.pop %v711
  %v713 = vadd.f32 %v710, 1.0
  %v714 = vadd.f32 %v712, 1.0
  %v715 = vrcp.pop %v713
  %v716 = vmul.f32 1.0, %v715
  %v717 = vrcp.pop %v714
  %v718 = vmul.f32 1.0, %v717
  %v719 = vmul.f32 %v702, %v677
  %v720 = vmul.f32 %v704, %v682
  %v721 = vadd.f32 %v687, %v719
  %v722 = vadd.f32 %v690, %v720
  %v723 = vtanh.pop %v721
  %v724 = vtanh.pop %v722
  %v725 = vsub.f32 1.0, %v716
  %v726 = vsub.f32 1.0, %v718
  %v727 = vmul.f32 %v725, %v723
  %v728 = vmul.f32 %v726, %v724
  %v729 = vmul.f32 %v716, 0.0
  %v730 = vmul.f32 %v718, 0.0
  %v731 = vadd.f32 %v727, %v729
  %v732 = vadd.f32 %v728, %v730
  %733 = vst.msk [vmem:[#allocation2] sm:$0xff] %vm98, %v731
  %734 = vst.msk [vmem:[#allocation2 + $0x8] sm:$0xff] %vm98, %v732
  %v735 = vld [vmem:[%s4] sm:$0xff]
  %v736 = vld [vmem:[%s4 + $0x8] sm:$0xff]
  %v737 = vld [vmem:[%s4 + $0x10] sm:$0xff]
  %v738 = vld [vmem:[%s4 + $0x18] sm:$0xff]
  %v739 = vld [vmem:[%s4 + $0x20] sm:$0xff]
  %v740 = vld [vmem:[%s4 + $0x28] sm:$0xff]
  %v741 = vld [vmem:[%s4 + $0x30] sm:$0xff]
  %v742 = vld [vmem:[%s4 + $0x38] sm:$0xff]
  %v743 = vld [vmem:[%s4 + $0x40] sm:$0xff]
  %v744 = vld [vmem:[%s4 + $0x48] sm:$0xff]
  %v745 = vld [vmem:[%s4 + $0x50] sm:$0xff]
  %v746 = vld [vmem:[%s4 + $0x58] sm:$0xff]
  %v748 = vsel %vm98, %v731, 0
  %v751 = vsel %vm98, %v732, 0
  %753 = vmatprep.subr.mxu0 %v736
  %754 = vmatpush1.msra.mxu0 %v735
  %755 = vmatprep.subr.mxu0 %v739
  %756 = vmatpush1.msra.mxu0 %v738
  %757 = vmatprep.subr.mxu0 %v742
  %758 = vmatpush1.msra.mxu0 %v741
  %759 = vmatprep.subr.mxu0 %v745
  %760 = vmatpush1.msra.mxu0 %v744
  %761 = vmatprep.subr.mxu0 0.0
  %762 = vmatpush1.msra.mxu0 0.0
  %763 = vmatprep.subr.mxu0 0.0
  %764 = vmatpush1.msra.mxu0 0.0
  %765 = vmatprep.subr.mxu0 0.0
  %766 = vmatpush1.msra.mxu0 0.0
  %767 = vmatprep.subr.mxu0 0.0
  %768 = vmatpush1.msra.mxu0 0.0
  %769 = vmatprep.subr.mxu0 0.0
  %770 = vmatpush1.msra.mxu0 0.0
  %771 = vmatprep.subr.mxu0 0.0
  %772 = vmatpush1.msra.mxu0 0.0
  %773 = vmatprep.subr.mxu0 0.0
  %774 = vmatpush1.msra.mxu0 0.0
  %775 = vmatprep.subr.mxu0 0.0
  %776 = vmatpush1.msra.mxu0 0.0
  %777 = vmatprep.subr.mxu0 0.0
  %778 = vmatpush1.msra.mxu0 0.0
  %779 = vmatprep.subr.mxu0 0.0
  %780 = vmatpush1.msra.mxu0 0.0
  %781 = vmatprep.subr.mxu0 0.0
  %782 = vmatpush1.msra.mxu0 0.0
  %783 = vmatprep.subr.mxu0 0.0
  %784 = vmatpush1.msra.mxu0 0.0
  %785 = vmatprep.subr.mxu0 0.0
  %786 = vmatpush1.msra.mxu0 0.0
  %787 = vmatprep.subr.mxu0 0.0
  %788 = vmatpush1.msra.mxu0 0.0
  %789 = vmatprep.subr.mxu0 0.0
  %790 = vmatpush1.msra.mxu0 0.0
  %791 = vmatprep.subr.mxu0 0.0
  %792 = vmatpush1.msra.mxu0 0.0
  %793 = vmatprep.subr.mxu0 0.0
  %794 = vmatpush1.msra.mxu0 0.0
  %795 = vmatprep.subr.mxu0 0.0
  %796 = vmatpush1.msra.mxu0 0.0
  %797 = vmatprep.subr.mxu0 0.0
  %798 = vmatpush1.msra.mxu0 0.0
  %799 = vmatprep.subr.mxu0 0.0
  %800 = vmatpush1.msra.mxu0 0.0
  %801 = vmatprep.subr.mxu0 0.0
  %802 = vmatpush1.msra.mxu0 0.0
  %803 = vmatprep.subr.mxu0 0.0
  %804 = vmatpush1.msra.mxu0 0.0
  %805 = vmatprep.subr.mxu0 0.0
  %806 = vmatpush1.msra.mxu0 0.0
  %807 = vmatprep.subr.mxu0 0.0
  %808 = vmatpush1.msra.mxu0 0.0
  %809 = vmatprep.subr.mxu0 0.0
  %810 = vmatpush1.msra.mxu0 0.0
  %811 = vmatprep.subr.mxu0 0.0
  %812 = vmatpush1.msra.mxu0 0.0
  %813 = vmatprep.subr.mxu0 0.0
  %814 = vmatpush1.msra.mxu0 0.0
  %815 = vmatprep.subr.mxu0 0.0
  %816 = vmatpush1.msra.mxu0 0.0
  %817 = vmatprep.mubr.f32.mxu0 0.0
  %818 = vmatmul.mubr.f32.gmra.mrb[0].mxu0 %v748
  %v819 = vpop.f32.mrb[0].mxu0
  %v820 = vadd.f32 %v506, %v819
  %v821 = vpop.f32.mrb[0].mxu0
  %v822 = vadd.f32 %v510, %v821
  %823 = vmatprep.mubr.f32.mxu0 0.0
  %824 = vmatmul.mubr.f32.gmra.mrb[0].mxu0 %v751
  %v825 = vpop.f32.mrb[0].mxu0
  %v826 = vadd.f32 %v506, %v825
  %v827 = vpop.f32.mrb[0].mxu0
  %v828 = vadd.f32 %v510, %v827
  %829 = vdwg.mxu0
  %830 = vmatprep.subr.mxu0 0.0
  %831 = vmatpush1.msra.mxu0 %v737
  %832 = vmatprep.subr.mxu0 0.0
  %833 = vmatpush1.msra.mxu0 %v740
  %834 = vmatprep.subr.mxu0 0.0
  %835 = vmatpush1.msra.mxu0 %v743
  %836 = vmatprep.subr.mxu0 0.0
  %837 = vmatpush1.msra.mxu0 %v746
  %838 = vmatprep.subr.mxu0 0.0
  %839 = vmatpush1.msra.mxu0 0.0
  %840 = vmatprep.subr.mxu0 0.0
  %841 = vmatpush1.msra.mxu0 0.0
  %842 = vmatprep.subr.mxu0 0.0
  %843 = vmatpush1.msra.mxu0 0.0
  %844 = vmatprep.subr.mxu0 0.0
  %845 = vmatpush1.msra.mxu0 0.0
  %846 = vmatprep.subr.mxu0 0.0
  %847 = vmatpush1.msra.mxu0 0.0
  %848 = vmatprep.subr.mxu0 0.0
  %849 = vmatpush1.msra.mxu0 0.0
  %850 = vmatprep.subr.mxu0 0.0
  %851 = vmatpush1.msra.mxu0 0.0
  %852 = vmatprep.subr.mxu0 0.0
  %853 = vmatpush1.msra.mxu0 0.0
  %854 = vmatprep.subr.mxu0 0.0
  %855 = vmatpush1.msra.mxu0 0.0
  %856 = vmatprep.subr.mxu0 0.0
  %857 = vmatpush1.msra.mxu0 0.0
  %858 = vmatprep.subr.mxu0 0.0
  %859 = vmatpush1.msra.mxu0 0.0
  %860 = vmatprep.subr.mxu0 0.0
  %861 = vmatpush1.msra.mxu0 0.0
  %862 = vmatprep.subr.mxu0 0.0
  %863 = vmatpush1.msra.mxu0 0.0
  %864 = vmatprep.subr.mxu0 0.0
  %865 = vmatpush1.msra.mxu0 0.0
  %866 = vmatprep.subr.mxu0 0.0
  %867 = vmatpush1.msra.mxu0 0.0
  %868 = vmatprep.subr.mxu0 0.0
  %869 = vmatpush1.msra.mxu0 0.0
  %870 = vmatprep.subr.mxu0 0.0
  %871 = vmatpush1.msra.mxu0 0.0
  %872 = vmatprep.subr.mxu0 0.0
  %873 = vmatpush1.msra.mxu0 0.0
  %874 = vmatprep.subr.mxu0 0.0
  %875 = vmatpush1.msra.mxu0 0.0
  %876 = vmatprep.subr.mxu0 0.0
  %877 = vmatpush1.msra.mxu0 0.0
  %878 = vmatprep.subr.mxu0 0.0
  %879 = vmatpush1.msra.mxu0 0.0
  %880 = vmatprep.subr.mxu0 0.0
  %881 = vmatpush1.msra.mxu0 0.0
  %882 = vmatprep.subr.mxu0 0.0
  %883 = vmatpush1.msra.mxu0 0.0
  %884 = vmatprep.subr.mxu0 0.0
  %885 = vmatpush1.msra.mxu0 0.0
  %886 = vmatprep.subr.mxu0 0.0
  %887 = vmatpush1.msra.mxu0 0.0
  %888 = vmatprep.subr.mxu0 0.0
  %889 = vmatpush1.msra.mxu0 0.0
  %890 = vmatprep.subr.mxu0 0.0
  %891 = vmatpush1.msra.mxu0 0.0
  %892 = vmatprep.subr.mxu0 0.0
  %893 = vmatpush1.msra.mxu0 0.0
  %894 = vmatprep.mubr.f32.mxu0 0.0
  %895 = vmatmul.mubr.f32.gmra.mrb[0].mxu0 %v748
  %v896 = vpop.f32.mrb[0].mxu0
  %v897 = vadd.f32 %v514, %v896
  %v898 = vpop.f32.mrb[0].mxu0
  %899 = vmatprep.mubr.f32.mxu0 0.0
  %900 = vmatmul.mubr.f32.gmra.mrb[0].mxu0 %v751
  %v901 = vpop.f32.mrb[0].mxu0
  %v902 = vadd.f32 %v514, %v901
  %v903 = vpop.f32.mrb[0].mxu0
  %904 = vdwg.mxu0
  %v905 = vld [vmem:[#allocation4 + $0x30] sm:$0xff]
  %v906 = vld [vmem:[#allocation4 + $0x38] sm:$0xff]
  %v907 = vld [vmem:[#allocation4 + $0x40] sm:$0xff]
  %v908 = vld [vmem:[#allocation4 + $0x48] sm:$0xff]
  %v909 = vld [vmem:[#allocation4 + $0x50] sm:$0xff]
  %v910 = vld [vmem:[#allocation4 + $0x58] sm:$0xff]
  %v911 = vadd.f32 %v905, %v820
  %v912 = vadd.f32 %v908, %v826
  %v913 = vxor.u32 %v911, 2147483648
  %v914 = vxor.u32 %v912, 2147483648
  %v915 = vmul.f32 %v913, 1.442695
  %v916 = vpow.pop %v915
  %v917 = vmul.f32 %v914, 1.442695
  %v918 = vpow.pop %v917
  %v919 = vadd.f32 %v916, 1.0
  %v920 = vadd.f32 %v918, 1.0
  %v921 = vrcp.pop %v919
  %v922 = vmul.f32 1.0, %v921
  %v923 = vrcp.pop %v920
  %v924 = vmul.f32 1.0, %v923
  %v925 = vadd.f32 %v906, %v822
  %v926 = vadd.f32 %v909, %v828
  %v927 = vxor.u32 %v925, 2147483648
  %v928 = vxor.u32 %v926, 2147483648
  %v929 = vmul.f32 %v927, 1.442695
  %v930 = vpow.pop %v929
  %v931 = vmul.f32 %v928, 1.442695
  %v932 = vpow.pop %v931
  %v933 = vadd.f32 %v930, 1.0
  %v934 = vadd.f32 %v932, 1.0
  %v935 = vrcp.pop %v933
  %v936 = vmul.f32 1.0, %v935
  %v937 = vrcp.pop %v934
  %v938 = vmul.f32 1.0, %v937
  %v939 = vmul.f32 %v922, %v897
  %v940 = vmul.f32 %v924, %v902
  %v941 = vadd.f32 %v907, %v939
  %v942 = vadd.f32 %v910, %v940
  %v943 = vtanh.pop %v941
  %v944 = vtanh.pop %v942
  %v945 = vsub.f32 1.0, %v936
  %v946 = vsub.f32 1.0, %v938
  %v947 = vmul.f32 %v945, %v943
  %v948 = vmul.f32 %v946, %v944
  %v949 = vmul.f32 %v936, %v731
  %v950 = vmul.f32 %v938, %v732
  %v951 = vadd.f32 %v947, %v949
  %v952 = vadd.f32 %v948, %v950
  %953 = vst.msk [vmem:[#allocation2 + $0x10] sm:$0xff] %vm98, %v951
  %954 = vst.msk [vmem:[#allocation2 + $0x18] sm:$0xff] %vm98, %v952
  %v955 = vld [vmem:[%s4] sm:$0xff]
  %v956 = vld [vmem:[%s4 + $0x8] sm:$0xff]
  %v957 = vld [vmem:[%s4 + $0x10] sm:$0xff]
  %v958 = vld [vmem:[%s4 + $0x18] sm:$0xff]
  %v959 = vld [vmem:[%s4 + $0x20] sm:$0xff]
  %v960 = vld [vmem:[%s4 + $0x28] sm:$0xff]
  %v961 = vld [vmem:[%s4 + $0x30] sm:$0xff]
  %v962 = vld [vmem:[%s4 + $0x38] sm:$0xff]
  %v963 = vld [vmem:[%s4 + $0x40] sm:$0xff]
  %v964 = vld [vmem:[%s4 + $0x48] sm:$0xff]
  %v965 = vld [vmem:[%s4 + $0x50] sm:$0xff]
  %v966 = vld [vmem:[%s4 + $0x58] sm:$0xff]
  %v968 = vsel %vm98, %v951, 0
  %v971 = vsel %vm98, %v952, 0
  %973 = vmatprep.subr.mxu0 %v956
  %974 = vmatpush1.msra.mxu0 %v955
  %975 = vmatprep.subr.mxu0 %v959
  %976 = vmatpush1.msra.mxu0 %v958
  %977 = vmatprep.subr.mxu0 %v962
  %978 = vmatpush1.msra.mxu0 %v961
  %979 = vmatprep.subr.mxu0 %v965
  %980 = vmatpush1.msra.mxu0 %v964
  %981 = vmatprep.subr.mxu0 0.0
  %982 = vmatpush1.msra.mxu0 0.0
  %983 = vmatprep.subr.mxu0 0.0
  %984 = vmatpush1.msra.mxu0 0.0
  %985 = vmatprep.subr.mxu0 0.0
  %986 = vmatpush1.msra.mxu0 0.0
  %987 = vmatprep.subr.mxu0 0.0
  %988 = vmatpush1.msra.mxu0 0.0
  %989 = vmatprep.subr.mxu0 0.0
  %990 = vmatpush1.msra.mxu0 0.0
  %991 = vmatprep.subr.mxu0 0.0
  %992 = vmatpush1.msra.mxu0 0.0
  %993 = vmatprep.subr.mxu0 0.0
  %994 = vmatpush1.msra.mxu0 0.0
  %995 = vmatprep.subr.mxu0 0.0
  %996 = vmatpush1.msra.mxu0 0.0
  %997 = vmatprep.subr.mxu0 0.0
  %998 = vmatpush1.msra.mxu0 0.0
  %999 = vmatprep.subr.mxu0 0.0
  %1000 = vmatpush1.msra.mxu0 0.0
  %1001 = vmatprep.subr.mxu0 0.0
  %1002 = vmatpush1.msra.mxu0 0.0
  %1003 = vmatprep.subr.mxu0 0.0
  %1004 = vmatpush1.msra.mxu0 0.0
  %1005 = vmatprep.subr.mxu0 0.0
  %1006 = vmatpush1.msra.mxu0 0.0
  %1007 = vmatprep.subr.mxu0 0.0
  %1008 = vmatpush1.msra.mxu0 0.0
  %1009 = vmatprep.subr.mxu0 0.0
  %1010 = vmatpush1.msra.mxu0 0.0
  %1011 = vmatprep.subr.mxu0 0.0
  %1012 = vmatpush1.msra.mxu0 0.0
  %1013 = vmatprep.subr.mxu0 0.0
  %1014 = vmatpush1.msra.mxu0 0.0
  %1015 = vmatprep.subr.mxu0 0.0
  %1016 = vmatpush1.msra.mxu0 0.0
  %1017 = vmatprep.subr.mxu0 0.0
  %1018 = vmatpush1.msra.mxu0 0.0
  %1019 = vmatprep.subr.mxu0 0.0
  %1020 = vmatpush1.msra.mxu0 0.0
  %1021 = vmatprep.subr.mxu0 0.0
  %1022 = vmatpush1.msra.mxu0 0.0
  %1023 = vmatprep.subr.mxu0 0.0
  %1024 = vmatpush1.msra.mxu0 0.0
  %1025 = vmatprep.subr.mxu0 0.0
  %1026 = vmatpush1.msra.mxu0 0.0
  %1027 = vmatprep.subr.mxu0 0.0
  %1028 = vmatpush1.msra.mxu0 0.0
  %1029 = vmatprep.subr.mxu0 0.0
  %1030 = vmatpush1.msra.mxu0 0.0
  %1031 = vmatprep.subr.mxu0 0.0
  %1032 = vmatpush1.msra.mxu0 0.0
  %1033 = vmatprep.subr.mxu0 0.0
  %1034 = vmatpush1.msra.mxu0 0.0
  %1035 = vmatprep.subr.mxu0 0.0
  %1036 = vmatpush1.msra.mxu0 0.0
  %1037 = vmatprep.mubr.f32.mxu0 0.0
  %1038 = vmatmul.mubr.f32.gmra.mrb[0].mxu0 %v968
  %v1039 = vpop.f32.mrb[0].mxu0
  %v1040 = vadd.f32 %v506, %v1039
  %v1041 = vpop.f32.mrb[0].mxu0
  %v1042 = vadd.f32 %v510, %v1041
  %1043 = vmatprep.mubr.f32.mxu0 0.0
  %1044 = vmatmul.mubr.f32.gmra.mrb[0].mxu0 %v971
  %v1045 = vpop.f32.mrb[0].mxu0
  %v1046 = vadd.f32 %v506, %v1045
  %v1047 = vpop.f32.mrb[0].mxu0
  %v1048 = vadd.f32 %v510, %v1047
  %1049 = vdwg.mxu0
  %1050 = vmatprep.subr.mxu0 0.0
  %1051 = vmatpush1.msra.mxu0 %v957
  %1052 = vmatprep.subr.mxu0 0.0
  %1053 = vmatpush1.msra.mxu0 %v960
  %1054 = vmatprep.subr.mxu0 0.0
  %1055 = vmatpush1.msra.mxu0 %v963
  %1056 = vmatprep.subr.mxu0 0.0
  %1057 = vmatpush1.msra.mxu0 %v966
  %1058 = vmatprep.subr.mxu0 0.0
  %1059 = vmatpush1.msra.mxu0 0.0
  %1060 = vmatprep.subr.mxu0 0.0
  %1061 = vmatpush1.msra.mxu0 0.0
  %1062 = vmatprep.subr.mxu0 0.0
  %1063 = vmatpush1.msra.mxu0 0.0
  %1064 = vmatprep.subr.mxu0 0.0
  %1065 = vmatpush1.msra.mxu0 0.0
  %1066 = vmatprep.subr.mxu0 0.0
  %1067 = vmatpush1.msra.mxu0 0.0
  %1068 = vmatprep.subr.mxu0 0.0
  %1069 = vmatpush1.msra.mxu0 0.0
  %1070 = vmatprep.subr.mxu0 0.0
  %1071 = vmatpush1.msra.mxu0 0.0
  %1072 = vmatprep.subr.mxu0 0.0
  %1073 = vmatpush1.msra.mxu0 0.0
  %1074 = vmatprep.subr.mxu0 0.0
  %1075 = vmatpush1.msra.mxu0 0.0
  %1076 = vmatprep.subr.mxu0 0.0
  %1077 = vmatpush1.msra.mxu0 0.0
  %1078 = vmatprep.subr.mxu0 0.0
  %1079 = vmatpush1.msra.mxu0 0.0
  %1080 = vmatprep.subr.mxu0 0.0
  %1081 = vmatpush1.msra.mxu0 0.0
  %1082 = vmatprep.subr.mxu0 0.0
  %1083 = vmatpush1.msra.mxu0 0.0
  %1084 = vmatprep.subr.mxu0 0.0
  %1085 = vmatpush1.msra.mxu0 0.0
  %1086 = vmatprep.subr.mxu0 0.0
  %1087 = vmatpush1.msra.mxu0 0.0
  %1088 = vmatprep.subr.mxu0 0.0
  %1089 = vmatpush1.msra.mxu0 0.0
  %1090 = vmatprep.subr.mxu0 0.0
  %1091 = vmatpush1.msra.mxu0 0.0
  %1092 = vmatprep.subr.mxu0 0.0
  %1093 = vmatpush1.msra.mxu0 0.0
  %1094 = vmatprep.subr.mxu0 0.0
  %1095 = vmatpush1.msra.mxu0 0.0
  %1096 = vmatprep.subr.mxu0 0.0
  %1097 = vmatpush1.msra.mxu0 0.0
  %1098 = vmatprep.subr.mxu0 0.0
  %1099 = vmatpush1.msra.mxu0 0.0
  %1100 = vmatprep.subr.mxu0 0.0
  %1101 = vmatpush1.msra.mxu0 0.0
  %1102 = vmatprep.subr.mxu0 0.0
  %1103 = vmatpush1.msra.mxu0 0.0
  %1104 = vmatprep.subr.mxu0 0.0
  %1105 = vmatpush1.msra.mxu0 0.0
  %1106 = vmatprep.subr.mxu0 0.0
  %1107 = vmatpush1.msra.mxu0 0.0
  %1108 = vmatprep.subr.mxu0 0.0
  %1109 = vmatpush1.msra.mxu0 0.0
  %1110 = vmatprep.subr.mxu0 0.0
  %1111 = vmatpush1.msra.mxu0 0.0
  %1112 = vmatprep.subr.mxu0 0.0
  %1113 = vmatpush1.msra.mxu0 0.0
  %1114 = vmatprep.mubr.f32.mxu0 0.0
  %1115 = vmatmul.mubr.f32.gmra.mrb[0].mxu0 %v968
  %v1116 = vpop.f32.mrb[0].mxu0
  %v1117 = vadd.f32 %v514, %v1116
  %v1118 = vpop.f32.mrb[0].mxu0
  %1119 = vmatprep.mubr.f32.mxu0 0.0
  %1120 = vmatmul.mubr.f32.gmra.mrb[0].mxu0 %v971
  %v1121 = vpop.f32.mrb[0].mxu0
  %v1122 = vadd.f32 %v514, %v1121
  %v1123 = vpop.f32.mrb[0].mxu0
  %1124 = vdwg.mxu0
  %v1125 = vld [vmem:[#allocation4 + $0x60] sm:$0xff]
  %v1126 = vld [vmem:[#allocation4 + $0x68] sm:$0xff]
  %v1127 = vld [vmem:[#allocation4 + $0x70] sm:$0xff]
  %v1128 = vld [vmem:[#allocation4 + $0x78] sm:$0xff]
  %v1129 = vld [vmem:[#allocation4 + $0x80] sm:$0xff]
  %v1130 = vld [vmem:[#allocation4 + $0x88] sm:$0xff]
  %v1131 = vadd.f32 %v1125, %v1040
  %v1132 = vadd.f32 %v1128, %v1046
  %v1133 = vxor.u32 %v1131, 2147483648
  %v1134 = vxor.u32 %v1132, 2147483648
  %v1135 = vmul.f32 %v1133, 1.442695
  %v1136 = vpow.pop %v1135
  %v1137 = vmul.f32 %v1134, 1.442695
  %v1138 = vpow.pop %v1137
  %v1139 = vadd.f32 %v1136, 1.0
  %v1140 = vadd.f32 %v1138, 1.0
  %v1141 = vrcp.pop %v1139
  %v1142 = vmul.f32 1.0, %v1141
  %v1143 = vrcp.pop %v1140
  %v1144 = vmul.f32 1.0, %v1143
  %v1145 = vadd.f32 %v1126, %v1042
  %v1146 = vadd.f32 %v1129, %v1048
  %v1147 = vxor.u32 %v1145, 2147483648
  %v1148 = vxor.u32 %v1146, 2147483648
  %v1149 = vmul.f32 %v1147, 1.442695
  %v1150 = vpow.pop %v1149
  %v1151 = vmul.f32 %v1148, 1.442695
  %v1152 = vpow.pop %v1151
  %v1153 = vadd.f32 %v1150, 1.0
  %v1154 = vadd.f32 %v1152, 1.0
  %v1155 = vrcp.pop %v1153
  %v1156 = vmul.f32 1.0, %v1155
  %v1157 = vrcp.pop %v1154
  %v1158 = vmul.f32 1.0, %v1157
  %v1159 = vmul.f32 %v1142, %v1117
  %v1160 = vmul.f32 %v1144, %v1122
  %v1161 = vadd.f32 %v1127, %v1159
  %v1162 = vadd.f32 %v1130, %v1160
  %v1163 = vtanh.pop %v1161
  %v1164 = vtanh.pop %v1162
  %v1165 = vsub.f32 1.0, %v1156
  %v1166 = vsub.f32 1.0, %v1158
  %v1167 = vmul.f32 %v1165, %v1163
  %v1168 = vmul.f32 %v1166, %v1164
  %v1169 = vmul.f32 %v1156, %v951
  %v1170 = vmul.f32 %v1158, %v952
  %v1171 = vadd.f32 %v1167, %v1169
  %v1172 = vadd.f32 %v1168, %v1170
  %1173 = vst.msk [vmem:[#allocation2 + $0x20] sm:$0xff] %vm98, %v1171
  %1174 = vst.msk [vmem:[#allocation2 + $0x28] sm:$0xff] %vm98, %v1172
  %v1175 = vld [vmem:[%s4] sm:$0xff]
  %v1176 = vld [vmem:[%s4 + $0x8] sm:$0xff]
  %v1177 = vld [vmem:[%s4 + $0x10] sm:$0xff]
  %v1178 = vld [vmem:[%s4 + $0x18] sm:$0xff]
  %v1179 = vld [vmem:[%s4 + $0x20] sm:$0xff]
  %v1180 = vld [vmem:[%s4 + $0x28] sm:$0xff]
  %v1181 = vld [vmem:[%s4 + $0x30] sm:$0xff]
  %v1182 = vld [vmem:[%s4 + $0x38] sm:$0xff]
  %v1183 = vld [vmem:[%s4 + $0x40] sm:$0xff]
  %v1184 = vld [vmem:[%s4 + $0x48] sm:$0xff]
  %v1185 = vld [vmem:[%s4 + $0x50] sm:$0xff]
  %v1186 = vld [vmem:[%s4 + $0x58] sm:$0xff]
  %v1188 = vsel %vm98, %v1171, 0
  %v1191 = vsel %vm98, %v1172, 0
  %1193 = vmatprep.subr.mxu0 %v1176
  %1194 = vmatpush1.msra.mxu0 %v1175
  %1195 = vmatprep.subr.mxu0 %v1179
  %1196 = vmatpush1.msra.mxu0 %v1178
  %1197 = vmatprep.subr.mxu0 %v1182
  %1198 = vmatpush1.msra.mxu0 %v1181
  %1199 = vmatprep.subr.mxu0 %v1185
  %1200 = vmatpush1.msra.mxu0 %v1184
  %1201 = vmatprep.subr.mxu0 0.0
  %1202 = vmatpush1.msra.mxu0 0.0
  %1203 = vmatprep.subr.mxu0 0.0
  %1204 = vmatpush1.msra.mxu0 0.0
  %1205 = vmatprep.subr.mxu0 0.0
  %1206 = vmatpush1.msra.mxu0 0.0
  %1207 = vmatprep.subr.mxu0 0.0
  %1208 = vmatpush1.msra.mxu0 0.0
  %1209 = vmatprep.subr.mxu0 0.0
  %1210 = vmatpush1.msra.mxu0 0.0
  %1211 = vmatprep.subr.mxu0 0.0
  %1212 = vmatpush1.msra.mxu0 0.0
  %1213 = vmatprep.subr.mxu0 0.0
  %1214 = vmatpush1.msra.mxu0 0.0
  %1215 = vmatprep.subr.mxu0 0.0
  %1216 = vmatpush1.msra.mxu0 0.0
  %1217 = vmatprep.subr.mxu0 0.0
  %1218 = vmatpush1.msra.mxu0 0.0
  %1219 = vmatprep.subr.mxu0 0.0
  %1220 = vmatpush1.msra.mxu0 0.0
  %1221 = vmatprep.subr.mxu0 0.0
  %1222 = vmatpush1.msra.mxu0 0.0
  %1223 = vmatprep.subr.mxu0 0.0
  %1224 = vmatpush1.msra.mxu0 0.0
  %1225 = vmatprep.subr.mxu0 0.0
  %1226 = vmatpush1.msra.mxu0 0.0
  %1227 = vmatprep.subr.mxu0 0.0
  %1228 = vmatpush1.msra.mxu0 0.0
  %1229 = vmatprep.subr.mxu0 0.0
  %1230 = vmatpush1.msra.mxu0 0.0
  %1231 = vmatprep.subr.mxu0 0.0
  %1232 = vmatpush1.msra.mxu0 0.0
  %1233 = vmatprep.subr.mxu0 0.0
  %1234 = vmatpush1.msra.mxu0 0.0
  %1235 = vmatprep.subr.mxu0 0.0
  %1236 = vmatpush1.msra.mxu0 0.0
  %1237 = vmatprep.subr.mxu0 0.0
  %1238 = vmatpush1.msra.mxu0 0.0
  %1239 = vmatprep.subr.mxu0 0.0
  %1240 = vmatpush1.msra.mxu0 0.0
  %1241 = vmatprep.subr.mxu0 0.0
  %1242 = vmatpush1.msra.mxu0 0.0
  %1243 = vmatprep.subr.mxu0 0.0
  %1244 = vmatpush1.msra.mxu0 0.0
  %1245 = vmatprep.subr.mxu0 0.0
  %1246 = vmatpush1.msra.mxu0 0.0
  %1247 = vmatprep.subr.mxu0 0.0
  %1248 = vmatpush1.msra.mxu0 0.0
  %1249 = vmatprep.subr.mxu0 0.0
  %1250 = vmatpush1.msra.mxu0 0.0
  %1251 = vmatprep.subr.mxu0 0.0
  %1252 = vmatpush1.msra.mxu0 0.0
  %1253 = vmatprep.subr.mxu0 0.0
  %1254 = vmatpush1.msra.mxu0 0.0
  %1255 = vmatprep.subr.mxu0 0.0
  %1256 = vmatpush1.msra.mxu0 0.0
  %1257 = vmatprep.mubr.f32.mxu0 0.0
  %1258 = vmatmul.mubr.f32.gmra.mrb[0].mxu0 %v1188
  %v1259 = vpop.f32.mrb[0].mxu0
  %v1260 = vadd.f32 %v506, %v1259
  %v1261 = vpop.f32.mrb[0].mxu0
  %v1262 = vadd.f32 %v510, %v1261
  %1263 = vmatprep.mubr.f32.mxu0 0.0
  %1264 = vmatmul.mubr.f32.gmra.mrb[0].mxu0 %v1191
  %v1265 = vpop.f32.mrb[0].mxu0
  %v1266 = vadd.f32 %v506, %v1265
  %v1267 = vpop.f32.mrb[0].mxu0
  %v1268 = vadd.f32 %v510, %v1267
  %1269 = vdwg.mxu0
  %1270 = vmatprep.subr.mxu0 0.0
  %1271 = vmatpush1.msra.mxu0 %v1177
  %1272 = vmatprep.subr.mxu0 0.0
  %1273 = vmatpush1.msra.mxu0 %v1180
  %1274 = vmatprep.subr.mxu0 0.0
  %1275 = vmatpush1.msra.mxu0 %v1183
  %1276 = vmatprep.subr.mxu0 0.0
  %1277 = vmatpush1.msra.mxu0 %v1186
  %1278 = vmatprep.subr.mxu0 0.0
  %1279 = vmatpush1.msra.mxu0 0.0
  %1280 = vmatprep.subr.mxu0 0.0
  %1281 = vmatpush1.msra.mxu0 0.0
  %1282 = vmatprep.subr.mxu0 0.0
  %1283 = vmatpush1.msra.mxu0 0.0
  %1284 = vmatprep.subr.mxu0 0.0
  %1285 = vmatpush1.msra.mxu0 0.0
  %1286 = vmatprep.subr.mxu0 0.0
  %1287 = vmatpush1.msra.mxu0 0.0
  %1288 = vmatprep.subr.mxu0 0.0
  %1289 = vmatpush1.msra.mxu0 0.0
  %1290 = vmatprep.subr.mxu0 0.0
  %1291 = vmatpush1.msra.mxu0 0.0
  %1292 = vmatprep.subr.mxu0 0.0
  %1293 = vmatpush1.msra.mxu0 0.0
  %1294 = vmatprep.subr.mxu0 0.0
  %1295 = vmatpush1.msra.mxu0 0.0
  %1296 = vmatprep.subr.mxu0 0.0
  %1297 = vmatpush1.msra.mxu0 0.0
  %1298 = vmatprep.subr.mxu0 0.0
  %1299 = vmatpush1.msra.mxu0 0.0
  %1300 = vmatprep.subr.mxu0 0.0
  %1301 = vmatpush1.msra.mxu0 0.0
  %1302 = vmatprep.subr.mxu0 0.0
  %1303 = vmatpush1.msra.mxu0 0.0
  %1304 = vmatprep.subr.mxu0 0.0
  %1305 = vmatpush1.msra.mxu0 0.0
  %1306 = vmatprep.subr.mxu0 0.0
  %1307 = vmatpush1.msra.mxu0 0.0
  %1308 = vmatprep.subr.mxu0 0.0
  %1309 = vmatpush1.msra.mxu0 0.0
  %1310 = vmatprep.subr.mxu0 0.0
  %1311 = vmatpush1.msra.mxu0 0.0
  %1312 = vmatprep.subr.mxu0 0.0
  %1313 = vmatpush1.msra.mxu0 0.0
  %1314 = vmatprep.subr.mxu0 0.0
  %1315 = vmatpush1.msra.mxu0 0.0
  %1316 = vmatprep.subr.mxu0 0.0
  %1317 = vmatpush1.msra.mxu0 0.0
  %1318 = vmatprep.subr.mxu0 0.0
  %1319 = vmatpush1.msra.mxu0 0.0
  %1320 = vmatprep.subr.mxu0 0.0
  %1321 = vmatpush1.msra.mxu0 0.0
  %1322 = vmatprep.subr.mxu0 0.0
  %1323 = vmatpush1.msra.mxu0 0.0
  %1324 = vmatprep.subr.mxu0 0.0
  %1325 = vmatpush1.msra.mxu0 0.0
  %1326 = vmatprep.subr.mxu0 0.0
  %1327 = vmatpush1.msra.mxu0 0.0
  %1328 = vmatprep.subr.mxu0 0.0
  %1329 = vmatpush1.msra.mxu0 0.0
  %1330 = vmatprep.subr.mxu0 0.0
  %1331 = vmatpush1.msra.mxu0 0.0
  %1332 = vmatprep.subr.mxu0 0.0
  %1333 = vmatpush1.msra.mxu0 0.0
  %1334 = vmatprep.mubr.f32.mxu0 0.0
  %1335 = vmatmul.mubr.f32.gmra.mrb[0].mxu0 %v1188
  %v1336 = vpop.f32.mrb[0].mxu0
  %v1337 = vadd.f32 %v514, %v1336
  %v1338 = vpop.f32.mrb[0].mxu0
  %1339 = vmatprep.mubr.f32.mxu0 0.0
  %1340 = vmatmul.mubr.f32.gmra.mrb[0].mxu0 %v1191
  %v1341 = vpop.f32.mrb[0].mxu0
  %v1342 = vadd.f32 %v514, %v1341
  %v1343 = vpop.f32.mrb[0].mxu0
  %1344 = vdwg.mxu0
  %v1345 = vld [vmem:[#allocation4 + $0x90] sm:$0xff]
  %v1346 = vld [vmem:[#allocation4 + $0x98] sm:$0xff]
  %v1347 = vld [vmem:[#allocation4 + $0xa0] sm:$0xff]
  %v1348 = vld [vmem:[#allocation4 + $0xa8] sm:$0xff]
  %v1349 = vld [vmem:[#allocation4 + $0xb0] sm:$0xff]
  %v1350 = vld [vmem:[#allocation4 + $0xb8] sm:$0xff]
  %v1351 = vadd.f32 %v1345, %v1260
  %v1352 = vadd.f32 %v1348, %v1266
  %v1353 = vxor.u32 %v1351, 2147483648
  %v1354 = vxor.u32 %v1352, 2147483648
  %v1355 = vmul.f32 %v1353, 1.442695
  %v1356 = vpow.pop %v1355
  %v1357 = vmul.f32 %v1354, 1.442695
  %v1358 = vpow.pop %v1357
  %v1359 = vadd.f32 %v1356, 1.0
  %v1360 = vadd.f32 %v1358, 1.0
  %v1361 = vrcp.pop %v1359
  %v1362 = vmul.f32 1.0, %v1361
  %v1363 = vrcp.pop %v1360
  %v1364 = vmul.f32 1.0, %v1363
  %v1365 = vadd.f32 %v1346, %v1262
  %v1366 = vadd.f32 %v1349, %v1268
  %v1367 = vxor.u32 %v1365, 2147483648
  %v1368 = vxor.u32 %v1366, 2147483648
  %v1369 = vmul.f32 %v1367, 1.442695
  %v1370 = vpow.pop %v1369
  %v1371 = vmul.f32 %v1368, 1.442695
  %v1372 = vpow.pop %v1371
  %v1373 = vadd.f32 %v1370, 1.0
  %v1374 = vadd.f32 %v1372, 1.0
  %v1375 = vrcp.pop %v1373
  %v1376 = vmul.f32 1.0, %v1375
  %v1377 = vrcp.pop %v1374
  %v1378 = vmul.f32 1.0, %v1377
  %v1379 = vmul.f32 %v1362, %v1337
  %v1380 = vmul.f32 %v1364, %v1342
  %v1381 = vadd.f32 %v1347, %v1379
  %v1382 = vadd.f32 %v1350, %v1380
  %v1383 = vtanh.pop %v1381
  %v1384 = vtanh.pop %v1382
  %v1385 = vsub.f32 1.0, %v1376
  %v1386 = vsub.f32 1.0, %v1378
  %v1387 = vmul.f32 %v1385, %v1383
  %v1388 = vmul.f32 %v1386, %v1384
  %v1389 = vmul.f32 %v1376, %v1171
  %v1390 = vmul.f32 %v1378, %v1172
  %v1391 = vadd.f32 %v1387, %v1389
  %v1392 = vadd.f32 %v1388, %v1390
  %1393 = vst.msk [vmem:[#allocation2 + $0x30] sm:$0xff] %vm98, %v1391
  %1394 = vst.msk [vmem:[#allocation2 + $0x38] sm:$0xff] %vm98, %v1392
  %v1395 = vld [vmem:[%s4] sm:$0xff]
  %v1396 = vld [vmem:[%s4 + $0x8] sm:$0xff]
  %v1397 = vld [vmem:[%s4 + $0x10] sm:$0xff]
  %v1398 = vld [vmem:[%s4 + $0x18] sm:$0xff]
  %v1399 = vld [vmem:[%s4 + $0x20] sm:$0xff]
  %v1400 = vld [vmem:[%s4 + $0x28] sm:$0xff]
  %v1401 = vld [vmem:[%s4 + $0x30] sm:$0xff]
  %v1402 = vld [vmem:[%s4 + $0x38] sm:$0xff]
  %v1403 = vld [vmem:[%s4 + $0x40] sm:$0xff]
  %v1404 = vld [vmem:[%s4 + $0x48] sm:$0xff]
  %v1405 = vld [vmem:[%s4 + $0x50] sm:$0xff]
  %v1406 = vld [vmem:[%s4 + $0x58] sm:$0xff]
  %v1408 = vsel %vm98, %v1391, 0
  %v1411 = vsel %vm98, %v1392, 0
  %1413 = vmatprep.subr.mxu0 %v1396
  %1414 = vmatpush1.msra.mxu0 %v1395
  %1415 = vmatprep.subr.mxu0 %v1399
  %1416 = vmatpush1.msra.mxu0 %v1398
  %1417 = vmatprep.subr.mxu0 %v1402
  %1418 = vmatpush1.msra.mxu0 %v1401
  %1419 = vmatprep.subr.mxu0 %v1405
  %1420 = vmatpush1.msra.mxu0 %v1404
  %1421 = vmatprep.subr.mxu0 0.0
  %1422 = vmatpush1.msra.mxu0 0.0
  %1423 = vmatprep.subr.mxu0 0.0
  %1424 = vmatpush1.msra.mxu0 0.0
  %1425 = vmatprep.subr.mxu0 0.0
  %1426 = vmatpush1.msra.mxu0 0.0
  %1427 = vmatprep.subr.mxu0 0.0
  %1428 = vmatpush1.msra.mxu0 0.0
  %1429 = vmatprep.subr.mxu0 0.0
  %1430 = vmatpush1.msra.mxu0 0.0
  %1431 = vmatprep.subr.mxu0 0.0
  %1432 = vmatpush1.msra.mxu0 0.0
  %1433 = vmatprep.subr.mxu0 0.0
  %1434 = vmatpush1.msra.mxu0 0.0
  %1435 = vmatprep.subr.mxu0 0.0
  %1436 = vmatpush1.msra.mxu0 0.0
  %1437 = vmatprep.subr.mxu0 0.0
  %1438 = vmatpush1.msra.mxu0 0.0
  %1439 = vmatprep.subr.mxu0 0.0
  %1440 = vmatpush1.msra.mxu0 0.0
  %1441 = vmatprep.subr.mxu0 0.0
  %1442 = vmatpush1.msra.mxu0 0.0
  %1443 = vmatprep.subr.mxu0 0.0
  %1444 = vmatpush1.msra.mxu0 0.0
  %1445 = vmatprep.subr.mxu0 0.0
  %1446 = vmatpush1.msra.mxu0 0.0
  %1447 = vmatprep.subr.mxu0 0.0
  %1448 = vmatpush1.msra.mxu0 0.0
  %1449 = vmatprep.subr.mxu0 0.0
  %1450 = vmatpush1.msra.mxu0 0.0
  %1451 = vmatprep.subr.mxu0 0.0
  %1452 = vmatpush1.msra.mxu0 0.0
  %1453 = vmatprep.subr.mxu0 0.0
  %1454 = vmatpush1.msra.mxu0 0.0
  %1455 = vmatprep.subr.mxu0 0.0
  %1456 = vmatpush1.msra.mxu0 0.0
  %1457 = vmatprep.subr.mxu0 0.0
  %1458 = vmatpush1.msra.mxu0 0.0
  %1459 = vmatprep.subr.mxu0 0.0
  %1460 = vmatpush1.msra.mxu0 0.0
  %1461 = vmatprep.subr.mxu0 0.0
  %1462 = vmatpush1.msra.mxu0 0.0
  %1463 = vmatprep.subr.mxu0 0.0
  %1464 = vmatpush1.msra.mxu0 0.0
  %1465 = vmatprep.subr.mxu0 0.0
  %1466 = vmatpush1.msra.mxu0 0.0
  %1467 = vmatprep.subr.mxu0 0.0
  %1468 = vmatpush1.msra.mxu0 0.0
  %1469 = vmatprep.subr.mxu0 0.0
  %1470 = vmatpush1.msra.mxu0 0.0
  %1471 = vmatprep.subr.mxu0 0.0
  %1472 = vmatpush1.msra.mxu0 0.0
  %1473 = vmatprep.subr.mxu0 0.0
  %1474 = vmatpush1.msra.mxu0 0.0
  %1475 = vmatprep.subr.mxu0 0.0
  %1476 = vmatpush1.msra.mxu0 0.0
  %1477 = vmatprep.mubr.f32.mxu0 0.0
  %1478 = vmatmul.mubr.f32.gmra.mrb[0].mxu0 %v1408
  %v1479 = vpop.f32.mrb[0].mxu0
  %v1480 = vadd.f32 %v506, %v1479
  %v1481 = vpop.f32.mrb[0].mxu0
  %v1482 = vadd.f32 %v510, %v1481
  %1483 = vmatprep.mubr.f32.mxu0 0.0
  %1484 = vmatmul.mubr.f32.gmra.mrb[0].mxu0 %v1411
  %v1485 = vpop.f32.mrb[0].mxu0
  %v1486 = vadd.f32 %v506, %v1485
  %v1487 = vpop.f32.mrb[0].mxu0
  %v1488 = vadd.f32 %v510, %v1487
  %1489 = vdwg.mxu0
  %1490 = vmatprep.subr.mxu0 0.0
  %1491 = vmatpush1.msra.mxu0 %v1397
  %1492 = vmatprep.subr.mxu0 0.0
  %1493 = vmatpush1.msra.mxu0 %v1400
  %1494 = vmatprep.subr.mxu0 0.0
  %1495 = vmatpush1.msra.mxu0 %v1403
  %1496 = vmatprep.subr.mxu0 0.0
  %1497 = vmatpush1.msra.mxu0 %v1406
  %1498 = vmatprep.subr.mxu0 0.0
  %1499 = vmatpush1.msra.mxu0 0.0
  %1500 = vmatprep.subr.mxu0 0.0
  %1501 = vmatpush1.msra.mxu0 0.0
  %1502 = vmatprep.subr.mxu0 0.0
  %1503 = vmatpush1.msra.mxu0 0.0
  %1504 = vmatprep.subr.mxu0 0.0
  %1505 = vmatpush1.msra.mxu0 0.0
  %1506 = vmatprep.subr.mxu0 0.0
  %1507 = vmatpush1.msra.mxu0 0.0
  %1508 = vmatprep.subr.mxu0 0.0
  %1509 = vmatpush1.msra.mxu0 0.0
  %1510 = vmatprep.subr.mxu0 0.0
  %1511 = vmatpush1.msra.mxu0 0.0
  %1512 = vmatprep.subr.mxu0 0.0
  %1513 = vmatpush1.msra.mxu0 0.0
  %1514 = vmatprep.subr.mxu0 0.0
  %1515 = vmatpush1.msra.mxu0 0.0
  %1516 = vmatprep.subr.mxu0 0.0
  %1517 = vmatpush1.msra.mxu0 0.0
  %1518 = vmatprep.subr.mxu0 0.0
  %1519 = vmatpush1.msra.mxu0 0.0
  %1520 = vmatprep.subr.mxu0 0.0
  %1521 = vmatpush1.msra.mxu0 0.0
  %1522 = vmatprep.subr.mxu0 0.0
  %1523 = vmatpush1.msra.mxu0 0.0
  %1524 = vmatprep.subr.mxu0 0.0
  %1525 = vmatpush1.msra.mxu0 0.0
  %1526 = vmatprep.subr.mxu0 0.0
  %1527 = vmatpush1.msra.mxu0 0.0
  %1528 = vmatprep.subr.mxu0 0.0
  %1529 = vmatpush1.msra.mxu0 0.0
  %1530 = vmatprep.subr.mxu0 0.0
  %1531 = vmatpush1.msra.mxu0 0.0
  %1532 = vmatprep.subr.mxu0 0.0
  %1533 = vmatpush1.msra.mxu0 0.0
  %1534 = vmatprep.subr.mxu0 0.0
  %1535 = vmatpush1.msra.mxu0 0.0
  %1536 = vmatprep.subr.mxu0 0.0
  %1537 = vmatpush1.msra.mxu0 0.0
  %1538 = vmatprep.subr.mxu0 0.0
  %1539 = vmatpush1.msra.mxu0 0.0
  %1540 = vmatprep.subr.mxu0 0.0
  %1541 = vmatpush1.msra.mxu0 0.0
  %1542 = vmatprep.subr.mxu0 0.0
  %1543 = vmatpush1.msra.mxu0 0.0
  %1544 = vmatprep.subr.mxu0 0.0
  %1545 = vmatpush1.msra.mxu0 0.0
  %1546 = vmatprep.subr.mxu0 0.0
  %1547 = vmatpush1.msra.mxu0 0.0
  %1548 = vmatprep.subr.mxu0 0.0
  %1549 = vmatpush1.msra.mxu0 0.0
  %1550 = vmatprep.subr.mxu0 0.0
  %1551 = vmatpush1.msra.mxu0 0.0
  %1552 = vmatprep.subr.mxu0 0.0
  %1553 = vmatpush1.msra.mxu0 0.0
  %1554 = vmatprep.mubr.f32.mxu0 0.0
  %1555 = vmatmul.mubr.f32.gmra.mrb[0].mxu0 %v1408
  %v1556 = vpop.f32.mrb[0].mxu0
  %v1557 = vadd.f32 %v514, %v1556
  %v1558 = vpop.f32.mrb[0].mxu0
  %1559 = vmatprep.mubr.f32.mxu0 0.0
  %1560 = vmatmul.mubr.f32.gmra.mrb[0].mxu0 %v1411
  %v1561 = vpop.f32.mrb[0].mxu0
  %v1562 = vadd.f32 %v514, %v1561
  %v1563 = vpop.f32.mrb[0].mxu0
  %1564 = vdwg.mxu0
  %v1565 = vld [vmem:[#allocation4 + $0xc0] sm:$0xff]
  %v1566 = vld [vmem:[#allocation4 + $0xc8] sm:$0xff]
  %v1567 = vld [vmem:[#allocation4 + $0xd0] sm:$0xff]
  %v1568 = vld [vmem:[#allocation4 + $0xd8] sm:$0xff]
  %v1569 = vld [vmem:[#allocation4 + $0xe0] sm:$0xff]
  %v1570 = vld [vmem:[#allocation4 + $0xe8] sm:$0xff]
  %v1571 = vadd.f32 %v1565, %v1480
  %v1572 = vadd.f32 %v1568, %v1486
  %v1573 = vxor.u32 %v1571, 2147483648
  %v1574 = vxor.u32 %v1572, 2147483648
  %v1575 = vmul.f32 %v1573, 1.442695
  %v1576 = vpow.pop %v1575
  %v1577 = vmul.f32 %v1574, 1.442695
  %v1578 = vpow.pop %v1577
  %v1579 = vadd.f32 %v1576, 1.0
  %v1580 = vadd.f32 %v1578, 1.0
  %v1581 = vrcp.pop %v1579
  %v1582 = vmul.f32 1.0, %v1581
  %v1583 = vrcp.pop %v1580
  %v1584 = vmul.f32 1.0, %v1583
  %v1585 = vadd.f32 %v1566, %v1482
  %v1586 = vadd.f32 %v1569, %v1488
  %v1587 = vxor.u32 %v1585, 2147483648
  %v1588 = vxor.u32 %v1586, 2147483648
  %v1589 = vmul.f32 %v1587, 1.442695
  %v1590 = vpow.pop %v1589
  %v1591 = vmul.f32 %v1588, 1.442695
  %v1592 = vpow.pop %v1591
  %v1593 = vadd.f32 %v1590, 1.0
  %v1594 = vadd.f32 %v1592, 1.0
  %v1595 = vrcp.pop %v1593
  %v1596 = vmul.f32 1.0, %v1595
  %v1597 = vrcp.pop %v1594
  %v1598 = vmul.f32 1.0, %v1597
  %v1599 = vmul.f32 %v1582, %v1557
  %v1600 = vmul.f32 %v1584, %v1562
  %v1601 = vadd.f32 %v1567, %v1599
  %v1602 = vadd.f32 %v1570, %v1600
  %v1603 = vtanh.pop %v1601
  %v1604 = vtanh.pop %v1602
  %v1605 = vsub.f32 1.0, %v1596
  %v1606 = vsub.f32 1.0, %v1598
  %v1607 = vmul.f32 %v1605, %v1603
  %v1608 = vmul.f32 %v1606, %v1604
  %v1609 = vmul.f32 %v1596, %v1391
  %v1610 = vmul.f32 %v1598, %v1392
  %v1611 = vadd.f32 %v1607, %v1609
  %v1612 = vadd.f32 %v1608, %v1610
  %1613 = vst.msk [vmem:[#allocation2 + $0x40] sm:$0xff] %vm98, %v1611
  %1614 = vst.msk [vmem:[#allocation2 + $0x48] sm:$0xff] %vm98, %v1612
  %v1615 = vld [vmem:[%s4] sm:$0xff]
  %v1616 = vld [vmem:[%s4 + $0x8] sm:$0xff]
  %v1617 = vld [vmem:[%s4 + $0x10] sm:$0xff]
  %v1618 = vld [vmem:[%s4 + $0x18] sm:$0xff]
  %v1619 = vld [vmem:[%s4 + $0x20] sm:$0xff]
  %v1620 = vld [vmem:[%s4 + $0x28] sm:$0xff]
  %v1621 = vld [vmem:[%s4 + $0x30] sm:$0xff]
  %v1622 = vld [vmem:[%s4 + $0x38] sm:$0xff]
  %v1623 = vld [vmem:[%s4 + $0x40] sm:$0xff]
  %v1624 = vld [vmem:[%s4 + $0x48] sm:$0xff]
  %v1625 = vld [vmem:[%s4 + $0x50] sm:$0xff]
  %v1626 = vld [vmem:[%s4 + $0x58] sm:$0xff]
  %v1628 = vsel %vm98, %v1611, 0
  %v1631 = vsel %vm98, %v1612, 0
  %1633 = vmatprep.subr.mxu0 %v1616
  %1634 = vmatpush1.msra.mxu0 %v1615
  %1635 = vmatprep.subr.mxu0 %v1619
  %1636 = vmatpush1.msra.mxu0 %v1618
  %1637 = vmatprep.subr.mxu0 %v1622
  %1638 = vmatpush1.msra.mxu0 %v1621
  %1639 = vmatprep.subr.mxu0 %v1625
  %1640 = vmatpush1.msra.mxu0 %v1624
  %1641 = vmatprep.subr.mxu0 0.0
  %1642 = vmatpush1.msra.mxu0 0.0
  %1643 = vmatprep.subr.mxu0 0.0
  %1644 = vmatpush1.msra.mxu0 0.0
  %1645 = vmatprep.subr.mxu0 0.0
  %1646 = vmatpush1.msra.mxu0 0.0
  %1647 = vmatprep.subr.mxu0 0.0
  %1648 = vmatpush1.msra.mxu0 0.0
  %1649 = vmatprep.subr.mxu0 0.0
  %1650 = vmatpush1.msra.mxu0 0.0
  %1651 = vmatprep.subr.mxu0 0.0
  %1652 = vmatpush1.msra.mxu0 0.0
  %1653 = vmatprep.subr.mxu0 0.0
  %1654 = vmatpush1.msra.mxu0 0.0
  %1655 = vmatprep.subr.mxu0 0.0
  %1656 = vmatpush1.msra.mxu0 0.0
  %1657 = vmatprep.subr.mxu0 0.0
  %1658 = vmatpush1.msra.mxu0 0.0
  %1659 = vmatprep.subr.mxu0 0.0
  %1660 = vmatpush1.msra.mxu0 0.0
  %1661 = vmatprep.subr.mxu0 0.0
  %1662 = vmatpush1.msra.mxu0 0.0
  %1663 = vmatprep.subr.mxu0 0.0
  %1664 = vmatpush1.msra.mxu0 0.0
  %1665 = vmatprep.subr.mxu0 0.0
  %1666 = vmatpush1.msra.mxu0 0.0
  %1667 = vmatprep.subr.mxu0 0.0
  %1668 = vmatpush1.msra.mxu0 0.0
  %1669 = vmatprep.subr.mxu0 0.0
  %1670 = vmatpush1.msra.mxu0 0.0
  %1671 = vmatprep.subr.mxu0 0.0
  %1672 = vmatpush1.msra.mxu0 0.0
  %1673 = vmatprep.subr.mxu0 0.0
  %1674 = vmatpush1.msra.mxu0 0.0
  %1675 = vmatprep.subr.mxu0 0.0
  %1676 = vmatpush1.msra.mxu0 0.0
  %1677 = vmatprep.subr.mxu0 0.0
  %1678 = vmatpush1.msra.mxu0 0.0
  %1679 = vmatprep.subr.mxu0 0.0
  %1680 = vmatpush1.msra.mxu0 0.0
  %1681 = vmatprep.subr.mxu0 0.0
  %1682 = vmatpush1.msra.mxu0 0.0
  %1683 = vmatprep.subr.mxu0 0.0
  %1684 = vmatpush1.msra.mxu0 0.0
  %1685 = vmatprep.subr.mxu0 0.0
  %1686 = vmatpush1.msra.mxu0 0.0
  %1687 = vmatprep.subr.mxu0 0.0
  %1688 = vmatpush1.msra.mxu0 0.0
  %1689 = vmatprep.subr.mxu0 0.0
  %1690 = vmatpush1.msra.mxu0 0.0
  %1691 = vmatprep.subr.mxu0 0.0
  %1692 = vmatpush1.msra.mxu0 0.0
  %1693 = vmatprep.subr.mxu0 0.0
  %1694 = vmatpush1.msra.mxu0 0.0
  %1695 = vmatprep.subr.mxu0 0.0
  %1696 = vmatpush1.msra.mxu0 0.0
  %1697 = vmatprep.mubr.f32.mxu0 0.0
  %1698 = vmatmul.mubr.f32.gmra.mrb[0].mxu0 %v1628
  %v1699 = vpop.f32.mrb[0].mxu0
  %v1700 = vadd.f32 %v506, %v1699
  %v1701 = vpop.f32.mrb[0].mxu0
  %v1702 = vadd.f32 %v510, %v1701
  %1703 = vmatprep.mubr.f32.mxu0 0.0
  %1704 = vmatmul.mubr.f32.gmra.mrb[0].mxu0 %v1631
  %v1705 = vpop.f32.mrb[0].mxu0
  %v1706 = vadd.f32 %v506, %v1705
  %v1707 = vpop.f32.mrb[0].mxu0
  %v1708 = vadd.f32 %v510, %v1707
  %1709 = vdwg.mxu0
  %1710 = vmatprep.subr.mxu0 0.0
  %1711 = vmatpush1.msra.mxu0 %v1617
  %1712 = vmatprep.subr.mxu0 0.0
  %1713 = vmatpush1.msra.mxu0 %v1620
  %1714 = vmatprep.subr.mxu0 0.0
  %1715 = vmatpush1.msra.mxu0 %v1623
  %1716 = vmatprep.subr.mxu0 0.0
  %1717 = vmatpush1.msra.mxu0 %v1626
  %1718 = vmatprep.subr.mxu0 0.0
  %1719 = vmatpush1.msra.mxu0 0.0
  %1720 = vmatprep.subr.mxu0 0.0
  %1721 = vmatpush1.msra.mxu0 0.0
  %1722 = vmatprep.subr.mxu0 0.0
  %1723 = vmatpush1.msra.mxu0 0.0
  %1724 = vmatprep.subr.mxu0 0.0
  %1725 = vmatpush1.msra.mxu0 0.0
  %1726 = vmatprep.subr.mxu0 0.0
  %1727 = vmatpush1.msra.mxu0 0.0
  %1728 = vmatprep.subr.mxu0 0.0
  %1729 = vmatpush1.msra.mxu0 0.0
  %1730 = vmatprep.subr.mxu0 0.0
  %1731 = vmatpush1.msra.mxu0 0.0
  %1732 = vmatprep.subr.mxu0 0.0
  %1733 = vmatpush1.msra.mxu0 0.0
  %1734 = vmatprep.subr.mxu0 0.0
  %1735 = vmatpush1.msra.mxu0 0.0
  %1736 = vmatprep.subr.mxu0 0.0
  %1737 = vmatpush1.msra.mxu0 0.0
  %1738 = vmatprep.subr.mxu0 0.0
  %1739 = vmatpush1.msra.mxu0 0.0
  %1740 = vmatprep.subr.mxu0 0.0
  %1741 = vmatpush1.msra.mxu0 0.0
  %1742 = vmatprep.subr.mxu0 0.0
  %1743 = vmatpush1.msra.mxu0 0.0
  %1744 = vmatprep.subr.mxu0 0.0
  %1745 = vmatpush1.msra.mxu0 0.0
  %1746 = vmatprep.subr.mxu0 0.0
  %1747 = vmatpush1.msra.mxu0 0.0
  %1748 = vmatprep.subr.mxu0 0.0
  %1749 = vmatpush1.msra.mxu0 0.0
  %1750 = vmatprep.subr.mxu0 0.0
  %1751 = vmatpush1.msra.mxu0 0.0
  %1752 = vmatprep.subr.mxu0 0.0
  %1753 = vmatpush1.msra.mxu0 0.0
  %1754 = vmatprep.subr.mxu0 0.0
  %1755 = vmatpush1.msra.mxu0 0.0
  %1756 = vmatprep.subr.mxu0 0.0
  %1757 = vmatpush1.msra.mxu0 0.0
  %1758 = vmatprep.subr.mxu0 0.0
  %1759 = vmatpush1.msra.mxu0 0.0
  %1760 = vmatprep.subr.mxu0 0.0
  %1761 = vmatpush1.msra.mxu0 0.0
  %1762 = vmatprep.subr.mxu0 0.0
  %1763 = vmatpush1.msra.mxu0 0.0
  %1764 = vmatprep.subr.mxu0 0.0
  %1765 = vmatpush1.msra.mxu0 0.0
  %1766 = vmatprep.subr.mxu0 0.0
  %1767 = vmatpush1.msra.mxu0 0.0
  %1768 = vmatprep.subr.mxu0 0.0
  %1769 = vmatpush1.msra.mxu0 0.0
  %1770 = vmatprep.subr.mxu0 0.0
  %1771 = vmatpush1.msra.mxu0 0.0
  %1772 = vmatprep.subr.mxu0 0.0
  %1773 = vmatpush1.msra.mxu0 0.0
  %1774 = vmatprep.mubr.f32.mxu0 0.0
  %1775 = vmatmul.mubr.f32.gmra.mrb[0].mxu0 %v1628
  %v1776 = vpop.f32.mrb[0].mxu0
  %v1777 = vadd.f32 %v514, %v1776
  %v1778 = vpop.f32.mrb[0].mxu0
  %1779 = vmatprep.mubr.f32.mxu0 0.0
  %1780 = vmatmul.mubr.f32.gmra.mrb[0].mxu0 %v1631
  %v1781 = vpop.f32.mrb[0].mxu0
  %v1782 = vadd.f32 %v514, %v1781
  %v1783 = vpop.f32.mrb[0].mxu0
  %1784 = vdwg.mxu0
  %v1785 = vld [vmem:[#allocation4 + $0xf0] sm:$0xff]
  %v1786 = vld [vmem:[#allocation4 + $0xf8] sm:$0xff]
  %v1787 = vld [vmem:[#allocation4 + $0x100] sm:$0xff]
  %v1788 = vld [vmem:[#allocation4 + $0x108] sm:$0xff]
  %v1789 = vld [vmem:[#allocation4 + $0x110] sm:$0xff]
  %v1790 = vld [vmem:[#allocation4 + $0x118] sm:$0xff]
  %v1791 = vadd.f32 %v1785, %v1700
  %v1792 = vadd.f32 %v1788, %v1706
  %v1793 = vxor.u32 %v1791, 2147483648
  %v1794 = vxor.u32 %v1792, 2147483648
  %v1795 = vmul.f32 %v1793, 1.442695
  %v1796 = vpow.pop %v1795
  %v1797 = vmul.f32 %v1794, 1.442695
  %v1798 = vpow.pop %v1797
  %v1799 = vadd.f32 %v1796, 1.0
  %v1800 = vadd.f32 %v1798, 1.0
  %v1801 = vrcp.pop %v1799
  %v1802 = vmul.f32 1.0, %v1801
  %v1803 = vrcp.pop %v1800
  %v1804 = vmul.f32 1.0, %v1803
  %v1805 = vadd.f32 %v1786, %v1702
  %v1806 = vadd.f32 %v1789, %v1708
  %v1807 = vxor.u32 %v1805, 2147483648
  %v1808 = vxor.u32 %v1806, 2147483648
  %v1809 = vmul.f32 %v1807, 1.442695
  %v1810 = vpow.pop %v1809
  %v1811 = vmul.f32 %v1808, 1.442695
  %v1812 = vpow.pop %v1811
  %v1813 = vadd.f32 %v1810, 1.0
  %v1814 = vadd.f32 %v1812, 1.0
  %v1815 = vrcp.pop %v1813
  %v1816 = vmul.f32 1.0, %v1815
  %v1817 = vrcp.pop %v1814
  %v1818 = vmul.f32 1.0, %v1817
  %v1819 = vmul.f32 %v1802, %v1777
  %v1820 = vmul.f32 %v1804, %v1782
  %v1821 = vadd.f32 %v1787, %v1819
  %v1822 = vadd.f32 %v1790, %v1820
  %v1823 = vtanh.pop %v1821
  %v1824 = vtanh.pop %v1822
  %v1825 = vsub.f32 1.0, %v1816
  %v1826 = vsub.f32 1.0, %v1818
  %v1827 = vmul.f32 %v1825, %v1823
  %v1828 = vmul.f32 %v1826, %v1824
  %v1829 = vmul.f32 %v1816, %v1611
  %v1830 = vmul.f32 %v1818, %v1612
  %v1831 = vadd.f32 %v1827, %v1829
  %v1832 = vadd.f32 %v1828, %v1830
  %1833 = vst.msk [vmem:[#allocation2 + $0x50] sm:$0xff] %vm98, %v1831
  %1834 = vst.msk [vmem:[#allocation2 + $0x58] sm:$0xff] %vm98, %v1832
  %v1835 = vld [vmem:[%s4] sm:$0xff]
  %v1836 = vld [vmem:[%s4 + $0x8] sm:$0xff]
  %v1837 = vld [vmem:[%s4 + $0x10] sm:$0xff]
  %v1838 = vld [vmem:[%s4 + $0x18] sm:$0xff]
  %v1839 = vld [vmem:[%s4 + $0x20] sm:$0xff]
  %v1840 = vld [vmem:[%s4 + $0x28] sm:$0xff]
  %v1841 = vld [vmem:[%s4 + $0x30] sm:$0xff]
  %v1842 = vld [vmem:[%s4 + $0x38] sm:$0xff]
  %v1843 = vld [vmem:[%s4 + $0x40] sm:$0xff]
  %v1844 = vld [vmem:[%s4 + $0x48] sm:$0xff]
  %v1845 = vld [vmem:[%s4 + $0x50] sm:$0xff]
  %v1846 = vld [vmem:[%s4 + $0x58] sm:$0xff]
  %v1848 = vsel %vm98, %v1831, 0
  %v1851 = vsel %vm98, %v1832, 0
  %1853 = vmatprep.subr.mxu0 %v1836
  %1854 = vmatpush1.msra.mxu0 %v1835
  %1855 = vmatprep.subr.mxu0 %v1839
  %1856 = vmatpush1.msra.mxu0 %v1838
  %1857 = vmatprep.subr.mxu0 %v1842
  %1858 = vmatpush1.msra.mxu0 %v1841
  %1859 = vmatprep.subr.mxu0 %v1845
  %1860 = vmatpush1.msra.mxu0 %v1844
  %1861 = vmatprep.subr.mxu0 0.0
  %1862 = vmatpush1.msra.mxu0 0.0
  %1863 = vmatprep.subr.mxu0 0.0
  %1864 = vmatpush1.msra.mxu0 0.0
  %1865 = vmatprep.subr.mxu0 0.0
  %1866 = vmatpush1.msra.mxu0 0.0
  %1867 = vmatprep.subr.mxu0 0.0
  %1868 = vmatpush1.msra.mxu0 0.0
  %1869 = vmatprep.subr.mxu0 0.0
  %1870 = vmatpush1.msra.mxu0 0.0
  %1871 = vmatprep.subr.mxu0 0.0
  %1872 = vmatpush1.msra.mxu0 0.0
  %1873 = vmatprep.subr.mxu0 0.0
  %1874 = vmatpush1.msra.mxu0 0.0
  %1875 = vmatprep.subr.mxu0 0.0
  %1876 = vmatpush1.msra.mxu0 0.0
  %1877 = vmatprep.subr.mxu0 0.0
  %1878 = vmatpush1.msra.mxu0 0.0
  %1879 = vmatprep.subr.mxu0 0.0
  %1880 = vmatpush1.msra.mxu0 0.0
  %1881 = vmatprep.subr.mxu0 0.0
  %1882 = vmatpush1.msra.mxu0 0.0
  %1883 = vmatprep.subr.mxu0 0.0
  %1884 = vmatpush1.msra.mxu0 0.0
  %1885 = vmatprep.subr.mxu0 0.0
  %1886 = vmatpush1.msra.mxu0 0.0
  %1887 = vmatprep.subr.mxu0 0.0
  %1888 = vmatpush1.msra.mxu0 0.0
  %1889 = vmatprep.subr.mxu0 0.0
  %1890 = vmatpush1.msra.mxu0 0.0
  %1891 = vmatprep.subr.mxu0 0.0
  %1892 = vmatpush1.msra.mxu0 0.0
  %1893 = vmatprep.subr.mxu0 0.0
  %1894 = vmatpush1.msra.mxu0 0.0
  %1895 = vmatprep.subr.mxu0 0.0
  %1896 = vmatpush1.msra.mxu0 0.0
  %1897 = vmatprep.subr.mxu0 0.0
  %1898 = vmatpush1.msra.mxu0 0.0
  %1899 = vmatprep.subr.mxu0 0.0
  %1900 = vmatpush1.msra.mxu0 0.0
  %1901 = vmatprep.subr.mxu0 0.0
  %1902 = vmatpush1.msra.mxu0 0.0
  %1903 = vmatprep.subr.mxu0 0.0
  %1904 = vmatpush1.msra.mxu0 0.0
  %1905 = vmatprep.subr.mxu0 0.0
  %1906 = vmatpush1.msra.mxu0 0.0
  %1907 = vmatprep.subr.mxu0 0.0
  %1908 = vmatpush1.msra.mxu0 0.0
  %1909 = vmatprep.subr.mxu0 0.0
  %1910 = vmatpush1.msra.mxu0 0.0
  %1911 = vmatprep.subr.mxu0 0.0
  %1912 = vmatpush1.msra.mxu0 0.0
  %1913 = vmatprep.subr.mxu0 0.0
  %1914 = vmatpush1.msra.mxu0 0.0
  %1915 = vmatprep.subr.mxu0 0.0
  %1916 = vmatpush1.msra.mxu0 0.0
  %1917 = vmatprep.mubr.f32.mxu0 0.0
  %1918 = vmatmul.mubr.f32.gmra.mrb[0].mxu0 %v1848
  %v1919 = vpop.f32.mrb[0].mxu0
  %v1920 = vadd.f32 %v506, %v1919
  %v1921 = vpop.f32.mrb[0].mxu0
  %v1922 = vadd.f32 %v510, %v1921
  %1923 = vmatprep.mubr.f32.mxu0 0.0
  %1924 = vmatmul.mubr.f32.gmra.mrb[0].mxu0 %v1851
  %v1925 = vpop.f32.mrb[0].mxu0
  %v1926 = vadd.f32 %v506, %v1925
  %v1927 = vpop.f32.mrb[0].mxu0
  %v1928 = vadd.f32 %v510, %v1927
  %1929 = vdwg.mxu0
  %1930 = vmatprep.subr.mxu0 0.0
  %1931 = vmatpush1.msra.mxu0 %v1837
  %1932 = vmatprep.subr.mxu0 0.0
  %1933 = vmatpush1.msra.mxu0 %v1840
  %1934 = vmatprep.subr.mxu0 0.0
  %1935 = vmatpush1.msra.mxu0 %v1843
  %1936 = vmatprep.subr.mxu0 0.0
  %1937 = vmatpush1.msra.mxu0 %v1846
  %1938 = vmatprep.subr.mxu0 0.0
  %1939 = vmatpush1.msra.mxu0 0.0
  %1940 = vmatprep.subr.mxu0 0.0
  %1941 = vmatpush1.msra.mxu0 0.0
  %1942 = vmatprep.subr.mxu0 0.0
  %1943 = vmatpush1.msra.mxu0 0.0
  %1944 = vmatprep.subr.mxu0 0.0
  %1945 = vmatpush1.msra.mxu0 0.0
  %1946 = vmatprep.subr.mxu0 0.0
  %1947 = vmatpush1.msra.mxu0 0.0
  %1948 = vmatprep.subr.mxu0 0.0
  %1949 = vmatpush1.msra.mxu0 0.0
  %1950 = vmatprep.subr.mxu0 0.0
  %1951 = vmatpush1.msra.mxu0 0.0
  %1952 = vmatprep.subr.mxu0 0.0
  %1953 = vmatpush1.msra.mxu0 0.0
  %1954 = vmatprep.subr.mxu0 0.0
  %1955 = vmatpush1.msra.mxu0 0.0
  %1956 = vmatprep.subr.mxu0 0.0
  %1957 = vmatpush1.msra.mxu0 0.0
  %1958 = vmatprep.subr.mxu0 0.0
  %1959 = vmatpush1.msra.mxu0 0.0
  %1960 = vmatprep.subr.mxu0 0.0
  %1961 = vmatpush1.msra.mxu0 0.0
  %1962 = vmatprep.subr.mxu0 0.0
  %1963 = vmatpush1.msra.mxu0 0.0
  %1964 = vmatprep.subr.mxu0 0.0
  %1965 = vmatpush1.msra.mxu0 0.0
  %1966 = vmatprep.subr.mxu0 0.0
  %1967 = vmatpush1.msra.mxu0 0.0
  %1968 = vmatprep.subr.mxu0 0.0
  %1969 = vmatpush1.msra.mxu0 0.0
  %1970 = vmatprep.subr.mxu0 0.0
  %1971 = vmatpush1.msra.mxu0 0.0
  %1972 = vmatprep.subr.mxu0 0.0
  %1973 = vmatpush1.msra.mxu0 0.0
  %1974 = vmatprep.subr.mxu0 0.0
  %1975 = vmatpush1.msra.mxu0 0.0
  %1976 = vmatprep.subr.mxu0 0.0
  %1977 = vmatpush1.msra.mxu0 0.0
  %1978 = vmatprep.subr.mxu0 0.0
  %1979 = vmatpush1.msra.mxu0 0.0
  %1980 = vmatprep.subr.mxu0 0.0
  %1981 = vmatpush1.msra.mxu0 0.0
  %1982 = vmatprep.subr.mxu0 0.0
  %1983 = vmatpush1.msra.mxu0 0.0
  %1984 = vmatprep.subr.mxu0 0.0
  %1985 = vmatpush1.msra.mxu0 0.0
  %1986 = vmatprep.subr.mxu0 0.0
  %1987 = vmatpush1.msra.mxu0 0.0
  %1988 = vmatprep.subr.mxu0 0.0
  %1989 = vmatpush1.msra.mxu0 0.0
  %1990 = vmatprep.subr.mxu0 0.0
  %1991 = vmatpush1.msra.mxu0 0.0
  %1992 = vmatprep.subr.mxu0 0.0
  %1993 = vmatpush1.msra.mxu0 0.0
  %1994 = vmatprep.mubr.f32.mxu0 0.0
  %1995 = vmatmul.mubr.f32.gmra.mrb[0].mxu0 %v1848
  %v1996 = vpop.f32.mrb[0].mxu0
  %v1997 = vadd.f32 %v514, %v1996
  %v1998 = vpop.f32.mrb[0].mxu0
  %1999 = vmatprep.mubr.f32.mxu0 0.0
  %2000 = vmatmul.mubr.f32.gmra.mrb[0].mxu0 %v1851
  %v2001 = vpop.f32.mrb[0].mxu0
  %v2002 = vadd.f32 %v514, %v2001
  %v2003 = vpop.f32.mrb[0].mxu0
  %2004 = vdwg.mxu0
  %v2005 = vld [vmem:[#allocation4 + $0x120] sm:$0xff]
  %v2006 = vld [vmem:[#allocation4 + $0x128] sm:$0xff]
  %v2007 = vld [vmem:[#allocation4 + $0x130] sm:$0xff]
  %v2008 = vld [vmem:[#allocation4 + $0x138] sm:$0xff]
  %v2009 = vld [vmem:[#allocation4 + $0x140] sm:$0xff]
  %v2010 = vld [vmem:[#allocation4 + $0x148] sm:$0xff]
  %v2011 = vadd.f32 %v2005, %v1920
  %v2012 = vadd.f32 %v2008, %v1926
  %v2013 = vxor.u32 %v2011, 2147483648
  %v2014 = vxor.u32 %v2012, 2147483648
  %v2015 = vmul.f32 %v2013, 1.442695
  %v2016 = vpow.pop %v2015
  %v2017 = vmul.f32 %v2014, 1.442695
  %v2018 = vpow.pop %v2017
  %v2019 = vadd.f32 %v2016, 1.0
  %v2020 = vadd.f32 %v2018, 1.0
  %v2021 = vrcp.pop %v2019
  %v2022 = vmul.f32 1.0, %v2021
  %v2023 = vrcp.pop %v2020
  %v2024 = vmul.f32 1.0, %v2023
  %v2025 = vadd.f32 %v2006, %v1922
  %v2026 = vadd.f32 %v2009, %v1928
  %v2027 = vxor.u32 %v2025, 2147483648
  %v2028 = vxor.u32 %v2026, 2147483648
  %v2029 = vmul.f32 %v2027, 1.442695
  %v2030 = vpow.pop %v2029
  %v2031 = vmul.f32 %v2028, 1.442695
  %v2032 = vpow.pop %v2031
  %v2033 = vadd.f32 %v2030, 1.0
  %v2034 = vadd.f32 %v2032, 1.0
  %v2035 = vrcp.pop %v2033
  %v2036 = vmul.f32 1.0, %v2035
  %v2037 = vrcp.pop %v2034
  %v2038 = vmul.f32 1.0, %v2037
  %v2039 = vmul.f32 %v2022, %v1997
  %v2040 = vmul.f32 %v2024, %v2002
  %v2041 = vadd.f32 %v2007, %v2039
  %v2042 = vadd.f32 %v2010, %v2040
  %v2043 = vtanh.pop %v2041
  %v2044 = vtanh.pop %v2042
  %v2045 = vsub.f32 1.0, %v2036
  %v2046 = vsub.f32 1.0, %v2038
  %v2047 = vmul.f32 %v2045, %v2043
  %v2048 = vmul.f32 %v2046, %v2044
  %v2049 = vmul.f32 %v2036, %v1831
  %v2050 = vmul.f32 %v2038, %v1832
  %v2051 = vadd.f32 %v2047, %v2049
  %v2052 = vadd.f32 %v2048, %v2050
  %2053 = vst.msk [vmem:[#allocation2 + $0x60] sm:$0xff] %vm98, %v2051
  %2054 = vst.msk [vmem:[#allocation2 + $0x68] sm:$0xff] %vm98, %v2052
  %v2055 = vld [vmem:[%s4] sm:$0xff]
  %v2056 = vld [vmem:[%s4 + $0x8] sm:$0xff]
  %v2057 = vld [vmem:[%s4 + $0x10] sm:$0xff]
  %v2058 = vld [vmem:[%s4 + $0x18] sm:$0xff]
  %v2059 = vld [vmem:[%s4 + $0x20] sm:$0xff]
  %v2060 = vld [vmem:[%s4 + $0x28] sm:$0xff]
  %v2061 = vld [vmem:[%s4 + $0x30] sm:$0xff]
  %v2062 = vld [vmem:[%s4 + $0x38] sm:$0xff]
  %v2063 = vld [vmem:[%s4 + $0x40] sm:$0xff]
  %v2064 = vld [vmem:[%s4 + $0x48] sm:$0xff]
  %v2065 = vld [vmem:[%s4 + $0x50] sm:$0xff]
  %v2066 = vld [vmem:[%s4 + $0x58] sm:$0xff]
  %v2068 = vsel %vm98, %v2051, 0
  %v2071 = vsel %vm98, %v2052, 0
  %2073 = vmatprep.subr.mxu0 %v2056
  %2074 = vmatpush1.msra.mxu0 %v2055
  %2075 = vmatprep.subr.mxu0 %v2059
  %2076 = vmatpush1.msra.mxu0 %v2058
  %2077 = vmatprep.subr.mxu0 %v2062
  %2078 = vmatpush1.msra.mxu0 %v2061
  %2079 = vmatprep.subr.mxu0 %v2065
  %2080 = vmatpush1.msra.mxu0 %v2064
  %2081 = vmatprep.subr.mxu0 0.0
  %2082 = vmatpush1.msra.mxu0 0.0
  %2083 = vmatprep.subr.mxu0 0.0
  %2084 = vmatpush1.msra.mxu0 0.0
  %2085 = vmatprep.subr.mxu0 0.0
  %2086 = vmatpush1.msra.mxu0 0.0
  %2087 = vmatprep.subr.mxu0 0.0
  %2088 = vmatpush1.msra.mxu0 0.0
  %2089 = vmatprep.subr.mxu0 0.0
  %2090 = vmatpush1.msra.mxu0 0.0
  %2091 = vmatprep.subr.mxu0 0.0
  %2092 = vmatpush1.msra.mxu0 0.0
  %2093 = vmatprep.subr.mxu0 0.0
  %2094 = vmatpush1.msra.mxu0 0.0
  %2095 = vmatprep.subr.mxu0 0.0
  %2096 = vmatpush1.msra.mxu0 0.0
  %2097 = vmatprep.subr.mxu0 0.0
  %2098 = vmatpush1.msra.mxu0 0.0
  %2099 = vmatprep.subr.mxu0 0.0
  %2100 = vmatpush1.msra.mxu0 0.0
  %2101 = vmatprep.subr.mxu0 0.0
  %2102 = vmatpush1.msra.mxu0 0.0
  %2103 = vmatprep.subr.mxu0 0.0
  %2104 = vmatpush1.msra.mxu0 0.0
  %2105 = vmatprep.subr.mxu0 0.0
  %2106 = vmatpush1.msra.mxu0 0.0
  %2107 = vmatprep.subr.mxu0 0.0
  %2108 = vmatpush1.msra.mxu0 0.0
  %2109 = vmatprep.subr.mxu0 0.0
  %2110 = vmatpush1.msra.mxu0 0.0
  %2111 = vmatprep.subr.mxu0 0.0
  %2112 = vmatpush1.msra.mxu0 0.0
  %2113 = vmatprep.subr.mxu0 0.0
  %2114 = vmatpush1.msra.mxu0 0.0
  %2115 = vmatprep.subr.mxu0 0.0
  %2116 = vmatpush1.msra.mxu0 0.0
  %2117 = vmatprep.subr.mxu0 0.0
  %2118 = vmatpush1.msra.mxu0 0.0
  %2119 = vmatprep.subr.mxu0 0.0
  %2120 = vmatpush1.msra.mxu0 0.0
  %2121 = vmatprep.subr.mxu0 0.0
  %2122 = vmatpush1.msra.mxu0 0.0
  %2123 = vmatprep.subr.mxu0 0.0
  %2124 = vmatpush1.msra.mxu0 0.0
  %2125 = vmatprep.subr.mxu0 0.0
  %2126 = vmatpush1.msra.mxu0 0.0
  %2127 = vmatprep.subr.mxu0 0.0
  %2128 = vmatpush1.msra.mxu0 0.0
  %2129 = vmatprep.subr.mxu0 0.0
  %2130 = vmatpush1.msra.mxu0 0.0
  %2131 = vmatprep.subr.mxu0 0.0
  %2132 = vmatpush1.msra.mxu0 0.0
  %2133 = vmatprep.subr.mxu0 0.0
  %2134 = vmatpush1.msra.mxu0 0.0
  %2135 = vmatprep.subr.mxu0 0.0
  %2136 = vmatpush1.msra.mxu0 0.0
  %2137 = vmatprep.mubr.f32.mxu0 0.0
  %2138 = vmatmul.mubr.f32.gmra.mrb[0].mxu0 %v2068
  %v2139 = vpop.f32.mrb[0].mxu0
  %v2140 = vadd.f32 %v506, %v2139
  %v2141 = vpop.f32.mrb[0].mxu0
  %v2142 = vadd.f32 %v510, %v2141
  %2143 = vmatprep.mubr.f32.mxu0 0.0
  %2144 = vmatmul.mubr.f32.gmra.mrb[0].mxu0 %v2071
  %v2145 = vpop.f32.mrb[0].mxu0
  %v2146 = vadd.f32 %v506, %v2145
  %v2147 = vpop.f32.mrb[0].mxu0
  %v2148 = vadd.f32 %v510, %v2147
  %2149 = vdwg.mxu0
  %2150 = vmatprep.subr.mxu0 0.0
  %2151 = vmatpush1.msra.mxu0 %v2057
  %2152 = vmatprep.subr.mxu0 0.0
  %2153 = vmatpush1.msra.mxu0 %v2060
  %2154 = vmatprep.subr.mxu0 0.0
  %2155 = vmatpush1.msra.mxu0 %v2063
  %2156 = vmatprep.subr.mxu0 0.0
  %2157 = vmatpush1.msra.mxu0 %v2066
  %2158 = vmatprep.subr.mxu0 0.0
  %2159 = vmatpush1.msra.mxu0 0.0
  %2160 = vmatprep.subr.mxu0 0.0
  %2161 = vmatpush1.msra.mxu0 0.0
  %2162 = vmatprep.subr.mxu0 0.0
  %2163 = vmatpush1.msra.mxu0 0.0
  %2164 = vmatprep.subr.mxu0 0.0
  %2165 = vmatpush1.msra.mxu0 0.0
  %2166 = vmatprep.subr.mxu0 0.0
  %2167 = vmatpush1.msra.mxu0 0.0
  %2168 = vmatprep.subr.mxu0 0.0
  %2169 = vmatpush1.msra.mxu0 0.0
  %2170 = vmatprep.subr.mxu0 0.0
  %2171 = vmatpush1.msra.mxu0 0.0
  %2172 = vmatprep.subr.mxu0 0.0
  %2173 = vmatpush1.msra.mxu0 0.0
  %2174 = vmatprep.subr.mxu0 0.0
  %2175 = vmatpush1.msra.mxu0 0.0
  %2176 = vmatprep.subr.mxu0 0.0
  %2177 = vmatpush1.msra.mxu0 0.0
  %2178 = vmatprep.subr.mxu0 0.0
  %2179 = vmatpush1.msra.mxu0 0.0
  %2180 = vmatprep.subr.mxu0 0.0
  %2181 = vmatpush1.msra.mxu0 0.0
  %2182 = vmatprep.subr.mxu0 0.0
  %2183 = vmatpush1.msra.mxu0 0.0
  %2184 = vmatprep.subr.mxu0 0.0
  %2185 = vmatpush1.msra.mxu0 0.0
  %2186 = vmatprep.subr.mxu0 0.0
  %2187 = vmatpush1.msra.mxu0 0.0
  %2188 = vmatprep.subr.mxu0 0.0
  %2189 = vmatpush1.msra.mxu0 0.0
  %2190 = vmatprep.subr.mxu0 0.0
  %2191 = vmatpush1.msra.mxu0 0.0
  %2192 = vmatprep.subr.mxu0 0.0
  %2193 = vmatpush1.msra.mxu0 0.0
  %2194 = vmatprep.subr.mxu0 0.0
  %2195 = vmatpush1.msra.mxu0 0.0
  %2196 = vmatprep.subr.mxu0 0.0
  %2197 = vmatpush1.msra.mxu0 0.0
  %2198 = vmatprep.subr.mxu0 0.0
  %2199 = vmatpush1.msra.mxu0 0.0
  %2200 = vmatprep.subr.mxu0 0.0
  %2201 = vmatpush1.msra.mxu0 0.0
  %2202 = vmatprep.subr.mxu0 0.0
  %2203 = vmatpush1.msra.mxu0 0.0
  %2204 = vmatprep.subr.mxu0 0.0
  %2205 = vmatpush1.msra.mxu0 0.0
  %2206 = vmatprep.subr.mxu0 0.0
  %2207 = vmatpush1.msra.mxu0 0.0
  %2208 = vmatprep.subr.mxu0 0.0
  %2209 = vmatpush1.msra.mxu0 0.0
  %2210 = vmatprep.subr.mxu0 0.0
  %2211 = vmatpush1.msra.mxu0 0.0
  %2212 = vmatprep.subr.mxu0 0.0
  %2213 = vmatpush1.msra.mxu0 0.0
  %2214 = vmatprep.mubr.f32.mxu0 0.0
  %2215 = vmatmul.mubr.f32.gmra.mrb[0].mxu0 %v2068
  %v2216 = vpop.f32.mrb[0].mxu0
  %v2217 = vadd.f32 %v514, %v2216
  %v2218 = vpop.f32.mrb[0].mxu0
  %2219 = vmatprep.mubr.f32.mxu0 0.0
  %2220 = vmatmul.mubr.f32.gmra.mrb[0].mxu0 %v2071
  %v2221 = vpop.f32.mrb[0].mxu0
  %v2222 = vadd.f32 %v514, %v2221
  %v2223 = vpop.f32.mrb[0].mxu0
  %2224 = vdwg.mxu0
  %v2225 = vld [vmem:[#allocation4 + $0x150] sm:$0xff]
  %v2226 = vld [vmem:[#allocation4 + $0x158] sm:$0xff]
  %v2227 = vld [vmem:[#allocation4 + $0x160] sm:$0xff]
  %v2228 = vld [vmem:[#allocation4 + $0x168] sm:$0xff]
  %v2229 = vld [vmem:[#allocation4 + $0x170] sm:$0xff]
  %v2230 = vld [vmem:[#allocation4 + $0x178] sm:$0xff]
  %v2231 = vadd.f32 %v2225, %v2140
  %v2232 = vadd.f32 %v2228, %v2146
  %v2233 = vxor.u32 %v2231, 2147483648
  %v2234 = vxor.u32 %v2232, 2147483648
  %v2235 = vmul.f32 %v2233, 1.442695
  %v2236 = vpow.pop %v2235
  %v2237 = vmul.f32 %v2234, 1.442695
  %v2238 = vpow.pop %v2237
  %v2239 = vadd.f32 %v2236, 1.0
  %v2240 = vadd.f32 %v2238, 1.0
  %v2241 = vrcp.pop %v2239
  %v2242 = vmul.f32 1.0, %v2241
  %v2243 = vrcp.pop %v2240
  %v2244 = vmul.f32 1.0, %v2243
  %v2245 = vadd.f32 %v2226, %v2142
  %v2246 = vadd.f32 %v2229, %v2148
  %v2247 = vxor.u32 %v2245, 2147483648
  %v2248 = vxor.u32 %v2246, 2147483648
  %v2249 = vmul.f32 %v2247, 1.442695
  %v2250 = vpow.pop %v2249
  %v2251 = vmul.f32 %v2248, 1.442695
  %v2252 = vpow.pop %v2251
  %v2253 = vadd.f32 %v2250, 1.0
  %v2254 = vadd.f32 %v2252, 1.0
  %v2255 = vrcp.pop %v2253
  %v2256 = vmul.f32 1.0, %v2255
  %v2257 = vrcp.pop %v2254
  %v2258 = vmul.f32 1.0, %v2257
  %v2259 = vmul.f32 %v2242, %v2217
  %v2260 = vmul.f32 %v2244, %v2222
  %v2261 = vadd.f32 %v2227, %v2259
  %v2262 = vadd.f32 %v2230, %v2260
  %v2263 = vtanh.pop %v2261
  %v2264 = vtanh.pop %v2262
  %v2265 = vsub.f32 1.0, %v2256
  %v2266 = vsub.f32 1.0, %v2258
  %v2267 = vmul.f32 %v2265, %v2263
  %v2268 = vmul.f32 %v2266, %v2264
  %v2269 = vmul.f32 %v2256, %v2051
  %v2270 = vmul.f32 %v2258, %v2052
  %v2271 = vadd.f32 %v2267, %v2269
  %v2272 = vadd.f32 %v2268, %v2270
  %2273 = vst.msk [vmem:[#allocation2 + $0x70] sm:$0xff] %vm98, %v2271
  %2274 = vst.msk [vmem:[#allocation2 + $0x78] sm:$0xff] %vm98, %v2272
  %v2275 = vld [vmem:[#allocation2] sm:$0xff]
  %v2276 = vld [vmem:[#allocation2 + $0x8] sm:$0xff]
  %v2277 = vld [vmem:[#allocation2 + $0x10] sm:$0xff]
  %v2278 = vld [vmem:[#allocation2 + $0x18] sm:$0xff]
  %v2279 = vld [vmem:[#allocation2 + $0x20] sm:$0xff]
  %v2280 = vld [vmem:[#allocation2 + $0x28] sm:$0xff]
  %v2281 = vld [vmem:[#allocation2 + $0x30] sm:$0xff]
  %v2282 = vld [vmem:[#allocation2 + $0x38] sm:$0xff]
  %v2283 = vld [vmem:[#allocation2 + $0x40] sm:$0xff]
  %v2284 = vld [vmem:[#allocation2 + $0x48] sm:$0xff]
  %v2285 = vld [vmem:[#allocation2 + $0x50] sm:$0xff]
  %v2286 = vld [vmem:[#allocation2 + $0x58] sm:$0xff]
  %v2287 = vld [vmem:[#allocation2 + $0x60] sm:$0xff]
  %v2288 = vld [vmem:[#allocation2 + $0x68] sm:$0xff]
  %v2289 = vld [vmem:[#allocation2 + $0x70] sm:$0xff]
  %v2290 = vld [vmem:[#allocation2 + $0x78] sm:$0xff]
  %v2291 = vld [vmem:[%s12] sm:$0xff]
  %v2292 = vld [vmem:[%s12 + $0x8] sm:$0xff]
  %v2293 = vld [vmem:[%s12 + $0x10] sm:$0xff]
  %v2294 = vld [vmem:[%s12 + $0x18] sm:$0xff]
  %v2295 = vld [vmem:[%s13] sm:$0x1]
  %v2297 = vlaneseq
  %v2298 = vshrl.u32 %v2297, 7
  %v2299 = vsub.s32 0, %v2298
  %v2300 = vrot.slane %v2295, %v2299
  %v2303 = vsel %vm98, %v2275, 0
  %v2306 = vsel %vm98, %v2276, 0
  %v2309 = vsel %vm98, %v2277, 0
  %v2312 = vsel %vm98, %v2278, 0
  %v2315 = vsel %vm98, %v2279, 0
  %v2318 = vsel %vm98, %v2280, 0
  %v2321 = vsel %vm98, %v2281, 0
  %v2324 = vsel %vm98, %v2282, 0
  %v2327 = vsel %vm98, %v2283, 0
  %v2330 = vsel %vm98, %v2284, 0
  %v2333 = vsel %vm98, %v2285, 0
  %v2336 = vsel %vm98, %v2286, 0
  %v2339 = vsel %vm98, %v2287, 0
  %v2342 = vsel %vm98, %v2288, 0
  %v2345 = vsel %vm98, %v2289, 0
  %v2348 = vsel %vm98, %v2290, 0
  %2350 = vmatprep.subr.mxu0 0.0
  %2351 = vmatpush1.msra.mxu0 %v2291
  %2352 = vmatprep.subr.mxu0 0.0
  %2353 = vmatpush1.msra.mxu0 %v2292
  %2354 = vmatprep.subr.mxu0 0.0
  %2355 = vmatpush1.msra.mxu0 %v2293
  %2356 = vmatprep.subr.mxu0 0.0
  %2357 = vmatpush1.msra.mxu0 %v2294
  %2358 = vmatprep.subr.mxu0 0.0
  %2359 = vmatpush1.msra.mxu0 0.0
  %2360 = vmatprep.subr.mxu0 0.0
  %2361 = vmatpush1.msra.mxu0 0.0
  %2362 = vmatprep.subr.mxu0 0.0
  %2363 = vmatpush1.msra.mxu0 0.0
  %2364 = vmatprep.subr.mxu0 0.0
  %2365 = vmatpush1.msra.mxu0 0.0
  %2366 = vmatprep.subr.mxu0 0.0
  %2367 = vmatpush1.msra.mxu0 0.0
  %2368 = vmatprep.subr.mxu0 0.0
  %2369 = vmatpush1.msra.mxu0 0.0
  %2370 = vmatprep.subr.mxu0 0.0
  %2371 = vmatpush1.msra.mxu0 0.0
  %2372 = vmatprep.subr.mxu0 0.0
  %2373 = vmatpush1.msra.mxu0 0.0
  %2374 = vmatprep.subr.mxu0 0.0
  %2375 = vmatpush1.msra.mxu0 0.0
  %2376 = vmatprep.subr.mxu0 0.0
  %2377 = vmatpush1.msra.mxu0 0.0
  %2378 = vmatprep.subr.mxu0 0.0
  %2379 = vmatpush1.msra.mxu0 0.0
  %2380 = vmatprep.subr.mxu0 0.0
  %2381 = vmatpush1.msra.mxu0 0.0
  %2382 = vmatprep.subr.mxu0 0.0
  %2383 = vmatpush1.msra.mxu0 0.0
  %2384 = vmatprep.subr.mxu0 0.0
  %2385 = vmatpush1.msra.mxu0 0.0
  %2386 = vmatprep.subr.mxu0 0.0
  %2387 = vmatpush1.msra.mxu0 0.0
  %2388 = vmatprep.subr.mxu0 0.0
  %2389 = vmatpush1.msra.mxu0 0.0
  %2390 = vmatprep.subr.mxu0 0.0
  %2391 = vmatpush1.msra.mxu0 0.0
  %2392 = vmatprep.subr.mxu0 0.0
  %2393 = vmatpush1.msra.mxu0 0.0
  %2394 = vmatprep.subr.mxu0 0.0
  %2395 = vmatpush1.msra.mxu0 0.0
  %2396 = vmatprep.subr.mxu0 0.0
  %2397 = vmatpush1.msra.mxu0 0.0
  %2398 = vmatprep.subr.mxu0 0.0
  %2399 = vmatpush1.msra.mxu0 0.0
  %2400 = vmatprep.subr.mxu0 0.0
  %2401 = vmatpush1.msra.mxu0 0.0
  %2402 = vmatprep.subr.mxu0 0.0
  %2403 = vmatpush1.msra.mxu0 0.0
  %2404 = vmatprep.subr.mxu0 0.0
  %2405 = vmatpush1.msra.mxu0 0.0
  %2406 = vmatprep.subr.mxu0 0.0
  %2407 = vmatpush1.msra.mxu0 0.0
  %2408 = vmatprep.subr.mxu0 0.0
  %2409 = vmatpush1.msra.mxu0 0.0
  %2410 = vmatprep.subr.mxu0 0.0
  %2411 = vmatpush1.msra.mxu0 0.0
  %2412 = vmatprep.subr.mxu0 0.0
  %2413 = vmatpush1.msra.mxu0 0.0
  %2414 = vmatprep.mubr.f32.mxu0 0.0
  %2415 = vmatmul.mubr.f32.gmra.mrb[0].mxu0 %v2303
  %v2416 = vpop.f32.mrb[0].mxu0
  %v2417 = vadd.f32 %v2300, %v2416
  %v2418 = vpop.f32.mrb[0].mxu0
  %2419 = vmatprep.mubr.f32.mxu0 0.0
  %2420 = vmatmul.mubr.f32.gmra.mrb[0].mxu0 %v2306
  %v2421 = vpop.f32.mrb[0].mxu0
  %v2422 = vadd.f32 %v2300, %v2421
  %v2423 = vpop.f32.mrb[0].mxu0
  %2424 = vmatprep.mubr.f32.mxu0 0.0
  %2425 = vmatmul.mubr.f32.gmra.mrb[0].mxu0 %v2309
  %v2426 = vpop.f32.mrb[0].mxu0
  %v2427 = vadd.f32 %v2300, %v2426
  %v2428 = vpop.f32.mrb[0].mxu0
  %2429 = vmatprep.mubr.f32.mxu0 0.0
  %2430 = vmatmul.mubr.f32.gmra.mrb[0].mxu0 %v2312
  %v2431 = vpop.f32.mrb[0].mxu0
  %v2432 = vadd.f32 %v2300, %v2431
  %v2433 = vpop.f32.mrb[0].mxu0
  %2434 = vmatprep.mubr.f32.mxu0 0.0
  %2435 = vmatmul.mubr.f32.gmra.mrb[0].mxu0 %v2315
  %v2436 = vpop.f32.mrb[0].mxu0
  %v2437 = vadd.f32 %v2300, %v2436
  %v2438 = vpop.f32.mrb[0].mxu0
  %2439 = vmatprep.mubr.f32.mxu0 0.0
  %2440 = vmatmul.mubr.f32.gmra.mrb[0].mxu0 %v2318
  %v2441 = vpop.f32.mrb[0].mxu0
  %v2442 = vadd.f32 %v2300, %v2441
  %v2443 = vpop.f32.mrb[0].mxu0
  %2444 = vmatprep.mubr.f32.mxu0 0.0
  %2445 = vmatmul.mubr.f32.gmra.mrb[0].mxu0 %v2321
  %v2446 = vpop.f32.mrb[0].mxu0
  %v2447 = vadd.f32 %v2300, %v2446
  %v2448 = vpop.f32.mrb[0].mxu0
  %2449 = vmatprep.mubr.f32.mxu0 0.0
  %2450 = vmatmul.mubr.f32.gmra.mrb[0].mxu0 %v2324
  %v2451 = vpop.f32.mrb[0].mxu0
  %v2452 = vadd.f32 %v2300, %v2451
  %v2453 = vpop.f32.mrb[0].mxu0
  %2454 = vmatprep.mubr.f32.mxu0 0.0
  %2455 = vmatmul.mubr.f32.gmra.mrb[0].mxu0 %v2327
  %v2456 = vpop.f32.mrb[0].mxu0
  %v2457 = vadd.f32 %v2300, %v2456
  %v2458 = vpop.f32.mrb[0].mxu0
  %2459 = vmatprep.mubr.f32.mxu0 0.0
  %2460 = vmatmul.mubr.f32.gmra.mrb[0].mxu0 %v2330
  %v2461 = vpop.f32.mrb[0].mxu0
  %v2462 = vadd.f32 %v2300, %v2461
  %v2463 = vpop.f32.mrb[0].mxu0
  %2464 = vmatprep.mubr.f32.mxu0 0.0
  %2465 = vmatmul.mubr.f32.gmra.mrb[0].mxu0 %v2333
  %v2466 = vpop.f32.mrb[0].mxu0
  %v2467 = vadd.f32 %v2300, %v2466
  %v2468 = vpop.f32.mrb[0].mxu0
  %2469 = vmatprep.mubr.f32.mxu0 0.0
  %2470 = vmatmul.mubr.f32.gmra.mrb[0].mxu0 %v2336
  %v2471 = vpop.f32.mrb[0].mxu0
  %v2472 = vadd.f32 %v2300, %v2471
  %v2473 = vpop.f32.mrb[0].mxu0
  %2474 = vmatprep.mubr.f32.mxu0 0.0
  %2475 = vmatmul.mubr.f32.gmra.mrb[0].mxu0 %v2339
  %v2476 = vpop.f32.mrb[0].mxu0
  %v2477 = vadd.f32 %v2300, %v2476
  %v2478 = vpop.f32.mrb[0].mxu0
  %2479 = vmatprep.mubr.f32.mxu0 0.0
  %2480 = vmatmul.mubr.f32.gmra.mrb[0].mxu0 %v2342
  %v2481 = vpop.f32.mrb[0].mxu0
  %v2482 = vadd.f32 %v2300, %v2481
  %v2483 = vpop.f32.mrb[0].mxu0
  %2484 = vmatprep.mubr.f32.mxu0 0.0
  %2485 = vmatmul.mubr.f32.gmra.mrb[0].mxu0 %v2345
  %v2486 = vpop.f32.mrb[0].mxu0
  %v2487 = vadd.f32 %v2300, %v2486
  %v2488 = vpop.f32.mrb[0].mxu0
  %2489 = vmatprep.mubr.f32.mxu0 0.0
  %2490 = vmatmul.mubr.f32.gmra.mrb[0].mxu0 %v2348
  %v2491 = vpop.f32.mrb[0].mxu0
  %v2492 = vadd.f32 %v2300, %v2491
  %v2493 = vpop.f32.mrb[0].mxu0
  %2494 = vdwg.mxu0
  %2495 = vst.msk [vmem:[#allocation3] sm:$0xff] %vm98, %v2417
  %2496 = vst.msk [vmem:[#allocation3 + $0x8] sm:$0xff] %vm98, %v2422
  %2497 = vst.msk [vmem:[#allocation3 + $0x10] sm:$0xff] %vm98, %v2427
  %2498 = vst.msk [vmem:[#allocation3 + $0x18] sm:$0xff] %vm98, %v2432
  %2499 = vst.msk [vmem:[#allocation3 + $0x20] sm:$0xff] %vm98, %v2437
  %2500 = vst.msk [vmem:[#allocation3 + $0x28] sm:$0xff] %vm98, %v2442
  %2501 = vst.msk [vmem:[#allocation3 + $0x30] sm:$0xff] %vm98, %v2447
  %2502 = vst.msk [vmem:[#allocation3 + $0x38] sm:$0xff] %vm98, %v2452
  %2503 = vst.msk [vmem:[#allocation3 + $0x40] sm:$0xff] %vm98, %v2457
  %2504 = vst.msk [vmem:[#allocation3 + $0x48] sm:$0xff] %vm98, %v2462
  %2505 = vst.msk [vmem:[#allocation3 + $0x50] sm:$0xff] %vm98, %v2467
  %2506 = vst.msk [vmem:[#allocation3 + $0x58] sm:$0xff] %vm98, %v2472
  %2507 = vst.msk [vmem:[#allocation3 + $0x60] sm:$0xff] %vm98, %v2477
  %2508 = vst.msk [vmem:[#allocation3 + $0x68] sm:$0xff] %vm98, %v2482
  %2509 = vst.msk [vmem:[#allocation3 + $0x70] sm:$0xff] %vm98, %v2487
  %2510 = vst.msk [vmem:[#allocation3 + $0x78] sm:$0xff] %vm98, %v2492
  %v2511 = vld [vmem:[%s1] sm:$0xff]
  %v2512 = vld [vmem:[%s1 + $0x8] sm:$0xff]
  %v2513 = vld [vmem:[%s1 + $0x10] sm:$0xff]
  %v2514 = vld [vmem:[%s1 + $0x18] sm:$0xff]
  %v2515 = vld [vmem:[%s1 + $0x20] sm:$0xff]
  %v2516 = vld [vmem:[%s1 + $0x28] sm:$0xff]
  %v2517 = vld [vmem:[%s1 + $0x30] sm:$0xff]
  %v2518 = vld [vmem:[%s1 + $0x38] sm:$0xff]
  %v2519 = vld [vmem:[%s1 + $0x40] sm:$0xff]
  %v2520 = vld [vmem:[%s1 + $0x48] sm:$0xff]
  %v2521 = vld [vmem:[%s1 + $0x50] sm:$0xff]
  %v2522 = vld [vmem:[%s1 + $0x58] sm:$0xff]
  %v2523 = vld [vmem:[%s1 + $0x60] sm:$0xff]
  %v2524 = vld [vmem:[%s1 + $0x68] sm:$0xff]
  %v2525 = vld [vmem:[%s1 + $0x70] sm:$0xff]
  %v2526 = vld [vmem:[%s1 + $0x78] sm:$0xff]
  %v2527 = vld [vmem:[%s7] sm:$0xff]
  %v2528 = vld [vmem:[%s7 + $0x8] sm:$0xff]
  %v2529 = vld [vmem:[%s7 + $0x10] sm:$0xff]
  %v2530 = vld [vmem:[%s7 + $0x18] sm:$0xff]
  %v2531 = vld [vmem:[%s7 + $0x20] sm:$0xff]
  %v2532 = vld [vmem:[%s7 + $0x28] sm:$0xff]
  %v2533 = vld [vmem:[%s7 + $0x30] sm:$0xff]
  %v2534 = vld [vmem:[%s7 + $0x38] sm:$0xff]
  %v2535 = vld [vmem:[%s7 + $0x40] sm:$0xff]
  %v2536 = vld [vmem:[%s7 + $0x48] sm:$0xff]
  %v2537 = vld [vmem:[%s7 + $0x50] sm:$0xff]
  %v2538 = vld [vmem:[%s7 + $0x58] sm:$0xff]
  %v2539 = vld [vmem:[%s10] sm:$0x7]
  %v2541 = vlaneseq
  %v2542 = vshrl.u32 %v2541, 7
  %v2543 = vsub.s32 0, %v2542
  %v2544 = vrot.slane %v2539, %v2543
  %v2545 = vlaneseq
  %v2546 = vshrl.u32 %v2545, 7
  %v2547 = vsub.s32 1, %v2546
  %v2548 = vrot.slane %v2539, %v2547
  %v2549 = vlaneseq
  %v2550 = vshrl.u32 %v2549, 7
  %v2551 = vsub.s32 2, %v2550
  %v2552 = vrot.slane %v2539, %v2551
  %v2557 = vsel %vm98, %v2511, 0
  %v2560 = vsel %vm98, %v2512, 0
  %v2563 = vsel %vm98, %v2513, 0
  %v2566 = vsel %vm98, %v2514, 0
  %v2569 = vsel %vm98, %v2515, 0
  %v2572 = vsel %vm98, %v2516, 0
  %v2575 = vsel %vm98, %v2517, 0
  %v2578 = vsel %vm98, %v2518, 0
  %v2581 = vsel %vm98, %v2519, 0
  %v2584 = vsel %vm98, %v2520, 0
  %v2587 = vsel %vm98, %v2521, 0
  %v2590 = vsel %vm98, %v2522, 0
  %v2593 = vsel %vm98, %v2523, 0
  %v2596 = vsel %vm98, %v2524, 0
  %v2599 = vsel %vm98, %v2525, 0
  %v2602 = vsel %vm98, %v2526, 0
  %2604 = vmatprep.subr.mxu0 %v2528
  %2605 = vmatpush1.msra.mxu0 %v2527
  %2606 = vmatprep.subr.mxu0 %v2531
  %2607 = vmatpush1.msra.mxu0 %v2530
  %2608 = vmatprep.subr.mxu0 %v2534
  %2609 = vmatpush1.msra.mxu0 %v2533
  %2610 = vmatprep.subr.mxu0 %v2537
  %2611 = vmatpush1.msra.mxu0 %v2536
  %2612 = vmatprep.subr.mxu0 0.0
  %2613 = vmatpush1.msra.mxu0 0.0
  %2614 = vmatprep.subr.mxu0 0.0
  %2615 = vmatpush1.msra.mxu0 0.0
  %2616 = vmatprep.subr.mxu0 0.0
  %2617 = vmatpush1.msra.mxu0 0.0
  %2618 = vmatprep.subr.mxu0 0.0
  %2619 = vmatpush1.msra.mxu0 0.0
  %2620 = vmatprep.subr.mxu0 0.0
  %2621 = vmatpush1.msra.mxu0 0.0
  %2622 = vmatprep.subr.mxu0 0.0
  %2623 = vmatpush1.msra.mxu0 0.0
  %2624 = vmatprep.subr.mxu0 0.0
  %2625 = vmatpush1.msra.mxu0 0.0
  %2626 = vmatprep.subr.mxu0 0.0
  %2627 = vmatpush1.msra.mxu0 0.0
  %2628 = vmatprep.subr.mxu0 0.0
  %2629 = vmatpush1.msra.mxu0 0.0
  %2630 = vmatprep.subr.mxu0 0.0
  %2631 = vmatpush1.msra.mxu0 0.0
  %2632 = vmatprep.subr.mxu0 0.0
  %2633 = vmatpush1.msra.mxu0 0.0
  %2634 = vmatprep.subr.mxu0 0.0
  %2635 = vmatpush1.msra.mxu0 0.0
  %2636 = vmatprep.subr.mxu0 0.0
  %2637 = vmatpush1.msra.mxu0 0.0
  %2638 = vmatprep.subr.mxu0 0.0
  %2639 = vmatpush1.msra.mxu0 0.0
  %2640 = vmatprep.subr.mxu0 0.0
  %2641 = vmatpush1.msra.mxu0 0.0
  %2642 = vmatprep.subr.mxu0 0.0
  %2643 = vmatpush1.msra.mxu0 0.0
  %2644 = vmatprep.subr.mxu0 0.0
  %2645 = vmatpush1.msra.mxu0 0.0
  %2646 = vmatprep.subr.mxu0 0.0
  %2647 = vmatpush1.msra.mxu0 0.0
  %2648 = vmatprep.subr.mxu0 0.0
  %2649 = vmatpush1.msra.mxu0 0.0
  %2650 = vmatprep.subr.mxu0 0.0
  %2651 = vmatpush1.msra.mxu0 0.0
  %2652 = vmatprep.subr.mxu0 0.0
  %2653 = vmatpush1.msra.mxu0 0.0
  %2654 = vmatprep.subr.mxu0 0.0
  %2655 = vmatpush1.msra.mxu0 0.0
  %2656 = vmatprep.subr.mxu0 0.0
  %2657 = vmatpush1.msra.mxu0 0.0
  %2658 = vmatprep.subr.mxu0 0.0
  %2659 = vmatpush1.msra.mxu0 0.0
  %2660 = vmatprep.subr.mxu0 0.0
  %2661 = vmatpush1.msra.mxu0 0.0
  %2662 = vmatprep.subr.mxu0 0.0
  %2663 = vmatpush1.msra.mxu0 0.0
  %2664 = vmatprep.subr.mxu0 0.0
  %2665 = vmatpush1.msra.mxu0 0.0
  %2666 = vmatprep.subr.mxu0 0.0
  %2667 = vmatpush1.msra.mxu0 0.0
  %2668 = vmatprep.mubr.f32.mxu0 0.0
  %2669 = vmatmul.mubr.f32.gmra.mrb[0].mxu0 %v2557
  %v2670 = vpop.f32.mrb[0].mxu0
  %v2671 = vadd.f32 %v2544, %v2670
  %v2672 = vpop.f32.mrb[0].mxu0
  %v2673 = vadd.f32 %v2548, %v2672
  %2674 = vmatprep.mubr.f32.mxu0 0.0
  %2675 = vmatmul.mubr.f32.gmra.mrb[0].mxu0 %v2560
  %v2676 = vpop.f32.mrb[0].mxu0
  %v2677 = vadd.f32 %v2544, %v2676
  %v2678 = vpop.f32.mrb[0].mxu0
  %v2679 = vadd.f32 %v2548, %v2678
  %2680 = vmatprep.mubr.f32.mxu0 0.0
  %2681 = vmatmul.mubr.f32.gmra.mrb[0].mxu0 %v2563
  %v2682 = vpop.f32.mrb[0].mxu0
  %v2683 = vadd.f32 %v2544, %v2682
  %v2684 = vpop.f32.mrb[0].mxu0
  %v2685 = vadd.f32 %v2548, %v2684
  %2686 = vmatprep.mubr.f32.mxu0 0.0
  %2687 = vmatmul.mubr.f32.gmra.mrb[0].mxu0 %v2566
  %v2688 = vpop.f32.mrb[0].mxu0
  %v2689 = vadd.f32 %v2544, %v2688
  %v2690 = vpop.f32.mrb[0].mxu0
  %v2691 = vadd.f32 %v2548, %v2690
  %2692 = vmatprep.mubr.f32.mxu0 0.0
  %2693 = vmatmul.mubr.f32.gmra.mrb[0].mxu0 %v2569
  %v2694 = vpop.f32.mrb[0].mxu0
  %v2695 = vadd.f32 %v2544, %v2694
  %v2696 = vpop.f32.mrb[0].mxu0
  %v2697 = vadd.f32 %v2548, %v2696
  %2698 = vmatprep.mubr.f32.mxu0 0.0
  %2699 = vmatmul.mubr.f32.gmra.mrb[0].mxu0 %v2572
  %v2700 = vpop.f32.mrb[0].mxu0
  %v2701 = vadd.f32 %v2544, %v2700
  %v2702 = vpop.f32.mrb[0].mxu0
  %v2703 = vadd.f32 %v2548, %v2702
  %2704 = vmatprep.mubr.f32.mxu0 0.0
  %2705 = vmatmul.mubr.f32.gmra.mrb[0].mxu0 %v2575
  %v2706 = vpop.f32.mrb[0].mxu0
  %v2707 = vadd.f32 %v2544, %v2706
  %v2708 = vpop.f32.mrb[0].mxu0
  %v2709 = vadd.f32 %v2548, %v2708
  %2710 = vmatprep.mubr.f32.mxu0 0.0
  %2711 = vmatmul.mubr.f32.gmra.mrb[0].mxu0 %v2578
  %v2712 = vpop.f32.mrb[0].mxu0
  %v2713 = vadd.f32 %v2544, %v2712
  %v2714 = vpop.f32.mrb[0].mxu0
  %v2715 = vadd.f32 %v2548, %v2714
  %2716 = vmatprep.mubr.f32.mxu0 0.0
  %2717 = vmatmul.mubr.f32.gmra.mrb[0].mxu0 %v2581
  %v2718 = vpop.f32.mrb[0].mxu0
  %v2719 = vadd.f32 %v2544, %v2718
  %v2720 = vpop.f32.mrb[0].mxu0
  %v2721 = vadd.f32 %v2548, %v2720
  %2722 = vmatprep.mubr.f32.mxu0 0.0
  %2723 = vmatmul.mubr.f32.gmra.mrb[0].mxu0 %v2584
  %v2724 = vpop.f32.mrb[0].mxu0
  %v2725 = vadd.f32 %v2544, %v2724
  %v2726 = vpop.f32.mrb[0].mxu0
  %v2727 = vadd.f32 %v2548, %v2726
  %2728 = vmatprep.mubr.f32.mxu0 0.0
  %2729 = vmatmul.mubr.f32.gmra.mrb[0].mxu0 %v2587
  %v2730 = vpop.f32.mrb[0].mxu0
  %v2731 = vadd.f32 %v2544, %v2730
  %v2732 = vpop.f32.mrb[0].mxu0
  %v2733 = vadd.f32 %v2548, %v2732
  %2734 = vmatprep.mubr.f32.mxu0 0.0
  %2735 = vmatmul.mubr.f32.gmra.mrb[0].mxu0 %v2590
  %v2736 = vpop.f32.mrb[0].mxu0
  %v2737 = vadd.f32 %v2544, %v2736
  %v2738 = vpop.f32.mrb[0].mxu0
  %v2739 = vadd.f32 %v2548, %v2738
  %2740 = vmatprep.mubr.f32.mxu0 0.0
  %2741 = vmatmul.mubr.f32.gmra.mrb[0].mxu0 %v2593
  %v2742 = vpop.f32.mrb[0].mxu0
  %v2743 = vadd.f32 %v2544, %v2742
  %v2744 = vpop.f32.mrb[0].mxu0
  %v2745 = vadd.f32 %v2548, %v2744
  %2746 = vmatprep.mubr.f32.mxu0 0.0
  %2747 = vmatmul.mubr.f32.gmra.mrb[0].mxu0 %v2596
  %v2748 = vpop.f32.mrb[0].mxu0
  %v2749 = vadd.f32 %v2544, %v2748
  %v2750 = vpop.f32.mrb[0].mxu0
  %v2751 = vadd.f32 %v2548, %v2750
  %2752 = vmatprep.mubr.f32.mxu0 0.0
  %2753 = vmatmul.mubr.f32.gmra.mrb[0].mxu0 %v2599
  %v2754 = vpop.f32.mrb[0].mxu0
  %v2755 = vadd.f32 %v2544, %v2754
  %v2756 = vpop.f32.mrb[0].mxu0
  %v2757 = vadd.f32 %v2548, %v2756
  %2758 = vmatprep.mubr.f32.mxu0 0.0
  %2759 = vmatmul.mubr.f32.gmra.mrb[0].mxu0 %v2602
  %v2760 = vpop.f32.mrb[0].mxu0
  %v2761 = vadd.f32 %v2544, %v2760
  %v2762 = vpop.f32.mrb[0].mxu0
  %v2763 = vadd.f32 %v2548, %v2762
  %2764 = vdwg.mxu0
  %2765 = vmatprep.subr.mxu0 0.0
  %2766 = vmatpush1.msra.mxu0 %v2529
  %2767 = vmatprep.subr.mxu0 0.0
  %2768 = vmatpush1.msra.mxu0 %v2532
  %2769 = vmatprep.subr.mxu0 0.0
  %2770 = vmatpush1.msra.mxu0 %v2535
  %2771 = vmatprep.subr.mxu0 0.0
  %2772 = vmatpush1.msra.mxu0 %v2538
  %2773 = vmatprep.subr.mxu0 0.0
  %2774 = vmatpush1.msra.mxu0 0.0
  %2775 = vmatprep.subr.mxu0 0.0
  %2776 = vmatpush1.msra.mxu0 0.0
  %2777 = vmatprep.subr.mxu0 0.0
  %2778 = vmatpush1.msra.mxu0 0.0
  %2779 = vmatprep.subr.mxu0 0.0
  %2780 = vmatpush1.msra.mxu0 0.0
  %2781 = vmatprep.subr.mxu0 0.0
  %2782 = vmatpush1.msra.mxu0 0.0
  %2783 = vmatprep.subr.mxu0 0.0
  %2784 = vmatpush1.msra.mxu0 0.0
  %2785 = vmatprep.subr.mxu0 0.0
  %2786 = vmatpush1.msra.mxu0 0.0
  %2787 = vmatprep.subr.mxu0 0.0
  %2788 = vmatpush1.msra.mxu0 0.0
  %2789 = vmatprep.subr.mxu0 0.0
  %2790 = vmatpush1.msra.mxu0 0.0
  %2791 = vmatprep.subr.mxu0 0.0
  %2792 = vmatpush1.msra.mxu0 0.0
  %2793 = vmatprep.subr.mxu0 0.0
  %2794 = vmatpush1.msra.mxu0 0.0
  %2795 = vmatprep.subr.mxu0 0.0
  %2796 = vmatpush1.msra.mxu0 0.0
  %2797 = vmatprep.subr.mxu0 0.0
  %2798 = vmatpush1.msra.mxu0 0.0
  %2799 = vmatprep.subr.mxu0 0.0
  %2800 = vmatpush1.msra.mxu0 0.0
  %2801 = vmatprep.subr.mxu0 0.0
  %2802 = vmatpush1.msra.mxu0 0.0
  %2803 = vmatprep.subr.mxu0 0.0
  %2804 = vmatpush1.msra.mxu0 0.0
  %2805 = vmatprep.subr.mxu0 0.0
  %2806 = vmatpush1.msra.mxu0 0.0
  %2807 = vmatprep.subr.mxu0 0.0
  %2808 = vmatpush1.msra.mxu0 0.0
  %2809 = vmatprep.subr.mxu0 0.0
  %2810 = vmatpush1.msra.mxu0 0.0
  %2811 = vmatprep.subr.mxu0 0.0
  %2812 = vmatpush1.msra.mxu0 0.0
  %2813 = vmatprep.subr.mxu0 0.0
  %2814 = vmatpush1.msra.mxu0 0.0
  %2815 = vmatprep.subr.mxu0 0.0
  %2816 = vmatpush1.msra.mxu0 0.0
  %2817 = vmatprep.subr.mxu0 0.0
  %2818 = vmatpush1.msra.mxu0 0.0
  %2819 = vmatprep.subr.mxu0 0.0
  %2820 = vmatpush1.msra.mxu0 0.0
  %2821 = vmatprep.subr.mxu0 0.0
  %2822 = vmatpush1.msra.mxu0 0.0
  %2823 = vmatprep.subr.mxu0 0.0
  %2824 = vmatpush1.msra.mxu0 0.0
  %2825 = vmatprep.subr.mxu0 0.0
  %2826 = vmatpush1.msra.mxu0 0.0
  %2827 = vmatprep.subr.mxu0 0.0
  %2828 = vmatpush1.msra.mxu0 0.0
  %2829 = vmatprep.mubr.f32.mxu0 0.0
  %2830 = vmatmul.mubr.f32.gmra.mrb[0].mxu0 %v2557
  %v2831 = vpop.f32.mrb[0].mxu0
  %v2832 = vadd.f32 %v2552, %v2831
  %v2833 = vpop.f32.mrb[0].mxu0
  %2834 = vmatprep.mubr.f32.mxu0 0.0
  %2835 = vmatmul.mubr.f32.gmra.mrb[0].mxu0 %v2560
  %v2836 = vpop.f32.mrb[0].mxu0
  %v2837 = vadd.f32 %v2552, %v2836
  %v2838 = vpop.f32.mrb[0].mxu0
  %2839 = vmatprep.mubr.f32.mxu0 0.0
  %2840 = vmatmul.mubr.f32.gmra.mrb[0].mxu0 %v2563
  %v2841 = vpop.f32.mrb[0].mxu0
  %v2842 = vadd.f32 %v2552, %v2841
  %v2843 = vpop.f32.mrb[0].mxu0
  %2844 = vmatprep.mubr.f32.mxu0 0.0
  %2845 = vmatmul.mubr.f32.gmra.mrb[0].mxu0 %v2566
  %v2846 = vpop.f32.mrb[0].mxu0
  %v2847 = vadd.f32 %v2552, %v2846
  %v2848 = vpop.f32.mrb[0].mxu0
  %2849 = vmatprep.mubr.f32.mxu0 0.0
  %2850 = vmatmul.mubr.f32.gmra.mrb[0].mxu0 %v2569
  %v2851 = vpop.f32.mrb[0].mxu0
  %v2852 = vadd.f32 %v2552, %v2851
  %v2853 = vpop.f32.mrb[0].mxu0
  %2854 = vmatprep.mubr.f32.mxu0 0.0
  %2855 = vmatmul.mubr.f32.gmra.mrb[0].mxu0 %v2572
  %v2856 = vpop.f32.mrb[0].mxu0
  %v2857 = vadd.f32 %v2552, %v2856
  %v2858 = vpop.f32.mrb[0].mxu0
  %2859 = vmatprep.mubr.f32.mxu0 0.0
  %2860 = vmatmul.mubr.f32.gmra.mrb[0].mxu0 %v2575
  %v2861 = vpop.f32.mrb[0].mxu0
  %v2862 = vadd.f32 %v2552, %v2861
  %v2863 = vpop.f32.mrb[0].mxu0
  %2864 = vmatprep.mubr.f32.mxu0 0.0
  %2865 = vmatmul.mubr.f32.gmra.mrb[0].mxu0 %v2578
  %v2866 = vpop.f32.mrb[0].mxu0
  %v2867 = vadd.f32 %v2552, %v2866
  %v2868 = vpop.f32.mrb[0].mxu0
  %2869 = vmatprep.mubr.f32.mxu0 0.0
  %2870 = vmatmul.mubr.f32.gmra.mrb[0].mxu0 %v2581
  %v2871 = vpop.f32.mrb[0].mxu0
  %v2872 = vadd.f32 %v2552, %v2871
  %v2873 = vpop.f32.mrb[0].mxu0
  %2874 = vmatprep.mubr.f32.mxu0 0.0
  %2875 = vmatmul.mubr.f32.gmra.mrb[0].mxu0 %v2584
  %v2876 = vpop.f32.mrb[0].mxu0
  %v2877 = vadd.f32 %v2552, %v2876
  %v2878 = vpop.f32.mrb[0].mxu0
  %2879 = vmatprep.mubr.f32.mxu0 0.0
  %2880 = vmatmul.mubr.f32.gmra.mrb[0].mxu0 %v2587
  %v2881 = vpop.f32.mrb[0].mxu0
  %v2882 = vadd.f32 %v2552, %v2881
  %v2883 = vpop.f32.mrb[0].mxu0
  %2884 = vmatprep.mubr.f32.mxu0 0.0
  %2885 = vmatmul.mubr.f32.gmra.mrb[0].mxu0 %v2590
  %v2886 = vpop.f32.mrb[0].mxu0
  %v2887 = vadd.f32 %v2552, %v2886
  %v2888 = vpop.f32.mrb[0].mxu0
  %2889 = vmatprep.mubr.f32.mxu0 0.0
  %2890 = vmatmul.mubr.f32.gmra.mrb[0].mxu0 %v2593
  %v2891 = vpop.f32.mrb[0].mxu0
  %v2892 = vadd.f32 %v2552, %v2891
  %v2893 = vpop.f32.mrb[0].mxu0
  %2894 = vmatprep.mubr.f32.mxu0 0.0
  %2895 = vmatmul.mubr.f32.gmra.mrb[0].mxu0 %v2596
  %v2896 = vpop.f32.mrb[0].mxu0
  %v2897 = vadd.f32 %v2552, %v2896
  %v2898 = vpop.f32.mrb[0].mxu0
  %2899 = vmatprep.mubr.f32.mxu0 0.0
  %2900 = vmatmul.mubr.f32.gmra.mrb[0].mxu0 %v2599
  %v2901 = vpop.f32.mrb[0].mxu0
  %v2902 = vadd.f32 %v2552, %v2901
  %v2903 = vpop.f32.mrb[0].mxu0
  %2904 = vmatprep.mubr.f32.mxu0 0.0
  %2905 = vmatmul.mubr.f32.gmra.mrb[0].mxu0 %v2602
  %v2906 = vpop.f32.mrb[0].mxu0
  %v2907 = vadd.f32 %v2552, %v2906
  %v2908 = vpop.f32.mrb[0].mxu0
  %2909 = vdwg.mxu0
  %2910 = vst [vmem:[#allocation5] sm:$0xff] %v2671
  %2911 = vst [vmem:[#allocation5 + $0x8] sm:$0xff] %v2673
  %2912 = vst [vmem:[#allocation5 + $0x10] sm:$0xff] %v2832
  %2913 = vst [vmem:[#allocation5 + $0x18] sm:$0xff] %v2677
  %2914 = vst [vmem:[#allocation5 + $0x20] sm:$0xff] %v2679
  %2915 = vst [vmem:[#allocation5 + $0x28] sm:$0xff] %v2837
  %2916 = vst [vmem:[#allocation5 + $0x30] sm:$0xff] %v2683
  %2917 = vst [vmem:[#allocation5 + $0x38] sm:$0xff] %v2685
  %2918 = vst [vmem:[#allocation5 + $0x40] sm:$0xff] %v2842
  %2919 = vst [vmem:[#allocation5 + $0x48] sm:$0xff] %v2689
  %2920 = vst [vmem:[#allocation5 + $0x50] sm:$0xff] %v2691
  %2921 = vst [vmem:[#allocation5 + $0x58] sm:$0xff] %v2847
  %2922 = vst [vmem:[#allocation5 + $0x60] sm:$0xff] %v2695
  %2923 = vst [vmem:[#allocation5 + $0x68] sm:$0xff] %v2697
  %2924 = vst [vmem:[#allocation5 + $0x70] sm:$0xff] %v2852
  %2925 = vst [vmem:[#allocation5 + $0x78] sm:$0xff] %v2701
  %2926 = vst [vmem:[#allocation5 + $0x80] sm:$0xff] %v2703
  %2927 = vst [vmem:[#allocation5 + $0x88] sm:$0xff] %v2857
  %2928 = vst [vmem:[#allocation5 + $0x90] sm:$0xff] %v2707
  %2929 = vst [vmem:[#allocation5 + $0x98] sm:$0xff] %v2709
  %2930 = vst [vmem:[#allocation5 + $0xa0] sm:$0xff] %v2862
  %2931 = vst [vmem:[#allocation5 + $0xa8] sm:$0xff] %v2713
  %2932 = vst [vmem:[#allocation5 + $0xb0] sm:$0xff] %v2715
  %2933 = vst [vmem:[#allocation5 + $0xb8] sm:$0xff] %v2867
  %2934 = vst [vmem:[#allocation5 + $0xc0] sm:$0xff] %v2719
  %2935 = vst [vmem:[#allocation5 + $0xc8] sm:$0xff] %v2721
  %2936 = vst [vmem:[#allocation5 + $0xd0] sm:$0xff] %v2872
  %2937 = vst [vmem:[#allocation5 + $0xd8] sm:$0xff] %v2725
  %2938 = vst [vmem:[#allocation5 + $0xe0] sm:$0xff] %v2727
  %2939 = vst [vmem:[#allocation5 + $0xe8] sm:$0xff] %v2877
  %2940 = vst [vmem:[#allocation5 + $0xf0] sm:$0xff] %v2731
  %2941 = vst [vmem:[#allocation5 + $0xf8] sm:$0xff] %v2733
  %2942 = vst [vmem:[#allocation5 + $0x100] sm:$0xff] %v2882
  %2943 = vst [vmem:[#allocation5 + $0x108] sm:$0xff] %v2737
  %2944 = vst [vmem:[#allocation5 + $0x110] sm:$0xff] %v2739
  %2945 = vst [vmem:[#allocation5 + $0x118] sm:$0xff] %v2887
  %2946 = vst [vmem:[#allocation5 + $0x120] sm:$0xff] %v2743
  %2947 = vst [vmem:[#allocation5 + $0x128] sm:$0xff] %v2745
  %2948 = vst [vmem:[#allocation5 + $0x130] sm:$0xff] %v2892
  %2949 = vst [vmem:[#allocation5 + $0x138] sm:$0xff] %v2749
  %2950 = vst [vmem:[#allocation5 + $0x140] sm:$0xff] %v2751
  %2951 = vst [vmem:[#allocation5 + $0x148] sm:$0xff] %v2897
  %2952 = vst [vmem:[#allocation5 + $0x150] sm:$0xff] %v2755
  %2953 = vst [vmem:[#allocation5 + $0x158] sm:$0xff] %v2757
  %2954 = vst [vmem:[#allocation5 + $0x160] sm:$0xff] %v2902
  %2955 = vst [vmem:[#allocation5 + $0x168] sm:$0xff] %v2761
  %2956 = vst [vmem:[#allocation5 + $0x170] sm:$0xff] %v2763
  %2957 = vst [vmem:[#allocation5 + $0x178] sm:$0xff] %v2907
  %v2958 = vld [vmem:[%s11] sm:$0x7]
  %v2960 = vlaneseq
  %v2961 = vshrl.u32 %v2960, 7
  %v2962 = vsub.s32 0, %v2961
  %v2963 = vrot.slane %v2958, %v2962
  %v2964 = vlaneseq
  %v2965 = vshrl.u32 %v2964, 7
  %v2966 = vsub.s32 1, %v2965
  %v2967 = vrot.slane %v2958, %v2966
  %v2968 = vlaneseq
  %v2969 = vshrl.u32 %v2968, 7
  %v2970 = vsub.s32 2, %v2969
  %v2971 = vrot.slane %v2958, %v2970
  %v2975 = vld [vmem:[%s15] sm:$0x1]
  %v2977 = vlaneseq
  %v2978 = vshrl.u32 %v2977, 7
  %v2979 = vsub.s32 0, %v2978
  %v2980 = vrot.slane %v2975, %v2979
  %v2982 = vld [vmem:[#allocation5] sm:$0xff]
  %v2983 = vld [vmem:[#allocation5 + $0x8] sm:$0xff]
  %v2984 = vld [vmem:[#allocation5 + $0x10] sm:$0xff]
  %v2985 = vld [vmem:[#allocation5 + $0x18] sm:$0xff]
  %v2986 = vld [vmem:[#allocation5 + $0x20] sm:$0xff]
  %v2987 = vld [vmem:[#allocation5 + $0x28] sm:$0xff]
  %v2988 = vld [vmem:[%s8] sm:$0xff]
  %v2989 = vld [vmem:[%s8 + $0x8] sm:$0xff]
  %v2990 = vld [vmem:[%s8 + $0x10] sm:$0xff]
  %v2991 = vld [vmem:[%s8 + $0x18] sm:$0xff]
  %v2992 = vld [vmem:[%s8 + $0x20] sm:$0xff]
  %v2993 = vld [vmem:[%s8 + $0x28] sm:$0xff]
  %v2994 = vld [vmem:[%s8 + $0x30] sm:$0xff]
  %v2995 = vld [vmem:[%s8 + $0x38] sm:$0xff]
  %v2996 = vld [vmem:[%s8 + $0x40] sm:$0xff]
  %v2997 = vld [vmem:[%s8 + $0x48] sm:$0xff]
  %v2998 = vld [vmem:[%s8 + $0x50] sm:$0xff]
  %v2999 = vld [vmem:[%s8 + $0x58] sm:$0xff]
  %3000 = vmatprep.subr.mxu0 %v2989
  %3001 = vmatpush1.msra.mxu0 %v2988
  %3002 = vmatprep.subr.mxu0 %v2992
  %3003 = vmatpush1.msra.mxu0 %v2991
  %3004 = vmatprep.subr.mxu0 %v2995
  %3005 = vmatpush1.msra.mxu0 %v2994
  %3006 = vmatprep.subr.mxu0 %v2998
  %3007 = vmatpush1.msra.mxu0 %v2997
  %3008 = vmatprep.subr.mxu0 0.0
  %3009 = vmatpush1.msra.mxu0 0.0
  %3010 = vmatprep.subr.mxu0 0.0
  %3011 = vmatpush1.msra.mxu0 0.0
  %3012 = vmatprep.subr.mxu0 0.0
  %3013 = vmatpush1.msra.mxu0 0.0
  %3014 = vmatprep.subr.mxu0 0.0
  %3015 = vmatpush1.msra.mxu0 0.0
  %3016 = vmatprep.subr.mxu0 0.0
  %3017 = vmatpush1.msra.mxu0 0.0
  %3018 = vmatprep.subr.mxu0 0.0
  %3019 = vmatpush1.msra.mxu0 0.0
  %3020 = vmatprep.subr.mxu0 0.0
  %3021 = vmatpush1.msra.mxu0 0.0
  %3022 = vmatprep.subr.mxu0 0.0
  %3023 = vmatpush1.msra.mxu0 0.0
  %3024 = vmatprep.subr.mxu0 0.0
  %3025 = vmatpush1.msra.mxu0 0.0
  %3026 = vmatprep.subr.mxu0 0.0
  %3027 = vmatpush1.msra.mxu0 0.0
  %3028 = vmatprep.subr.mxu0 0.0
  %3029 = vmatpush1.msra.mxu0 0.0
  %3030 = vmatprep.subr.mxu0 0.0
  %3031 = vmatpush1.msra.mxu0 0.0
  %3032 = vmatprep.subr.mxu0 0.0
  %3033 = vmatpush1.msra.mxu0 0.0
  %3034 = vmatprep.subr.mxu0 0.0
  %3035 = vmatpush1.msra.mxu0 0.0
  %3036 = vmatprep.subr.mxu0 0.0
  %3037 = vmatpush1.msra.mxu0 0.0
  %3038 = vmatprep.subr.mxu0 0.0
  %3039 = vmatpush1.msra.mxu0 0.0
  %3040 = vmatprep.subr.mxu0 0.0
  %3041 = vmatpush1.msra.mxu0 0.0
  %3042 = vmatprep.subr.mxu0 0.0
  %3043 = vmatpush1.msra.mxu0 0.0
  %3044 = vmatprep.subr.mxu0 0.0
  %3045 = vmatpush1.msra.mxu0 0.0
  %3046 = vmatprep.subr.mxu0 0.0
  %3047 = vmatpush1.msra.mxu0 0.0
  %3048 = vmatprep.subr.mxu0 0.0
  %3049 = vmatpush1.msra.mxu0 0.0
  %3050 = vmatprep.subr.mxu0 0.0
  %3051 = vmatpush1.msra.mxu0 0.0
  %3052 = vmatprep.subr.mxu0 0.0
  %3053 = vmatpush1.msra.mxu0 0.0
  %3054 = vmatprep.subr.mxu0 0.0
  %3055 = vmatpush1.msra.mxu0 0.0
  %3056 = vmatprep.subr.mxu0 0.0
  %3057 = vmatpush1.msra.mxu0 0.0
  %3058 = vmatprep.subr.mxu0 0.0
  %3059 = vmatpush1.msra.mxu0 0.0
  %3060 = vmatprep.subr.mxu0 0.0
  %3061 = vmatpush1.msra.mxu0 0.0
  %3062 = vmatprep.subr.mxu0 0.0
  %3063 = vmatpush1.msra.mxu0 0.0
  %3064 = vmatprep.mubr.f32.mxu0 0.0
  %3065 = vmatmul.mubr.f32.gmra.mrb[0].mxu0 %v531
  %v3066 = vpop.f32.mrb[0].mxu0
  %v3067 = vadd.f32 0.0, %v3066
  %v3068 = vpop.f32.mrb[0].mxu0
  %v3069 = vadd.f32 0.0, %v3068
  %3070 = vmatprep.mubr.f32.mxu0 0.0
  %3071 = vmatmul.mubr.f32.gmra.mrb[0].mxu0 %v531
  %v3072 = vpop.f32.mrb[0].mxu0
  %v3073 = vadd.f32 0.0, %v3072
  %v3074 = vpop.f32.mrb[0].mxu0
  %v3075 = vadd.f32 0.0, %v3074
  %3076 = vdwg.mxu0
  %3077 = vmatprep.subr.mxu0 0.0
  %3078 = vmatpush1.msra.mxu0 %v2990
  %3079 = vmatprep.subr.mxu0 0.0
  %3080 = vmatpush1.msra.mxu0 %v2993
  %3081 = vmatprep.subr.mxu0 0.0
  %3082 = vmatpush1.msra.mxu0 %v2996
  %3083 = vmatprep.subr.mxu0 0.0
  %3084 = vmatpush1.msra.mxu0 %v2999
  %3085 = vmatprep.subr.mxu0 0.0
  %3086 = vmatpush1.msra.mxu0 0.0
  %3087 = vmatprep.subr.mxu0 0.0
  %3088 = vmatpush1.msra.mxu0 0.0
  %3089 = vmatprep.subr.mxu0 0.0
  %3090 = vmatpush1.msra.mxu0 0.0
  %3091 = vmatprep.subr.mxu0 0.0
  %3092 = vmatpush1.msra.mxu0 0.0
  %3093 = vmatprep.subr.mxu0 0.0
  %3094 = vmatpush1.msra.mxu0 0.0
  %3095 = vmatprep.subr.mxu0 0.0
  %3096 = vmatpush1.msra.mxu0 0.0
  %3097 = vmatprep.subr.mxu0 0.0
  %3098 = vmatpush1.msra.mxu0 0.0
  %3099 = vmatprep.subr.mxu0 0.0
  %3100 = vmatpush1.msra.mxu0 0.0
  %3101 = vmatprep.subr.mxu0 0.0
  %3102 = vmatpush1.msra.mxu0 0.0
  %3103 = vmatprep.subr.mxu0 0.0
  %3104 = vmatpush1.msra.mxu0 0.0
  %3105 = vmatprep.subr.mxu0 0.0
  %3106 = vmatpush1.msra.mxu0 0.0
  %3107 = vmatprep.subr.mxu0 0.0
  %3108 = vmatpush1.msra.mxu0 0.0
  %3109 = vmatprep.subr.mxu0 0.0
  %3110 = vmatpush1.msra.mxu0 0.0
  %3111 = vmatprep.subr.mxu0 0.0
  %3112 = vmatpush1.msra.mxu0 0.0
  %3113 = vmatprep.subr.mxu0 0.0
  %3114 = vmatpush1.msra.mxu0 0.0
  %3115 = vmatprep.subr.mxu0 0.0
  %3116 = vmatpush1.msra.mxu0 0.0
  %3117 = vmatprep.subr.mxu0 0.0
  %3118 = vmatpush1.msra.mxu0 0.0
  %3119 = vmatprep.subr.mxu0 0.0
  %3120 = vmatpush1.msra.mxu0 0.0
  %3121 = vmatprep.subr.mxu0 0.0
  %3122 = vmatpush1.msra.mxu0 0.0
  %3123 = vmatprep.subr.mxu0 0.0
  %3124 = vmatpush1.msra.mxu0 0.0
  %3125 = vmatprep.subr.mxu0 0.0
  %3126 = vmatpush1.msra.mxu0 0.0
  %3127 = vmatprep.subr.mxu0 0.0
  %3128 = vmatpush1.msra.mxu0 0.0
  %3129 = vmatprep.subr.mxu0 0.0
  %3130 = vmatpush1.msra.mxu0 0.0
  %3131 = vmatprep.subr.mxu0 0.0
  %3132 = vmatpush1.msra.mxu0 0.0
  %3133 = vmatprep.subr.mxu0 0.0
  %3134 = vmatpush1.msra.mxu0 0.0
  %3135 = vmatprep.subr.mxu0 0.0
  %3136 = vmatpush1.msra.mxu0 0.0
  %3137 = vmatprep.subr.mxu0 0.0
  %3138 = vmatpush1.msra.mxu0 0.0
  %3139 = vmatprep.subr.mxu0 0.0
  %3140 = vmatpush1.msra.mxu0 0.0
  %3141 = vmatprep.mubr.f32.mxu0 0.0
  %3142 = vmatmul.mubr.f32.gmra.mrb[0].mxu0 %v531
  %v3143 = vpop.f32.mrb[0].mxu0
  %v3144 = vadd.f32 0.0, %v3143
  %v3145 = vpop.f32.mrb[0].mxu0
  %3146 = vmatprep.mubr.f32.mxu0 0.0
  %3147 = vmatmul.mubr.f32.gmra.mrb[0].mxu0 %v531
  %v3148 = vpop.f32.mrb[0].mxu0
  %v3149 = vadd.f32 0.0, %v3148
  %v3150 = vpop.f32.mrb[0].mxu0
  %3151 = vdwg.mxu0
  %v3152 = vadd.f32 %v2982, %v3067
  %v3153 = vadd.f32 %v2983, %v3069
  %v3154 = vadd.f32 %v2984, %v3144
  %v3155 = vadd.f32 %v2985, %v3073
  %v3156 = vadd.f32 %v2986, %v3075
  %v3157 = vadd.f32 %v2987, %v3149
  %v3158 = vld [vmem:[%s9] sm:$0xff]
  %v3159 = vld [vmem:[%s9 + $0x8] sm:$0xff]
  %v3160 = vld [vmem:[%s9 + $0x10] sm:$0xff]
  %v3161 = vld [vmem:[%s9 + $0x18] sm:$0xff]
  %v3162 = vld [vmem:[%s9 + $0x20] sm:$0xff]
  %v3163 = vld [vmem:[%s9 + $0x28] sm:$0xff]
  %v3164 = vld [vmem:[%s9 + $0x30] sm:$0xff]
  %v3165 = vld [vmem:[%s9 + $0x38] sm:$0xff]
  %v3166 = vld [vmem:[%s9 + $0x40] sm:$0xff]
  %v3167 = vld [vmem:[%s9 + $0x48] sm:$0xff]
  %v3168 = vld [vmem:[%s9 + $0x50] sm:$0xff]
  %v3169 = vld [vmem:[%s9 + $0x58] sm:$0xff]
  %v3171 = vsel %vm98, %v2271, 0
  %v3174 = vsel %vm98, %v2272, 0
  %3176 = vmatprep.subr.mxu0 %v3159
  %3177 = vmatpush1.msra.mxu0 %v3158
  %3178 = vmatprep.subr.mxu0 %v3162
  %3179 = vmatpush1.msra.mxu0 %v3161
  %3180 = vmatprep.subr.mxu0 %v3165
  %3181 = vmatpush1.msra.mxu0 %v3164
  %3182 = vmatprep.subr.mxu0 %v3168
  %3183 = vmatpush1.msra.mxu0 %v3167
  %3184 = vmatprep.subr.mxu0 0.0
  %3185 = vmatpush1.msra.mxu0 0.0
  %3186 = vmatprep.subr.mxu0 0.0
  %3187 = vmatpush1.msra.mxu0 0.0
  %3188 = vmatprep.subr.mxu0 0.0
  %3189 = vmatpush1.msra.mxu0 0.0
  %3190 = vmatprep.subr.mxu0 0.0
  %3191 = vmatpush1.msra.mxu0 0.0
  %3192 = vmatprep.subr.mxu0 0.0
  %3193 = vmatpush1.msra.mxu0 0.0
  %3194 = vmatprep.subr.mxu0 0.0
  %3195 = vmatpush1.msra.mxu0 0.0
  %3196 = vmatprep.subr.mxu0 0.0
  %3197 = vmatpush1.msra.mxu0 0.0
  %3198 = vmatprep.subr.mxu0 0.0
  %3199 = vmatpush1.msra.mxu0 0.0
  %3200 = vmatprep.subr.mxu0 0.0
  %3201 = vmatpush1.msra.mxu0 0.0
  %3202 = vmatprep.subr.mxu0 0.0
  %3203 = vmatpush1.msra.mxu0 0.0
  %3204 = vmatprep.subr.mxu0 0.0
  %3205 = vmatpush1.msra.mxu0 0.0
  %3206 = vmatprep.subr.mxu0 0.0
  %3207 = vmatpush1.msra.mxu0 0.0
  %3208 = vmatprep.subr.mxu0 0.0
  %3209 = vmatpush1.msra.mxu0 0.0
  %3210 = vmatprep.subr.mxu0 0.0
  %3211 = vmatpush1.msra.mxu0 0.0
  %3212 = vmatprep.subr.mxu0 0.0
  %3213 = vmatpush1.msra.mxu0 0.0
  %3214 = vmatprep.subr.mxu0 0.0
  %3215 = vmatpush1.msra.mxu0 0.0
  %3216 = vmatprep.subr.mxu0 0.0
  %3217 = vmatpush1.msra.mxu0 0.0
  %3218 = vmatprep.subr.mxu0 0.0
  %3219 = vmatpush1.msra.mxu0 0.0
  %3220 = vmatprep.subr.mxu0 0.0
  %3221 = vmatpush1.msra.mxu0 0.0
  %3222 = vmatprep.subr.mxu0 0.0
  %3223 = vmatpush1.msra.mxu0 0.0
  %3224 = vmatprep.subr.mxu0 0.0
  %3225 = vmatpush1.msra.mxu0 0.0
  %3226 = vmatprep.subr.mxu0 0.0
  %3227 = vmatpush1.msra.mxu0 0.0
  %3228 = vmatprep.subr.mxu0 0.0
  %3229 = vmatpush1.msra.mxu0 0.0
  %3230 = vmatprep.subr.mxu0 0.0
  %3231 = vmatpush1.msra.mxu0 0.0
  %3232 = vmatprep.subr.mxu0 0.0
  %3233 = vmatpush1.msra.mxu0 0.0
  %3234 = vmatprep.subr.mxu0 0.0
  %3235 = vmatpush1.msra.mxu0 0.0
  %3236 = vmatprep.subr.mxu0 0.0
  %3237 = vmatpush1.msra.mxu0 0.0
  %3238 = vmatprep.subr.mxu0 0.0
  %3239 = vmatpush1.msra.mxu0 0.0
  %3240 = vmatprep.mubr.f32.mxu0 0.0
  %3241 = vmatmul.mubr.f32.gmra.mrb[0].mxu0 %v3171
  %v3242 = vpop.f32.mrb[0].mxu0
  %v3243 = vadd.f32 %v2963, %v3242
  %v3244 = vpop.f32.mrb[0].mxu0
  %v3245 = vadd.f32 %v2967, %v3244
  %3246 = vmatprep.mubr.f32.mxu0 0.0
  %3247 = vmatmul.mubr.f32.gmra.mrb[0].mxu0 %v3174
  %v3248 = vpop.f32.mrb[0].mxu0
  %v3249 = vadd.f32 %v2963, %v3248
  %v3250 = vpop.f32.mrb[0].mxu0
  %v3251 = vadd.f32 %v2967, %v3250
  %3252 = vdwg.mxu0
  %3253 = vmatprep.subr.mxu0 0.0
  %3254 = vmatpush1.msra.mxu0 %v3160
  %3255 = vmatprep.subr.mxu0 0.0
  %3256 = vmatpush1.msra.mxu0 %v3163
  %3257 = vmatprep.subr.mxu0 0.0
  %3258 = vmatpush1.msra.mxu0 %v3166
  %3259 = vmatprep.subr.mxu0 0.0
  %3260 = vmatpush1.msra.mxu0 %v3169
  %3261 = vmatprep.subr.mxu0 0.0
  %3262 = vmatpush1.msra.mxu0 0.0
  %3263 = vmatprep.subr.mxu0 0.0
  %3264 = vmatpush1.msra.mxu0 0.0
  %3265 = vmatprep.subr.mxu0 0.0
  %3266 = vmatpush1.msra.mxu0 0.0
  %3267 = vmatprep.subr.mxu0 0.0
  %3268 = vmatpush1.msra.mxu0 0.0
  %3269 = vmatprep.subr.mxu0 0.0
  %3270 = vmatpush1.msra.mxu0 0.0
  %3271 = vmatprep.subr.mxu0 0.0
  %3272 = vmatpush1.msra.mxu0 0.0
  %3273 = vmatprep.subr.mxu0 0.0
  %3274 = vmatpush1.msra.mxu0 0.0
  %3275 = vmatprep.subr.mxu0 0.0
  %3276 = vmatpush1.msra.mxu0 0.0
  %3277 = vmatprep.subr.mxu0 0.0
  %3278 = vmatpush1.msra.mxu0 0.0
  %3279 = vmatprep.subr.mxu0 0.0
  %3280 = vmatpush1.msra.mxu0 0.0
  %3281 = vmatprep.subr.mxu0 0.0
  %3282 = vmatpush1.msra.mxu0 0.0
  %3283 = vmatprep.subr.mxu0 0.0
  %3284 = vmatpush1.msra.mxu0 0.0
  %3285 = vmatprep.subr.mxu0 0.0
  %3286 = vmatpush1.msra.mxu0 0.0
  %3287 = vmatprep.subr.mxu0 0.0
  %3288 = vmatpush1.msra.mxu0 0.0
  %3289 = vmatprep.subr.mxu0 0.0
  %3290 = vmatpush1.msra.mxu0 0.0
  %3291 = vmatprep.subr.mxu0 0.0
  %3292 = vmatpush1.msra.mxu0 0.0
  %3293 = vmatprep.subr.mxu0 0.0
  %3294 = vmatpush1.msra.mxu0 0.0
  %3295 = vmatprep.subr.mxu0 0.0
  %3296 = vmatpush1.msra.mxu0 0.0
  %3297 = vmatprep.subr.mxu0 0.0
  %3298 = vmatpush1.msra.mxu0 0.0
  %3299 = vmatprep.subr.mxu0 0.0
  %3300 = vmatpush1.msra.mxu0 0.0
  %3301 = vmatprep.subr.mxu0 0.0
  %3302 = vmatpush1.msra.mxu0 0.0
  %3303 = vmatprep.subr.mxu0 0.0
  %3304 = vmatpush1.msra.mxu0 0.0
  %3305 = vmatprep.subr.mxu0 0.0
  %3306 = vmatpush1.msra.mxu0 0.0
  %3307 = vmatprep.subr.mxu0 0.0
  %3308 = vmatpush1.msra.mxu0 0.0
  %3309 = vmatprep.subr.mxu0 0.0
  %3310 = vmatpush1.msra.mxu0 0.0
  %3311 = vmatprep.subr.mxu0 0.0
  %3312 = vmatpush1.msra.mxu0 0.0
  %3313 = vmatprep.subr.mxu0 0.0
  %3314 = vmatpush1.msra.mxu0 0.0
  %3315 = vmatprep.subr.mxu0 0.0
  %3316 = vmatpush1.msra.mxu0 0.0
  %3317 = vmatprep.mubr.f32.mxu0 0.0
  %3318 = vmatmul.mubr.f32.gmra.mrb[0].mxu0 %v3171
  %v3319 = vpop.f32.mrb[0].mxu0
  %v3320 = vadd.f32 %v2971, %v3319
  %v3321 = vpop.f32.mrb[0].mxu0
  %3322 = vmatprep.mubr.f32.mxu0 0.0
  %3323 = vmatmul.mubr.f32.gmra.mrb[0].mxu0 %v3174
  %v3324 = vpop.f32.mrb[0].mxu0
  %v3325 = vadd.f32 %v2971, %v3324
  %v3326 = vpop.f32.mrb[0].mxu0
  %3327 = vdwg.mxu0
  %v3328 = vadd.f32 %v3152, %v3243
  %v3329 = vadd.f32 %v3155, %v3249
  %v3330 = vxor.u32 %v3328, 2147483648
  %v3331 = vxor.u32 %v3329, 2147483648
  %v3332 = vmul.f32 %v3330, 1.442695
  %v3333 = vpow.pop %v3332
  %v3334 = vmul.f32 %v3331, 1.442695
  %v3335 = vpow.pop %v3334
  %v3336 = vadd.f32 %v3333, 1.0
  %v3337 = vadd.f32 %v3335, 1.0
  %v3338 = vrcp.pop %v3336
  %v3339 = vmul.f32 1.0, %v3338
  %v3340 = vrcp.pop %v3337
  %v3341 = vmul.f32 1.0, %v3340
  %v3342 = vadd.f32 %v3153, %v3245
  %v3343 = vadd.f32 %v3156, %v3251
  %v3344 = vxor.u32 %v3342, 2147483648
  %v3345 = vxor.u32 %v3343, 2147483648
  %v3346 = vmul.f32 %v3344, 1.442695
  %v3347 = vpow.pop %v3346
  %v3348 = vmul.f32 %v3345, 1.442695
  %v3349 = vpow.pop %v3348
  %v3350 = vadd.f32 %v3347, 1.0
  %v3351 = vadd.f32 %v3349, 1.0
  %v3352 = vrcp.pop %v3350
  %v3353 = vmul.f32 1.0, %v3352
  %v3354 = vrcp.pop %v3351
  %v3355 = vmul.f32 1.0, %v3354
  %v3356 = vmul.f32 %v3339, %v3320
  %v3357 = vmul.f32 %v3341, %v3325
  %v3358 = vadd.f32 %v3154, %v3356
  %v3359 = vadd.f32 %v3157, %v3357
  %v3360 = vtanh.pop %v3358
  %v3361 = vtanh.pop %v3359
  %v3362 = vsub.f32 1.0, %v3353
  %v3363 = vsub.f32 1.0, %v3355
  %v3364 = vmul.f32 %v3362, %v3360
  %v3365 = vmul.f32 %v3363, %v3361
  %v3366 = vmul.f32 %v3353, %v2271
  %v3367 = vmul.f32 %v3355, %v2272
  %v3368 = vadd.f32 %v3364, %v3366
  %v3369 = vadd.f32 %v3365, %v3367
  %v3370 = vld [vmem:[#allocation3] sm:$0xff]
  %v3371 = vld [vmem:[#allocation3 + $0x8] sm:$0xff]
  %v3372 = vld [vmem:[#allocation3 + $0x10] sm:$0xff]
  %v3373 = vld [vmem:[#allocation3 + $0x18] sm:$0xff]
  %v3374 = vld [vmem:[#allocation3 + $0x20] sm:$0xff]
  %v3375 = vld [vmem:[#allocation3 + $0x28] sm:$0xff]
  %v3376 = vld [vmem:[#allocation3 + $0x30] sm:$0xff]
  %v3377 = vld [vmem:[#allocation3 + $0x38] sm:$0xff]
  %v3378 = vld [vmem:[#allocation3 + $0x40] sm:$0xff]
  %v3379 = vld [vmem:[#allocation3 + $0x48] sm:$0xff]
  %v3380 = vld [vmem:[#allocation3 + $0x50] sm:$0xff]
  %v3381 = vld [vmem:[#allocation3 + $0x58] sm:$0xff]
  %v3382 = vld [vmem:[#allocation3 + $0x60] sm:$0xff]
  %v3383 = vld [vmem:[#allocation3 + $0x68] sm:$0xff]
  %v3384 = vld [vmem:[#allocation3 + $0x70] sm:$0xff]
  %v3385 = vld [vmem:[#allocation3 + $0x78] sm:$0xff]
  %v3386 = vld [vmem:[%s2] sm:$0xff]
  %v3387 = vld [vmem:[%s2 + $0x8] sm:$0xff]
  %v3389 = vsel %vm98, %v3368, 0
  %v3392 = vsel %vm98, %v3369, 0
  %v3395 = vsel %vm98, %v3370, 0
  %v3398 = vsel %vm98, %v3371, 0
  %v3401 = vsel %vm98, %v3372, 0
  %v3404 = vsel %vm98, %v3373, 0
  %v3407 = vsel %vm98, %v3374, 0
  %v3410 = vsel %vm98, %v3375, 0
  %v3413 = vsel %vm98, %v3376, 0
  %v3416 = vsel %vm98, %v3377, 0
  %v3419 = vsel %vm98, %v3378, 0
  %v3422 = vsel %vm98, %v3379, 0
  %v3425 = vsel %vm98, %v3380, 0
  %v3428 = vsel %vm98, %v3381, 0
  %v3431 = vsel %vm98, %v3382, 0
  %v3434 = vsel %vm98, %v3383, 0
  %v3437 = vsel %vm98, %v3384, 0
  %v3440 = vsel %vm98, %v3385, 0
  %3442 = vmatprep.subr.mxu0 0.0
  %3443 = vmatpush1.xpose.msra.mxu0 %v3395
  %3444 = vmatprep.subr.mxu0 0.0
  %3445 = vmatpush1.xpose.msra.mxu0 %v3398
  %3446 = vmatprep.subr.mxu0 0.0
  %3447 = vmatpush1.xpose.msra.mxu0 %v3401
  %3448 = vmatprep.subr.mxu0 0.0
  %3449 = vmatpush1.xpose.msra.mxu0 %v3404
  %3450 = vmatprep.subr.mxu0 0.0
  %3451 = vmatpush1.xpose.msra.mxu0 %v3407
  %3452 = vmatprep.subr.mxu0 0.0
  %3453 = vmatpush1.xpose.msra.mxu0 %v3410
  %3454 = vmatprep.subr.mxu0 0.0
  %3455 = vmatpush1.xpose.msra.mxu0 %v3413
  %3456 = vmatprep.subr.mxu0 0.0
  %3457 = vmatpush1.xpose.msra.mxu0 %v3416
  %3458 = vmatprep.subr.mxu0 0.0
  %3459 = vmatpush1.xpose.msra.mxu0 %v3419
  %3460 = vmatprep.subr.mxu0 0.0
  %3461 = vmatpush1.xpose.msra.mxu0 %v3422
  %3462 = vmatprep.subr.mxu0 0.0
  %3463 = vmatpush1.xpose.msra.mxu0 %v3425
  %3464 = vmatprep.subr.mxu0 0.0
  %3465 = vmatpush1.xpose.msra.mxu0 %v3428
  %3466 = vmatprep.subr.mxu0 0.0
  %3467 = vmatpush1.xpose.msra.mxu0 %v3431
  %3468 = vmatprep.subr.mxu0 0.0
  %3469 = vmatpush1.xpose.msra.mxu0 %v3434
  %3470 = vmatprep.subr.mxu0 0.0
  %3471 = vmatpush1.xpose.msra.mxu0 %v3437
  %3472 = vmatprep.subr.mxu0 0.0
  %3473 = vmatpush1.xpose.msra.mxu0 %v3440
  %3474 = vmatprep.subr.mxu0 0.0
  %3475 = vmatpush1.xpose.msra.mxu0 0.0
  %3476 = vmatprep.subr.mxu0 0.0
  %3477 = vmatpush1.xpose.msra.mxu0 0.0
  %3478 = vmatprep.subr.mxu0 0.0
  %3479 = vmatpush1.xpose.msra.mxu0 0.0
  %3480 = vmatprep.subr.mxu0 0.0
  %3481 = vmatpush1.xpose.msra.mxu0 0.0
  %3482 = vmatprep.subr.mxu0 0.0
  %3483 = vmatpush1.xpose.msra.mxu0 0.0
  %3484 = vmatprep.subr.mxu0 0.0
  %3485 = vmatpush1.xpose.msra.mxu0 0.0
  %3486 = vmatprep.subr.mxu0 0.0
  %3487 = vmatpush1.xpose.msra.mxu0 0.0
  %3488 = vmatprep.subr.mxu0 0.0
  %3489 = vmatpush1.xpose.msra.mxu0 0.0
  %3490 = vmatprep.subr.mxu0 0.0
  %3491 = vmatpush1.xpose.msra.mxu0 0.0
  %3492 = vmatprep.subr.mxu0 0.0
  %3493 = vmatpush1.xpose.msra.mxu0 0.0
  %3494 = vmatprep.subr.mxu0 0.0
  %3495 = vmatpush1.xpose.msra.mxu0 0.0
  %3496 = vmatprep.subr.mxu0 0.0
  %3497 = vmatpush1.xpose.msra.mxu0 0.0
  %3498 = vmatprep.subr.mxu0 0.0
  %3499 = vmatpush1.xpose.msra.mxu0 0.0
  %3500 = vmatprep.subr.mxu0 0.0
  %3501 = vmatpush1.xpose.msra.mxu0 0.0
  %3502 = vmatprep.subr.mxu0 0.0
  %3503 = vmatpush1.xpose.msra.mxu0 0.0
  %3504 = vmatprep.subr.mxu0 0.0
  %3505 = vmatpush1.xpose.msra.mxu0 0.0
  %3506 = vmatprep.mubr.f32.mxu0 0.0
  %3507 = vmatmul.mubr.f32.gmra.mrb[0].mxu0 %v3389
  %v3508 = vpop.f32.mrb[0].mxu0
  %v3509 = vadd.f32 %v3386, %v3508
  %v3510 = vpop.f32.mrb[0].mxu0
  %3511 = vmatprep.mubr.f32.mxu0 0.0
  %3512 = vmatmul.mubr.f32.gmra.mrb[0].mxu0 %v3392
  %v3513 = vpop.f32.mrb[0].mxu0
  %v3514 = vadd.f32 %v3387, %v3513
  %v3515 = vpop.f32.mrb[0].mxu0
  %3516 = vdwg.mxu0
  %3517 = vmax.xlane.f32.xlu0 %v3509
  %v3518 = vpop.xlane.xlu0 %3517
  %3519 = vmax.xlane.f32.xlu0 %v3514
  %v3520 = vpop.xlane.xlu0 %3519
  %v3521 = vsub.f32 %v3509, %v3518
  %v3522 = vsub.f32 %v3514, %v3520
  %v3523 = vmul.f32 %v3521, 1.442695
  %v3524 = vpow.pop %v3523
  %v3525 = vmul.f32 %v3522, 1.442695
  %v3526 = vpow.pop %v3525
  %3527 = vadd.xlane.f32.xlu0 %v3524
  %v3528 = vpop.xlane.xlu0 %3527
  %3529 = vadd.xlane.f32.xlu0 %v3526
  %v3530 = vpop.xlane.xlu0 %3529
  %v3531 = vrcp.pop %v3528
  %v3532 = vrcp.pop %v3530
  %v3533 = vmul.f32 %v3524, %v3531
  %v3534 = vmul.f32 %v3526, %v3532
  %v3535 = vld [vmem:[#allocation2] sm:$0xff]
  %v3536 = vld [vmem:[#allocation2 + $0x8] sm:$0xff]
  %v3537 = vld [vmem:[#allocation2 + $0x10] sm:$0xff]
  %v3538 = vld [vmem:[#allocation2 + $0x18] sm:$0xff]
  %v3539 = vld [vmem:[#allocation2 + $0x20] sm:$0xff]
  %v3540 = vld [vmem:[#allocation2 + $0x28] sm:$0xff]
  %v3541 = vld [vmem:[#allocation2 + $0x30] sm:$0xff]
  %v3542 = vld [vmem:[#allocation2 + $0x38] sm:$0xff]
  %v3543 = vld [vmem:[#allocation2 + $0x40] sm:$0xff]
  %v3544 = vld [vmem:[#allocation2 + $0x48] sm:$0xff]
  %v3545 = vld [vmem:[#allocation2 + $0x50] sm:$0xff]
  %v3546 = vld [vmem:[#allocation2 + $0x58] sm:$0xff]
  %v3547 = vld [vmem:[#allocation2 + $0x60] sm:$0xff]
  %v3548 = vld [vmem:[#allocation2 + $0x68] sm:$0xff]
  %v3549 = vld [vmem:[#allocation2 + $0x70] sm:$0xff]
  %v3550 = vld [vmem:[#allocation2 + $0x78] sm:$0xff]
  %3551 = vmatprep.subr.mxu0 0.0
  %3552 = vmatpush1.msra.mxu0 %v3535
  %3553 = vmatprep.subr.mxu0 0.0
  %3554 = vmatpush1.msra.mxu0 %v3536
  %3555 = vmatprep.subr.mxu0 0.0
  %3556 = vmatpush1.msra.mxu0 %v3537
  %3557 = vmatprep.subr.mxu0 0.0
  %3558 = vmatpush1.msra.mxu0 %v3538
  %3559 = vmatprep.subr.mxu0 0.0
  %3560 = vmatpush1.msra.mxu0 %v3539
  %3561 = vmatprep.subr.mxu0 0.0
  %3562 = vmatpush1.msra.mxu0 %v3540
  %3563 = vmatprep.subr.mxu0 0.0
  %3564 = vmatpush1.msra.mxu0 %v3541
  %3565 = vmatprep.subr.mxu0 0.0
  %3566 = vmatpush1.msra.mxu0 %v3542
  %3567 = vmatprep.subr.mxu0 0.0
  %3568 = vmatpush1.msra.mxu0 %v3543
  %3569 = vmatprep.subr.mxu0 0.0
  %3570 = vmatpush1.msra.mxu0 %v3544
  %3571 = vmatprep.subr.mxu0 0.0
  %3572 = vmatpush1.msra.mxu0 %v3545
  %3573 = vmatprep.subr.mxu0 0.0
  %3574 = vmatpush1.msra.mxu0 %v3546
  %3575 = vmatprep.subr.mxu0 0.0
  %3576 = vmatpush1.msra.mxu0 %v3547
  %3577 = vmatprep.subr.mxu0 0.0
  %3578 = vmatpush1.msra.mxu0 %v3548
  %3579 = vmatprep.subr.mxu0 0.0
  %3580 = vmatpush1.msra.mxu0 %v3549
  %3581 = vmatprep.subr.mxu0 0.0
  %3582 = vmatpush1.msra.mxu0 %v3550
  %3583 = vmatprep.subr.mxu0 0.0
  %3584 = vmatpush1.msra.mxu0 0.0
  %3585 = vmatprep.subr.mxu0 0.0
  %3586 = vmatpush1.msra.mxu0 0.0
  %3587 = vmatprep.subr.mxu0 0.0
  %3588 = vmatpush1.msra.mxu0 0.0
  %3589 = vmatprep.subr.mxu0 0.0
  %3590 = vmatpush1.msra.mxu0 0.0
  %3591 = vmatprep.subr.mxu0 0.0
  %3592 = vmatpush1.msra.mxu0 0.0
  %3593 = vmatprep.subr.mxu0 0.0
  %3594 = vmatpush1.msra.mxu0 0.0
  %3595 = vmatprep.subr.mxu0 0.0
  %3596 = vmatpush1.msra.mxu0 0.0
  %3597 = vmatprep.subr.mxu0 0.0
  %3598 = vmatpush1.msra.mxu0 0.0
  %3599 = vmatprep.subr.mxu0 0.0
  %3600 = vmatpush1.msra.mxu0 0.0
  %3601 = vmatprep.subr.mxu0 0.0
  %3602 = vmatpush1.msra.mxu0 0.0
  %3603 = vmatprep.subr.mxu0 0.0
  %3604 = vmatpush1.msra.mxu0 0.0
  %3605 = vmatprep.subr.mxu0 0.0
  %3606 = vmatpush1.msra.mxu0 0.0
  %3607 = vmatprep.subr.mxu0 0.0
  %3608 = vmatpush1.msra.mxu0 0.0
  %3609 = vmatprep.subr.mxu0 0.0
  %3610 = vmatpush1.msra.mxu0 0.0
  %3611 = vmatprep.subr.mxu0 0.0
  %3612 = vmatpush1.msra.mxu0 0.0
  %3613 = vmatprep.subr.mxu0 0.0
  %3614 = vmatpush1.msra.mxu0 0.0
  %3615 = vmatprep.mubr.f32.mxu0 0.0
  %3616 = vmatmul.mubr.f32.gmra.mrb[0].mxu0 %v3533
  %v3617 = vpop.f32.mrb[0].mxu0
  %v3618 = vadd.f32 0.0, %v3617
  %v3619 = vpop.f32.mrb[0].mxu0
  %3620 = vmatprep.mubr.f32.mxu0 0.0
  %3621 = vmatmul.mubr.f32.gmra.mrb[0].mxu0 %v3534
  %v3622 = vpop.f32.mrb[0].mxu0
  %v3623 = vadd.f32 0.0, %v3622
  %v3624 = vpop.f32.mrb[0].mxu0
  %3625 = vdwg.mxu0
  %3628 = vrot.lane.b32.xlu0 %v3618, 32
  %v3629 = vpop.permute.xlu0 %3628
  %3630 = vrot.lane.b32.xlu0 %v3623, 32
  %v3631 = vpop.permute.xlu0 %3630
  %v3634 = vsel %vm98, %v3368, %v3629
  %v3635 = vsel %vm98, %v3369, %v3631
  %v3636 = vld [vmem:[%s14] sm:$0xff]
  %v3637 = vld [vmem:[%s14 + $0x8] sm:$0xff]
  %v3638 = vld [vmem:[%s14 + $0x10] sm:$0xff]
  %v3639 = vld [vmem:[%s14 + $0x18] sm:$0xff]
  %v3640 = vld [vmem:[%s14 + $0x20] sm:$0xff]
  %v3641 = vld [vmem:[%s14 + $0x28] sm:$0xff]
  %v3642 = vld [vmem:[%s14 + $0x30] sm:$0xff]
  %v3643 = vld [vmem:[%s14 + $0x38] sm:$0xff]
  %vm3644 = vcmask 523264
  %v3646 = vsel %vm3644, %v3634, 0
  %v3649 = vsel %vm3644, %v3635, 0
  %3651 = vmatprep.subr.mxu0 0.0
  %3652 = vmatpush1.msra.mxu0 %v3636
  %3653 = vmatprep.subr.mxu0 0.0
  %3654 = vmatpush1.msra.mxu0 %v3637
  %3655 = vmatprep.subr.mxu0 0.0
  %3656 = vmatpush1.msra.mxu0 %v3638
  %3657 = vmatprep.subr.mxu0 0.0
  %3658 = vmatpush1.msra.mxu0 %v3639
  %3659 = vmatprep.subr.mxu0 0.0
  %3660 = vmatpush1.msra.mxu0 %v3640
  %3661 = vmatprep.subr.mxu0 0.0
  %3662 = vmatpush1.msra.mxu0 %v3641
  %3663 = vmatprep.subr.mxu0 0.0
  %3664 = vmatpush1.msra.mxu0 %v3642
  %3665 = vmatprep.subr.mxu0 0.0
  %3666 = vmatpush1.msra.mxu0 %v3643
  %3667 = vmatprep.subr.mxu0 0.0
  %3668 = vmatpush1.msra.mxu0 0.0
  %3669 = vmatprep.subr.mxu0 0.0
  %3670 = vmatpush1.msra.mxu0 0.0
  %3671 = vmatprep.subr.mxu0 0.0
  %3672 = vmatpush1.msra.mxu0 0.0
  %3673 = vmatprep.subr.mxu0 0.0
  %3674 = vmatpush1.msra.mxu0 0.0
  %3675 = vmatprep.subr.mxu0 0.0
  %3676 = vmatpush1.msra.mxu0 0.0
  %3677 = vmatprep.subr.mxu0 0.0
  %3678 = vmatpush1.msra.mxu0 0.0
  %3679 = vmatprep.subr.mxu0 0.0
  %3680 = vmatpush1.msra.mxu0 0.0
  %3681 = vmatprep.subr.mxu0 0.0
  %3682 = vmatpush1.msra.mxu0 0.0
  %3683 = vmatprep.subr.mxu0 0.0
  %3684 = vmatpush1.msra.mxu0 0.0
  %3685 = vmatprep.subr.mxu0 0.0
  %3686 = vmatpush1.msra.mxu0 0.0
  %3687 = vmatprep.subr.mxu0 0.0
  %3688 = vmatpush1.msra.mxu0 0.0
  %3689 = vmatprep.subr.mxu0 0.0
  %3690 = vmatpush1.msra.mxu0 0.0
  %3691 = vmatprep.subr.mxu0 0.0
  %3692 = vmatpush1.msra.mxu0 0.0
  %3693 = vmatprep.subr.mxu0 0.0
  %3694 = vmatpush1.msra.mxu0 0.0
  %3695 = vmatprep.subr.mxu0 0.0
  %3696 = vmatpush1.msra.mxu0 0.0
  %3697 = vmatprep.subr.mxu0 0.0
  %3698 = vmatpush1.msra.mxu0 0.0
  %3699 = vmatprep.subr.mxu0 0.0
  %3700 = vmatpush1.msra.mxu0 0.0
  %3701 = vmatprep.subr.mxu0 0.0
  %3702 = vmatpush1.msra.mxu0 0.0
  %3703 = vmatprep.subr.mxu0 0.0
  %3704 = vmatpush1.msra.mxu0 0.0
  %3705 = vmatprep.subr.mxu0 0.0
  %3706 = vmatpush1.msra.mxu0 0.0
  %3707 = vmatprep.subr.mxu0 0.0
  %3708 = vmatpush1.msra.mxu0 0.0
  %3709 = vmatprep.subr.mxu0 0.0
  %3710 = vmatpush1.msra.mxu0 0.0
  %3711 = vmatprep.subr.mxu0 0.0
  %3712 = vmatpush1.msra.mxu0 0.0
  %3713 = vmatprep.subr.mxu0 0.0
  %3714 = vmatpush1.msra.mxu0 0.0
  %3715 = vmatprep.mubr.f32.mxu0 0.0
  %3716 = vmatmul.mubr.f32.gmra.mrb[0].mxu0 %v3646
  %v3717 = vpop.f32.mrb[0].mxu0
  %v3718 = vadd.f32 %v2980, %v3717
  %v3719 = vpop.f32.mrb[0].mxu0
  %3720 = vmatprep.mubr.f32.mxu0 0.0
  %3721 = vmatmul.mubr.f32.gmra.mrb[0].mxu0 %v3649
  %v3722 = vpop.f32.mrb[0].mxu0
  %v3723 = vadd.f32 %v2980, %v3722
  %v3724 = vpop.f32.mrb[0].mxu0
  %3725 = vdwg.mxu0
  %vm3726 = vcmask 130048
  %v3727 = vsel %vm3726, %v3718, -inf
  %3728 = vmax.xlane.f32.xlu0 %v3727
  %v3729 = vpop.xlane.xlu0 %3728
  %v3730 = vsel %vm3726, %v3723, -inf
  %3731 = vmax.xlane.f32.xlu0 %v3730
  %v3732 = vpop.xlane.xlu0 %3731
  %v3733 = vsub.f32 %v3718, %v3729
  %v3734 = vsub.f32 %v3723, %v3732
  %v3735 = vmul.f32 %v3733, 1.442695
  %v3736 = vpow.pop %v3735
  %v3737 = vmul.f32 %v3734, 1.442695
  %v3738 = vpow.pop %v3737
  %v3739 = vsel %vm3726, %v3736, 0.0
  %3740 = vadd.xlane.f32.xlu0 %v3739
  %v3741 = vpop.xlane.xlu0 %3740
  %v3742 = vsel %vm3726, %v3738, 0.0
  %3743 = vadd.xlane.f32.xlu0 %v3742
  %v3744 = vpop.xlane.xlu0 %3743
  %v3745 = vlog2.pop %v3741
  %v3746 = vmul.f32 %v3745, 0.6931472
  %v3747 = vlog2.pop %v3744
  %v3748 = vmul.f32 %v3747, 0.6931472
  %v3749 = vadd.f32 %v3729, %v3746
  %v3750 = vadd.f32 %v3732, %v3748
  %v3751 = vsub.f32 %v3718, %v3749
  %v3752 = vsub.f32 %v3723, %v3750
  %3753 = vst.msk [vmem:[%s16] sm:$0xff] %vm3726, %v3751
  %3754 = vst.msk [vmem:[%s16 + $0x8] sm:$0xff] %vm3726, %v3752
  %v3755 = vld [vmem:[#allocation5 + $0x30] sm:$0xff]
  %v3756 = vld [vmem:[#allocation5 + $0x38] sm:$0xff]
  %v3757 = vld [vmem:[#allocation5 + $0x40] sm:$0xff]
  %v3758 = vld [vmem:[#allocation5 + $0x48] sm:$0xff]
  %v3759 = vld [vmem:[#allocation5 + $0x50] sm:$0xff]
  %v3760 = vld [vmem:[#allocation5 + $0x58] sm:$0xff]
  %v3761 = vld [vmem:[%s8] sm:$0xff]
  %v3762 = vld [vmem:[%s8 + $0x8] sm:$0xff]
  %v3763 = vld [vmem:[%s8 + $0x10] sm:$0xff]
  %v3764 = vld [vmem:[%s8 + $0x18] sm:$0xff]
  %v3765 = vld [vmem:[%s8 + $0x20] sm:$0xff]
  %v3766 = vld [vmem:[%s8 + $0x28] sm:$0xff]
  %v3767 = vld [vmem:[%s8 + $0x30] sm:$0xff]
  %v3768 = vld [vmem:[%s8 + $0x38] sm:$0xff]
  %v3769 = vld [vmem:[%s8 + $0x40] sm:$0xff]
  %v3770 = vld [vmem:[%s8 + $0x48] sm:$0xff]
  %v3771 = vld [vmem:[%s8 + $0x50] sm:$0xff]
  %v3772 = vld [vmem:[%s8 + $0x58] sm:$0xff]
  %v3773 = vsel %vm98, %v3618, 0
  %v3775 = vsel %vm98, %v3623, 0
  %3777 = vmatprep.subr.mxu0 %v3762
  %3778 = vmatpush1.msra.mxu0 %v3761
  %3779 = vmatprep.subr.mxu0 %v3765
  %3780 = vmatpush1.msra.mxu0 %v3764
  %3781 = vmatprep.subr.mxu0 %v3768
  %3782 = vmatpush1.msra.mxu0 %v3767
  %3783 = vmatprep.subr.mxu0 %v3771
  %3784 = vmatpush1.msra.mxu0 %v3770
  %3785 = vmatprep.subr.mxu0 0.0
  %3786 = vmatpush1.msra.mxu0 0.0
  %3787 = vmatprep.subr.mxu0 0.0
  %3788 = vmatpush1.msra.mxu0 0.0
  %3789 = vmatprep.subr.mxu0 0.0
  %3790 = vmatpush1.msra.mxu0 0.0
  %3791 = vmatprep.subr.mxu0 0.0
  %3792 = vmatpush1.msra.mxu0 0.0
  %3793 = vmatprep.subr.mxu0 0.0
  %3794 = vmatpush1.msra.mxu0 0.0
  %3795 = vmatprep.subr.mxu0 0.0
  %3796 = vmatpush1.msra.mxu0 0.0
  %3797 = vmatprep.subr.mxu0 0.0
  %3798 = vmatpush1.msra.mxu0 0.0
  %3799 = vmatprep.subr.mxu0 0.0
  %3800 = vmatpush1.msra.mxu0 0.0
  %3801 = vmatprep.subr.mxu0 0.0
  %3802 = vmatpush1.msra.mxu0 0.0
  %3803 = vmatprep.subr.mxu0 0.0
  %3804 = vmatpush1.msra.mxu0 0.0
  %3805 = vmatprep.subr.mxu0 0.0
  %3806 = vmatpush1.msra.mxu0 0.0
  %3807 = vmatprep.subr.mxu0 0.0
  %3808 = vmatpush1.msra.mxu0 0.0
  %3809 = vmatprep.subr.mxu0 0.0
  %3810 = vmatpush1.msra.mxu0 0.0
  %3811 = vmatprep.subr.mxu0 0.0
  %3812 = vmatpush1.msra.mxu0 0.0
  %3813 = vmatprep.subr.mxu0 0.0
  %3814 = vmatpush1.msra.mxu0 0.0
  %3815 = vmatprep.subr.mxu0 0.0
  %3816 = vmatpush1.msra.mxu0 0.0
  %3817 = vmatprep.subr.mxu0 0.0
  %3818 = vmatpush1.msra.mxu0 0.0
  %3819 = vmatprep.subr.mxu0 0.0
  %3820 = vmatpush1.msra.mxu0 0.0
  %3821 = vmatprep.subr.mxu0 0.0
  %3822 = vmatpush1.msra.mxu0 0.0
  %3823 = vmatprep.subr.mxu0 0.0
  %3824 = vmatpush1.msra.mxu0 0.0
  %3825 = vmatprep.subr.mxu0 0.0
  %3826 = vmatpush1.msra.mxu0 0.0
  %3827 = vmatprep.subr.mxu0 0.0
  %3828 = vmatpush1.msra.mxu0 0.0
  %3829 = vmatprep.subr.mxu0 0.0
  %3830 = vmatpush1.msra.mxu0 0.0
  %3831 = vmatprep.subr.mxu0 0.0
  %3832 = vmatpush1.msra.mxu0 0.0
  %3833 = vmatprep.subr.mxu0 0.0
  %3834 = vmatpush1.msra.mxu0 0.0
  %3835 = vmatprep.subr.mxu0 0.0
  %3836 = vmatpush1.msra.mxu0 0.0
  %3837 = vmatprep.subr.mxu0 0.0
  %3838 = vmatpush1.msra.mxu0 0.0
  %3839 = vmatprep.subr.mxu0 0.0
  %3840 = vmatpush1.msra.mxu0 0.0
  %3841 = vmatprep.mubr.f32.mxu0 0.0
  %3842 = vmatmul.mubr.f32.gmra.mrb[0].mxu0 %v3773
  %v3843 = vpop.f32.mrb[0].mxu0
  %v3844 = vadd.f32 0.0, %v3843
  %v3845 = vpop.f32.mrb[0].mxu0
  %v3846 = vadd.f32 0.0, %v3845
  %3847 = vmatprep.mubr.f32.mxu0 0.0
  %3848 = vmatmul.mubr.f32.gmra.mrb[0].mxu0 %v3775
  %v3849 = vpop.f32.mrb[0].mxu0
  %v3850 = vadd.f32 0.0, %v3849
  %v3851 = vpop.f32.mrb[0].mxu0
  %v3852 = vadd.f32 0.0, %v3851
  %3853 = vdwg.mxu0
  %3854 = vmatprep.subr.mxu0 0.0
  %3855 = vmatpush1.msra.mxu0 %v3763
  %3856 = vmatprep.subr.mxu0 0.0
  %3857 = vmatpush1.msra.mxu0 %v3766
  %3858 = vmatprep.subr.mxu0 0.0
  %3859 = vmatpush1.msra.mxu0 %v3769
  %3860 = vmatprep.subr.mxu0 0.0
  %3861 = vmatpush1.msra.mxu0 %v3772
  %3862 = vmatprep.subr.mxu0 0.0
  %3863 = vmatpush1.msra.mxu0 0.0
  %3864 = vmatprep.subr.mxu0 0.0
  %3865 = vmatpush1.msra.mxu0 0.0
  %3866 = vmatprep.subr.mxu0 0.0
  %3867 = vmatpush1.msra.mxu0 0.0
  %3868 = vmatprep.subr.mxu0 0.0
  %3869 = vmatpush1.msra.mxu0 0.0
  %3870 = vmatprep.subr.mxu0 0.0
  %3871 = vmatpush1.msra.mxu0 0.0
  %3872 = vmatprep.subr.mxu0 0.0
  %3873 = vmatpush1.msra.mxu0 0.0
  %3874 = vmatprep.subr.mxu0 0.0
  %3875 = vmatpush1.msra.mxu0 0.0
  %3876 = vmatprep.subr.mxu0 0.0
  %3877 = vmatpush1.msra.mxu0 0.0
  %3878 = vmatprep.subr.mxu0 0.0
  %3879 = vmatpush1.msra.mxu0 0.0
  %3880 = vmatprep.subr.mxu0 0.0
  %3881 = vmatpush1.msra.mxu0 0.0
  %3882 = vmatprep.subr.mxu0 0.0
  %3883 = vmatpush1.msra.mxu0 0.0
  %3884 = vmatprep.subr.mxu0 0.0
  %3885 = vmatpush1.msra.mxu0 0.0
  %3886 = vmatprep.subr.mxu0 0.0
  %3887 = vmatpush1.msra.mxu0 0.0
  %3888 = vmatprep.subr.mxu0 0.0
  %3889 = vmatpush1.msra.mxu0 0.0
  %3890 = vmatprep.subr.mxu0 0.0
  %3891 = vmatpush1.msra.mxu0 0.0
  %3892 = vmatprep.subr.mxu0 0.0
  %3893 = vmatpush1.msra.mxu0 0.0
  %3894 = vmatprep.subr.mxu0 0.0
  %3895 = vmatpush1.msra.mxu0 0.0
  %3896 = vmatprep.subr.mxu0 0.0
  %3897 = vmatpush1.msra.mxu0 0.0
  %3898 = vmatprep.subr.mxu0 0.0
  %3899 = vmatpush1.msra.mxu0 0.0
  %3900 = vmatprep.subr.mxu0 0.0
  %3901 = vmatpush1.msra.mxu0 0.0
  %3902 = vmatprep.subr.mxu0 0.0
  %3903 = vmatpush1.msra.mxu0 0.0
  %3904 = vmatprep.subr.mxu0 0.0
  %3905 = vmatpush1.msra.mxu0 0.0
  %3906 = vmatprep.subr.mxu0 0.0
  %3907 = vmatpush1.msra.mxu0 0.0
  %3908 = vmatprep.subr.mxu0 0.0
  %3909 = vmatpush1.msra.mxu0 0.0
  %3910 = vmatprep.subr.mxu0 0.0
  %3911 = vmatpush1.msra.mxu0 0.0
  %3912 = vmatprep.subr.mxu0 0.0
  %3913 = vmatpush1.msra.mxu0 0.0
  %3914 = vmatprep.subr.mxu0 0.0
  %3915 = vmatpush1.msra.mxu0 0.0
  %3916 = vmatprep.subr.mxu0 0.0
  %3917 = vmatpush1.msra.mxu0 0.0
  %3918 = vmatprep.mubr.f32.mxu0 0.0
  %3919 = vmatmul.mubr.f32.gmra.mrb[0].mxu0 %v3773
  %v3920 = vpop.f32.mrb[0].mxu0
  %v3921 = vadd.f32 0.0, %v3920
  %v3922 = vpop.f32.mrb[0].mxu0
  %3923 = vmatprep.mubr.f32.mxu0 0.0
  %3924 = vmatmul.mubr.f32.gmra.mrb[0].mxu0 %v3775
  %v3925 = vpop.f32.mrb[0].mxu0
  %v3926 = vadd.f32 0.0, %v3925
  %v3927 = vpop.f32.mrb[0].mxu0
  %3928 = vdwg.mxu0
  %v3929 = vadd.f32 %v3755, %v3844
  %v3930 = vadd.f32 %v3756, %v3846
  %v3931 = vadd.f32 %v3757, %v3921
  %v3932 = vadd.f32 %v3758, %v3850
  %v3933 = vadd.f32 %v3759, %v3852
  %v3934 = vadd.f32 %v3760, %v3926
  %v3935 = vld [vmem:[%s9] sm:$0xff]
  %v3936 = vld [vmem:[%s9 + $0x8] sm:$0xff]
  %v3937 = vld [vmem:[%s9 + $0x10] sm:$0xff]
  %v3938 = vld [vmem:[%s9 + $0x18] sm:$0xff]
  %v3939 = vld [vmem:[%s9 + $0x20] sm:$0xff]
  %v3940 = vld [vmem:[%s9 + $0x28] sm:$0xff]
  %v3941 = vld [vmem:[%s9 + $0x30] sm:$0xff]
  %v3942 = vld [vmem:[%s9 + $0x38] sm:$0xff]
  %v3943 = vld [vmem:[%s9 + $0x40] sm:$0xff]
  %v3944 = vld [vmem:[%s9 + $0x48] sm:$0xff]
  %v3945 = vld [vmem:[%s9 + $0x50] sm:$0xff]
  %v3946 = vld [vmem:[%s9 + $0x58] sm:$0xff]
  %3947 = vmatprep.subr.mxu0 %v3936
  %3948 = vmatpush1.msra.mxu0 %v3935
  %3949 = vmatprep.subr.mxu0 %v3939
  %3950 = vmatpush1.msra.mxu0 %v3938
  %3951 = vmatprep.subr.mxu0 %v3942
  %3952 = vmatpush1.msra.mxu0 %v3941
  %3953 = vmatprep.subr.mxu0 %v3945
  %3954 = vmatpush1.msra.mxu0 %v3944
  %3955 = vmatprep.subr.mxu0 0.0
  %3956 = vmatpush1.msra.mxu0 0.0
  %3957 = vmatprep.subr.mxu0 0.0
  %3958 = vmatpush1.msra.mxu0 0.0
  %3959 = vmatprep.subr.mxu0 0.0
  %3960 = vmatpush1.msra.mxu0 0.0
  %3961 = vmatprep.subr.mxu0 0.0
  %3962 = vmatpush1.msra.mxu0 0.0
  %3963 = vmatprep.subr.mxu0 0.0
  %3964 = vmatpush1.msra.mxu0 0.0
  %3965 = vmatprep.subr.mxu0 0.0
  %3966 = vmatpush1.msra.mxu0 0.0
  %3967 = vmatprep.subr.mxu0 0.0
  %3968 = vmatpush1.msra.mxu0 0.0
  %3969 = vmatprep.subr.mxu0 0.0
  %3970 = vmatpush1.msra.mxu0 0.0
  %3971 = vmatprep.subr.mxu0 0.0
  %3972 = vmatpush1.msra.mxu0 0.0
  %3973 = vmatprep.subr.mxu0 0.0
  %3974 = vmatpush1.msra.mxu0 0.0
  %3975 = vmatprep.subr.mxu0 0.0
  %3976 = vmatpush1.msra.mxu0 0.0
  %3977 = vmatprep.subr.mxu0 0.0
  %3978 = vmatpush1.msra.mxu0 0.0
  %3979 = vmatprep.subr.mxu0 0.0
  %3980 = vmatpush1.msra.mxu0 0.0
  %3981 = vmatprep.subr.mxu0 0.0
  %3982 = vmatpush1.msra.mxu0 0.0
  %3983 = vmatprep.subr.mxu0 0.0
  %3984 = vmatpush1.msra.mxu0 0.0
  %3985 = vmatprep.subr.mxu0 0.0
  %3986 = vmatpush1.msra.mxu0 0.0
  %3987 = vmatprep.subr.mxu0 0.0
  %3988 = vmatpush1.msra.mxu0 0.0
  %3989 = vmatprep.subr.mxu0 0.0
  %3990 = vmatpush1.msra.mxu0 0.0
  %3991 = vmatprep.subr.mxu0 0.0
  %3992 = vmatpush1.msra.mxu0 0.0
  %3993 = vmatprep.subr.mxu0 0.0
  %3994 = vmatpush1.msra.mxu0 0.0
  %3995 = vmatprep.subr.mxu0 0.0
  %3996 = vmatpush1.msra.mxu0 0.0
  %3997 = vmatprep.subr.mxu0 0.0
  %3998 = vmatpush1.msra.mxu0 0.0
  %3999 = vmatprep.subr.mxu0 0.0
  %4000 = vmatpush1.msra.mxu0 0.0
  %4001 = vmatprep.subr.mxu0 0.0
  %4002 = vmatpush1.msra.mxu0 0.0
  %4003 = vmatprep.subr.mxu0 0.0
  %4004 = vmatpush1.msra.mxu0 0.0
  %4005 = vmatprep.subr.mxu0 0.0
  %4006 = vmatpush1.msra.mxu0 0.0
  %4007 = vmatprep.subr.mxu0 0.0
  %4008 = vmatpush1.msra.mxu0 0.0
  %4009 = vmatprep.subr.mxu0 0.0
  %4010 = vmatpush1.msra.mxu0 0.0
  %4011 = vmatprep.mubr.f32.mxu0 0.0
  %4012 = vmatmul.mubr.f32.gmra.mrb[0].mxu0 %v3389
  %v4013 = vpop.f32.mrb[0].mxu0
  %v4014 = vadd.f32 %v2963, %v4013
  %v4015 = vpop.f32.mrb[0].mxu0
  %v4016 = vadd.f32 %v2967, %v4015
  %4017 = vmatprep.mubr.f32.mxu0 0.0
  %4018 = vmatmul.mubr.f32.gmra.mrb[0].mxu0 %v3392
  %v4019 = vpop.f32.mrb[0].mxu0
  %v4020 = vadd.f32 %v2963, %v4019
  %v4021 = vpop.f32.mrb[0].mxu0
  %v4022 = vadd.f32 %v2967, %v4021
  %4023 = vdwg.mxu0
  %4024 = vmatprep.subr.mxu0 0.0
  %4025 = vmatpush1.msra.mxu0 %v3937
  %4026 = vmatprep.subr.mxu0 0.0
  %4027 = vmatpush1.msra.mxu0 %v3940
  %4028 = vmatprep.subr.mxu0 0.0
  %4029 = vmatpush1.msra.mxu0 %v3943
  %4030 = vmatprep.subr.mxu0 0.0
  %4031 = vmatpush1.msra.mxu0 %v3946
  %4032 = vmatprep.subr.mxu0 0.0
  %4033 = vmatpush1.msra.mxu0 0.0
  %4034 = vmatprep.subr.mxu0 0.0
  %4035 = vmatpush1.msra.mxu0 0.0
  %4036 = vmatprep.subr.mxu0 0.0
  %4037 = vmatpush1.msra.mxu0 0.0
  %4038 = vmatprep.subr.mxu0 0.0
  %4039 = vmatpush1.msra.mxu0 0.0
  %4040 = vmatprep.subr.mxu0 0.0
  %4041 = vmatpush1.msra.mxu0 0.0
  %4042 = vmatprep.subr.mxu0 0.0
  %4043 = vmatpush1.msra.mxu0 0.0
  %4044 = vmatprep.subr.mxu0 0.0
  %4045 = vmatpush1.msra.mxu0 0.0
  %4046 = vmatprep.subr.mxu0 0.0
  %4047 = vmatpush1.msra.mxu0 0.0
  %4048 = vmatprep.subr.mxu0 0.0
  %4049 = vmatpush1.msra.mxu0 0.0
  %4050 = vmatprep.subr.mxu0 0.0
  %4051 = vmatpush1.msra.mxu0 0.0
  %4052 = vmatprep.subr.mxu0 0.0
  %4053 = vmatpush1.msra.mxu0 0.0
  %4054 = vmatprep.subr.mxu0 0.0
  %4055 = vmatpush1.msra.mxu0 0.0
  %4056 = vmatprep.subr.mxu0 0.0
  %4057 = vmatpush1.msra.mxu0 0.0
  %4058 = vmatprep.subr.mxu0 0.0
  %4059 = vmatpush1.msra.mxu0 0.0
  %4060 = vmatprep.subr.mxu0 0.0
  %4061 = vmatpush1.msra.mxu0 0.0
  %4062 = vmatprep.subr.mxu0 0.0
  %4063 = vmatpush1.msra.mxu0 0.0
  %4064 = vmatprep.subr.mxu0 0.0
  %4065 = vmatpush1.msra.mxu0 0.0
  %4066 = vmatprep.subr.mxu0 0.0
  %4067 = vmatpush1.msra.mxu0 0.0
  %4068 = vmatprep.subr.mxu0 0.0
  %4069 = vmatpush1.msra.mxu0 0.0
  %4070 = vmatprep.subr.mxu0 0.0
  %4071 = vmatpush1.msra.mxu0 0.0
  %4072 = vmatprep.subr.mxu0 0.0
  %4073 = vmatpush1.msra.mxu0 0.0
  %4074 = vmatprep.subr.mxu0 0.0
  %4075 = vmatpush1.msra.mxu0 0.0
  %4076 = vmatprep.subr.mxu0 0.0
  %4077 = vmatpush1.msra.mxu0 0.0
  %4078 = vmatprep.subr.mxu0 0.0
  %4079 = vmatpush1.msra.mxu0 0.0
  %4080 = vmatprep.subr.mxu0 0.0
  %4081 = vmatpush1.msra.mxu0 0.0
  %4082 = vmatprep.subr.mxu0 0.0
  %4083 = vmatpush1.msra.mxu0 0.0
  %4084 = vmatprep.subr.mxu0 0.0
  %4085 = vmatpush1.msra.mxu0 0.0
  %4086 = vmatprep.subr.mxu0 0.0
  %4087 = vmatpush1.msra.mxu0 0.0
  %4088 = vmatprep.mubr.f32.mxu0 0.0
  %4089 = vmatmul.mubr.f32.gmra.mrb[0].mxu0 %v3389
  %v4090 = vpop.f32.mrb[0].mxu0
  %v4091 = vadd.f32 %v2971, %v4090
  %v4092 = vpop.f32.mrb[0].mxu0
  %4093 = vmatprep.mubr.f32.mxu0 0.0
  %4094 = vmatmul.mubr.f32.gmra.mrb[0].mxu0 %v3392
  %v4095 = vpop.f32.mrb[0].mxu0
  %v4096 = vadd.f32 %v2971, %v4095
  %v4097 = vpop.f32.mrb[0].mxu0
  %4098 = vdwg.mxu0
  %v4099 = vadd.f32 %v3929, %v4014
  %v4100 = vadd.f32 %v3932, %v4020
  %v4101 = vxor.u32 %v4099, 2147483648
  %v4102 = vxor.u32 %v4100, 2147483648
  %v4103 = vmul.f32 %v4101, 1.442695
  %v4104 = vpow.pop %v4103
  %v4105 = vmul.f32 %v4102, 1.442695
  %v4106 = vpow.pop %v4105
  %v4107 = vadd.f32 %v4104, 1.0
  %v4108 = vadd.f32 %v4106, 1.0
  %v4109 = vrcp.pop %v4107
  %v4110 = vmul.f32 1.0, %v4109
  %v4111 = vrcp.pop %v4108
  %v4112 = vmul.f32 1.0, %v4111
  %v4113 = vadd.f32 %v3930, %v4016
  %v4114 = vadd.f32 %v3933, %v4022
  %v4115 = vxor.u32 %v4113, 2147483648
  %v4116 = vxor.u32 %v4114, 2147483648
  %v4117 = vmul.f32 %v4115, 1.442695
  %v4118 = vpow.pop %v4117
  %v4119 = vmul.f32 %v4116, 1.442695
  %v4120 = vpow.pop %v4119
  %v4121 = vadd.f32 %v4118, 1.0
  %v4122 = vadd.f32 %v4120, 1.0
  %v4123 = vrcp.pop %v4121
  %v4124 = vmul.f32 1.0, %v4123
  %v4125 = vrcp.pop %v4122
  %v4126 = vmul.f32 1.0, %v4125
  %v4127 = vmul.f32 %v4110, %v4091
  %v4128 = vmul.f32 %v4112, %v4096
  %v4129 = vadd.f32 %v3931, %v4127
  %v4130 = vadd.f32 %v3934, %v4128
  %v4131 = vtanh.pop %v4129
  %v4132 = vtanh.pop %v4130
  %v4133 = vsub.f32 1.0, %v4124
  %v4134 = vsub.f32 1.0, %v4126
  %v4135 = vmul.f32 %v4133, %v4131
  %v4136 = vmul.f32 %v4134, %v4132
  %v4137 = vmul.f32 %v4124, %v3368
  %v4138 = vmul.f32 %v4126, %v3369
  %v4139 = vadd.f32 %v4135, %v4137
  %v4140 = vadd.f32 %v4136, %v4138
  %v4141 = vld [vmem:[#allocation3] sm:$0xff]
  %v4142 = vld [vmem:[#allocation3 + $0x8] sm:$0xff]
  %v4143 = vld [vmem:[#allocation3 + $0x10] sm:$0xff]
  %v4144 = vld [vmem:[#allocation3 + $0x18] sm:$0xff]
  %v4145 = vld [vmem:[#allocation3 + $0x20] sm:$0xff]
  %v4146 = vld [vmem:[#allocation3 + $0x28] sm:$0xff]
  %v4147 = vld [vmem:[#allocation3 + $0x30] sm:$0xff]
  %v4148 = vld [vmem:[#allocation3 + $0x38] sm:$0xff]
  %v4149 = vld [vmem:[#allocation3 + $0x40] sm:$0xff]
  %v4150 = vld [vmem:[#allocation3 + $0x48] sm:$0xff]
  %v4151 = vld [vmem:[#allocation3 + $0x50] sm:$0xff]
  %v4152 = vld [vmem:[#allocation3 + $0x58] sm:$0xff]
  %v4153 = vld [vmem:[#allocation3 + $0x60] sm:$0xff]
  %v4154 = vld [vmem:[#allocation3 + $0x68] sm:$0xff]
  %v4155 = vld [vmem:[#allocation3 + $0x70] sm:$0xff]
  %v4156 = vld [vmem:[#allocation3 + $0x78] sm:$0xff]
  %v4157 = vld [vmem:[%s2] sm:$0xff]
  %v4158 = vld [vmem:[%s2 + $0x8] sm:$0xff]
  %v4160 = vsel %vm98, %v4139, 0
  %v4163 = vsel %vm98, %v4140, 0
  %v4166 = vsel %vm98, %v4141, 0
  %v4169 = vsel %vm98, %v4142, 0
  %v4172 = vsel %vm98, %v4143, 0
  %v4175 = vsel %vm98, %v4144, 0
  %v4178 = vsel %vm98, %v4145, 0
  %v4181 = vsel %vm98, %v4146, 0
  %v4184 = vsel %vm98, %v4147, 0
  %v4187 = vsel %vm98, %v4148, 0
  %v4190 = vsel %vm98, %v4149, 0
  %v4193 = vsel %vm98, %v4150, 0
  %v4196 = vsel %vm98, %v4151, 0
  %v4199 = vsel %vm98, %v4152, 0
  %v4202 = vsel %vm98, %v4153, 0
  %v4205 = vsel %vm98, %v4154, 0
  %v4208 = vsel %vm98, %v4155, 0
  %v4211 = vsel %vm98, %v4156, 0
  %4213 = vmatprep.subr.mxu0 0.0
  %4214 = vmatpush1.xpose.msra.mxu0 %v4166
  %4215 = vmatprep.subr.mxu0 0.0
  %4216 = vmatpush1.xpose.msra.mxu0 %v4169
  %4217 = vmatprep.subr.mxu0 0.0
  %4218 = vmatpush1.xpose.msra.mxu0 %v4172
  %4219 = vmatprep.subr.mxu0 0.0
  %4220 = vmatpush1.xpose.msra.mxu0 %v4175
  %4221 = vmatprep.subr.mxu0 0.0
  %4222 = vmatpush1.xpose.msra.mxu0 %v4178
  %4223 = vmatprep.subr.mxu0 0.0
  %4224 = vmatpush1.xpose.msra.mxu0 %v4181
  %4225 = vmatprep.subr.mxu0 0.0
  %4226 = vmatpush1.xpose.msra.mxu0 %v4184
  %4227 = vmatprep.subr.mxu0 0.0
  %4228 = vmatpush1.xpose.msra.mxu0 %v4187
  %4229 = vmatprep.subr.mxu0 0.0
  %4230 = vmatpush1.xpose.msra.mxu0 %v4190
  %4231 = vmatprep.subr.mxu0 0.0
  %4232 = vmatpush1.xpose.msra.mxu0 %v4193
  %4233 = vmatprep.subr.mxu0 0.0
  %4234 = vmatpush1.xpose.msra.mxu0 %v4196
  %4235 = vmatprep.subr.mxu0 0.0
  %4236 = vmatpush1.xpose.msra.mxu0 %v4199
  %4237 = vmatprep.subr.mxu0 0.0
  %4238 = vmatpush1.xpose.msra.mxu0 %v4202
  %4239 = vmatprep.subr.mxu0 0.0
  %4240 = vmatpush1.xpose.msra.mxu0 %v4205
  %4241 = vmatprep.subr.mxu0 0.0
  %4242 = vmatpush1.xpose.msra.mxu0 %v4208
  %4243 = vmatprep.subr.mxu0 0.0
  %4244 = vmatpush1.xpose.msra.mxu0 %v4211
  %4245 = vmatprep.subr.mxu0 0.0
  %4246 = vmatpush1.xpose.msra.mxu0 0.0
  %4247 = vmatprep.subr.mxu0 0.0
  %4248 = vmatpush1.xpose.msra.mxu0 0.0
  %4249 = vmatprep.subr.mxu0 0.0
  %4250 = vmatpush1.xpose.msra.mxu0 0.0
  %4251 = vmatprep.subr.mxu0 0.0
  %4252 = vmatpush1.xpose.msra.mxu0 0.0
  %4253 = vmatprep.subr.mxu0 0.0
  %4254 = vmatpush1.xpose.msra.mxu0 0.0
  %4255 = vmatprep.subr.mxu0 0.0
  %4256 = vmatpush1.xpose.msra.mxu0 0.0
  %4257 = vmatprep.subr.mxu0 0.0
  %4258 = vmatpush1.xpose.msra.mxu0 0.0
  %4259 = vmatprep.subr.mxu0 0.0
  %4260 = vmatpush1.xpose.msra.mxu0 0.0
  %4261 = vmatprep.subr.mxu0 0.0
  %4262 = vmatpush1.xpose.msra.mxu0 0.0
  %4263 = vmatprep.subr.mxu0 0.0
  %4264 = vmatpush1.xpose.msra.mxu0 0.0
  %4265 = vmatprep.subr.mxu0 0.0
  %4266 = vmatpush1.xpose.msra.mxu0 0.0
  %4267 = vmatprep.subr.mxu0 0.0
  %4268 = vmatpush1.xpose.msra.mxu0 0.0
  %4269 = vmatprep.subr.mxu0 0.0
  %4270 = vmatpush1.xpose.msra.mxu0 0.0
  %4271 = vmatprep.subr.mxu0 0.0
  %4272 = vmatpush1.xpose.msra.mxu0 0.0
  %4273 = vmatprep.subr.mxu0 0.0
  %4274 = vmatpush1.xpose.msra.mxu0 0.0
  %4275 = vmatprep.subr.mxu0 0.0
  %4276 = vmatpush1.xpose.msra.mxu0 0.0
  %4277 = vmatprep.mubr.f32.mxu0 0.0
  %4278 = vmatmul.mubr.f32.gmra.mrb[0].mxu0 %v4160
  %v4279 = vpop.f32.mrb[0].mxu0
  %v4280 = vadd.f32 %v4157, %v4279
  %v4281 = vpop.f32.mrb[0].mxu0
  %4282 = vmatprep.mubr.f32.mxu0 0.0
  %4283 = vmatmul.mubr.f32.gmra.mrb[0].mxu0 %v4163
  %v4284 = vpop.f32.mrb[0].mxu0
  %v4285 = vadd.f32 %v4158, %v4284
  %v4286 = vpop.f32.mrb[0].mxu0
  %4287 = vdwg.mxu0
  %4288 = vmax.xlane.f32.xlu0 %v4280
  %v4289 = vpop.xlane.xlu0 %4288
  %4290 = vmax.xlane.f32.xlu0 %v4285
  %v4291 = vpop.xlane.xlu0 %4290
  %v4292 = vsub.f32 %v4280, %v4289
  %v4293 = vsub.f32 %v4285, %v4291
  %v4294 = vmul.f32 %v4292, 1.442695
  %v4295 = vpow.pop %v4294
  %v4296 = vmul.f32 %v4293, 1.442695
  %v4297 = vpow.pop %v4296
  %4298 = vadd.xlane.f32.xlu0 %v4295
  %v4299 = vpop.xlane.xlu0 %4298
  %4300 = vadd.xlane.f32.xlu0 %v4297
  %v4301 = vpop.xlane.xlu0 %4300
  %v4302 = vrcp.pop %v4299
  %v4303 = vrcp.pop %v4301
  %v4304 = vmul.f32 %v4295, %v4302
  %v4305 = vmul.f32 %v4297, %v4303
  %v4306 = vld [vmem:[#allocation2] sm:$0xff]
  %v4307 = vld [vmem:[#allocation2 + $0x8] sm:$0xff]
  %v4308 = vld [vmem:[#allocation2 + $0x10] sm:$0xff]
  %v4309 = vld [vmem:[#allocation2 + $0x18] sm:$0xff]
  %v4310 = vld [vmem:[#allocation2 + $0x20] sm:$0xff]
  %v4311 = vld [vmem:[#allocation2 + $0x28] sm:$0xff]
  %v4312 = vld [vmem:[#allocation2 + $0x30] sm:$0xff]
  %v4313 = vld [vmem:[#allocation2 + $0x38] sm:$0xff]
  %v4314 = vld [vmem:[#allocation2 + $0x40] sm:$0xff]
  %v4315 = vld [vmem:[#allocation2 + $0x48] sm:$0xff]
  %v4316 = vld [vmem:[#allocation2 + $0x50] sm:$0xff]
  %v4317 = vld [vmem:[#allocation2 + $0x58] sm:$0xff]
  %v4318 = vld [vmem:[#allocation2 + $0x60] sm:$0xff]
  %v4319 = vld [vmem:[#allocation2 + $0x68] sm:$0xff]
  %v4320 = vld [vmem:[#allocation2 + $0x70] sm:$0xff]
  %v4321 = vld [vmem:[#allocation2 + $0x78] sm:$0xff]
  %4322 = vmatprep.subr.mxu0 0.0
  %4323 = vmatpush1.msra.mxu0 %v4306
  %4324 = vmatprep.subr.mxu0 0.0
  %4325 = vmatpush1.msra.mxu0 %v4307
  %4326 = vmatprep.subr.mxu0 0.0
  %4327 = vmatpush1.msra.mxu0 %v4308
  %4328 = vmatprep.subr.mxu0 0.0
  %4329 = vmatpush1.msra.mxu0 %v4309
  %4330 = vmatprep.subr.mxu0 0.0
  %4331 = vmatpush1.msra.mxu0 %v4310
  %4332 = vmatprep.subr.mxu0 0.0
  %4333 = vmatpush1.msra.mxu0 %v4311
  %4334 = vmatprep.subr.mxu0 0.0
  %4335 = vmatpush1.msra.mxu0 %v4312
  %4336 = vmatprep.subr.mxu0 0.0
  %4337 = vmatpush1.msra.mxu0 %v4313
  %4338 = vmatprep.subr.mxu0 0.0
  %4339 = vmatpush1.msra.mxu0 %v4314
  %4340 = vmatprep.subr.mxu0 0.0
  %4341 = vmatpush1.msra.mxu0 %v4315
  %4342 = vmatprep.subr.mxu0 0.0
  %4343 = vmatpush1.msra.mxu0 %v4316
  %4344 = vmatprep.subr.mxu0 0.0
  %4345 = vmatpush1.msra.mxu0 %v4317
  %4346 = vmatprep.subr.mxu0 0.0
  %4347 = vmatpush1.msra.mxu0 %v4318
  %4348 = vmatprep.subr.mxu0 0.0
  %4349 = vmatpush1.msra.mxu0 %v4319
  %4350 = vmatprep.subr.mxu0 0.0
  %4351 = vmatpush1.msra.mxu0 %v4320
  %4352 = vmatprep.subr.mxu0 0.0
  %4353 = vmatpush1.msra.mxu0 %v4321
  %4354 = vmatprep.subr.mxu0 0.0
  %4355 = vmatpush1.msra.mxu0 0.0
  %4356 = vmatprep.subr.mxu0 0.0
  %4357 = vmatpush1.msra.mxu0 0.0
  %4358 = vmatprep.subr.mxu0 0.0
  %4359 = vmatpush1.msra.mxu0 0.0
  %4360 = vmatprep.subr.mxu0 0.0
  %4361 = vmatpush1.msra.mxu0 0.0
  %4362 = vmatprep.subr.mxu0 0.0
  %4363 = vmatpush1.msra.mxu0 0.0
  %4364 = vmatprep.subr.mxu0 0.0
  %4365 = vmatpush1.msra.mxu0 0.0
  %4366 = vmatprep.subr.mxu0 0.0
  %4367 = vmatpush1.msra.mxu0 0.0
  %4368 = vmatprep.subr.mxu0 0.0
  %4369 = vmatpush1.msra.mxu0 0.0
  %4370 = vmatprep.subr.mxu0 0.0
  %4371 = vmatpush1.msra.mxu0 0.0
  %4372 = vmatprep.subr.mxu0 0.0
  %4373 = vmatpush1.msra.mxu0 0.0
  %4374 = vmatprep.subr.mxu0 0.0
  %4375 = vmatpush1.msra.mxu0 0.0
  %4376 = vmatprep.subr.mxu0 0.0
  %4377 = vmatpush1.msra.mxu0 0.0
  %4378 = vmatprep.subr.mxu0 0.0
  %4379 = vmatpush1.msra.mxu0 0.0
  %4380 = vmatprep.subr.mxu0 0.0
  %4381 = vmatpush1.msra.mxu0 0.0
  %4382 = vmatprep.subr.mxu0 0.0
  %4383 = vmatpush1.msra.mxu0 0.0
  %4384 = vmatprep.subr.mxu0 0.0
  %4385 = vmatpush1.msra.mxu0 0.0
  %4386 = vmatprep.mubr.f32.mxu0 0.0
  %4387 = vmatmul.mubr.f32.gmra.mrb[0].mxu0 %v4304
  %v4388 = vpop.f32.mrb[0].mxu0
  %v4389 = vadd.f32 0.0, %v4388
  %v4390 = vpop.f32.mrb[0].mxu0
  %4391 = vmatprep.mubr.f32.mxu0 0.0
  %4392 = vmatmul.mubr.f32.gmra.mrb[0].mxu0 %v4305
  %v4393 = vpop.f32.mrb[0].mxu0
  %v4394 = vadd.f32 0.0, %v4393
  %v4395 = vpop.f32.mrb[0].mxu0
  %4396 = vdwg.mxu0
  %4399 = vrot.lane.b32.xlu0 %v4389, 32
  %v4400 = vpop.permute.xlu0 %4399
  %4401 = vrot.lane.b32.xlu0 %v4394, 32
  %v4402 = vpop.permute.xlu0 %4401
  %v4405 = vsel %vm98, %v4139, %v4400
  %v4406 = vsel %vm98, %v4140, %v4402
  %v4407 = vld [vmem:[%s14] sm:$0xff]
  %v4408 = vld [vmem:[%s14 + $0x8] sm:$0xff]
  %v4409 = vld [vmem:[%s14 + $0x10] sm:$0xff]
  %v4410 = vld [vmem:[%s14 + $0x18] sm:$0xff]
  %v4411 = vld [vmem:[%s14 + $0x20] sm:$0xff]
  %v4412 = vld [vmem:[%s14 + $0x28] sm:$0xff]
  %v4413 = vld [vmem:[%s14 + $0x30] sm:$0xff]
  %v4414 = vld [vmem:[%s14 + $0x38] sm:$0xff]
  %v4416 = vsel %vm3644, %v4405, 0
  %v4419 = vsel %vm3644, %v4406, 0
  %4421 = vmatprep.subr.mxu0 0.0
  %4422 = vmatpush1.msra.mxu0 %v4407
  %4423 = vmatprep.subr.mxu0 0.0
  %4424 = vmatpush1.msra.mxu0 %v4408
  %4425 = vmatprep.subr.mxu0 0.0
  %4426 = vmatpush1.msra.mxu0 %v4409
  %4427 = vmatprep.subr.mxu0 0.0
  %4428 = vmatpush1.msra.mxu0 %v4410
  %4429 = vmatprep.subr.mxu0 0.0
  %4430 = vmatpush1.msra.mxu0 %v4411
  %4431 = vmatprep.subr.mxu0 0.0
  %4432 = vmatpush1.msra.mxu0 %v4412
  %4433 = vmatprep.subr.mxu0 0.0
  %4434 = vmatpush1.msra.mxu0 %v4413
  %4435 = vmatprep.subr.mxu0 0.0
  %4436 = vmatpush1.msra.mxu0 %v4414
  %4437 = vmatprep.subr.mxu0 0.0
  %4438 = vmatpush1.msra.mxu0 0.0
  %4439 = vmatprep.subr.mxu0 0.0
  %4440 = vmatpush1.msra.mxu0 0.0
  %4441 = vmatprep.subr.mxu0 0.0
  %4442 = vmatpush1.msra.mxu0 0.0
  %4443 = vmatprep.subr.mxu0 0.0
  %4444 = vmatpush1.msra.mxu0 0.0
  %4445 = vmatprep.subr.mxu0 0.0
  %4446 = vmatpush1.msra.mxu0 0.0
  %4447 = vmatprep.subr.mxu0 0.0
  %4448 = vmatpush1.msra.mxu0 0.0
  %4449 = vmatprep.subr.mxu0 0.0
  %4450 = vmatpush1.msra.mxu0 0.0
  %4451 = vmatprep.subr.mxu0 0.0
  %4452 = vmatpush1.msra.mxu0 0.0
  %4453 = vmatprep.subr.mxu0 0.0
  %4454 = vmatpush1.msra.mxu0 0.0
  %4455 = vmatprep.subr.mxu0 0.0
  %4456 = vmatpush1.msra.mxu0 0.0
  %4457 = vmatprep.subr.mxu0 0.0
  %4458 = vmatpush1.msra.mxu0 0.0
  %4459 = vmatprep.subr.mxu0 0.0
  %4460 = vmatpush1.msra.mxu0 0.0
  %4461 = vmatprep.subr.mxu0 0.0
  %4462 = vmatpush1.msra.mxu0 0.0
  %4463 = vmatprep.subr.mxu0 0.0
  %4464 = vmatpush1.msra.mxu0 0.0
  %4465 = vmatprep.subr.mxu0 0.0
  %4466 = vmatpush1.msra.mxu0 0.0
  %4467 = vmatprep.subr.mxu0 0.0
  %4468 = vmatpush1.msra.mxu0 0.0
  %4469 = vmatprep.subr.mxu0 0.0
  %4470 = vmatpush1.msra.mxu0 0.0
  %4471 = vmatprep.subr.mxu0 0.0
  %4472 = vmatpush1.msra.mxu0 0.0
  %4473 = vmatprep.subr.mxu0 0.0
  %4474 = vmatpush1.msra.mxu0 0.0
  %4475 = vmatprep.subr.mxu0 0.0
  %4476 = vmatpush1.msra.mxu0 0.0
  %4477 = vmatprep.subr.mxu0 0.0
  %4478 = vmatpush1.msra.mxu0 0.0
  %4479 = vmatprep.subr.mxu0 0.0
  %4480 = vmatpush1.msra.mxu0 0.0
  %4481 = vmatprep.subr.mxu0 0.0
  %4482 = vmatpush1.msra.mxu0 0.0
  %4483 = vmatprep.subr.mxu0 0.0
  %4484 = vmatpush1.msra.mxu0 0.0
  %4485 = vmatprep.mubr.f32.mxu0 0.0
  %4486 = vmatmul.mubr.f32.gmra.mrb[0].mxu0 %v4416
  %v4487 = vpop.f32.mrb[0].mxu0
  %v4488 = vadd.f32 %v2980, %v4487
  %v4489 = vpop.f32.mrb[0].mxu0
  %4490 = vmatprep.mubr.f32.mxu0 0.0
  %4491 = vmatmul.mubr.f32.gmra.mrb[0].mxu0 %v4419
  %v4492 = vpop.f32.mrb[0].mxu0
  %v4493 = vadd.f32 %v2980, %v4492
  %v4494 = vpop.f32.mrb[0].mxu0
  %4495 = vdwg.mxu0
  %v4496 = vsel %vm3726, %v4488, -inf
  %4497 = vmax.xlane.f32.xlu0 %v4496
  %v4498 = vpop.xlane.xlu0 %4497
  %v4499 = vsel %vm3726, %v4493, -inf
  %4500 = vmax.xlane.f32.xlu0 %v4499
  %v4501 = vpop.xlane.xlu0 %4500
  %v4502 = vsub.f32 %v4488, %v4498
  %v4503 = vsub.f32 %v4493, %v4501
  %v4504 = vmul.f32 %v4502, 1.442695
  %v4505 = vpow.pop %v4504
  %v4506 = vmul.f32 %v4503, 1.442695
  %v4507 = vpow.pop %v4506
  %v4508 = vsel %vm3726, %v4505, 0.0
  %4509 = vadd.xlane.f32.xlu0 %v4508
  %v4510 = vpop.xlane.xlu0 %4509
  %v4511 = vsel %vm3726, %v4507, 0.0
  %4512 = vadd.xlane.f32.xlu0 %v4511
  %v4513 = vpop.xlane.xlu0 %4512
  %v4514 = vlog2.pop %v4510
  %v4515 = vmul.f32 %v4514, 0.6931472
  %v4516 = vlog2.pop %v4513
  %v4517 = vmul.f32 %v4516, 0.6931472
  %v4518 = vadd.f32 %v4498, %v4515
  %v4519 = vadd.f32 %v4501, %v4517
  %v4520 = vsub.f32 %v4488, %v4518
  %v4521 = vsub.f32 %v4493, %v4519
  %4524 = vrot.lane.b32.xlu0 %v4520, 16
  %v4525 = vpop.permute.xlu0 %4524
  %4526 = vrot.lane.b32.xlu0 %v4521, 16
  %v4527 = vpop.permute.xlu0 %4526
  %vm4530 = vcmask 261248
  %4531 = vst.msk [vmem:[%s16] sm:$0xff] %vm4530, %v4525
  %4532 = vst.msk [vmem:[%s16 + $0x8] sm:$0xff] %vm4530, %v4527
  %v4533 = vld [vmem:[#allocation5 + $0x60] sm:$0xff]
  %v4534 = vld [vmem:[#allocation5 + $0x68] sm:$0xff]
  %v4535 = vld [vmem:[#allocation5 + $0x70] sm:$0xff]
  %v4536 = vld [vmem:[#allocation5 + $0x78] sm:$0xff]
  %v4537 = vld [vmem:[#allocation5 + $0x80] sm:$0xff]
  %v4538 = vld [vmem:[#allocation5 + $0x88] sm:$0xff]
  %v4539 = vld [vmem:[%s8] sm:$0xff]
  %v4540 = vld [vmem:[%s8 + $0x8] sm:$0xff]
  %v4541 = vld [vmem:[%s8 + $0x10] sm:$0xff]
  %v4542 = vld [vmem:[%s8 + $0x18] sm:$0xff]
  %v4543 = vld [vmem:[%s8 + $0x20] sm:$0xff]
  %v4544 = vld [vmem:[%s8 + $0x28] sm:$0xff]
  %v4545 = vld [vmem:[%s8 + $0x30] sm:$0xff]
  %v4546 = vld [vmem:[%s8 + $0x38] sm:$0xff]
  %v4547 = vld [vmem:[%s8 + $0x40] sm:$0xff]
  %v4548 = vld [vmem:[%s8 + $0x48] sm:$0xff]
  %v4549 = vld [vmem:[%s8 + $0x50] sm:$0xff]
  %v4550 = vld [vmem:[%s8 + $0x58] sm:$0xff]
  %v4551 = vsel %vm98, %v4389, 0
  %v4553 = vsel %vm98, %v4394, 0
  %4555 = vmatprep.subr.mxu0 %v4540
  %4556 = vmatpush1.msra.mxu0 %v4539
  %4557 = vmatprep.subr.mxu0 %v4543
  %4558 = vmatpush1.msra.mxu0 %v4542
  %4559 = vmatprep.subr.mxu0 %v4546
  %4560 = vmatpush1.msra.mxu0 %v4545
  %4561 = vmatprep.subr.mxu0 %v4549
  %4562 = vmatpush1.msra.mxu0 %v4548
  %4563 = vmatprep.subr.mxu0 0.0
  %4564 = vmatpush1.msra.mxu0 0.0
  %4565 = vmatprep.subr.mxu0 0.0
  %4566 = vmatpush1.msra.mxu0 0.0
  %4567 = vmatprep.subr.mxu0 0.0
  %4568 = vmatpush1.msra.mxu0 0.0
  %4569 = vmatprep.subr.mxu0 0.0
  %4570 = vmatpush1.msra.mxu0 0.0
  %4571 = vmatprep.subr.mxu0 0.0
  %4572 = vmatpush1.msra.mxu0 0.0
  %4573 = vmatprep.subr.mxu0 0.0
  %4574 = vmatpush1.msra.mxu0 0.0
  %4575 = vmatprep.subr.mxu0 0.0
  %4576 = vmatpush1.msra.mxu0 0.0
  %4577 = vmatprep.subr.mxu0 0.0
  %4578 = vmatpush1.msra.mxu0 0.0
  %4579 = vmatprep.subr.mxu0 0.0
  %4580 = vmatpush1.msra.mxu0 0.0
  %4581 = vmatprep.subr.mxu0 0.0
  %4582 = vmatpush1.msra.mxu0 0.0
  %4583 = vmatprep.subr.mxu0 0.0
  %4584 = vmatpush1.msra.mxu0 0.0
  %4585 = vmatprep.subr.mxu0 0.0
  %4586 = vmatpush1.msra.mxu0 0.0
  %4587 = vmatprep.subr.mxu0 0.0
  %4588 = vmatpush1.msra.mxu0 0.0
  %4589 = vmatprep.subr.mxu0 0.0
  %4590 = vmatpush1.msra.mxu0 0.0
  %4591 = vmatprep.subr.mxu0 0.0
  %4592 = vmatpush1.msra.mxu0 0.0
  %4593 = vmatprep.subr.mxu0 0.0
  %4594 = vmatpush1.msra.mxu0 0.0
  %4595 = vmatprep.subr.mxu0 0.0
  %4596 = vmatpush1.msra.mxu0 0.0
  %4597 = vmatprep.subr.mxu0 0.0
  %4598 = vmatpush1.msra.mxu0 0.0
  %4599 = vmatprep.subr.mxu0 0.0
  %4600 = vmatpush1.msra.mxu0 0.0
  %4601 = vmatprep.subr.mxu0 0.0
  %4602 = vmatpush1.msra.mxu0 0.0
  %4603 = vmatprep.subr.mxu0 0.0
  %4604 = vmatpush1.msra.mxu0 0.0
  %4605 = vmatprep.subr.mxu0 0.0
  %4606 = vmatpush1.msra.mxu0 0.0
  %4607 = vmatprep.subr.mxu0 0.0
  %4608 = vmatpush1.msra.mxu0 0.0
  %4609 = vmatprep.subr.mxu0 0.0
  %4610 = vmatpush1.msra.mxu0 0.0
  %4611 = vmatprep.subr.mxu0 0.0
  %4612 = vmatpush1.msra.mxu0 0.0
  %4613 = vmatprep.subr.mxu0 0.0
  %4614 = vmatpush1.msra.mxu0 0.0
  %4615 = vmatprep.subr.mxu0 0.0
  %4616 = vmatpush1.msra.mxu0 0.0
  %4617 = vmatprep.subr.mxu0 0.0
  %4618 = vmatpush1.msra.mxu0 0.0
  %4619 = vmatprep.mubr.f32.mxu0 0.0
  %4620 = vmatmul.mubr.f32.gmra.mrb[0].mxu0 %v4551
  %v4621 = vpop.f32.mrb[0].mxu0
  %v4622 = vadd.f32 0.0, %v4621
  %v4623 = vpop.f32.mrb[0].mxu0
  %v4624 = vadd.f32 0.0, %v4623
  %4625 = vmatprep.mubr.f32.mxu0 0.0
  %4626 = vmatmul.mubr.f32.gmra.mrb[0].mxu0 %v4553
  %v4627 = vpop.f32.mrb[0].mxu0
  %v4628 = vadd.f32 0.0, %v4627
  %v4629 = vpop.f32.mrb[0].mxu0
  %v4630 = vadd.f32 0.0, %v4629
  %4631 = vdwg.mxu0
  %4632 = vmatprep.subr.mxu0 0.0
  %4633 = vmatpush1.msra.mxu0 %v4541
  %4634 = vmatprep.subr.mxu0 0.0
  %4635 = vmatpush1.msra.mxu0 %v4544
  %4636 = vmatprep.subr.mxu0 0.0
  %4637 = vmatpush1.msra.mxu0 %v4547
  %4638 = vmatprep.subr.mxu0 0.0
  %4639 = vmatpush1.msra.mxu0 %v4550
  %4640 = vmatprep.subr.mxu0 0.0
  %4641 = vmatpush1.msra.mxu0 0.0
  %4642 = vmatprep.subr.mxu0 0.0
  %4643 = vmatpush1.msra.mxu0 0.0
  %4644 = vmatprep.subr.mxu0 0.0
  %4645 = vmatpush1.msra.mxu0 0.0
  %4646 = vmatprep.subr.mxu0 0.0
  %4647 = vmatpush1.msra.mxu0 0.0
  %4648 = vmatprep.subr.mxu0 0.0
  %4649 = vmatpush1.msra.mxu0 0.0
  %4650 = vmatprep.subr.mxu0 0.0
  %4651 = vmatpush1.msra.mxu0 0.0
  %4652 = vmatprep.subr.mxu0 0.0
  %4653 = vmatpush1.msra.mxu0 0.0
  %4654 = vmatprep.subr.mxu0 0.0
  %4655 = vmatpush1.msra.mxu0 0.0
  %4656 = vmatprep.subr.mxu0 0.0
  %4657 = vmatpush1.msra.mxu0 0.0
  %4658 = vmatprep.subr.mxu0 0.0
  %4659 = vmatpush1.msra.mxu0 0.0
  %4660 = vmatprep.subr.mxu0 0.0
  %4661 = vmatpush1.msra.mxu0 0.0
  %4662 = vmatprep.subr.mxu0 0.0
  %4663 = vmatpush1.msra.mxu0 0.0
  %4664 = vmatprep.subr.mxu0 0.0
  %4665 = vmatpush1.msra.mxu0 0.0
  %4666 = vmatprep.subr.mxu0 0.0
  %4667 = vmatpush1.msra.mxu0 0.0
  %4668 = vmatprep.subr.mxu0 0.0
  %4669 = vmatpush1.msra.mxu0 0.0
  %4670 = vmatprep.subr.mxu0 0.0
  %4671 = vmatpush1.msra.mxu0 0.0
  %4672 = vmatprep.subr.mxu0 0.0
  %4673 = vmatpush1.msra.mxu0 0.0
  %4674 = vmatprep.subr.mxu0 0.0
  %4675 = vmatpush1.msra.mxu0 0.0
  %4676 = vmatprep.subr.mxu0 0.0
  %4677 = vmatpush1.msra.mxu0 0.0
  %4678 = vmatprep.subr.mxu0 0.0
  %4679 = vmatpush1.msra.mxu0 0.0
  %4680 = vmatprep.subr.mxu0 0.0
  %4681 = vmatpush1.msra.mxu0 0.0
  %4682 = vmatprep.subr.mxu0 0.0
  %4683 = vmatpush1.msra.mxu0 0.0
  %4684 = vmatprep.subr.mxu0 0.0
  %4685 = vmatpush1.msra.mxu0 0.0
  %4686 = vmatprep.subr.mxu0 0.0
  %4687 = vmatpush1.msra.mxu0 0.0
  %4688 = vmatprep.subr.mxu0 0.0
  %4689 = vmatpush1.msra.mxu0 0.0
  %4690 = vmatprep.subr.mxu0 0.0
  %4691 = vmatpush1.msra.mxu0 0.0
  %4692 = vmatprep.subr.mxu0 0.0
  %4693 = vmatpush1.msra.mxu0 0.0
  %4694 = vmatprep.subr.mxu0 0.0
  %4695 = vmatpush1.msra.mxu0 0.0
  %4696 = vmatprep.mubr.f32.mxu0 0.0
  %4697 = vmatmul.mubr.f32.gmra.mrb[0].mxu0 %v4551
  %v4698 = vpop.f32.mrb[0].mxu0
  %v4699 = vadd.f32 0.0, %v4698
  %v4700 = vpop.f32.mrb[0].mxu0
  %4701 = vmatprep.mubr.f32.mxu0 0.0
  %4702 = vmatmul.mubr.f32.gmra.mrb[0].mxu0 %v4553
  %v4703 = vpop.f32.mrb[0].mxu0
  %v4704 = vadd.f32 0.0, %v4703
  %v4705 = vpop.f32.mrb[0].mxu0
  %4706 = vdwg.mxu0
  %v4707 = vadd.f32 %v4533, %v4622
  %v4708 = vadd.f32 %v4534, %v4624
  %v4709 = vadd.f32 %v4535, %v4699
  %v4710 = vadd.f32 %v4536, %v4628
  %v4711 = vadd.f32 %v4537, %v4630
  %v4712 = vadd.f32 %v4538, %v4704
  %v4713 = vld [vmem:[%s9] sm:$0xff]
  %v4714 = vld [vmem:[%s9 + $0x8] sm:$0xff]
  %v4715 = vld [vmem:[%s9 + $0x10] sm:$0xff]
  %v4716 = vld [vmem:[%s9 + $0x18] sm:$0xff]
  %v4717 = vld [vmem:[%s9 + $0x20] sm:$0xff]
  %v4718 = vld [vmem:[%s9 + $0x28] sm:$0xff]
  %v4719 = vld [vmem:[%s9 + $0x30] sm:$0xff]
  %v4720 = vld [vmem:[%s9 + $0x38] sm:$0xff]
  %v4721 = vld [vmem:[%s9 + $0x40] sm:$0xff]
  %v4722 = vld [vmem:[%s9 + $0x48] sm:$0xff]
  %v4723 = vld [vmem:[%s9 + $0x50] sm:$0xff]
  %v4724 = vld [vmem:[%s9 + $0x58] sm:$0xff]
  %4725 = vmatprep.subr.mxu0 %v4714
  %4726 = vmatpush1.msra.mxu0 %v4713
  %4727 = vmatprep.subr.mxu0 %v4717
  %4728 = vmatpush1.msra.mxu0 %v4716
  %4729 = vmatprep.subr.mxu0 %v4720
  %4730 = vmatpush1.msra.mxu0 %v4719
  %4731 = vmatprep.subr.mxu0 %v4723
  %4732 = vmatpush1.msra.mxu0 %v4722
  %4733 = vmatprep.subr.mxu0 0.0
  %4734 = vmatpush1.msra.mxu0 0.0
  %4735 = vmatprep.subr.mxu0 0.0
  %4736 = vmatpush1.msra.mxu0 0.0
  %4737 = vmatprep.subr.mxu0 0.0
  %4738 = vmatpush1.msra.mxu0 0.0
  %4739 = vmatprep.subr.mxu0 0.0
  %4740 = vmatpush1.msra.mxu0 0.0
  %4741 = vmatprep.subr.mxu0 0.0
  %4742 = vmatpush1.msra.mxu0 0.0
  %4743 = vmatprep.subr.mxu0 0.0
  %4744 = vmatpush1.msra.mxu0 0.0
  %4745 = vmatprep.subr.mxu0 0.0
  %4746 = vmatpush1.msra.mxu0 0.0
  %4747 = vmatprep.subr.mxu0 0.0
  %4748 = vmatpush1.msra.mxu0 0.0
  %4749 = vmatprep.subr.mxu0 0.0
  %4750 = vmatpush1.msra.mxu0 0.0
  %4751 = vmatprep.subr.mxu0 0.0
  %4752 = vmatpush1.msra.mxu0 0.0
  %4753 = vmatprep.subr.mxu0 0.0
  %4754 = vmatpush1.msra.mxu0 0.0
  %4755 = vmatprep.subr.mxu0 0.0
  %4756 = vmatpush1.msra.mxu0 0.0
  %4757 = vmatprep.subr.mxu0 0.0
  %4758 = vmatpush1.msra.mxu0 0.0
  %4759 = vmatprep.subr.mxu0 0.0
  %4760 = vmatpush1.msra.mxu0 0.0
  %4761 = vmatprep.subr.mxu0 0.0
  %4762 = vmatpush1.msra.mxu0 0.0
  %4763 = vmatprep.subr.mxu0 0.0
  %4764 = vmatpush1.msra.mxu0 0.0
  %4765 = vmatprep.subr.mxu0 0.0
  %4766 = vmatpush1.msra.mxu0 0.0
  %4767 = vmatprep.subr.mxu0 0.0
  %4768 = vmatpush1.msra.mxu0 0.0
  %4769 = vmatprep.subr.mxu0 0.0
  %4770 = vmatpush1.msra.mxu0 0.0
  %4771 = vmatprep.subr.mxu0 0.0
  %4772 = vmatpush1.msra.mxu0 0.0
  %4773 = vmatprep.subr.mxu0 0.0
  %4774 = vmatpush1.msra.mxu0 0.0
  %4775 = vmatprep.subr.mxu0 0.0
  %4776 = vmatpush1.msra.mxu0 0.0
  %4777 = vmatprep.subr.mxu0 0.0
  %4778 = vmatpush1.msra.mxu0 0.0
  %4779 = vmatprep.subr.mxu0 0.0
  %4780 = vmatpush1.msra.mxu0 0.0
  %4781 = vmatprep.subr.mxu0 0.0
  %4782 = vmatpush1.msra.mxu0 0.0
  %4783 = vmatprep.subr.mxu0 0.0
  %4784 = vmatpush1.msra.mxu0 0.0
  %4785 = vmatprep.subr.mxu0 0.0
  %4786 = vmatpush1.msra.mxu0 0.0
  %4787 = vmatprep.subr.mxu0 0.0
  %4788 = vmatpush1.msra.mxu0 0.0
  %4789 = vmatprep.mubr.f32.mxu0 0.0
  %4790 = vmatmul.mubr.f32.gmra.mrb[0].mxu0 %v4160
  %v4791 = vpop.f32.mrb[0].mxu0
  %v4792 = vadd.f32 %v2963, %v4791
  %v4793 = vpop.f32.mrb[0].mxu0
  %v4794 = vadd.f32 %v2967, %v4793
  %4795 = vmatprep.mubr.f32.mxu0 0.0
  %4796 = vmatmul.mubr.f32.gmra.mrb[0].mxu0 %v4163
  %v4797 = vpop.f32.mrb[0].mxu0
  %v4798 = vadd.f32 %v2963, %v4797
  %v4799 = vpop.f32.mrb[0].mxu0
  %v4800 = vadd.f32 %v2967, %v4799
  %4801 = vdwg.mxu0
  %4802 = vmatprep.subr.mxu0 0.0
  %4803 = vmatpush1.msra.mxu0 %v4715
  %4804 = vmatprep.subr.mxu0 0.0
  %4805 = vmatpush1.msra.mxu0 %v4718
  %4806 = vmatprep.subr.mxu0 0.0
  %4807 = vmatpush1.msra.mxu0 %v4721
  %4808 = vmatprep.subr.mxu0 0.0
  %4809 = vmatpush1.msra.mxu0 %v4724
  %4810 = vmatprep.subr.mxu0 0.0
  %4811 = vmatpush1.msra.mxu0 0.0
  %4812 = vmatprep.subr.mxu0 0.0
  %4813 = vmatpush1.msra.mxu0 0.0
  %4814 = vmatprep.subr.mxu0 0.0
  %4815 = vmatpush1.msra.mxu0 0.0
  %4816 = vmatprep.subr.mxu0 0.0
  %4817 = vmatpush1.msra.mxu0 0.0
  %4818 = vmatprep.subr.mxu0 0.0
  %4819 = vmatpush1.msra.mxu0 0.0
  %4820 = vmatprep.subr.mxu0 0.0
  %4821 = vmatpush1.msra.mxu0 0.0
  %4822 = vmatprep.subr.mxu0 0.0
  %4823 = vmatpush1.msra.mxu0 0.0
  %4824 = vmatprep.subr.mxu0 0.0
  %4825 = vmatpush1.msra.mxu0 0.0
  %4826 = vmatprep.subr.mxu0 0.0
  %4827 = vmatpush1.msra.mxu0 0.0
  %4828 = vmatprep.subr.mxu0 0.0
  %4829 = vmatpush1.msra.mxu0 0.0
  %4830 = vmatprep.subr.mxu0 0.0
  %4831 = vmatpush1.msra.mxu0 0.0
  %4832 = vmatprep.subr.mxu0 0.0
  %4833 = vmatpush1.msra.mxu0 0.0
  %4834 = vmatprep.subr.mxu0 0.0
  %4835 = vmatpush1.msra.mxu0 0.0
  %4836 = vmatprep.subr.mxu0 0.0
  %4837 = vmatpush1.msra.mxu0 0.0
  %4838 = vmatprep.subr.mxu0 0.0
  %4839 = vmatpush1.msra.mxu0 0.0
  %4840 = vmatprep.subr.mxu0 0.0
  %4841 = vmatpush1.msra.mxu0 0.0
  %4842 = vmatprep.subr.mxu0 0.0
  %4843 = vmatpush1.msra.mxu0 0.0
  %4844 = vmatprep.subr.mxu0 0.0
  %4845 = vmatpush1.msra.mxu0 0.0
  %4846 = vmatprep.subr.mxu0 0.0
  %4847 = vmatpush1.msra.mxu0 0.0
  %4848 = vmatprep.subr.mxu0 0.0
  %4849 = vmatpush1.msra.mxu0 0.0
  %4850 = vmatprep.subr.mxu0 0.0
  %4851 = vmatpush1.msra.mxu0 0.0
  %4852 = vmatprep.subr.mxu0 0.0
  %4853 = vmatpush1.msra.mxu0 0.0
  %4854 = vmatprep.subr.mxu0 0.0
  %4855 = vmatpush1.msra.mxu0 0.0
  %4856 = vmatprep.subr.mxu0 0.0
  %4857 = vmatpush1.msra.mxu0 0.0
  %4858 = vmatprep.subr.mxu0 0.0
  %4859 = vmatpush1.msra.mxu0 0.0
  %4860 = vmatprep.subr.mxu0 0.0
  %4861 = vmatpush1.msra.mxu0 0.0
  %4862 = vmatprep.subr.mxu0 0.0
  %4863 = vmatpush1.msra.mxu0 0.0
  %4864 = vmatprep.subr.mxu0 0.0
  %4865 = vmatpush1.msra.mxu0 0.0
  %4866 = vmatprep.mubr.f32.mxu0 0.0
  %4867 = vmatmul.mubr.f32.gmra.mrb[0].mxu0 %v4160
  %v4868 = vpop.f32.mrb[0].mxu0
  %v4869 = vadd.f32 %v2971, %v4868
  %v4870 = vpop.f32.mrb[0].mxu0
  %4871 = vmatprep.mubr.f32.mxu0 0.0
  %4872 = vmatmul.mubr.f32.gmra.mrb[0].mxu0 %v4163
  %v4873 = vpop.f32.mrb[0].mxu0
  %v4874 = vadd.f32 %v2971, %v4873
  %v4875 = vpop.f32.mrb[0].mxu0
  %4876 = vdwg.mxu0
  %v4877 = vadd.f32 %v4707, %v4792
  %v4878 = vadd.f32 %v4710, %v4798
  %v4879 = vxor.u32 %v4877, 2147483648
  %v4880 = vxor.u32 %v4878, 2147483648
  %v4881 = vmul.f32 %v4879, 1.442695
  %v4882 = vpow.pop %v4881
  %v4883 = vmul.f32 %v4880, 1.442695
  %v4884 = vpow.pop %v4883
  %v4885 = vadd.f32 %v4882, 1.0
  %v4886 = vadd.f32 %v4884, 1.0
  %v4887 = vrcp.pop %v4885
  %v4888 = vmul.f32 1.0, %v4887
  %v4889 = vrcp.pop %v4886
  %v4890 = vmul.f32 1.0, %v4889
  %v4891 = vadd.f32 %v4708, %v4794
  %v4892 = vadd.f32 %v4711, %v4800
  %v4893 = vxor.u32 %v4891, 2147483648
  %v4894 = vxor.u32 %v4892, 2147483648
  %v4895 = vmul.f32 %v4893, 1.442695
  %v4896 = vpow.pop %v4895
  %v4897 = vmul.f32 %v4894, 1.442695
  %v4898 = vpow.pop %v4897
  %v4899 = vadd.f32 %v4896, 1.0
  %v4900 = vadd.f32 %v4898, 1.0
  %v4901 = vrcp.pop %v4899
  %v4902 = vmul.f32 1.0, %v4901
  %v4903 = vrcp.pop %v4900
  %v4904 = vmul.f32 1.0, %v4903
  %v4905 = vmul.f32 %v4888, %v4869
  %v4906 = vmul.f32 %v4890, %v4874
  %v4907 = vadd.f32 %v4709, %v4905
  %v4908 = vadd.f32 %v4712, %v4906
  %v4909 = vtanh.pop %v4907
  %v4910 = vtanh.pop %v4908
  %v4911 = vsub.f32 1.0, %v4902
  %v4912 = vsub.f32 1.0, %v4904
  %v4913 = vmul.f32 %v4911, %v4909
  %v4914 = vmul.f32 %v4912, %v4910
  %v4915 = vmul.f32 %v4902, %v4139
  %v4916 = vmul.f32 %v4904, %v4140
  %v4917 = vadd.f32 %v4913, %v4915
  %v4918 = vadd.f32 %v4914, %v4916
  %v4919 = vld [vmem:[#allocation3] sm:$0xff]
  %v4920 = vld [vmem:[#allocation3 + $0x8] sm:$0xff]
  %v4921 = vld [vmem:[#allocation3 + $0x10] sm:$0xff]
  %v4922 = vld [vmem:[#allocation3 + $0x18] sm:$0xff]
  %v4923 = vld [vmem:[#allocation3 + $0x20] sm:$0xff]
  %v4924 = vld [vmem:[#allocation3 + $0x28] sm:$0xff]
  %v4925 = vld [vmem:[#allocation3 + $0x30] sm:$0xff]
  %v4926 = vld [vmem:[#allocation3 + $0x38] sm:$0xff]
  %v4927 = vld [vmem:[#allocation3 + $0x40] sm:$0xff]
  %v4928 = vld [vmem:[#allocation3 + $0x48] sm:$0xff]
  %v4929 = vld [vmem:[#allocation3 + $0x50] sm:$0xff]
  %v4930 = vld [vmem:[#allocation3 + $0x58] sm:$0xff]
  %v4931 = vld [vmem:[#allocation3 + $0x60] sm:$0xff]
  %v4932 = vld [vmem:[#allocation3 + $0x68] sm:$0xff]
  %v4933 = vld [vmem:[#allocation3 + $0x70] sm:$0xff]
  %v4934 = vld [vmem:[#allocation3 + $0x78] sm:$0xff]
  %v4935 = vld [vmem:[%s2] sm:$0xff]
  %v4936 = vld [vmem:[%s2 + $0x8] sm:$0xff]
  %v4938 = vsel %vm98, %v4917, 0
  %v4941 = vsel %vm98, %v4918, 0
  %v4944 = vsel %vm98, %v4919, 0
  %v4947 = vsel %vm98, %v4920, 0
  %v4950 = vsel %vm98, %v4921, 0
  %v4953 = vsel %vm98, %v4922, 0
  %v4956 = vsel %vm98, %v4923, 0
  %v4959 = vsel %vm98, %v4924, 0
  %v4962 = vsel %vm98, %v4925, 0
  %v4965 = vsel %vm98, %v4926, 0
  %v4968 = vsel %vm98, %v4927, 0
  %v4971 = vsel %vm98, %v4928, 0
  %v4974 = vsel %vm98, %v4929, 0
  %v4977 = vsel %vm98, %v4930, 0
  %v4980 = vsel %vm98, %v4931, 0
  %v4983 = vsel %vm98, %v4932, 0
  %v4986 = vsel %vm98, %v4933, 0
  %v4989 = vsel %vm98, %v4934, 0
  %4991 = vmatprep.subr.mxu0 0.0
  %4992 = vmatpush1.xpose.msra.mxu0 %v4944
  %4993 = vmatprep.subr.mxu0 0.0
  %4994 = vmatpush1.xpose.msra.mxu0 %v4947
  %4995 = vmatprep.subr.mxu0 0.0
  %4996 = vmatpush1.xpose.msra.mxu0 %v4950
  %4997 = vmatprep.subr.mxu0 0.0
  %4998 = vmatpush1.xpose.msra.mxu0 %v4953
  %4999 = vmatprep.subr.mxu0 0.0
  %5000 = vmatpush1.xpose.msra.mxu0 %v4956
  %5001 = vmatprep.subr.mxu0 0.0
  %5002 = vmatpush1.xpose.msra.mxu0 %v4959
  %5003 = vmatprep.subr.mxu0 0.0
  %5004 = vmatpush1.xpose.msra.mxu0 %v4962
  %5005 = vmatprep.subr.mxu0 0.0
  %5006 = vmatpush1.xpose.msra.mxu0 %v4965
  %5007 = vmatprep.subr.mxu0 0.0
  %5008 = vmatpush1.xpose.msra.mxu0 %v4968
  %5009 = vmatprep.subr.mxu0 0.0
  %5010 = vmatpush1.xpose.msra.mxu0 %v4971
  %5011 = vmatprep.subr.mxu0 0.0
  %5012 = vmatpush1.xpose.msra.mxu0 %v4974
  %5013 = vmatprep.subr.mxu0 0.0
  %5014 = vmatpush1.xpose.msra.mxu0 %v4977
  %5015 = vmatprep.subr.mxu0 0.0
  %5016 = vmatpush1.xpose.msra.mxu0 %v4980
  %5017 = vmatprep.subr.mxu0 0.0
  %5018 = vmatpush1.xpose.msra.mxu0 %v4983
  %5019 = vmatprep.subr.mxu0 0.0
  %5020 = vmatpush1.xpose.msra.mxu0 %v4986
  %5021 = vmatprep.subr.mxu0 0.0
  %5022 = vmatpush1.xpose.msra.mxu0 %v4989
  %5023 = vmatprep.subr.mxu0 0.0
  %5024 = vmatpush1.xpose.msra.mxu0 0.0
  %5025 = vmatprep.subr.mxu0 0.0
  %5026 = vmatpush1.xpose.msra.mxu0 0.0
  %5027 = vmatprep.subr.mxu0 0.0
  %5028 = vmatpush1.xpose.msra.mxu0 0.0
  %5029 = vmatprep.subr.mxu0 0.0
  %5030 = vmatpush1.xpose.msra.mxu0 0.0
  %5031 = vmatprep.subr.mxu0 0.0
  %5032 = vmatpush1.xpose.msra.mxu0 0.0
  %5033 = vmatprep.subr.mxu0 0.0
  %5034 = vmatpush1.xpose.msra.mxu0 0.0
  %5035 = vmatprep.subr.mxu0 0.0
  %5036 = vmatpush1.xpose.msra.mxu0 0.0
  %5037 = vmatprep.subr.mxu0 0.0
  %5038 = vmatpush1.xpose.msra.mxu0 0.0
  %5039 = vmatprep.subr.mxu0 0.0
  %5040 = vmatpush1.xpose.msra.mxu0 0.0
  %5041 = vmatprep.subr.mxu0 0.0
  %5042 = vmatpush1.xpose.msra.mxu0 0.0
  %5043 = vmatprep.subr.mxu0 0.0
  %5044 = vmatpush1.xpose.msra.mxu0 0.0
  %5045 = vmatprep.subr.mxu0 0.0
  %5046 = vmatpush1.xpose.msra.mxu0 0.0
  %5047 = vmatprep.subr.mxu0 0.0
  %5048 = vmatpush1.xpose.msra.mxu0 0.0
  %5049 = vmatprep.subr.mxu0 0.0
  %5050 = vmatpush1.xpose.msra.mxu0 0.0
  %5051 = vmatprep.subr.mxu0 0.0
  %5052 = vmatpush1.xpose.msra.mxu0 0.0
  %5053 = vmatprep.subr.mxu0 0.0
  %5054 = vmatpush1.xpose.msra.mxu0 0.0
  %5055 = vmatprep.mubr.f32.mxu0 0.0
  %5056 = vmatmul.mubr.f32.gmra.mrb[0].mxu0 %v4938
  %v5057 = vpop.f32.mrb[0].mxu0
  %v5058 = vadd.f32 %v4935, %v5057
  %v5059 = vpop.f32.mrb[0].mxu0
  %5060 = vmatprep.mubr.f32.mxu0 0.0
  %5061 = vmatmul.mubr.f32.gmra.mrb[0].mxu0 %v4941
  %v5062 = vpop.f32.mrb[0].mxu0
  %v5063 = vadd.f32 %v4936, %v5062
  %v5064 = vpop.f32.mrb[0].mxu0
  %5065 = vdwg.mxu0
  %5066 = vmax.xlane.f32.xlu0 %v5058
  %v5067 = vpop.xlane.xlu0 %5066
  %5068 = vmax.xlane.f32.xlu0 %v5063
  %v5069 = vpop.xlane.xlu0 %5068
  %v5070 = vsub.f32 %v5058, %v5067
  %v5071 = vsub.f32 %v5063, %v5069
  %v5072 = vmul.f32 %v5070, 1.442695
  %v5073 = vpow.pop %v5072
  %v5074 = vmul.f32 %v5071, 1.442695
  %v5075 = vpow.pop %v5074
  %5076 = vadd.xlane.f32.xlu0 %v5073
  %v5077 = vpop.xlane.xlu0 %5076
  %5078 = vadd.xlane.f32.xlu0 %v5075
  %v5079 = vpop.xlane.xlu0 %5078
  %v5080 = vrcp.pop %v5077
  %v5081 = vrcp.pop %v5079
  %v5082 = vmul.f32 %v5073, %v5080
  %v5083 = vmul.f32 %v5075, %v5081
  %v5084 = vld [vmem:[#allocation2] sm:$0xff]
  %v5085 = vld [vmem:[#allocation2 + $0x8] sm:$0xff]
  %v5086 = vld [vmem:[#allocation2 + $0x10] sm:$0xff]
  %v5087 = vld [vmem:[#allocation2 + $0x18] sm:$0xff]
  %v5088 = vld [vmem:[#allocation2 + $0x20] sm:$0xff]
  %v5089 = vld [vmem:[#allocation2 + $0x28] sm:$0xff]
  %v5090 = vld [vmem:[#allocation2 + $0x30] sm:$0xff]
  %v5091 = vld [vmem:[#allocation2 + $0x38] sm:$0xff]
  %v5092 = vld [vmem:[#allocation2 + $0x40] sm:$0xff]
  %v5093 = vld [vmem:[#allocation2 + $0x48] sm:$0xff]
  %v5094 = vld [vmem:[#allocation2 + $0x50] sm:$0xff]
  %v5095 = vld [vmem:[#allocation2 + $0x58] sm:$0xff]
  %v5096 = vld [vmem:[#allocation2 + $0x60] sm:$0xff]
  %v5097 = vld [vmem:[#allocation2 + $0x68] sm:$0xff]
  %v5098 = vld [vmem:[#allocation2 + $0x70] sm:$0xff]
  %v5099 = vld [vmem:[#allocation2 + $0x78] sm:$0xff]
  %5100 = vmatprep.subr.mxu0 0.0
  %5101 = vmatpush1.msra.mxu0 %v5084
  %5102 = vmatprep.subr.mxu0 0.0
  %5103 = vmatpush1.msra.mxu0 %v5085
  %5104 = vmatprep.subr.mxu0 0.0
  %5105 = vmatpush1.msra.mxu0 %v5086
  %5106 = vmatprep.subr.mxu0 0.0
  %5107 = vmatpush1.msra.mxu0 %v5087
  %5108 = vmatprep.subr.mxu0 0.0
  %5109 = vmatpush1.msra.mxu0 %v5088
  %5110 = vmatprep.subr.mxu0 0.0
  %5111 = vmatpush1.msra.mxu0 %v5089
  %5112 = vmatprep.subr.mxu0 0.0
  %5113 = vmatpush1.msra.mxu0 %v5090
  %5114 = vmatprep.subr.mxu0 0.0
  %5115 = vmatpush1.msra.mxu0 %v5091
  %5116 = vmatprep.subr.mxu0 0.0
  %5117 = vmatpush1.msra.mxu0 %v5092
  %5118 = vmatprep.subr.mxu0 0.0
  %5119 = vmatpush1.msra.mxu0 %v5093
  %5120 = vmatprep.subr.mxu0 0.0
  %5121 = vmatpush1.msra.mxu0 %v5094
  %5122 = vmatprep.subr.mxu0 0.0
  %5123 = vmatpush1.msra.mxu0 %v5095
  %5124 = vmatprep.subr.mxu0 0.0
  %5125 = vmatpush1.msra.mxu0 %v5096
  %5126 = vmatprep.subr.mxu0 0.0
  %5127 = vmatpush1.msra.mxu0 %v5097
  %5128 = vmatprep.subr.mxu0 0.0
  %5129 = vmatpush1.msra.mxu0 %v5098
  %5130 = vmatprep.subr.mxu0 0.0
  %5131 = vmatpush1.msra.mxu0 %v5099
  %5132 = vmatprep.subr.mxu0 0.0
  %5133 = vmatpush1.msra.mxu0 0.0
  %5134 = vmatprep.subr.mxu0 0.0
  %5135 = vmatpush1.msra.mxu0 0.0
  %5136 = vmatprep.subr.mxu0 0.0
  %5137 = vmatpush1.msra.mxu0 0.0
  %5138 = vmatprep.subr.mxu0 0.0
  %5139 = vmatpush1.msra.mxu0 0.0
  %5140 = vmatprep.subr.mxu0 0.0
  %5141 = vmatpush1.msra.mxu0 0.0
  %5142 = vmatprep.subr.mxu0 0.0
  %5143 = vmatpush1.msra.mxu0 0.0
  %5144 = vmatprep.subr.mxu0 0.0
  %5145 = vmatpush1.msra.mxu0 0.0
  %5146 = vmatprep.subr.mxu0 0.0
  %5147 = vmatpush1.msra.mxu0 0.0
  %5148 = vmatprep.subr.mxu0 0.0
  %5149 = vmatpush1.msra.mxu0 0.0
  %5150 = vmatprep.subr.mxu0 0.0
  %5151 = vmatpush1.msra.mxu0 0.0
  %5152 = vmatprep.subr.mxu0 0.0
  %5153 = vmatpush1.msra.mxu0 0.0
  %5154 = vmatprep.subr.mxu0 0.0
  %5155 = vmatpush1.msra.mxu0 0.0
  %5156 = vmatprep.subr.mxu0 0.0
  %5157 = vmatpush1.msra.mxu0 0.0
  %5158 = vmatprep.subr.mxu0 0.0
  %5159 = vmatpush1.msra.mxu0 0.0
  %5160 = vmatprep.subr.mxu0 0.0
  %5161 = vmatpush1.msra.mxu0 0.0
  %5162 = vmatprep.subr.mxu0 0.0
  %5163 = vmatpush1.msra.mxu0 0.0
  %5164 = vmatprep.mubr.f32.mxu0 0.0
  %5165 = vmatmul.mubr.f32.gmra.mrb[0].mxu0 %v5082
  %v5166 = vpop.f32.mrb[0].mxu0
  %v5167 = vadd.f32 0.0, %v5166
  %v5168 = vpop.f32.mrb[0].mxu0
  %5169 = vmatprep.mubr.f32.mxu0 0.0
  %5170 = vmatmul.mubr.f32.gmra.mrb[0].mxu0 %v5083
  %v5171 = vpop.f32.mrb[0].mxu0
  %v5172 = vadd.f32 0.0, %v5171
  %v5173 = vpop.f32.mrb[0].mxu0
  %5174 = vdwg.mxu0
  %5177 = vrot.lane.b32.xlu0 %v5167, 32
  %v5178 = vpop.permute.xlu0 %5177
  %5179 = vrot.lane.b32.xlu0 %v5172, 32
  %v5180 = vpop.permute.xlu0 %5179
  %v5183 = vsel %vm98, %v4917, %v5178
  %v5184 = vsel %vm98, %v4918, %v5180
  %v5185 = vld [vmem:[%s14] sm:$0xff]
  %v5186 = vld [vmem:[%s14 + $0x8] sm:$0xff]
  %v5187 = vld [vmem:[%s14 + $0x10] sm:$0xff]
  %v5188 = vld [vmem:[%s14 + $0x18] sm:$0xff]
  %v5189 = vld [vmem:[%s14 + $0x20] sm:$0xff]
  %v5190 = vld [vmem:[%s14 + $0x28] sm:$0xff]
  %v5191 = vld [vmem:[%s14 + $0x30] sm:$0xff]
  %v5192 = vld [vmem:[%s14 + $0x38] sm:$0xff]
  %v5194 = vsel %vm3644, %v5183, 0
  %v5197 = vsel %vm3644, %v5184, 0
  %5199 = vmatprep.subr.mxu0 0.0
  %5200 = vmatpush1.msra.mxu0 %v5185
  %5201 = vmatprep.subr.mxu0 0.0
  %5202 = vmatpush1.msra.mxu0 %v5186
  %5203 = vmatprep.subr.mxu0 0.0
  %5204 = vmatpush1.msra.mxu0 %v5187
  %5205 = vmatprep.subr.mxu0 0.0
  %5206 = vmatpush1.msra.mxu0 %v5188
  %5207 = vmatprep.subr.mxu0 0.0
  %5208 = vmatpush1.msra.mxu0 %v5189
  %5209 = vmatprep.subr.mxu0 0.0
  %5210 = vmatpush1.msra.mxu0 %v5190
  %5211 = vmatprep.subr.mxu0 0.0
  %5212 = vmatpush1.msra.mxu0 %v5191
  %5213 = vmatprep.subr.mxu0 0.0
  %5214 = vmatpush1.msra.mxu0 %v5192
  %5215 = vmatprep.subr.mxu0 0.0
  %5216 = vmatpush1.msra.mxu0 0.0
  %5217 = vmatprep.subr.mxu0 0.0
  %5218 = vmatpush1.msra.mxu0 0.0
  %5219 = vmatprep.subr.mxu0 0.0
  %5220 = vmatpush1.msra.mxu0 0.0
  %5221 = vmatprep.subr.mxu0 0.0
  %5222 = vmatpush1.msra.mxu0 0.0
  %5223 = vmatprep.subr.mxu0 0.0
  %5224 = vmatpush1.msra.mxu0 0.0
  %5225 = vmatprep.subr.mxu0 0.0
  %5226 = vmatpush1.msra.mxu0 0.0
  %5227 = vmatprep.subr.mxu0 0.0
  %5228 = vmatpush1.msra.mxu0 0.0
  %5229 = vmatprep.subr.mxu0 0.0
  %5230 = vmatpush1.msra.mxu0 0.0
  %5231 = vmatprep.subr.mxu0 0.0
  %5232 = vmatpush1.msra.mxu0 0.0
  %5233 = vmatprep.subr.mxu0 0.0
  %5234 = vmatpush1.msra.mxu0 0.0
  %5235 = vmatprep.subr.mxu0 0.0
  %5236 = vmatpush1.msra.mxu0 0.0
  %5237 = vmatprep.subr.mxu0 0.0
  %5238 = vmatpush1.msra.mxu0 0.0
  %5239 = vmatprep.subr.mxu0 0.0
  %5240 = vmatpush1.msra.mxu0 0.0
  %5241 = vmatprep.subr.mxu0 0.0
  %5242 = vmatpush1.msra.mxu0 0.0
  %5243 = vmatprep.subr.mxu0 0.0
  %5244 = vmatpush1.msra.mxu0 0.0
  %5245 = vmatprep.subr.mxu0 0.0
  %5246 = vmatpush1.msra.mxu0 0.0
  %5247 = vmatprep.subr.mxu0 0.0
  %5248 = vmatpush1.msra.mxu0 0.0
  %5249 = vmatprep.subr.mxu0 0.0
  %5250 = vmatpush1.msra.mxu0 0.0
  %5251 = vmatprep.subr.mxu0 0.0
  %5252 = vmatpush1.msra.mxu0 0.0
  %5253 = vmatprep.subr.mxu0 0.0
  %5254 = vmatpush1.msra.mxu0 0.0
  %5255 = vmatprep.subr.mxu0 0.0
  %5256 = vmatpush1.msra.mxu0 0.0
  %5257 = vmatprep.subr.mxu0 0.0
  %5258 = vmatpush1.msra.mxu0 0.0
  %5259 = vmatprep.subr.mxu0 0.0
  %5260 = vmatpush1.msra.mxu0 0.0
  %5261 = vmatprep.subr.mxu0 0.0
  %5262 = vmatpush1.msra.mxu0 0.0
  %5263 = vmatprep.mubr.f32.mxu0 0.0
  %5264 = vmatmul.mubr.f32.gmra.mrb[0].mxu0 %v5194
  %v5265 = vpop.f32.mrb[0].mxu0
  %v5266 = vadd.f32 %v2980, %v5265
  %v5267 = vpop.f32.mrb[0].mxu0
  %5268 = vmatprep.mubr.f32.mxu0 0.0
  %5269 = vmatmul.mubr.f32.gmra.mrb[0].mxu0 %v5197
  %v5270 = vpop.f32.mrb[0].mxu0
  %v5271 = vadd.f32 %v2980, %v5270
  %v5272 = vpop.f32.mrb[0].mxu0
  %5273 = vdwg.mxu0
  %v5274 = vsel %vm3726, %v5266, -inf
  %5275 = vmax.xlane.f32.xlu0 %v5274
  %v5276 = vpop.xlane.xlu0 %5275
  %v5277 = vsel %vm3726, %v5271, -inf
  %5278 = vmax.xlane.f32.xlu0 %v5277
  %v5279 = vpop.xlane.xlu0 %5278
  %v5280 = vsub.f32 %v5266, %v5276
  %v5281 = vsub.f32 %v5271, %v5279
  %v5282 = vmul.f32 %v5280, 1.442695
  %v5283 = vpow.pop %v5282
  %v5284 = vmul.f32 %v5281, 1.442695
  %v5285 = vpow.pop %v5284
  %v5286 = vsel %vm3726, %v5283, 0.0
  %5287 = vadd.xlane.f32.xlu0 %v5286
  %v5288 = vpop.xlane.xlu0 %5287
  %v5289 = vsel %vm3726, %v5285, 0.0
  %5290 = vadd.xlane.f32.xlu0 %v5289
  %v5291 = vpop.xlane.xlu0 %5290
  %v5292 = vlog2.pop %v5288
  %v5293 = vmul.f32 %v5292, 0.6931472
  %v5294 = vlog2.pop %v5291
  %v5295 = vmul.f32 %v5294, 0.6931472
  %v5296 = vadd.f32 %v5276, %v5293
  %v5297 = vadd.f32 %v5279, %v5295
  %v5298 = vsub.f32 %v5266, %v5296
  %v5299 = vsub.f32 %v5271, %v5297
  %5302 = vrot.lane.b32.xlu0 %v5298, 32
  %v5303 = vpop.permute.xlu0 %5302
  %5304 = vrot.lane.b32.xlu0 %v5299, 32
  %v5305 = vpop.permute.xlu0 %5304
  %vm5308 = vcmask 392448
  %5309 = vst.msk [vmem:[%s16] sm:$0xff] %vm5308, %v5303
  %5310 = vst.msk [vmem:[%s16 + $0x8] sm:$0xff] %vm5308, %v5305
  %v5311 = vld [vmem:[#allocation5 + $0x90] sm:$0xff]
  %v5312 = vld [vmem:[#allocation5 + $0x98] sm:$0xff]
  %v5313 = vld [vmem:[#allocation5 + $0xa0] sm:$0xff]
  %v5314 = vld [vmem:[#allocation5 + $0xa8] sm:$0xff]
  %v5315 = vld [vmem:[#allocation5 + $0xb0] sm:$0xff]
  %v5316 = vld [vmem:[#allocation5 + $0xb8] sm:$0xff]
  %v5317 = vld [vmem:[%s8] sm:$0xff]
  %v5318 = vld [vmem:[%s8 + $0x8] sm:$0xff]
  %v5319 = vld [vmem:[%s8 + $0x10] sm:$0xff]
  %v5320 = vld [vmem:[%s8 + $0x18] sm:$0xff]
  %v5321 = vld [vmem:[%s8 + $0x20] sm:$0xff]
  %v5322 = vld [vmem:[%s8 + $0x28] sm:$0xff]
  %v5323 = vld [vmem:[%s8 + $0x30] sm:$0xff]
  %v5324 = vld [vmem:[%s8 + $0x38] sm:$0xff]
  %v5325 = vld [vmem:[%s8 + $0x40] sm:$0xff]
  %v5326 = vld [vmem:[%s8 + $0x48] sm:$0xff]
  %v5327 = vld [vmem:[%s8 + $0x50] sm:$0xff]
  %v5328 = vld [vmem:[%s8 + $0x58] sm:$0xff]
  %v5329 = vsel %vm98, %v5167, 0
  %v5331 = vsel %vm98, %v5172, 0
  %5333 = vmatprep.subr.mxu0 %v5318
  %5334 = vmatpush1.msra.mxu0 %v5317
  %5335 = vmatprep.subr.mxu0 %v5321
  %5336 = vmatpush1.msra.mxu0 %v5320
  %5337 = vmatprep.subr.mxu0 %v5324
  %5338 = vmatpush1.msra.mxu0 %v5323
  %5339 = vmatprep.subr.mxu0 %v5327
  %5340 = vmatpush1.msra.mxu0 %v5326
  %5341 = vmatprep.subr.mxu0 0.0
  %5342 = vmatpush1.msra.mxu0 0.0
  %5343 = vmatprep.subr.mxu0 0.0
  %5344 = vmatpush1.msra.mxu0 0.0
  %5345 = vmatprep.subr.mxu0 0.0
  %5346 = vmatpush1.msra.mxu0 0.0
  %5347 = vmatprep.subr.mxu0 0.0
  %5348 = vmatpush1.msra.mxu0 0.0
  %5349 = vmatprep.subr.mxu0 0.0
  %5350 = vmatpush1.msra.mxu0 0.0
  %5351 = vmatprep.subr.mxu0 0.0
  %5352 = vmatpush1.msra.mxu0 0.0
  %5353 = vmatprep.subr.mxu0 0.0
  %5354 = vmatpush1.msra.mxu0 0.0
  %5355 = vmatprep.subr.mxu0 0.0
  %5356 = vmatpush1.msra.mxu0 0.0
  %5357 = vmatprep.subr.mxu0 0.0
  %5358 = vmatpush1.msra.mxu0 0.0
  %5359 = vmatprep.subr.mxu0 0.0
  %5360 = vmatpush1.msra.mxu0 0.0
  %5361 = vmatprep.subr.mxu0 0.0
  %5362 = vmatpush1.msra.mxu0 0.0
  %5363 = vmatprep.subr.mxu0 0.0
  %5364 = vmatpush1.msra.mxu0 0.0
  %5365 = vmatprep.subr.mxu0 0.0
  %5366 = vmatpush1.msra.mxu0 0.0
  %5367 = vmatprep.subr.mxu0 0.0
  %5368 = vmatpush1.msra.mxu0 0.0
  %5369 = vmatprep.subr.mxu0 0.0
  %5370 = vmatpush1.msra.mxu0 0.0
  %5371 = vmatprep.subr.mxu0 0.0
  %5372 = vmatpush1.msra.mxu0 0.0
  %5373 = vmatprep.subr.mxu0 0.0
  %5374 = vmatpush1.msra.mxu0 0.0
  %5375 = vmatprep.subr.mxu0 0.0
  %5376 = vmatpush1.msra.mxu0 0.0
  %5377 = vmatprep.subr.mxu0 0.0
  %5378 = vmatpush1.msra.mxu0 0.0
  %5379 = vmatprep.subr.mxu0 0.0
  %5380 = vmatpush1.msra.mxu0 0.0
  %5381 = vmatprep.subr.mxu0 0.0
  %5382 = vmatpush1.msra.mxu0 0.0
  %5383 = vmatprep.subr.mxu0 0.0
  %5384 = vmatpush1.msra.mxu0 0.0
  %5385 = vmatprep.subr.mxu0 0.0
  %5386 = vmatpush1.msra.mxu0 0.0
  %5387 = vmatprep.subr.mxu0 0.0
  %5388 = vmatpush1.msra.mxu0 0.0
  %5389 = vmatprep.subr.mxu0 0.0
  %5390 = vmatpush1.msra.mxu0 0.0
  %5391 = vmatprep.subr.mxu0 0.0
  %5392 = vmatpush1.msra.mxu0 0.0
  %5393 = vmatprep.subr.mxu0 0.0
  %5394 = vmatpush1.msra.mxu0 0.0
  %5395 = vmatprep.subr.mxu0 0.0
  %5396 = vmatpush1.msra.mxu0 0.0
  %5397 = vmatprep.mubr.f32.mxu0 0.0
  %5398 = vmatmul.mubr.f32.gmra.mrb[0].mxu0 %v5329
  %v5399 = vpop.f32.mrb[0].mxu0
  %v5400 = vadd.f32 0.0, %v5399
  %v5401 = vpop.f32.mrb[0].mxu0
  %v5402 = vadd.f32 0.0, %v5401
  %5403 = vmatprep.mubr.f32.mxu0 0.0
  %5404 = vmatmul.mubr.f32.gmra.mrb[0].mxu0 %v5331
  %v5405 = vpop.f32.mrb[0].mxu0
  %v5406 = vadd.f32 0.0, %v5405
  %v5407 = vpop.f32.mrb[0].mxu0
  %v5408 = vadd.f32 0.0, %v5407
  %5409 = vdwg.mxu0
  %5410 = vmatprep.subr.mxu0 0.0
  %5411 = vmatpush1.msra.mxu0 %v5319
  %5412 = vmatprep.subr.mxu0 0.0
  %5413 = vmatpush1.msra.mxu0 %v5322
  %5414 = vmatprep.subr.mxu0 0.0
  %5415 = vmatpush1.msra.mxu0 %v5325
  %5416 = vmatprep.subr.mxu0 0.0
  %5417 = vmatpush1.msra.mxu0 %v5328
  %5418 = vmatprep.subr.mxu0 0.0
  %5419 = vmatpush1.msra.mxu0 0.0
  %5420 = vmatprep.subr.mxu0 0.0
  %5421 = vmatpush1.msra.mxu0 0.0
  %5422 = vmatprep.subr.mxu0 0.0
  %5423 = vmatpush1.msra.mxu0 0.0
  %5424 = vmatprep.subr.mxu0 0.0
  %5425 = vmatpush1.msra.mxu0 0.0
  %5426 = vmatprep.subr.mxu0 0.0
  %5427 = vmatpush1.msra.mxu0 0.0
  %5428 = vmatprep.subr.mxu0 0.0
  %5429 = vmatpush1.msra.mxu0 0.0
  %5430 = vmatprep.subr.mxu0 0.0
  %5431 = vmatpush1.msra.mxu0 0.0
  %5432 = vmatprep.subr.mxu0 0.0
  %5433 = vmatpush1.msra.mxu0 0.0
  %5434 = vmatprep.subr.mxu0 0.0
  %5435 = vmatpush1.msra.mxu0 0.0
  %5436 = vmatprep.subr.mxu0 0.0
  %5437 = vmatpush1.msra.mxu0 0.0
  %5438 = vmatprep.subr.mxu0 0.0
  %5439 = vmatpush1.msra.mxu0 0.0
  %5440 = vmatprep.subr.mxu0 0.0
  %5441 = vmatpush1.msra.mxu0 0.0
  %5442 = vmatprep.subr.mxu0 0.0
  %5443 = vmatpush1.msra.mxu0 0.0
  %5444 = vmatprep.subr.mxu0 0.0
  %5445 = vmatpush1.msra.mxu0 0.0
  %5446 = vmatprep.subr.mxu0 0.0
  %5447 = vmatpush1.msra.mxu0 0.0
  %5448 = vmatprep.subr.mxu0 0.0
  %5449 = vmatpush1.msra.mxu0 0.0
  %5450 = vmatprep.subr.mxu0 0.0
  %5451 = vmatpush1.msra.mxu0 0.0
  %5452 = vmatprep.subr.mxu0 0.0
  %5453 = vmatpush1.msra.mxu0 0.0
  %5454 = vmatprep.subr.mxu0 0.0
  %5455 = vmatpush1.msra.mxu0 0.0
  %5456 = vmatprep.subr.mxu0 0.0
  %5457 = vmatpush1.msra.mxu0 0.0
  %5458 = vmatprep.subr.mxu0 0.0
  %5459 = vmatpush1.msra.mxu0 0.0
  %5460 = vmatprep.subr.mxu0 0.0
  %5461 = vmatpush1.msra.mxu0 0.0
  %5462 = vmatprep.subr.mxu0 0.0
  %5463 = vmatpush1.msra.mxu0 0.0
  %5464 = vmatprep.subr.mxu0 0.0
  %5465 = vmatpush1.msra.mxu0 0.0
  %5466 = vmatprep.subr.mxu0 0.0
  %5467 = vmatpush1.msra.mxu0 0.0
  %5468 = vmatprep.subr.mxu0 0.0
  %5469 = vmatpush1.msra.mxu0 0.0
  %5470 = vmatprep.subr.mxu0 0.0
  %5471 = vmatpush1.msra.mxu0 0.0
  %5472 = vmatprep.subr.mxu0 0.0
  %5473 = vmatpush1.msra.mxu0 0.0
  %5474 = vmatprep.mubr.f32.mxu0 0.0
  %5475 = vmatmul.mubr.f32.gmra.mrb[0].mxu0 %v5329
  %v5476 = vpop.f32.mrb[0].mxu0
  %v5477 = vadd.f32 0.0, %v5476
  %v5478 = vpop.f32.mrb[0].mxu0
  %5479 = vmatprep.mubr.f32.mxu0 0.0
  %5480 = vmatmul.mubr.f32.gmra.mrb[0].mxu0 %v5331
  %v5481 = vpop.f32.mrb[0].mxu0
  %v5482 = vadd.f32 0.0, %v5481
  %v5483 = vpop.f32.mrb[0].mxu0
  %5484 = vdwg.mxu0
  %v5485 = vadd.f32 %v5311, %v5400
  %v5486 = vadd.f32 %v5312, %v5402
  %v5487 = vadd.f32 %v5313, %v5477
  %v5488 = vadd.f32 %v5314, %v5406
  %v5489 = vadd.f32 %v5315, %v5408
  %v5490 = vadd.f32 %v5316, %v5482
  %v5491 = vld [vmem:[%s9] sm:$0xff]
  %v5492 = vld [vmem:[%s9 + $0x8] sm:$0xff]
  %v5493 = vld [vmem:[%s9 + $0x10] sm:$0xff]
  %v5494 = vld [vmem:[%s9 + $0x18] sm:$0xff]
  %v5495 = vld [vmem:[%s9 + $0x20] sm:$0xff]
  %v5496 = vld [vmem:[%s9 + $0x28] sm:$0xff]
  %v5497 = vld [vmem:[%s9 + $0x30] sm:$0xff]
  %v5498 = vld [vmem:[%s9 + $0x38] sm:$0xff]
  %v5499 = vld [vmem:[%s9 + $0x40] sm:$0xff]
  %v5500 = vld [vmem:[%s9 + $0x48] sm:$0xff]
  %v5501 = vld [vmem:[%s9 + $0x50] sm:$0xff]
  %v5502 = vld [vmem:[%s9 + $0x58] sm:$0xff]
  %5503 = vmatprep.subr.mxu0 %v5492
  %5504 = vmatpush1.msra.mxu0 %v5491
  %5505 = vmatprep.subr.mxu0 %v5495
  %5506 = vmatpush1.msra.mxu0 %v5494
  %5507 = vmatprep.subr.mxu0 %v5498
  %5508 = vmatpush1.msra.mxu0 %v5497
  %5509 = vmatprep.subr.mxu0 %v5501
  %5510 = vmatpush1.msra.mxu0 %v5500
  %5511 = vmatprep.subr.mxu0 0.0
  %5512 = vmatpush1.msra.mxu0 0.0
  %5513 = vmatprep.subr.mxu0 0.0
  %5514 = vmatpush1.msra.mxu0 0.0
  %5515 = vmatprep.subr.mxu0 0.0
  %5516 = vmatpush1.msra.mxu0 0.0
  %5517 = vmatprep.subr.mxu0 0.0
  %5518 = vmatpush1.msra.mxu0 0.0
  %5519 = vmatprep.subr.mxu0 0.0
  %5520 = vmatpush1.msra.mxu0 0.0
  %5521 = vmatprep.subr.mxu0 0.0
  %5522 = vmatpush1.msra.mxu0 0.0
  %5523 = vmatprep.subr.mxu0 0.0
  %5524 = vmatpush1.msra.mxu0 0.0
  %5525 = vmatprep.subr.mxu0 0.0
  %5526 = vmatpush1.msra.mxu0 0.0
  %5527 = vmatprep.subr.mxu0 0.0
  %5528 = vmatpush1.msra.mxu0 0.0
  %5529 = vmatprep.subr.mxu0 0.0
  %5530 = vmatpush1.msra.mxu0 0.0
  %5531 = vmatprep.subr.mxu0 0.0
  %5532 = vmatpush1.msra.mxu0 0.0
  %5533 = vmatprep.subr.mxu0 0.0
  %5534 = vmatpush1.msra.mxu0 0.0
  %5535 = vmatprep.subr.mxu0 0.0
  %5536 = vmatpush1.msra.mxu0 0.0
  %5537 = vmatprep.subr.mxu0 0.0
  %5538 = vmatpush1.msra.mxu0 0.0
  %5539 = vmatprep.subr.mxu0 0.0
  %5540 = vmatpush1.msra.mxu0 0.0
  %5541 = vmatprep.subr.mxu0 0.0
  %5542 = vmatpush1.msra.mxu0 0.0
  %5543 = vmatprep.subr.mxu0 0.0
  %5544 = vmatpush1.msra.mxu0 0.0
  %5545 = vmatprep.subr.mxu0 0.0
  %5546 = vmatpush1.msra.mxu0 0.0
  %5547 = vmatprep.subr.mxu0 0.0
  %5548 = vmatpush1.msra.mxu0 0.0
  %5549 = vmatprep.subr.mxu0 0.0
  %5550 = vmatpush1.msra.mxu0 0.0
  %5551 = vmatprep.subr.mxu0 0.0
  %5552 = vmatpush1.msra.mxu0 0.0
  %5553 = vmatprep.subr.mxu0 0.0
  %5554 = vmatpush1.msra.mxu0 0.0
  %5555 = vmatprep.subr.mxu0 0.0
  %5556 = vmatpush1.msra.mxu0 0.0
  %5557 = vmatprep.subr.mxu0 0.0
  %5558 = vmatpush1.msra.mxu0 0.0
  %5559 = vmatprep.subr.mxu0 0.0
  %5560 = vmatpush1.msra.mxu0 0.0
  %5561 = vmatprep.subr.mxu0 0.0
  %5562 = vmatpush1.msra.mxu0 0.0
  %5563 = vmatprep.subr.mxu0 0.0
  %5564 = vmatpush1.msra.mxu0 0.0
  %5565 = vmatprep.subr.mxu0 0.0
  %5566 = vmatpush1.msra.mxu0 0.0
  %5567 = vmatprep.mubr.f32.mxu0 0.0
  %5568 = vmatmul.mubr.f32.gmra.mrb[0].mxu0 %v4938
  %v5569 = vpop.f32.mrb[0].mxu0
  %v5570 = vadd.f32 %v2963, %v5569
  %v5571 = vpop.f32.mrb[0].mxu0
  %v5572 = vadd.f32 %v2967, %v5571
  %5573 = vmatprep.mubr.f32.mxu0 0.0
  %5574 = vmatmul.mubr.f32.gmra.mrb[0].mxu0 %v4941
  %v5575 = vpop.f32.mrb[0].mxu0
  %v5576 = vadd.f32 %v2963, %v5575
  %v5577 = vpop.f32.mrb[0].mxu0
  %v5578 = vadd.f32 %v2967, %v5577
  %5579 = vdwg.mxu0
  %5580 = vmatprep.subr.mxu0 0.0
  %5581 = vmatpush1.msra.mxu0 %v5493
  %5582 = vmatprep.subr.mxu0 0.0
  %5583 = vmatpush1.msra.mxu0 %v5496
  %5584 = vmatprep.subr.mxu0 0.0
  %5585 = vmatpush1.msra.mxu0 %v5499
  %5586 = vmatprep.subr.mxu0 0.0
  %5587 = vmatpush1.msra.mxu0 %v5502
  %5588 = vmatprep.subr.mxu0 0.0
  %5589 = vmatpush1.msra.mxu0 0.0
  %5590 = vmatprep.subr.mxu0 0.0
  %5591 = vmatpush1.msra.mxu0 0.0
  %5592 = vmatprep.subr.mxu0 0.0
  %5593 = vmatpush1.msra.mxu0 0.0
  %5594 = vmatprep.subr.mxu0 0.0
  %5595 = vmatpush1.msra.mxu0 0.0
  %5596 = vmatprep.subr.mxu0 0.0
  %5597 = vmatpush1.msra.mxu0 0.0
  %5598 = vmatprep.subr.mxu0 0.0
  %5599 = vmatpush1.msra.mxu0 0.0
  %5600 = vmatprep.subr.mxu0 0.0
  %5601 = vmatpush1.msra.mxu0 0.0
  %5602 = vmatprep.subr.mxu0 0.0
  %5603 = vmatpush1.msra.mxu0 0.0
  %5604 = vmatprep.subr.mxu0 0.0
  %5605 = vmatpush1.msra.mxu0 0.0
  %5606 = vmatprep.subr.mxu0 0.0
  %5607 = vmatpush1.msra.mxu0 0.0
  %5608 = vmatprep.subr.mxu0 0.0
  %5609 = vmatpush1.msra.mxu0 0.0
  %5610 = vmatprep.subr.mxu0 0.0
  %5611 = vmatpush1.msra.mxu0 0.0
  %5612 = vmatprep.subr.mxu0 0.0
  %5613 = vmatpush1.msra.mxu0 0.0
  %5614 = vmatprep.subr.mxu0 0.0
  %5615 = vmatpush1.msra.mxu0 0.0
  %5616 = vmatprep.subr.mxu0 0.0
  %5617 = vmatpush1.msra.mxu0 0.0
  %5618 = vmatprep.subr.mxu0 0.0
  %5619 = vmatpush1.msra.mxu0 0.0
  %5620 = vmatprep.subr.mxu0 0.0
  %5621 = vmatpush1.msra.mxu0 0.0
  %5622 = vmatprep.subr.mxu0 0.0
  %5623 = vmatpush1.msra.mxu0 0.0
  %5624 = vmatprep.subr.mxu0 0.0
  %5625 = vmatpush1.msra.mxu0 0.0
  %5626 = vmatprep.subr.mxu0 0.0
  %5627 = vmatpush1.msra.mxu0 0.0
  %5628 = vmatprep.subr.mxu0 0.0
  %5629 = vmatpush1.msra.mxu0 0.0
  %5630 = vmatprep.subr.mxu0 0.0
  %5631 = vmatpush1.msra.mxu0 0.0
  %5632 = vmatprep.subr.mxu0 0.0
  %5633 = vmatpush1.msra.mxu0 0.0
  %5634 = vmatprep.subr.mxu0 0.0
  %5635 = vmatpush1.msra.mxu0 0.0
  %5636 = vmatprep.subr.mxu0 0.0
  %5637 = vmatpush1.msra.mxu0 0.0
  %5638 = vmatprep.subr.mxu0 0.0
  %5639 = vmatpush1.msra.mxu0 0.0
  %5640 = vmatprep.subr.mxu0 0.0
  %5641 = vmatpush1.msra.mxu0 0.0
  %5642 = vmatprep.subr.mxu0 0.0
  %5643 = vmatpush1.msra.mxu0 0.0
  %5644 = vmatprep.mubr.f32.mxu0 0.0
  %5645 = vmatmul.mubr.f32.gmra.mrb[0].mxu0 %v4938
  %v5646 = vpop.f32.mrb[0].mxu0
  %v5647 = vadd.f32 %v2971, %v5646
  %v5648 = vpop.f32.mrb[0].mxu0
  %5649 = vmatprep.mubr.f32.mxu0 0.0
  %5650 = vmatmul.mubr.f32.gmra.mrb[0].mxu0 %v4941
  %v5651 = vpop.f32.mrb[0].mxu0
  %v5652 = vadd.f32 %v2971, %v5651
  %v5653 = vpop.f32.mrb[0].mxu0
  %5654 = vdwg.mxu0
  %v5655 = vadd.f32 %v5485, %v5570
  %v5656 = vadd.f32 %v5488, %v5576
  %v5657 = vxor.u32 %v5655, 2147483648
  %v5658 = vxor.u32 %v5656, 2147483648
  %v5659 = vmul.f32 %v5657, 1.442695
  %v5660 = vpow.pop %v5659
  %v5661 = vmul.f32 %v5658, 1.442695
  %v5662 = vpow.pop %v5661
  %v5663 = vadd.f32 %v5660, 1.0
  %v5664 = vadd.f32 %v5662, 1.0
  %v5665 = vrcp.pop %v5663
  %v5666 = vmul.f32 1.0, %v5665
  %v5667 = vrcp.pop %v5664
  %v5668 = vmul.f32 1.0, %v5667
  %v5669 = vadd.f32 %v5486, %v5572
  %v5670 = vadd.f32 %v5489, %v5578
  %v5671 = vxor.u32 %v5669, 2147483648
  %v5672 = vxor.u32 %v5670, 2147483648
  %v5673 = vmul.f32 %v5671, 1.442695
  %v5674 = vpow.pop %v5673
  %v5675 = vmul.f32 %v5672, 1.442695
  %v5676 = vpow.pop %v5675
  %v5677 = vadd.f32 %v5674, 1.0
  %v5678 = vadd.f32 %v5676, 1.0
  %v5679 = vrcp.pop %v5677
  %v5680 = vmul.f32 1.0, %v5679
  %v5681 = vrcp.pop %v5678
  %v5682 = vmul.f32 1.0, %v5681
  %v5683 = vmul.f32 %v5666, %v5647
  %v5684 = vmul.f32 %v5668, %v5652
  %v5685 = vadd.f32 %v5487, %v5683
  %v5686 = vadd.f32 %v5490, %v5684
  %v5687 = vtanh.pop %v5685
  %v5688 = vtanh.pop %v5686
  %v5689 = vsub.f32 1.0, %v5680
  %v5690 = vsub.f32 1.0, %v5682
  %v5691 = vmul.f32 %v5689, %v5687
  %v5692 = vmul.f32 %v5690, %v5688
  %v5693 = vmul.f32 %v5680, %v4917
  %v5694 = vmul.f32 %v5682, %v4918
  %v5695 = vadd.f32 %v5691, %v5693
  %v5696 = vadd.f32 %v5692, %v5694
  %v5697 = vld [vmem:[#allocation3] sm:$0xff]
  %v5698 = vld [vmem:[#allocation3 + $0x8] sm:$0xff]
  %v5699 = vld [vmem:[#allocation3 + $0x10] sm:$0xff]
  %v5700 = vld [vmem:[#allocation3 + $0x18] sm:$0xff]
  %v5701 = vld [vmem:[#allocation3 + $0x20] sm:$0xff]
  %v5702 = vld [vmem:[#allocation3 + $0x28] sm:$0xff]
  %v5703 = vld [vmem:[#allocation3 + $0x30] sm:$0xff]
  %v5704 = vld [vmem:[#allocation3 + $0x38] sm:$0xff]
  %v5705 = vld [vmem:[#allocation3 + $0x40] sm:$0xff]
  %v5706 = vld [vmem:[#allocation3 + $0x48] sm:$0xff]
  %v5707 = vld [vmem:[#allocation3 + $0x50] sm:$0xff]
  %v5708 = vld [vmem:[#allocation3 + $0x58] sm:$0xff]
  %v5709 = vld [vmem:[#allocation3 + $0x60] sm:$0xff]
  %v5710 = vld [vmem:[#allocation3 + $0x68] sm:$0xff]
  %v5711 = vld [vmem:[#allocation3 + $0x70] sm:$0xff]
  %v5712 = vld [vmem:[#allocation3 + $0x78] sm:$0xff]
  %v5713 = vld [vmem:[%s2] sm:$0xff]
  %v5714 = vld [vmem:[%s2 + $0x8] sm:$0xff]
  %v5716 = vsel %vm98, %v5695, 0
  %v5719 = vsel %vm98, %v5696, 0
  %v5722 = vsel %vm98, %v5697, 0
  %v5725 = vsel %vm98, %v5698, 0
  %v5728 = vsel %vm98, %v5699, 0
  %v5731 = vsel %vm98, %v5700, 0
  %v5734 = vsel %vm98, %v5701, 0
  %v5737 = vsel %vm98, %v5702, 0
  %v5740 = vsel %vm98, %v5703, 0
  %v5743 = vsel %vm98, %v5704, 0
  %v5746 = vsel %vm98, %v5705, 0
  %v5749 = vsel %vm98, %v5706, 0
  %v5752 = vsel %vm98, %v5707, 0
  %v5755 = vsel %vm98, %v5708, 0
  %v5758 = vsel %vm98, %v5709, 0
  %v5761 = vsel %vm98, %v5710, 0
  %v5764 = vsel %vm98, %v5711, 0
  %v5767 = vsel %vm98, %v5712, 0
  %5769 = vmatprep.subr.mxu0 0.0
  %5770 = vmatpush1.xpose.msra.mxu0 %v5722
  %5771 = vmatprep.subr.mxu0 0.0
  %5772 = vmatpush1.xpose.msra.mxu0 %v5725
  %5773 = vmatprep.subr.mxu0 0.0
  %5774 = vmatpush1.xpose.msra.mxu0 %v5728
  %5775 = vmatprep.subr.mxu0 0.0
  %5776 = vmatpush1.xpose.msra.mxu0 %v5731
  %5777 = vmatprep.subr.mxu0 0.0
  %5778 = vmatpush1.xpose.msra.mxu0 %v5734
  %5779 = vmatprep.subr.mxu0 0.0
  %5780 = vmatpush1.xpose.msra.mxu0 %v5737
  %5781 = vmatprep.subr.mxu0 0.0
  %5782 = vmatpush1.xpose.msra.mxu0 %v5740
  %5783 = vmatprep.subr.mxu0 0.0
  %5784 = vmatpush1.xpose.msra.mxu0 %v5743
  %5785 = vmatprep.subr.mxu0 0.0
  %5786 = vmatpush1.xpose.msra.mxu0 %v5746
  %5787 = vmatprep.subr.mxu0 0.0
  %5788 = vmatpush1.xpose.msra.mxu0 %v5749
  %5789 = vmatprep.subr.mxu0 0.0
  %5790 = vmatpush1.xpose.msra.mxu0 %v5752
  %5791 = vmatprep.subr.mxu0 0.0
  %5792 = vmatpush1.xpose.msra.mxu0 %v5755
  %5793 = vmatprep.subr.mxu0 0.0
  %5794 = vmatpush1.xpose.msra.mxu0 %v5758
  %5795 = vmatprep.subr.mxu0 0.0
  %5796 = vmatpush1.xpose.msra.mxu0 %v5761
  %5797 = vmatprep.subr.mxu0 0.0
  %5798 = vmatpush1.xpose.msra.mxu0 %v5764
  %5799 = vmatprep.subr.mxu0 0.0
  %5800 = vmatpush1.xpose.msra.mxu0 %v5767
  %5801 = vmatprep.subr.mxu0 0.0
  %5802 = vmatpush1.xpose.msra.mxu0 0.0
  %5803 = vmatprep.subr.mxu0 0.0
  %5804 = vmatpush1.xpose.msra.mxu0 0.0
  %5805 = vmatprep.subr.mxu0 0.0
  %5806 = vmatpush1.xpose.msra.mxu0 0.0
  %5807 = vmatprep.subr.mxu0 0.0
  %5808 = vmatpush1.xpose.msra.mxu0 0.0
  %5809 = vmatprep.subr.mxu0 0.0
  %5810 = vmatpush1.xpose.msra.mxu0 0.0
  %5811 = vmatprep.subr.mxu0 0.0
  %5812 = vmatpush1.xpose.msra.mxu0 0.0
  %5813 = vmatprep.subr.mxu0 0.0
  %5814 = vmatpush1.xpose.msra.mxu0 0.0
  %5815 = vmatprep.subr.mxu0 0.0
  %5816 = vmatpush1.xpose.msra.mxu0 0.0
  %5817 = vmatprep.subr.mxu0 0.0
  %5818 = vmatpush1.xpose.msra.mxu0 0.0
  %5819 = vmatprep.subr.mxu0 0.0
  %5820 = vmatpush1.xpose.msra.mxu0 0.0
  %5821 = vmatprep.subr.mxu0 0.0
  %5822 = vmatpush1.xpose.msra.mxu0 0.0
  %5823 = vmatprep.subr.mxu0 0.0
  %5824 = vmatpush1.xpose.msra.mxu0 0.0
  %5825 = vmatprep.subr.mxu0 0.0
  %5826 = vmatpush1.xpose.msra.mxu0 0.0
  %5827 = vmatprep.subr.mxu0 0.0
  %5828 = vmatpush1.xpose.msra.mxu0 0.0
  %5829 = vmatprep.subr.mxu0 0.0
  %5830 = vmatpush1.xpose.msra.mxu0 0.0
  %5831 = vmatprep.subr.mxu0 0.0
  %5832 = vmatpush1.xpose.msra.mxu0 0.0
  %5833 = vmatprep.mubr.f32.mxu0 0.0
  %5834 = vmatmul.mubr.f32.gmra.mrb[0].mxu0 %v5716
  %v5835 = vpop.f32.mrb[0].mxu0
  %v5836 = vadd.f32 %v5713, %v5835
  %v5837 = vpop.f32.mrb[0].mxu0
  %5838 = vmatprep.mubr.f32.mxu0 0.0
  %5839 = vmatmul.mubr.f32.gmra.mrb[0].mxu0 %v5719
  %v5840 = vpop.f32.mrb[0].mxu0
  %v5841 = vadd.f32 %v5714, %v5840
  %v5842 = vpop.f32.mrb[0].mxu0
  %5843 = vdwg.mxu0
  %5844 = vmax.xlane.f32.xlu0 %v5836
  %v5845 = vpop.xlane.xlu0 %5844
  %5846 = vmax.xlane.f32.xlu0 %v5841
  %v5847 = vpop.xlane.xlu0 %5846
  %v5848 = vsub.f32 %v5836, %v5845
  %v5849 = vsub.f32 %v5841, %v5847
  %v5850 = vmul.f32 %v5848, 1.442695
  %v5851 = vpow.pop %v5850
  %v5852 = vmul.f32 %v5849, 1.442695
  %v5853 = vpow.pop %v5852
  %5854 = vadd.xlane.f32.xlu0 %v5851
  %v5855 = vpop.xlane.xlu0 %5854
  %5856 = vadd.xlane.f32.xlu0 %v5853
  %v5857 = vpop.xlane.xlu0 %5856
  %v5858 = vrcp.pop %v5855
  %v5859 = vrcp.pop %v5857
  %v5860 = vmul.f32 %v5851, %v5858
  %v5861 = vmul.f32 %v5853, %v5859
  %v5862 = vld [vmem:[#allocation2] sm:$0xff]
  %v5863 = vld [vmem:[#allocation2 + $0x8] sm:$0xff]
  %v5864 = vld [vmem:[#allocation2 + $0x10] sm:$0xff]
  %v5865 = vld [vmem:[#allocation2 + $0x18] sm:$0xff]
  %v5866 = vld [vmem:[#allocation2 + $0x20] sm:$0xff]
  %v5867 = vld [vmem:[#allocation2 + $0x28] sm:$0xff]
  %v5868 = vld [vmem:[#allocation2 + $0x30] sm:$0xff]
  %v5869 = vld [vmem:[#allocation2 + $0x38] sm:$0xff]
  %v5870 = vld [vmem:[#allocation2 + $0x40] sm:$0xff]
  %v5871 = vld [vmem:[#allocation2 + $0x48] sm:$0xff]
  %v5872 = vld [vmem:[#allocation2 + $0x50] sm:$0xff]
  %v5873 = vld [vmem:[#allocation2 + $0x58] sm:$0xff]
  %v5874 = vld [vmem:[#allocation2 + $0x60] sm:$0xff]
  %v5875 = vld [vmem:[#allocation2 + $0x68] sm:$0xff]
  %v5876 = vld [vmem:[#allocation2 + $0x70] sm:$0xff]
  %v5877 = vld [vmem:[#allocation2 + $0x78] sm:$0xff]
  %5878 = vmatprep.subr.mxu0 0.0
  %5879 = vmatpush1.msra.mxu0 %v5862
  %5880 = vmatprep.subr.mxu0 0.0
  %5881 = vmatpush1.msra.mxu0 %v5863
  %5882 = vmatprep.subr.mxu0 0.0
  %5883 = vmatpush1.msra.mxu0 %v5864
  %5884 = vmatprep.subr.mxu0 0.0
  %5885 = vmatpush1.msra.mxu0 %v5865
  %5886 = vmatprep.subr.mxu0 0.0
  %5887 = vmatpush1.msra.mxu0 %v5866
  %5888 = vmatprep.subr.mxu0 0.0
  %5889 = vmatpush1.msra.mxu0 %v5867
  %5890 = vmatprep.subr.mxu0 0.0
  %5891 = vmatpush1.msra.mxu0 %v5868
  %5892 = vmatprep.subr.mxu0 0.0
  %5893 = vmatpush1.msra.mxu0 %v5869
  %5894 = vmatprep.subr.mxu0 0.0
  %5895 = vmatpush1.msra.mxu0 %v5870
  %5896 = vmatprep.subr.mxu0 0.0
  %5897 = vmatpush1.msra.mxu0 %v5871
  %5898 = vmatprep.subr.mxu0 0.0
  %5899 = vmatpush1.msra.mxu0 %v5872
  %5900 = vmatprep.subr.mxu0 0.0
  %5901 = vmatpush1.msra.mxu0 %v5873
  %5902 = vmatprep.subr.mxu0 0.0
  %5903 = vmatpush1.msra.mxu0 %v5874
  %5904 = vmatprep.subr.mxu0 0.0
  %5905 = vmatpush1.msra.mxu0 %v5875
  %5906 = vmatprep.subr.mxu0 0.0
  %5907 = vmatpush1.msra.mxu0 %v5876
  %5908 = vmatprep.subr.mxu0 0.0
  %5909 = vmatpush1.msra.mxu0 %v5877
  %5910 = vmatprep.subr.mxu0 0.0
  %5911 = vmatpush1.msra.mxu0 0.0
  %5912 = vmatprep.subr.mxu0 0.0
  %5913 = vmatpush1.msra.mxu0 0.0
  %5914 = vmatprep.subr.mxu0 0.0
  %5915 = vmatpush1.msra.mxu0 0.0
  %5916 = vmatprep.subr.mxu0 0.0
  %5917 = vmatpush1.msra.mxu0 0.0
  %5918 = vmatprep.subr.mxu0 0.0
  %5919 = vmatpush1.msra.mxu0 0.0
  %5920 = vmatprep.subr.mxu0 0.0
  %5921 = vmatpush1.msra.mxu0 0.0
  %5922 = vmatprep.subr.mxu0 0.0
  %5923 = vmatpush1.msra.mxu0 0.0
  %5924 = vmatprep.subr.mxu0 0.0
  %5925 = vmatpush1.msra.mxu0 0.0
  %5926 = vmatprep.subr.mxu0 0.0
  %5927 = vmatpush1.msra.mxu0 0.0
  %5928 = vmatprep.subr.mxu0 0.0
  %5929 = vmatpush1.msra.mxu0 0.0
  %5930 = vmatprep.subr.mxu0 0.0
  %5931 = vmatpush1.msra.mxu0 0.0
  %5932 = vmatprep.subr.mxu0 0.0
  %5933 = vmatpush1.msra.mxu0 0.0
  %5934 = vmatprep.subr.mxu0 0.0
  %5935 = vmatpush1.msra.mxu0 0.0
  %5936 = vmatprep.subr.mxu0 0.0
  %5937 = vmatpush1.msra.mxu0 0.0
  %5938 = vmatprep.subr.mxu0 0.0
  %5939 = vmatpush1.msra.mxu0 0.0
  %5940 = vmatprep.subr.mxu0 0.0
  %5941 = vmatpush1.msra.mxu0 0.0
  %5942 = vmatprep.mubr.f32.mxu0 0.0
  %5943 = vmatmul.mubr.f32.gmra.mrb[0].mxu0 %v5860
  %v5944 = vpop.f32.mrb[0].mxu0
  %v5945 = vadd.f32 0.0, %v5944
  %v5946 = vpop.f32.mrb[0].mxu0
  %5947 = vmatprep.mubr.f32.mxu0 0.0
  %5948 = vmatmul.mubr.f32.gmra.mrb[0].mxu0 %v5861
  %v5949 = vpop.f32.mrb[0].mxu0
  %v5950 = vadd.f32 0.0, %v5949
  %v5951 = vpop.f32.mrb[0].mxu0
  %5952 = vdwg.mxu0
  %5955 = vrot.lane.b32.xlu0 %v5945, 32
  %v5956 = vpop.permute.xlu0 %5955
  %5957 = vrot.lane.b32.xlu0 %v5950, 32
  %v5958 = vpop.permute.xlu0 %5957
  %v5961 = vsel %vm98, %v5695, %v5956
  %v5962 = vsel %vm98, %v5696, %v5958
  %v5963 = vld [vmem:[%s14] sm:$0xff]
  %v5964 = vld [vmem:[%s14 + $0x8] sm:$0xff]
  %v5965 = vld [vmem:[%s14 + $0x10] sm:$0xff]
  %v5966 = vld [vmem:[%s14 + $0x18] sm:$0xff]
  %v5967 = vld [vmem:[%s14 + $0x20] sm:$0xff]
  %v5968 = vld [vmem:[%s14 + $0x28] sm:$0xff]
  %v5969 = vld [vmem:[%s14 + $0x30] sm:$0xff]
  %v5970 = vld [vmem:[%s14 + $0x38] sm:$0xff]
  %v5972 = vsel %vm3644, %v5961, 0
  %v5975 = vsel %vm3644, %v5962, 0
  %5977 = vmatprep.subr.mxu0 0.0
  %5978 = vmatpush1.msra.mxu0 %v5963
  %5979 = vmatprep.subr.mxu0 0.0
  %5980 = vmatpush1.msra.mxu0 %v5964
  %5981 = vmatprep.subr.mxu0 0.0
  %5982 = vmatpush1.msra.mxu0 %v5965
  %5983 = vmatprep.subr.mxu0 0.0
  %5984 = vmatpush1.msra.mxu0 %v5966
  %5985 = vmatprep.subr.mxu0 0.0
  %5986 = vmatpush1.msra.mxu0 %v5967
  %5987 = vmatprep.subr.mxu0 0.0
  %5988 = vmatpush1.msra.mxu0 %v5968
  %5989 = vmatprep.subr.mxu0 0.0
  %5990 = vmatpush1.msra.mxu0 %v5969
  %5991 = vmatprep.subr.mxu0 0.0
  %5992 = vmatpush1.msra.mxu0 %v5970
  %5993 = vmatprep.subr.mxu0 0.0
  %5994 = vmatpush1.msra.mxu0 0.0
  %5995 = vmatprep.subr.mxu0 0.0
  %5996 = vmatpush1.msra.mxu0 0.0
  %5997 = vmatprep.subr.mxu0 0.0
  %5998 = vmatpush1.msra.mxu0 0.0
  %5999 = vmatprep.subr.mxu0 0.0
  %6000 = vmatpush1.msra.mxu0 0.0
  %6001 = vmatprep.subr.mxu0 0.0
  %6002 = vmatpush1.msra.mxu0 0.0
  %6003 = vmatprep.subr.mxu0 0.0
  %6004 = vmatpush1.msra.mxu0 0.0
  %6005 = vmatprep.subr.mxu0 0.0
  %6006 = vmatpush1.msra.mxu0 0.0
  %6007 = vmatprep.subr.mxu0 0.0
  %6008 = vmatpush1.msra.mxu0 0.0
  %6009 = vmatprep.subr.mxu0 0.0
  %6010 = vmatpush1.msra.mxu0 0.0
  %6011 = vmatprep.subr.mxu0 0.0
  %6012 = vmatpush1.msra.mxu0 0.0
  %6013 = vmatprep.subr.mxu0 0.0
  %6014 = vmatpush1.msra.mxu0 0.0
  %6015 = vmatprep.subr.mxu0 0.0
  %6016 = vmatpush1.msra.mxu0 0.0
  %6017 = vmatprep.subr.mxu0 0.0
  %6018 = vmatpush1.msra.mxu0 0.0
  %6019 = vmatprep.subr.mxu0 0.0
  %6020 = vmatpush1.msra.mxu0 0.0
  %6021 = vmatprep.subr.mxu0 0.0
  %6022 = vmatpush1.msra.mxu0 0.0
  %6023 = vmatprep.subr.mxu0 0.0
  %6024 = vmatpush1.msra.mxu0 0.0
  %6025 = vmatprep.subr.mxu0 0.0
  %6026 = vmatpush1.msra.mxu0 0.0
  %6027 = vmatprep.subr.mxu0 0.0
  %6028 = vmatpush1.msra.mxu0 0.0
  %6029 = vmatprep.subr.mxu0 0.0
  %6030 = vmatpush1.msra.mxu0 0.0
  %6031 = vmatprep.subr.mxu0 0.0
  %6032 = vmatpush1.msra.mxu0 0.0
  %6033 = vmatprep.subr.mxu0 0.0
  %6034 = vmatpush1.msra.mxu0 0.0
  %6035 = vmatprep.subr.mxu0 0.0
  %6036 = vmatpush1.msra.mxu0 0.0
  %6037 = vmatprep.subr.mxu0 0.0
  %6038 = vmatpush1.msra.mxu0 0.0
  %6039 = vmatprep.subr.mxu0 0.0
  %6040 = vmatpush1.msra.mxu0 0.0
  %6041 = vmatprep.mubr.f32.mxu0 0.0
  %6042 = vmatmul.mubr.f32.gmra.mrb[0].mxu0 %v5972
  %v6043 = vpop.f32.mrb[0].mxu0
  %v6044 = vadd.f32 %v2980, %v6043
  %v6045 = vpop.f32.mrb[0].mxu0
  %6046 = vmatprep.mubr.f32.mxu0 0.0
  %6047 = vmatmul.mubr.f32.gmra.mrb[0].mxu0 %v5975
  %v6048 = vpop.f32.mrb[0].mxu0
  %v6049 = vadd.f32 %v2980, %v6048
  %v6050 = vpop.f32.mrb[0].mxu0
  %6051 = vdwg.mxu0
  %v6052 = vsel %vm3726, %v6044, -inf
  %6053 = vmax.xlane.f32.xlu0 %v6052
  %v6054 = vpop.xlane.xlu0 %6053
  %v6055 = vsel %vm3726, %v6049, -inf
  %6056 = vmax.xlane.f32.xlu0 %v6055
  %v6057 = vpop.xlane.xlu0 %6056
  %v6058 = vsub.f32 %v6044, %v6054
  %v6059 = vsub.f32 %v6049, %v6057
  %v6060 = vmul.f32 %v6058, 1.442695
  %v6061 = vpow.pop %v6060
  %v6062 = vmul.f32 %v6059, 1.442695
  %v6063 = vpow.pop %v6062
  %v6064 = vsel %vm3726, %v6061, 0.0
  %6065 = vadd.xlane.f32.xlu0 %v6064
  %v6066 = vpop.xlane.xlu0 %6065
  %v6067 = vsel %vm3726, %v6063, 0.0
  %6068 = vadd.xlane.f32.xlu0 %v6067
  %v6069 = vpop.xlane.xlu0 %6068
  %v6070 = vlog2.pop %v6066
  %v6071 = vmul.f32 %v6070, 0.6931472
  %v6072 = vlog2.pop %v6069
  %v6073 = vmul.f32 %v6072, 0.6931472
  %v6074 = vadd.f32 %v6054, %v6071
  %v6075 = vadd.f32 %v6057, %v6073
  %v6076 = vsub.f32 %v6044, %v6074
  %v6077 = vsub.f32 %v6049, %v6075
  %6080 = vrot.lane.b32.xlu0 %v6076, 48
  %v6081 = vpop.permute.xlu0 %6080
  %6082 = vrot.lane.b32.xlu0 %v6077, 48
  %v6083 = vpop.permute.xlu0 %6082
  %vm6086 = vcmask 523648
  %6087 = vst.msk [vmem:[%s16] sm:$0xff] %vm6086, %v6081
  %6088 = vst.msk [vmem:[%s16 + $0x8] sm:$0xff] %vm6086, %v6083
  %v6089 = vld [vmem:[#allocation5 + $0xc0] sm:$0xff]
  %v6090 = vld [vmem:[#allocation5 + $0xc8] sm:$0xff]
  %v6091 = vld [vmem:[#allocation5 + $0xd0] sm:$0xff]
  %v6092 = vld [vmem:[#allocation5 + $0xd8] sm:$0xff]
  %v6093 = vld [vmem:[#allocation5 + $0xe0] sm:$0xff]
  %v6094 = vld [vmem:[#allocation5 + $0xe8] sm:$0xff]
  %v6095 = vld [vmem:[%s8] sm:$0xff]
  %v6096 = vld [vmem:[%s8 + $0x8] sm:$0xff]
  %v6097 = vld [vmem:[%s8 + $0x10] sm:$0xff]
  %v6098 = vld [vmem:[%s8 + $0x18] sm:$0xff]
  %v6099 = vld [vmem:[%s8 + $0x20] sm:$0xff]
  %v6100 = vld [vmem:[%s8 + $0x28] sm:$0xff]
  %v6101 = vld [vmem:[%s8 + $0x30] sm:$0xff]
  %v6102 = vld [vmem:[%s8 + $0x38] sm:$0xff]
  %v6103 = vld [vmem:[%s8 + $0x40] sm:$0xff]
  %v6104 = vld [vmem:[%s8 + $0x48] sm:$0xff]
  %v6105 = vld [vmem:[%s8 + $0x50] sm:$0xff]
  %v6106 = vld [vmem:[%s8 + $0x58] sm:$0xff]
  %v6107 = vsel %vm98, %v5945, 0
  %v6109 = vsel %vm98, %v5950, 0
  %6111 = vmatprep.subr.mxu0 %v6096
  %6112 = vmatpush1.msra.mxu0 %v6095
  %6113 = vmatprep.subr.mxu0 %v6099
  %6114 = vmatpush1.msra.mxu0 %v6098
  %6115 = vmatprep.subr.mxu0 %v6102
  %6116 = vmatpush1.msra.mxu0 %v6101
  %6117 = vmatprep.subr.mxu0 %v6105
  %6118 = vmatpush1.msra.mxu0 %v6104
  %6119 = vmatprep.subr.mxu0 0.0
  %6120 = vmatpush1.msra.mxu0 0.0
  %6121 = vmatprep.subr.mxu0 0.0
  %6122 = vmatpush1.msra.mxu0 0.0
  %6123 = vmatprep.subr.mxu0 0.0
  %6124 = vmatpush1.msra.mxu0 0.0
  %6125 = vmatprep.subr.mxu0 0.0
  %6126 = vmatpush1.msra.mxu0 0.0
  %6127 = vmatprep.subr.mxu0 0.0
  %6128 = vmatpush1.msra.mxu0 0.0
  %6129 = vmatprep.subr.mxu0 0.0
  %6130 = vmatpush1.msra.mxu0 0.0
  %6131 = vmatprep.subr.mxu0 0.0
  %6132 = vmatpush1.msra.mxu0 0.0
  %6133 = vmatprep.subr.mxu0 0.0
  %6134 = vmatpush1.msra.mxu0 0.0
  %6135 = vmatprep.subr.mxu0 0.0
  %6136 = vmatpush1.msra.mxu0 0.0
  %6137 = vmatprep.subr.mxu0 0.0
  %6138 = vmatpush1.msra.mxu0 0.0
  %6139 = vmatprep.subr.mxu0 0.0
  %6140 = vmatpush1.msra.mxu0 0.0
  %6141 = vmatprep.subr.mxu0 0.0
  %6142 = vmatpush1.msra.mxu0 0.0
  %6143 = vmatprep.subr.mxu0 0.0
  %6144 = vmatpush1.msra.mxu0 0.0
  %6145 = vmatprep.subr.mxu0 0.0
  %6146 = vmatpush1.msra.mxu0 0.0
  %6147 = vmatprep.subr.mxu0 0.0
  %6148 = vmatpush1.msra.mxu0 0.0
  %6149 = vmatprep.subr.mxu0 0.0
  %6150 = vmatpush1.msra.mxu0 0.0
  %6151 = vmatprep.subr.mxu0 0.0
  %6152 = vmatpush1.msra.mxu0 0.0
  %6153 = vmatprep.subr.mxu0 0.0
  %6154 = vmatpush1.msra.mxu0 0.0
  %6155 = vmatprep.subr.mxu0 0.0
  %6156 = vmatpush1.msra.mxu0 0.0
  %6157 = vmatprep.subr.mxu0 0.0
  %6158 = vmatpush1.msra.mxu0 0.0
  %6159 = vmatprep.subr.mxu0 0.0
  %6160 = vmatpush1.msra.mxu0 0.0
  %6161 = vmatprep.subr.mxu0 0.0
  %6162 = vmatpush1.msra.mxu0 0.0
  %6163 = vmatprep.subr.mxu0 0.0
  %6164 = vmatpush1.msra.mxu0 0.0
  %6165 = vmatprep.subr.mxu0 0.0
  %6166 = vmatpush1.msra.mxu0 0.0
  %6167 = vmatprep.subr.mxu0 0.0
  %6168 = vmatpush1.msra.mxu0 0.0
  %6169 = vmatprep.subr.mxu0 0.0
  %6170 = vmatpush1.msra.mxu0 0.0
  %6171 = vmatprep.subr.mxu0 0.0
  %6172 = vmatpush1.msra.mxu0 0.0
  %6173 = vmatprep.subr.mxu0 0.0
  %6174 = vmatpush1.msra.mxu0 0.0
  %6175 = vmatprep.mubr.f32.mxu0 0.0
  %6176 = vmatmul.mubr.f32.gmra.mrb[0].mxu0 %v6107
  %v6177 = vpop.f32.mrb[0].mxu0
  %v6178 = vadd.f32 0.0, %v6177
  %v6179 = vpop.f32.mrb[0].mxu0
  %v6180 = vadd.f32 0.0, %v6179
  %6181 = vmatprep.mubr.f32.mxu0 0.0
  %6182 = vmatmul.mubr.f32.gmra.mrb[0].mxu0 %v6109
  %v6183 = vpop.f32.mrb[0].mxu0
  %v6184 = vadd.f32 0.0, %v6183
  %v6185 = vpop.f32.mrb[0].mxu0
  %v6186 = vadd.f32 0.0, %v6185
  %6187 = vdwg.mxu0
  %6188 = vmatprep.subr.mxu0 0.0
  %6189 = vmatpush1.msra.mxu0 %v6097
  %6190 = vmatprep.subr.mxu0 0.0
  %6191 = vmatpush1.msra.mxu0 %v6100
  %6192 = vmatprep.subr.mxu0 0.0
  %6193 = vmatpush1.msra.mxu0 %v6103
  %6194 = vmatprep.subr.mxu0 0.0
  %6195 = vmatpush1.msra.mxu0 %v6106
  %6196 = vmatprep.subr.mxu0 0.0
  %6197 = vmatpush1.msra.mxu0 0.0
  %6198 = vmatprep.subr.mxu0 0.0
  %6199 = vmatpush1.msra.mxu0 0.0
  %6200 = vmatprep.subr.mxu0 0.0
  %6201 = vmatpush1.msra.mxu0 0.0
  %6202 = vmatprep.subr.mxu0 0.0
  %6203 = vmatpush1.msra.mxu0 0.0
  %6204 = vmatprep.subr.mxu0 0.0
  %6205 = vmatpush1.msra.mxu0 0.0
  %6206 = vmatprep.subr.mxu0 0.0
  %6207 = vmatpush1.msra.mxu0 0.0
  %6208 = vmatprep.subr.mxu0 0.0
  %6209 = vmatpush1.msra.mxu0 0.0
  %6210 = vmatprep.subr.mxu0 0.0
  %6211 = vmatpush1.msra.mxu0 0.0
  %6212 = vmatprep.subr.mxu0 0.0
  %6213 = vmatpush1.msra.mxu0 0.0
  %6214 = vmatprep.subr.mxu0 0.0
  %6215 = vmatpush1.msra.mxu0 0.0
  %6216 = vmatprep.subr.mxu0 0.0
  %6217 = vmatpush1.msra.mxu0 0.0
  %6218 = vmatprep.subr.mxu0 0.0
  %6219 = vmatpush1.msra.mxu0 0.0
  %6220 = vmatprep.subr.mxu0 0.0
  %6221 = vmatpush1.msra.mxu0 0.0
  %6222 = vmatprep.subr.mxu0 0.0
  %6223 = vmatpush1.msra.mxu0 0.0
  %6224 = vmatprep.subr.mxu0 0.0
  %6225 = vmatpush1.msra.mxu0 0.0
  %6226 = vmatprep.subr.mxu0 0.0
  %6227 = vmatpush1.msra.mxu0 0.0
  %6228 = vmatprep.subr.mxu0 0.0
  %6229 = vmatpush1.msra.mxu0 0.0
  %6230 = vmatprep.subr.mxu0 0.0
  %6231 = vmatpush1.msra.mxu0 0.0
  %6232 = vmatprep.subr.mxu0 0.0
  %6233 = vmatpush1.msra.mxu0 0.0
  %6234 = vmatprep.subr.mxu0 0.0
  %6235 = vmatpush1.msra.mxu0 0.0
  %6236 = vmatprep.subr.mxu0 0.0
  %6237 = vmatpush1.msra.mxu0 0.0
  %6238 = vmatprep.subr.mxu0 0.0
  %6239 = vmatpush1.msra.mxu0 0.0
  %6240 = vmatprep.subr.mxu0 0.0
  %6241 = vmatpush1.msra.mxu0 0.0
  %6242 = vmatprep.subr.mxu0 0.0
  %6243 = vmatpush1.msra.mxu0 0.0
  %6244 = vmatprep.subr.mxu0 0.0
  %6245 = vmatpush1.msra.mxu0 0.0
  %6246 = vmatprep.subr.mxu0 0.0
  %6247 = vmatpush1.msra.mxu0 0.0
  %6248 = vmatprep.subr.mxu0 0.0
  %6249 = vmatpush1.msra.mxu0 0.0
  %6250 = vmatprep.subr.mxu0 0.0
  %6251 = vmatpush1.msra.mxu0 0.0
  %6252 = vmatprep.mubr.f32.mxu0 0.0
  %6253 = vmatmul.mubr.f32.gmra.mrb[0].mxu0 %v6107
  %v6254 = vpop.f32.mrb[0].mxu0
  %v6255 = vadd.f32 0.0, %v6254
  %v6256 = vpop.f32.mrb[0].mxu0
  %6257 = vmatprep.mubr.f32.mxu0 0.0
  %6258 = vmatmul.mubr.f32.gmra.mrb[0].mxu0 %v6109
  %v6259 = vpop.f32.mrb[0].mxu0
  %v6260 = vadd.f32 0.0, %v6259
  %v6261 = vpop.f32.mrb[0].mxu0
  %6262 = vdwg.mxu0
  %v6263 = vadd.f32 %v6089, %v6178
  %v6264 = vadd.f32 %v6090, %v6180
  %v6265 = vadd.f32 %v6091, %v6255
  %v6266 = vadd.f32 %v6092, %v6184
  %v6267 = vadd.f32 %v6093, %v6186
  %v6268 = vadd.f32 %v6094, %v6260
  %v6269 = vld [vmem:[%s9] sm:$0xff]
  %v6270 = vld [vmem:[%s9 + $0x8] sm:$0xff]
  %v6271 = vld [vmem:[%s9 + $0x10] sm:$0xff]
  %v6272 = vld [vmem:[%s9 + $0x18] sm:$0xff]
  %v6273 = vld [vmem:[%s9 + $0x20] sm:$0xff]
  %v6274 = vld [vmem:[%s9 + $0x28] sm:$0xff]
  %v6275 = vld [vmem:[%s9 + $0x30] sm:$0xff]
  %v6276 = vld [vmem:[%s9 + $0x38] sm:$0xff]
  %v6277 = vld [vmem:[%s9 + $0x40] sm:$0xff]
  %v6278 = vld [vmem:[%s9 + $0x48] sm:$0xff]
  %v6279 = vld [vmem:[%s9 + $0x50] sm:$0xff]
  %v6280 = vld [vmem:[%s9 + $0x58] sm:$0xff]
  %6281 = vmatprep.subr.mxu0 %v6270
  %6282 = vmatpush1.msra.mxu0 %v6269
  %6283 = vmatprep.subr.mxu0 %v6273
  %6284 = vmatpush1.msra.mxu0 %v6272
  %6285 = vmatprep.subr.mxu0 %v6276
  %6286 = vmatpush1.msra.mxu0 %v6275
  %6287 = vmatprep.subr.mxu0 %v6279
  %6288 = vmatpush1.msra.mxu0 %v6278
  %6289 = vmatprep.subr.mxu0 0.0
  %6290 = vmatpush1.msra.mxu0 0.0
  %6291 = vmatprep.subr.mxu0 0.0
  %6292 = vmatpush1.msra.mxu0 0.0
  %6293 = vmatprep.subr.mxu0 0.0
  %6294 = vmatpush1.msra.mxu0 0.0
  %6295 = vmatprep.subr.mxu0 0.0
  %6296 = vmatpush1.msra.mxu0 0.0
  %6297 = vmatprep.subr.mxu0 0.0
  %6298 = vmatpush1.msra.mxu0 0.0
  %6299 = vmatprep.subr.mxu0 0.0
  %6300 = vmatpush1.msra.mxu0 0.0
  %6301 = vmatprep.subr.mxu0 0.0
  %6302 = vmatpush1.msra.mxu0 0.0
  %6303 = vmatprep.subr.mxu0 0.0
  %6304 = vmatpush1.msra.mxu0 0.0
  %6305 = vmatprep.subr.mxu0 0.0
  %6306 = vmatpush1.msra.mxu0 0.0
  %6307 = vmatprep.subr.mxu0 0.0
  %6308 = vmatpush1.msra.mxu0 0.0
  %6309 = vmatprep.subr.mxu0 0.0
  %6310 = vmatpush1.msra.mxu0 0.0
  %6311 = vmatprep.subr.mxu0 0.0
  %6312 = vmatpush1.msra.mxu0 0.0
  %6313 = vmatprep.subr.mxu0 0.0
  %6314 = vmatpush1.msra.mxu0 0.0
  %6315 = vmatprep.subr.mxu0 0.0
  %6316 = vmatpush1.msra.mxu0 0.0
  %6317 = vmatprep.subr.mxu0 0.0
  %6318 = vmatpush1.msra.mxu0 0.0
  %6319 = vmatprep.subr.mxu0 0.0
  %6320 = vmatpush1.msra.mxu0 0.0
  %6321 = vmatprep.subr.mxu0 0.0
  %6322 = vmatpush1.msra.mxu0 0.0
  %6323 = vmatprep.subr.mxu0 0.0
  %6324 = vmatpush1.msra.mxu0 0.0
  %6325 = vmatprep.subr.mxu0 0.0
  %6326 = vmatpush1.msra.mxu0 0.0
  %6327 = vmatprep.subr.mxu0 0.0
  %6328 = vmatpush1.msra.mxu0 0.0
  %6329 = vmatprep.subr.mxu0 0.0
  %6330 = vmatpush1.msra.mxu0 0.0
  %6331 = vmatprep.subr.mxu0 0.0
  %6332 = vmatpush1.msra.mxu0 0.0
  %6333 = vmatprep.subr.mxu0 0.0
  %6334 = vmatpush1.msra.mxu0 0.0
  %6335 = vmatprep.subr.mxu0 0.0
  %6336 = vmatpush1.msra.mxu0 0.0
  %6337 = vmatprep.subr.mxu0 0.0
  %6338 = vmatpush1.msra.mxu0 0.0
  %6339 = vmatprep.subr.mxu0 0.0
  %6340 = vmatpush1.msra.mxu0 0.0
  %6341 = vmatprep.subr.mxu0 0.0
  %6342 = vmatpush1.msra.mxu0 0.0
  %6343 = vmatprep.subr.mxu0 0.0
  %6344 = vmatpush1.msra.mxu0 0.0
  %6345 = vmatprep.mubr.f32.mxu0 0.0
  %6346 = vmatmul.mubr.f32.gmra.mrb[0].mxu0 %v5716
  %v6347 = vpop.f32.mrb[0].mxu0
  %v6348 = vadd.f32 %v2963, %v6347
  %v6349 = vpop.f32.mrb[0].mxu0
  %v6350 = vadd.f32 %v2967, %v6349
  %6351 = vmatprep.mubr.f32.mxu0 0.0
  %6352 = vmatmul.mubr.f32.gmra.mrb[0].mxu0 %v5719
  %v6353 = vpop.f32.mrb[0].mxu0
  %v6354 = vadd.f32 %v2963, %v6353
  %v6355 = vpop.f32.mrb[0].mxu0
  %v6356 = vadd.f32 %v2967, %v6355
  %6357 = vdwg.mxu0
  %6358 = vmatprep.subr.mxu0 0.0
  %6359 = vmatpush1.msra.mxu0 %v6271
  %6360 = vmatprep.subr.mxu0 0.0
  %6361 = vmatpush1.msra.mxu0 %v6274
  %6362 = vmatprep.subr.mxu0 0.0
  %6363 = vmatpush1.msra.mxu0 %v6277
  %6364 = vmatprep.subr.mxu0 0.0
  %6365 = vmatpush1.msra.mxu0 %v6280
  %6366 = vmatprep.subr.mxu0 0.0
  %6367 = vmatpush1.msra.mxu0 0.0
  %6368 = vmatprep.subr.mxu0 0.0
  %6369 = vmatpush1.msra.mxu0 0.0
  %6370 = vmatprep.subr.mxu0 0.0
  %6371 = vmatpush1.msra.mxu0 0.0
  %6372 = vmatprep.subr.mxu0 0.0
  %6373 = vmatpush1.msra.mxu0 0.0
  %6374 = vmatprep.subr.mxu0 0.0
  %6375 = vmatpush1.msra.mxu0 0.0
  %6376 = vmatprep.subr.mxu0 0.0
  %6377 = vmatpush1.msra.mxu0 0.0
  %6378 = vmatprep.subr.mxu0 0.0
  %6379 = vmatpush1.msra.mxu0 0.0
  %6380 = vmatprep.subr.mxu0 0.0
  %6381 = vmatpush1.msra.mxu0 0.0
  %6382 = vmatprep.subr.mxu0 0.0
  %6383 = vmatpush1.msra.mxu0 0.0
  %6384 = vmatprep.subr.mxu0 0.0
  %6385 = vmatpush1.msra.mxu0 0.0
  %6386 = vmatprep.subr.mxu0 0.0
  %6387 = vmatpush1.msra.mxu0 0.0
  %6388 = vmatprep.subr.mxu0 0.0
  %6389 = vmatpush1.msra.mxu0 0.0
  %6390 = vmatprep.subr.mxu0 0.0
  %6391 = vmatpush1.msra.mxu0 0.0
  %6392 = vmatprep.subr.mxu0 0.0
  %6393 = vmatpush1.msra.mxu0 0.0
  %6394 = vmatprep.subr.mxu0 0.0
  %6395 = vmatpush1.msra.mxu0 0.0
  %6396 = vmatprep.subr.mxu0 0.0
  %6397 = vmatpush1.msra.mxu0 0.0
  %6398 = vmatprep.subr.mxu0 0.0
  %6399 = vmatpush1.msra.mxu0 0.0
  %6400 = vmatprep.subr.mxu0 0.0
  %6401 = vmatpush1.msra.mxu0 0.0
  %6402 = vmatprep.subr.mxu0 0.0
  %6403 = vmatpush1.msra.mxu0 0.0
  %6404 = vmatprep.subr.mxu0 0.0
  %6405 = vmatpush1.msra.mxu0 0.0
  %6406 = vmatprep.subr.mxu0 0.0
  %6407 = vmatpush1.msra.mxu0 0.0
  %6408 = vmatprep.subr.mxu0 0.0
  %6409 = vmatpush1.msra.mxu0 0.0
  %6410 = vmatprep.subr.mxu0 0.0
  %6411 = vmatpush1.msra.mxu0 0.0
  %6412 = vmatprep.subr.mxu0 0.0
  %6413 = vmatpush1.msra.mxu0 0.0
  %6414 = vmatprep.subr.mxu0 0.0
  %6415 = vmatpush1.msra.mxu0 0.0
  %6416 = vmatprep.subr.mxu0 0.0
  %6417 = vmatpush1.msra.mxu0 0.0
  %6418 = vmatprep.subr.mxu0 0.0
  %6419 = vmatpush1.msra.mxu0 0.0
  %6420 = vmatprep.subr.mxu0 0.0
  %6421 = vmatpush1.msra.mxu0 0.0
  %6422 = vmatprep.mubr.f32.mxu0 0.0
  %6423 = vmatmul.mubr.f32.gmra.mrb[0].mxu0 %v5716
  %v6424 = vpop.f32.mrb[0].mxu0
  %v6425 = vadd.f32 %v2971, %v6424
  %v6426 = vpop.f32.mrb[0].mxu0
  %6427 = vmatprep.mubr.f32.mxu0 0.0
  %6428 = vmatmul.mubr.f32.gmra.mrb[0].mxu0 %v5719
  %v6429 = vpop.f32.mrb[0].mxu0
  %v6430 = vadd.f32 %v2971, %v6429
  %v6431 = vpop.f32.mrb[0].mxu0
  %6432 = vdwg.mxu0
  %v6433 = vadd.f32 %v6263, %v6348
  %v6434 = vadd.f32 %v6266, %v6354
  %v6435 = vxor.u32 %v6433, 2147483648
  %v6436 = vxor.u32 %v6434, 2147483648
  %v6437 = vmul.f32 %v6435, 1.442695
  %v6438 = vpow.pop %v6437
  %v6439 = vmul.f32 %v6436, 1.442695
  %v6440 = vpow.pop %v6439
  %v6441 = vadd.f32 %v6438, 1.0
  %v6442 = vadd.f32 %v6440, 1.0
  %v6443 = vrcp.pop %v6441
  %v6444 = vmul.f32 1.0, %v6443
  %v6445 = vrcp.pop %v6442
  %v6446 = vmul.f32 1.0, %v6445
  %v6447 = vadd.f32 %v6264, %v6350
  %v6448 = vadd.f32 %v6267, %v6356
  %v6449 = vxor.u32 %v6447, 2147483648
  %v6450 = vxor.u32 %v6448, 2147483648
  %v6451 = vmul.f32 %v6449, 1.442695
  %v6452 = vpow.pop %v6451
  %v6453 = vmul.f32 %v6450, 1.442695
  %v6454 = vpow.pop %v6453
  %v6455 = vadd.f32 %v6452, 1.0
  %v6456 = vadd.f32 %v6454, 1.0
  %v6457 = vrcp.pop %v6455
  %v6458 = vmul.f32 1.0, %v6457
  %v6459 = vrcp.pop %v6456
  %v6460 = vmul.f32 1.0, %v6459
  %v6461 = vmul.f32 %v6444, %v6425
  %v6462 = vmul.f32 %v6446, %v6430
  %v6463 = vadd.f32 %v6265, %v6461
  %v6464 = vadd.f32 %v6268, %v6462
  %v6465 = vtanh.pop %v6463
  %v6466 = vtanh.pop %v6464
  %v6467 = vsub.f32 1.0, %v6458
  %v6468 = vsub.f32 1.0, %v6460
  %v6469 = vmul.f32 %v6467, %v6465
  %v6470 = vmul.f32 %v6468, %v6466
  %v6471 = vmul.f32 %v6458, %v5695
  %v6472 = vmul.f32 %v6460, %v5696
  %v6473 = vadd.f32 %v6469, %v6471
  %v6474 = vadd.f32 %v6470, %v6472
  %v6475 = vld [vmem:[#allocation3] sm:$0xff]
  %v6476 = vld [vmem:[#allocation3 + $0x8] sm:$0xff]
  %v6477 = vld [vmem:[#allocation3 + $0x10] sm:$0xff]
  %v6478 = vld [vmem:[#allocation3 + $0x18] sm:$0xff]
  %v6479 = vld [vmem:[#allocation3 + $0x20] sm:$0xff]
  %v6480 = vld [vmem:[#allocation3 + $0x28] sm:$0xff]
  %v6481 = vld [vmem:[#allocation3 + $0x30] sm:$0xff]
  %v6482 = vld [vmem:[#allocation3 + $0x38] sm:$0xff]
  %v6483 = vld [vmem:[#allocation3 + $0x40] sm:$0xff]
  %v6484 = vld [vmem:[#allocation3 + $0x48] sm:$0xff]
  %v6485 = vld [vmem:[#allocation3 + $0x50] sm:$0xff]
  %v6486 = vld [vmem:[#allocation3 + $0x58] sm:$0xff]
  %v6487 = vld [vmem:[#allocation3 + $0x60] sm:$0xff]
  %v6488 = vld [vmem:[#allocation3 + $0x68] sm:$0xff]
  %v6489 = vld [vmem:[#allocation3 + $0x70] sm:$0xff]
  %v6490 = vld [vmem:[#allocation3 + $0x78] sm:$0xff]
  %v6491 = vld [vmem:[%s2] sm:$0xff]
  %v6492 = vld [vmem:[%s2 + $0x8] sm:$0xff]
  %v6494 = vsel %vm98, %v6473, 0
  %v6497 = vsel %vm98, %v6474, 0
  %v6500 = vsel %vm98, %v6475, 0
  %v6503 = vsel %vm98, %v6476, 0
  %v6506 = vsel %vm98, %v6477, 0
  %v6509 = vsel %vm98, %v6478, 0
  %v6512 = vsel %vm98, %v6479, 0
  %v6515 = vsel %vm98, %v6480, 0
  %v6518 = vsel %vm98, %v6481, 0
  %v6521 = vsel %vm98, %v6482, 0
  %v6524 = vsel %vm98, %v6483, 0
  %v6527 = vsel %vm98, %v6484, 0
  %v6530 = vsel %vm98, %v6485, 0
  %v6533 = vsel %vm98, %v6486, 0
  %v6536 = vsel %vm98, %v6487, 0
  %v6539 = vsel %vm98, %v6488, 0
  %v6542 = vsel %vm98, %v6489, 0
  %v6545 = vsel %vm98, %v6490, 0
  %6547 = vmatprep.subr.mxu0 0.0
  %6548 = vmatpush1.xpose.msra.mxu0 %v6500
  %6549 = vmatprep.subr.mxu0 0.0
  %6550 = vmatpush1.xpose.msra.mxu0 %v6503
  %6551 = vmatprep.subr.mxu0 0.0
  %6552 = vmatpush1.xpose.msra.mxu0 %v6506
  %6553 = vmatprep.subr.mxu0 0.0
  %6554 = vmatpush1.xpose.msra.mxu0 %v6509
  %6555 = vmatprep.subr.mxu0 0.0
  %6556 = vmatpush1.xpose.msra.mxu0 %v6512
  %6557 = vmatprep.subr.mxu0 0.0
  %6558 = vmatpush1.xpose.msra.mxu0 %v6515
  %6559 = vmatprep.subr.mxu0 0.0
  %6560 = vmatpush1.xpose.msra.mxu0 %v6518
  %6561 = vmatprep.subr.mxu0 0.0
  %6562 = vmatpush1.xpose.msra.mxu0 %v6521
  %6563 = vmatprep.subr.mxu0 0.0
  %6564 = vmatpush1.xpose.msra.mxu0 %v6524
  %6565 = vmatprep.subr.mxu0 0.0
  %6566 = vmatpush1.xpose.msra.mxu0 %v6527
  %6567 = vmatprep.subr.mxu0 0.0
  %6568 = vmatpush1.xpose.msra.mxu0 %v6530
  %6569 = vmatprep.subr.mxu0 0.0
  %6570 = vmatpush1.xpose.msra.mxu0 %v6533
  %6571 = vmatprep.subr.mxu0 0.0
  %6572 = vmatpush1.xpose.msra.mxu0 %v6536
  %6573 = vmatprep.subr.mxu0 0.0
  %6574 = vmatpush1.xpose.msra.mxu0 %v6539
  %6575 = vmatprep.subr.mxu0 0.0
  %6576 = vmatpush1.xpose.msra.mxu0 %v6542
  %6577 = vmatprep.subr.mxu0 0.0
  %6578 = vmatpush1.xpose.msra.mxu0 %v6545
  %6579 = vmatprep.subr.mxu0 0.0
  %6580 = vmatpush1.xpose.msra.mxu0 0.0
  %6581 = vmatprep.subr.mxu0 0.0
  %6582 = vmatpush1.xpose.msra.mxu0 0.0
  %6583 = vmatprep.subr.mxu0 0.0
  %6584 = vmatpush1.xpose.msra.mxu0 0.0
  %6585 = vmatprep.subr.mxu0 0.0
  %6586 = vmatpush1.xpose.msra.mxu0 0.0
  %6587 = vmatprep.subr.mxu0 0.0
  %6588 = vmatpush1.xpose.msra.mxu0 0.0
  %6589 = vmatprep.subr.mxu0 0.0
  %6590 = vmatpush1.xpose.msra.mxu0 0.0
  %6591 = vmatprep.subr.mxu0 0.0
  %6592 = vmatpush1.xpose.msra.mxu0 0.0
  %6593 = vmatprep.subr.mxu0 0.0
  %6594 = vmatpush1.xpose.msra.mxu0 0.0
  %6595 = vmatprep.subr.mxu0 0.0
  %6596 = vmatpush1.xpose.msra.mxu0 0.0
  %6597 = vmatprep.subr.mxu0 0.0
  %6598 = vmatpush1.xpose.msra.mxu0 0.0
  %6599 = vmatprep.subr.mxu0 0.0
  %6600 = vmatpush1.xpose.msra.mxu0 0.0
  %6601 = vmatprep.subr.mxu0 0.0
  %6602 = vmatpush1.xpose.msra.mxu0 0.0
  %6603 = vmatprep.subr.mxu0 0.0
  %6604 = vmatpush1.xpose.msra.mxu0 0.0
  %6605 = vmatprep.subr.mxu0 0.0
  %6606 = vmatpush1.xpose.msra.mxu0 0.0
  %6607 = vmatprep.subr.mxu0 0.0
  %6608 = vmatpush1.xpose.msra.mxu0 0.0
  %6609 = vmatprep.subr.mxu0 0.0
  %6610 = vmatpush1.xpose.msra.mxu0 0.0
  %6611 = vmatprep.mubr.f32.mxu0 0.0
  %6612 = vmatmul.mubr.f32.gmra.mrb[0].mxu0 %v6494
  %v6613 = vpop.f32.mrb[0].mxu0
  %v6614 = vadd.f32 %v6491, %v6613
  %v6615 = vpop.f32.mrb[0].mxu0
  %6616 = vmatprep.mubr.f32.mxu0 0.0
  %6617 = vmatmul.mubr.f32.gmra.mrb[0].mxu0 %v6497
  %v6618 = vpop.f32.mrb[0].mxu0
  %v6619 = vadd.f32 %v6492, %v6618
  %v6620 = vpop.f32.mrb[0].mxu0
  %6621 = vdwg.mxu0
  %6622 = vmax.xlane.f32.xlu0 %v6614
  %v6623 = vpop.xlane.xlu0 %6622
  %6624 = vmax.xlane.f32.xlu0 %v6619
  %v6625 = vpop.xlane.xlu0 %6624
  %v6626 = vsub.f32 %v6614, %v6623
  %v6627 = vsub.f32 %v6619, %v6625
  %v6628 = vmul.f32 %v6626, 1.442695
  %v6629 = vpow.pop %v6628
  %v6630 = vmul.f32 %v6627, 1.442695
  %v6631 = vpow.pop %v6630
  %6632 = vadd.xlane.f32.xlu0 %v6629
  %v6633 = vpop.xlane.xlu0 %6632
  %6634 = vadd.xlane.f32.xlu0 %v6631
  %v6635 = vpop.xlane.xlu0 %6634
  %v6636 = vrcp.pop %v6633
  %v6637 = vrcp.pop %v6635
  %v6638 = vmul.f32 %v6629, %v6636
  %v6639 = vmul.f32 %v6631, %v6637
  %v6640 = vld [vmem:[#allocation2] sm:$0xff]
  %v6641 = vld [vmem:[#allocation2 + $0x8] sm:$0xff]
  %v6642 = vld [vmem:[#allocation2 + $0x10] sm:$0xff]
  %v6643 = vld [vmem:[#allocation2 + $0x18] sm:$0xff]
  %v6644 = vld [vmem:[#allocation2 + $0x20] sm:$0xff]
  %v6645 = vld [vmem:[#allocation2 + $0x28] sm:$0xff]
  %v6646 = vld [vmem:[#allocation2 + $0x30] sm:$0xff]
  %v6647 = vld [vmem:[#allocation2 + $0x38] sm:$0xff]
  %v6648 = vld [vmem:[#allocation2 + $0x40] sm:$0xff]
  %v6649 = vld [vmem:[#allocation2 + $0x48] sm:$0xff]
  %v6650 = vld [vmem:[#allocation2 + $0x50] sm:$0xff]
  %v6651 = vld [vmem:[#allocation2 + $0x58] sm:$0xff]
  %v6652 = vld [vmem:[#allocation2 + $0x60] sm:$0xff]
  %v6653 = vld [vmem:[#allocation2 + $0x68] sm:$0xff]
  %v6654 = vld [vmem:[#allocation2 + $0x70] sm:$0xff]
  %v6655 = vld [vmem:[#allocation2 + $0x78] sm:$0xff]
  %6656 = vmatprep.subr.mxu0 0.0
  %6657 = vmatpush1.msra.mxu0 %v6640
  %6658 = vmatprep.subr.mxu0 0.0
  %6659 = vmatpush1.msra.mxu0 %v6641
  %6660 = vmatprep.subr.mxu0 0.0
  %6661 = vmatpush1.msra.mxu0 %v6642
  %6662 = vmatprep.subr.mxu0 0.0
  %6663 = vmatpush1.msra.mxu0 %v6643
  %6664 = vmatprep.subr.mxu0 0.0
  %6665 = vmatpush1.msra.mxu0 %v6644
  %6666 = vmatprep.subr.mxu0 0.0
  %6667 = vmatpush1.msra.mxu0 %v6645
  %6668 = vmatprep.subr.mxu0 0.0
  %6669 = vmatpush1.msra.mxu0 %v6646
  %6670 = vmatprep.subr.mxu0 0.0
  %6671 = vmatpush1.msra.mxu0 %v6647
  %6672 = vmatprep.subr.mxu0 0.0
  %6673 = vmatpush1.msra.mxu0 %v6648
  %6674 = vmatprep.subr.mxu0 0.0
  %6675 = vmatpush1.msra.mxu0 %v6649
  %6676 = vmatprep.subr.mxu0 0.0
  %6677 = vmatpush1.msra.mxu0 %v6650
  %6678 = vmatprep.subr.mxu0 0.0
  %6679 = vmatpush1.msra.mxu0 %v6651
  %6680 = vmatprep.subr.mxu0 0.0
  %6681 = vmatpush1.msra.mxu0 %v6652
  %6682 = vmatprep.subr.mxu0 0.0
  %6683 = vmatpush1.msra.mxu0 %v6653
  %6684 = vmatprep.subr.mxu0 0.0
  %6685 = vmatpush1.msra.mxu0 %v6654
  %6686 = vmatprep.subr.mxu0 0.0
  %6687 = vmatpush1.msra.mxu0 %v6655
  %6688 = vmatprep.subr.mxu0 0.0
  %6689 = vmatpush1.msra.mxu0 0.0
  %6690 = vmatprep.subr.mxu0 0.0
  %6691 = vmatpush1.msra.mxu0 0.0
  %6692 = vmatprep.subr.mxu0 0.0
  %6693 = vmatpush1.msra.mxu0 0.0
  %6694 = vmatprep.subr.mxu0 0.0
  %6695 = vmatpush1.msra.mxu0 0.0
  %6696 = vmatprep.subr.mxu0 0.0
  %6697 = vmatpush1.msra.mxu0 0.0
  %6698 = vmatprep.subr.mxu0 0.0
  %6699 = vmatpush1.msra.mxu0 0.0
  %6700 = vmatprep.subr.mxu0 0.0
  %6701 = vmatpush1.msra.mxu0 0.0
  %6702 = vmatprep.subr.mxu0 0.0
  %6703 = vmatpush1.msra.mxu0 0.0
  %6704 = vmatprep.subr.mxu0 0.0
  %6705 = vmatpush1.msra.mxu0 0.0
  %6706 = vmatprep.subr.mxu0 0.0
  %6707 = vmatpush1.msra.mxu0 0.0
  %6708 = vmatprep.subr.mxu0 0.0
  %6709 = vmatpush1.msra.mxu0 0.0
  %6710 = vmatprep.subr.mxu0 0.0
  %6711 = vmatpush1.msra.mxu0 0.0
  %6712 = vmatprep.subr.mxu0 0.0
  %6713 = vmatpush1.msra.mxu0 0.0
  %6714 = vmatprep.subr.mxu0 0.0
  %6715 = vmatpush1.msra.mxu0 0.0
  %6716 = vmatprep.subr.mxu0 0.0
  %6717 = vmatpush1.msra.mxu0 0.0
  %6718 = vmatprep.subr.mxu0 0.0
  %6719 = vmatpush1.msra.mxu0 0.0
  %6720 = vmatprep.mubr.f32.mxu0 0.0
  %6721 = vmatmul.mubr.f32.gmra.mrb[0].mxu0 %v6638
  %v6722 = vpop.f32.mrb[0].mxu0
  %v6723 = vadd.f32 0.0, %v6722
  %v6724 = vpop.f32.mrb[0].mxu0
  %6725 = vmatprep.mubr.f32.mxu0 0.0
  %6726 = vmatmul.mubr.f32.gmra.mrb[0].mxu0 %v6639
  %v6727 = vpop.f32.mrb[0].mxu0
  %v6728 = vadd.f32 0.0, %v6727
  %v6729 = vpop.f32.mrb[0].mxu0
  %6730 = vdwg.mxu0
  %6733 = vrot.lane.b32.xlu0 %v6723, 32
  %v6734 = vpop.permute.xlu0 %6733
  %6735 = vrot.lane.b32.xlu0 %v6728, 32
  %v6736 = vpop.permute.xlu0 %6735
  %v6739 = vsel %vm98, %v6473, %v6734
  %v6740 = vsel %vm98, %v6474, %v6736
  %v6741 = vld [vmem:[%s14] sm:$0xff]
  %v6742 = vld [vmem:[%s14 + $0x8] sm:$0xff]
  %v6743 = vld [vmem:[%s14 + $0x10] sm:$0xff]
  %v6744 = vld [vmem:[%s14 + $0x18] sm:$0xff]
  %v6745 = vld [vmem:[%s14 + $0x20] sm:$0xff]
  %v6746 = vld [vmem:[%s14 + $0x28] sm:$0xff]
  %v6747 = vld [vmem:[%s14 + $0x30] sm:$0xff]
  %v6748 = vld [vmem:[%s14 + $0x38] sm:$0xff]
  %v6750 = vsel %vm3644, %v6739, 0
  %v6753 = vsel %vm3644, %v6740, 0
  %6755 = vmatprep.subr.mxu0 0.0
  %6756 = vmatpush1.msra.mxu0 %v6741
  %6757 = vmatprep.subr.mxu0 0.0
  %6758 = vmatpush1.msra.mxu0 %v6742
  %6759 = vmatprep.subr.mxu0 0.0
  %6760 = vmatpush1.msra.mxu0 %v6743
  %6761 = vmatprep.subr.mxu0 0.0
  %6762 = vmatpush1.msra.mxu0 %v6744
  %6763 = vmatprep.subr.mxu0 0.0
  %6764 = vmatpush1.msra.mxu0 %v6745
  %6765 = vmatprep.subr.mxu0 0.0
  %6766 = vmatpush1.msra.mxu0 %v6746
  %6767 = vmatprep.subr.mxu0 0.0
  %6768 = vmatpush1.msra.mxu0 %v6747
  %6769 = vmatprep.subr.mxu0 0.0
  %6770 = vmatpush1.msra.mxu0 %v6748
  %6771 = vmatprep.subr.mxu0 0.0
  %6772 = vmatpush1.msra.mxu0 0.0
  %6773 = vmatprep.subr.mxu0 0.0
  %6774 = vmatpush1.msra.mxu0 0.0
  %6775 = vmatprep.subr.mxu0 0.0
  %6776 = vmatpush1.msra.mxu0 0.0
  %6777 = vmatprep.subr.mxu0 0.0
  %6778 = vmatpush1.msra.mxu0 0.0
  %6779 = vmatprep.subr.mxu0 0.0
  %6780 = vmatpush1.msra.mxu0 0.0
  %6781 = vmatprep.subr.mxu0 0.0
  %6782 = vmatpush1.msra.mxu0 0.0
  %6783 = vmatprep.subr.mxu0 0.0
  %6784 = vmatpush1.msra.mxu0 0.0
  %6785 = vmatprep.subr.mxu0 0.0
  %6786 = vmatpush1.msra.mxu0 0.0
  %6787 = vmatprep.subr.mxu0 0.0
  %6788 = vmatpush1.msra.mxu0 0.0
  %6789 = vmatprep.subr.mxu0 0.0
  %6790 = vmatpush1.msra.mxu0 0.0
  %6791 = vmatprep.subr.mxu0 0.0
  %6792 = vmatpush1.msra.mxu0 0.0
  %6793 = vmatprep.subr.mxu0 0.0
  %6794 = vmatpush1.msra.mxu0 0.0
  %6795 = vmatprep.subr.mxu0 0.0
  %6796 = vmatpush1.msra.mxu0 0.0
  %6797 = vmatprep.subr.mxu0 0.0
  %6798 = vmatpush1.msra.mxu0 0.0
  %6799 = vmatprep.subr.mxu0 0.0
  %6800 = vmatpush1.msra.mxu0 0.0
  %6801 = vmatprep.subr.mxu0 0.0
  %6802 = vmatpush1.msra.mxu0 0.0
  %6803 = vmatprep.subr.mxu0 0.0
  %6804 = vmatpush1.msra.mxu0 0.0
  %6805 = vmatprep.subr.mxu0 0.0
  %6806 = vmatpush1.msra.mxu0 0.0
  %6807 = vmatprep.subr.mxu0 0.0
  %6808 = vmatpush1.msra.mxu0 0.0
  %6809 = vmatprep.subr.mxu0 0.0
  %6810 = vmatpush1.msra.mxu0 0.0
  %6811 = vmatprep.subr.mxu0 0.0
  %6812 = vmatpush1.msra.mxu0 0.0
  %6813 = vmatprep.subr.mxu0 0.0
  %6814 = vmatpush1.msra.mxu0 0.0
  %6815 = vmatprep.subr.mxu0 0.0
  %6816 = vmatpush1.msra.mxu0 0.0
  %6817 = vmatprep.subr.mxu0 0.0
  %6818 = vmatpush1.msra.mxu0 0.0
  %6819 = vmatprep.mubr.f32.mxu0 0.0
  %6820 = vmatmul.mubr.f32.gmra.mrb[0].mxu0 %v6750
  %v6821 = vpop.f32.mrb[0].mxu0
  %v6822 = vadd.f32 %v2980, %v6821
  %v6823 = vpop.f32.mrb[0].mxu0
  %6824 = vmatprep.mubr.f32.mxu0 0.0
  %6825 = vmatmul.mubr.f32.gmra.mrb[0].mxu0 %v6753
  %v6826 = vpop.f32.mrb[0].mxu0
  %v6827 = vadd.f32 %v2980, %v6826
  %v6828 = vpop.f32.mrb[0].mxu0
  %6829 = vdwg.mxu0
  %v6830 = vsel %vm3726, %v6822, -inf
  %6831 = vmax.xlane.f32.xlu0 %v6830
  %v6832 = vpop.xlane.xlu0 %6831
  %v6833 = vsel %vm3726, %v6827, -inf
  %6834 = vmax.xlane.f32.xlu0 %v6833
  %v6835 = vpop.xlane.xlu0 %6834
  %v6836 = vsub.f32 %v6822, %v6832
  %v6837 = vsub.f32 %v6827, %v6835
  %v6838 = vmul.f32 %v6836, 1.442695
  %v6839 = vpow.pop %v6838
  %v6840 = vmul.f32 %v6837, 1.442695
  %v6841 = vpow.pop %v6840
  %v6842 = vsel %vm3726, %v6839, 0.0
  %6843 = vadd.xlane.f32.xlu0 %v6842
  %v6844 = vpop.xlane.xlu0 %6843
  %v6845 = vsel %vm3726, %v6841, 0.0
  %6846 = vadd.xlane.f32.xlu0 %v6845
  %v6847 = vpop.xlane.xlu0 %6846
  %v6848 = vlog2.pop %v6844
  %v6849 = vmul.f32 %v6848, 0.6931472
  %v6850 = vlog2.pop %v6847
  %v6851 = vmul.f32 %v6850, 0.6931472
  %v6852 = vadd.f32 %v6832, %v6849
  %v6853 = vadd.f32 %v6835, %v6851
  %v6854 = vsub.f32 %v6822, %v6852
  %v6855 = vsub.f32 %v6827, %v6853
  %6858 = vrot.lane.b32.xlu0 %v6854, 64
  %v6859 = vpop.permute.xlu0 %6858
  %6860 = vrot.lane.b32.xlu0 %v6855, 64
  %v6861 = vpop.permute.xlu0 %6860
  %vm6864 = vcmask 654848
  %6865 = vst.msk [vmem:[%s16] sm:$0xff] %vm6864, %v6859
  %6866 = vst.msk [vmem:[%s16 + $0x8] sm:$0xff] %vm6864, %v6861
  %v6867 = vld [vmem:[#allocation5 + $0xf0] sm:$0xff]
  %v6868 = vld [vmem:[#allocation5 + $0xf8] sm:$0xff]
  %v6869 = vld [vmem:[#allocation5 + $0x100] sm:$0xff]
  %v6870 = vld [vmem:[#allocation5 + $0x108] sm:$0xff]
  %v6871 = vld [vmem:[#allocation5 + $0x110] sm:$0xff]
  %v6872 = vld [vmem:[#allocation5 + $0x118] sm:$0xff]
  %v6873 = vld [vmem:[%s8] sm:$0xff]
  %v6874 = vld [vmem:[%s8 + $0x8] sm:$0xff]
  %v6875 = vld [vmem:[%s8 + $0x10] sm:$0xff]
  %v6876 = vld [vmem:[%s8 + $0x18] sm:$0xff]
  %v6877 = vld [vmem:[%s8 + $0x20] sm:$0xff]
  %v6878 = vld [vmem:[%s8 + $0x28] sm:$0xff]
  %v6879 = vld [vmem:[%s8 + $0x30] sm:$0xff]
  %v6880 = vld [vmem:[%s8 + $0x38] sm:$0xff]
  %v6881 = vld [vmem:[%s8 + $0x40] sm:$0xff]
  %v6882 = vld [vmem:[%s8 + $0x48] sm:$0xff]
  %v6883 = vld [vmem:[%s8 + $0x50] sm:$0xff]
  %v6884 = vld [vmem:[%s8 + $0x58] sm:$0xff]
  %v6885 = vsel %vm98, %v6723, 0
  %v6887 = vsel %vm98, %v6728, 0
  %6889 = vmatprep.subr.mxu0 %v6874
  %6890 = vmatpush1.msra.mxu0 %v6873
  %6891 = vmatprep.subr.mxu0 %v6877
  %6892 = vmatpush1.msra.mxu0 %v6876
  %6893 = vmatprep.subr.mxu0 %v6880
  %6894 = vmatpush1.msra.mxu0 %v6879
  %6895 = vmatprep.subr.mxu0 %v6883
  %6896 = vmatpush1.msra.mxu0 %v6882
  %6897 = vmatprep.subr.mxu0 0.0
  %6898 = vmatpush1.msra.mxu0 0.0
  %6899 = vmatprep.subr.mxu0 0.0
  %6900 = vmatpush1.msra.mxu0 0.0
  %6901 = vmatprep.subr.mxu0 0.0
  %6902 = vmatpush1.msra.mxu0 0.0
  %6903 = vmatprep.subr.mxu0 0.0
  %6904 = vmatpush1.msra.mxu0 0.0
  %6905 = vmatprep.subr.mxu0 0.0
  %6906 = vmatpush1.msra.mxu0 0.0
  %6907 = vmatprep.subr.mxu0 0.0
  %6908 = vmatpush1.msra.mxu0 0.0
  %6909 = vmatprep.subr.mxu0 0.0
  %6910 = vmatpush1.msra.mxu0 0.0
  %6911 = vmatprep.subr.mxu0 0.0
  %6912 = vmatpush1.msra.mxu0 0.0
  %6913 = vmatprep.subr.mxu0 0.0
  %6914 = vmatpush1.msra.mxu0 0.0
  %6915 = vmatprep.subr.mxu0 0.0
  %6916 = vmatpush1.msra.mxu0 0.0
  %6917 = vmatprep.subr.mxu0 0.0
  %6918 = vmatpush1.msra.mxu0 0.0
  %6919 = vmatprep.subr.mxu0 0.0
  %6920 = vmatpush1.msra.mxu0 0.0
  %6921 = vmatprep.subr.mxu0 0.0
  %6922 = vmatpush1.msra.mxu0 0.0
  %6923 = vmatprep.subr.mxu0 0.0
  %6924 = vmatpush1.msra.mxu0 0.0
  %6925 = vmatprep.subr.mxu0 0.0
  %6926 = vmatpush1.msra.mxu0 0.0
  %6927 = vmatprep.subr.mxu0 0.0
  %6928 = vmatpush1.msra.mxu0 0.0
  %6929 = vmatprep.subr.mxu0 0.0
  %6930 = vmatpush1.msra.mxu0 0.0
  %6931 = vmatprep.subr.mxu0 0.0
  %6932 = vmatpush1.msra.mxu0 0.0
  %6933 = vmatprep.subr.mxu0 0.0
  %6934 = vmatpush1.msra.mxu0 0.0
  %6935 = vmatprep.subr.mxu0 0.0
  %6936 = vmatpush1.msra.mxu0 0.0
  %6937 = vmatprep.subr.mxu0 0.0
  %6938 = vmatpush1.msra.mxu0 0.0
  %6939 = vmatprep.subr.mxu0 0.0
  %6940 = vmatpush1.msra.mxu0 0.0
  %6941 = vmatprep.subr.mxu0 0.0
  %6942 = vmatpush1.msra.mxu0 0.0
  %6943 = vmatprep.subr.mxu0 0.0
  %6944 = vmatpush1.msra.mxu0 0.0
  %6945 = vmatprep.subr.mxu0 0.0
  %6946 = vmatpush1.msra.mxu0 0.0
  %6947 = vmatprep.subr.mxu0 0.0
  %6948 = vmatpush1.msra.mxu0 0.0
  %6949 = vmatprep.subr.mxu0 0.0
  %6950 = vmatpush1.msra.mxu0 0.0
  %6951 = vmatprep.subr.mxu0 0.0
  %6952 = vmatpush1.msra.mxu0 0.0
  %6953 = vmatprep.mubr.f32.mxu0 0.0
  %6954 = vmatmul.mubr.f32.gmra.mrb[0].mxu0 %v6885
  %v6955 = vpop.f32.mrb[0].mxu0
  %v6956 = vadd.f32 0.0, %v6955
  %v6957 = vpop.f32.mrb[0].mxu0
  %v6958 = vadd.f32 0.0, %v6957
  %6959 = vmatprep.mubr.f32.mxu0 0.0
  %6960 = vmatmul.mubr.f32.gmra.mrb[0].mxu0 %v6887
  %v6961 = vpop.f32.mrb[0].mxu0
  %v6962 = vadd.f32 0.0, %v6961
  %v6963 = vpop.f32.mrb[0].mxu0
  %v6964 = vadd.f32 0.0, %v6963
  %6965 = vdwg.mxu0
  %6966 = vmatprep.subr.mxu0 0.0
  %6967 = vmatpush1.msra.mxu0 %v6875
  %6968 = vmatprep.subr.mxu0 0.0
  %6969 = vmatpush1.msra.mxu0 %v6878
  %6970 = vmatprep.subr.mxu0 0.0
  %6971 = vmatpush1.msra.mxu0 %v6881
  %6972 = vmatprep.subr.mxu0 0.0
  %6973 = vmatpush1.msra.mxu0 %v6884
  %6974 = vmatprep.subr.mxu0 0.0
  %6975 = vmatpush1.msra.mxu0 0.0
  %6976 = vmatprep.subr.mxu0 0.0
  %6977 = vmatpush1.msra.mxu0 0.0
  %6978 = vmatprep.subr.mxu0 0.0
  %6979 = vmatpush1.msra.mxu0 0.0
  %6980 = vmatprep.subr.mxu0 0.0
  %6981 = vmatpush1.msra.mxu0 0.0
  %6982 = vmatprep.subr.mxu0 0.0
  %6983 = vmatpush1.msra.mxu0 0.0
  %6984 = vmatprep.subr.mxu0 0.0
  %6985 = vmatpush1.msra.mxu0 0.0
  %6986 = vmatprep.subr.mxu0 0.0
  %6987 = vmatpush1.msra.mxu0 0.0
  %6988 = vmatprep.subr.mxu0 0.0
  %6989 = vmatpush1.msra.mxu0 0.0
  %6990 = vmatprep.subr.mxu0 0.0
  %6991 = vmatpush1.msra.mxu0 0.0
  %6992 = vmatprep.subr.mxu0 0.0
  %6993 = vmatpush1.msra.mxu0 0.0
  %6994 = vmatprep.subr.mxu0 0.0
  %6995 = vmatpush1.msra.mxu0 0.0
  %6996 = vmatprep.subr.mxu0 0.0
  %6997 = vmatpush1.msra.mxu0 0.0
  %6998 = vmatprep.subr.mxu0 0.0
  %6999 = vmatpush1.msra.mxu0 0.0
  %7000 = vmatprep.subr.mxu0 0.0
  %7001 = vmatpush1.msra.mxu0 0.0
  %7002 = vmatprep.subr.mxu0 0.0
  %7003 = vmatpush1.msra.mxu0 0.0
  %7004 = vmatprep.subr.mxu0 0.0
  %7005 = vmatpush1.msra.mxu0 0.0
  %7006 = vmatprep.subr.mxu0 0.0
  %7007 = vmatpush1.msra.mxu0 0.0
  %7008 = vmatprep.subr.mxu0 0.0
  %7009 = vmatpush1.msra.mxu0 0.0
  %7010 = vmatprep.subr.mxu0 0.0
  %7011 = vmatpush1.msra.mxu0 0.0
  %7012 = vmatprep.subr.mxu0 0.0
  %7013 = vmatpush1.msra.mxu0 0.0
  %7014 = vmatprep.subr.mxu0 0.0
  %7015 = vmatpush1.msra.mxu0 0.0
  %7016 = vmatprep.subr.mxu0 0.0
  %7017 = vmatpush1.msra.mxu0 0.0
  %7018 = vmatprep.subr.mxu0 0.0
  %7019 = vmatpush1.msra.mxu0 0.0
  %7020 = vmatprep.subr.mxu0 0.0
  %7021 = vmatpush1.msra.mxu0 0.0
  %7022 = vmatprep.subr.mxu0 0.0
  %7023 = vmatpush1.msra.mxu0 0.0
  %7024 = vmatprep.subr.mxu0 0.0
  %7025 = vmatpush1.msra.mxu0 0.0
  %7026 = vmatprep.subr.mxu0 0.0
  %7027 = vmatpush1.msra.mxu0 0.0
  %7028 = vmatprep.subr.mxu0 0.0
  %7029 = vmatpush1.msra.mxu0 0.0
  %7030 = vmatprep.mubr.f32.mxu0 0.0
  %7031 = vmatmul.mubr.f32.gmra.mrb[0].mxu0 %v6885
  %v7032 = vpop.f32.mrb[0].mxu0
  %v7033 = vadd.f32 0.0, %v7032
  %v7034 = vpop.f32.mrb[0].mxu0
  %7035 = vmatprep.mubr.f32.mxu0 0.0
  %7036 = vmatmul.mubr.f32.gmra.mrb[0].mxu0 %v6887
  %v7037 = vpop.f32.mrb[0].mxu0
  %v7038 = vadd.f32 0.0, %v7037
  %v7039 = vpop.f32.mrb[0].mxu0
  %7040 = vdwg.mxu0
  %v7041 = vadd.f32 %v6867, %v6956
  %v7042 = vadd.f32 %v6868, %v6958
  %v7043 = vadd.f32 %v6869, %v7033
  %v7044 = vadd.f32 %v6870, %v6962
  %v7045 = vadd.f32 %v6871, %v6964
  %v7046 = vadd.f32 %v6872, %v7038
  %v7047 = vld [vmem:[%s9] sm:$0xff]
  %v7048 = vld [vmem:[%s9 + $0x8] sm:$0xff]
  %v7049 = vld [vmem:[%s9 + $0x10] sm:$0xff]
  %v7050 = vld [vmem:[%s9 + $0x18] sm:$0xff]
  %v7051 = vld [vmem:[%s9 + $0x20] sm:$0xff]
  %v7052 = vld [vmem:[%s9 + $0x28] sm:$0xff]
  %v7053 = vld [vmem:[%s9 + $0x30] sm:$0xff]
  %v7054 = vld [vmem:[%s9 + $0x38] sm:$0xff]
  %v7055 = vld [vmem:[%s9 + $0x40] sm:$0xff]
  %v7056 = vld [vmem:[%s9 + $0x48] sm:$0xff]
  %v7057 = vld [vmem:[%s9 + $0x50] sm:$0xff]
  %v7058 = vld [vmem:[%s9 + $0x58] sm:$0xff]
  %7059 = vmatprep.subr.mxu0 %v7048
  %7060 = vmatpush1.msra.mxu0 %v7047
  %7061 = vmatprep.subr.mxu0 %v7051
  %7062 = vmatpush1.msra.mxu0 %v7050
  %7063 = vmatprep.subr.mxu0 %v7054
  %7064 = vmatpush1.msra.mxu0 %v7053
  %7065 = vmatprep.subr.mxu0 %v7057
  %7066 = vmatpush1.msra.mxu0 %v7056
  %7067 = vmatprep.subr.mxu0 0.0
  %7068 = vmatpush1.msra.mxu0 0.0
  %7069 = vmatprep.subr.mxu0 0.0
  %7070 = vmatpush1.msra.mxu0 0.0
  %7071 = vmatprep.subr.mxu0 0.0
  %7072 = vmatpush1.msra.mxu0 0.0
  %7073 = vmatprep.subr.mxu0 0.0
  %7074 = vmatpush1.msra.mxu0 0.0
  %7075 = vmatprep.subr.mxu0 0.0
  %7076 = vmatpush1.msra.mxu0 0.0
  %7077 = vmatprep.subr.mxu0 0.0
  %7078 = vmatpush1.msra.mxu0 0.0
  %7079 = vmatprep.subr.mxu0 0.0
  %7080 = vmatpush1.msra.mxu0 0.0
  %7081 = vmatprep.subr.mxu0 0.0
  %7082 = vmatpush1.msra.mxu0 0.0
  %7083 = vmatprep.subr.mxu0 0.0
  %7084 = vmatpush1.msra.mxu0 0.0
  %7085 = vmatprep.subr.mxu0 0.0
  %7086 = vmatpush1.msra.mxu0 0.0
  %7087 = vmatprep.subr.mxu0 0.0
  %7088 = vmatpush1.msra.mxu0 0.0
  %7089 = vmatprep.subr.mxu0 0.0
  %7090 = vmatpush1.msra.mxu0 0.0
  %7091 = vmatprep.subr.mxu0 0.0
  %7092 = vmatpush1.msra.mxu0 0.0
  %7093 = vmatprep.subr.mxu0 0.0
  %7094 = vmatpush1.msra.mxu0 0.0
  %7095 = vmatprep.subr.mxu0 0.0
  %7096 = vmatpush1.msra.mxu0 0.0
  %7097 = vmatprep.subr.mxu0 0.0
  %7098 = vmatpush1.msra.mxu0 0.0
  %7099 = vmatprep.subr.mxu0 0.0
  %7100 = vmatpush1.msra.mxu0 0.0
  %7101 = vmatprep.subr.mxu0 0.0
  %7102 = vmatpush1.msra.mxu0 0.0
  %7103 = vmatprep.subr.mxu0 0.0
  %7104 = vmatpush1.msra.mxu0 0.0
  %7105 = vmatprep.subr.mxu0 0.0
  %7106 = vmatpush1.msra.mxu0 0.0
  %7107 = vmatprep.subr.mxu0 0.0
  %7108 = vmatpush1.msra.mxu0 0.0
  %7109 = vmatprep.subr.mxu0 0.0
  %7110 = vmatpush1.msra.mxu0 0.0
  %7111 = vmatprep.subr.mxu0 0.0
  %7112 = vmatpush1.msra.mxu0 0.0
  %7113 = vmatprep.subr.mxu0 0.0
  %7114 = vmatpush1.msra.mxu0 0.0
  %7115 = vmatprep.subr.mxu0 0.0
  %7116 = vmatpush1.msra.mxu0 0.0
  %7117 = vmatprep.subr.mxu0 0.0
  %7118 = vmatpush1.msra.mxu0 0.0
  %7119 = vmatprep.subr.mxu0 0.0
  %7120 = vmatpush1.msra.mxu0 0.0
  %7121 = vmatprep.subr.mxu0 0.0
  %7122 = vmatpush1.msra.mxu0 0.0
  %7123 = vmatprep.mubr.f32.mxu0 0.0
  %7124 = vmatmul.mubr.f32.gmra.mrb[0].mxu0 %v6494
  %v7125 = vpop.f32.mrb[0].mxu0
  %v7126 = vadd.f32 %v2963, %v7125
  %v7127 = vpop.f32.mrb[0].mxu0
  %v7128 = vadd.f32 %v2967, %v7127
  %7129 = vmatprep.mubr.f32.mxu0 0.0
  %7130 = vmatmul.mubr.f32.gmra.mrb[0].mxu0 %v6497
  %v7131 = vpop.f32.mrb[0].mxu0
  %v7132 = vadd.f32 %v2963, %v7131
  %v7133 = vpop.f32.mrb[0].mxu0
  %v7134 = vadd.f32 %v2967, %v7133
  %7135 = vdwg.mxu0
  %7136 = vmatprep.subr.mxu0 0.0
  %7137 = vmatpush1.msra.mxu0 %v7049
  %7138 = vmatprep.subr.mxu0 0.0
  %7139 = vmatpush1.msra.mxu0 %v7052
  %7140 = vmatprep.subr.mxu0 0.0
  %7141 = vmatpush1.msra.mxu0 %v7055
  %7142 = vmatprep.subr.mxu0 0.0
  %7143 = vmatpush1.msra.mxu0 %v7058
  %7144 = vmatprep.subr.mxu0 0.0
  %7145 = vmatpush1.msra.mxu0 0.0
  %7146 = vmatprep.subr.mxu0 0.0
  %7147 = vmatpush1.msra.mxu0 0.0
  %7148 = vmatprep.subr.mxu0 0.0
  %7149 = vmatpush1.msra.mxu0 0.0
  %7150 = vmatprep.subr.mxu0 0.0
  %7151 = vmatpush1.msra.mxu0 0.0
  %7152 = vmatprep.subr.mxu0 0.0
  %7153 = vmatpush1.msra.mxu0 0.0
  %7154 = vmatprep.subr.mxu0 0.0
  %7155 = vmatpush1.msra.mxu0 0.0
  %7156 = vmatprep.subr.mxu0 0.0
  %7157 = vmatpush1.msra.mxu0 0.0
  %7158 = vmatprep.subr.mxu0 0.0
  %7159 = vmatpush1.msra.mxu0 0.0
  %7160 = vmatprep.subr.mxu0 0.0
  %7161 = vmatpush1.msra.mxu0 0.0
  %7162 = vmatprep.subr.mxu0 0.0
  %7163 = vmatpush1.msra.mxu0 0.0
  %7164 = vmatprep.subr.mxu0 0.0
  %7165 = vmatpush1.msra.mxu0 0.0
  %7166 = vmatprep.subr.mxu0 0.0
  %7167 = vmatpush1.msra.mxu0 0.0
  %7168 = vmatprep.subr.mxu0 0.0
  %7169 = vmatpush1.msra.mxu0 0.0
  %7170 = vmatprep.subr.mxu0 0.0
  %7171 = vmatpush1.msra.mxu0 0.0
  %7172 = vmatprep.subr.mxu0 0.0
  %7173 = vmatpush1.msra.mxu0 0.0
  %7174 = vmatprep.subr.mxu0 0.0
  %7175 = vmatpush1.msra.mxu0 0.0
  %7176 = vmatprep.subr.mxu0 0.0
  %7177 = vmatpush1.msra.mxu0 0.0
  %7178 = vmatprep.subr.mxu0 0.0
  %7179 = vmatpush1.msra.mxu0 0.0
  %7180 = vmatprep.subr.mxu0 0.0
  %7181 = vmatpush1.msra.mxu0 0.0
  %7182 = vmatprep.subr.mxu0 0.0
  %7183 = vmatpush1.msra.mxu0 0.0
  %7184 = vmatprep.subr.mxu0 0.0
  %7185 = vmatpush1.msra.mxu0 0.0
  %7186 = vmatprep.subr.mxu0 0.0
  %7187 = vmatpush1.msra.mxu0 0.0
  %7188 = vmatprep.subr.mxu0 0.0
  %7189 = vmatpush1.msra.mxu0 0.0
  %7190 = vmatprep.subr.mxu0 0.0
  %7191 = vmatpush1.msra.mxu0 0.0
  %7192 = vmatprep.subr.mxu0 0.0
  %7193 = vmatpush1.msra.mxu0 0.0
  %7194 = vmatprep.subr.mxu0 0.0
  %7195 = vmatpush1.msra.mxu0 0.0
  %7196 = vmatprep.subr.mxu0 0.0
  %7197 = vmatpush1.msra.mxu0 0.0
  %7198 = vmatprep.subr.mxu0 0.0
  %7199 = vmatpush1.msra.mxu0 0.0
  %7200 = vmatprep.mubr.f32.mxu0 0.0
  %7201 = vmatmul.mubr.f32.gmra.mrb[0].mxu0 %v6494
  %v7202 = vpop.f32.mrb[0].mxu0
  %v7203 = vadd.f32 %v2971, %v7202
  %v7204 = vpop.f32.mrb[0].mxu0
  %7205 = vmatprep.mubr.f32.mxu0 0.0
  %7206 = vmatmul.mubr.f32.gmra.mrb[0].mxu0 %v6497
  %v7207 = vpop.f32.mrb[0].mxu0
  %v7208 = vadd.f32 %v2971, %v7207
  %v7209 = vpop.f32.mrb[0].mxu0
  %7210 = vdwg.mxu0
  %v7211 = vadd.f32 %v7041, %v7126
  %v7212 = vadd.f32 %v7044, %v7132
  %v7213 = vxor.u32 %v7211, 2147483648
  %v7214 = vxor.u32 %v7212, 2147483648
  %v7215 = vmul.f32 %v7213, 1.442695
  %v7216 = vpow.pop %v7215
  %v7217 = vmul.f32 %v7214, 1.442695
  %v7218 = vpow.pop %v7217
  %v7219 = vadd.f32 %v7216, 1.0
  %v7220 = vadd.f32 %v7218, 1.0
  %v7221 = vrcp.pop %v7219
  %v7222 = vmul.f32 1.0, %v7221
  %v7223 = vrcp.pop %v7220
  %v7224 = vmul.f32 1.0, %v7223
  %v7225 = vadd.f32 %v7042, %v7128
  %v7226 = vadd.f32 %v7045, %v7134
  %v7227 = vxor.u32 %v7225, 2147483648
  %v7228 = vxor.u32 %v7226, 2147483648
  %v7229 = vmul.f32 %v7227, 1.442695
  %v7230 = vpow.pop %v7229
  %v7231 = vmul.f32 %v7228, 1.442695
  %v7232 = vpow.pop %v7231
  %v7233 = vadd.f32 %v7230, 1.0
  %v7234 = vadd.f32 %v7232, 1.0
  %v7235 = vrcp.pop %v7233
  %v7236 = vmul.f32 1.0, %v7235
  %v7237 = vrcp.pop %v7234
  %v7238 = vmul.f32 1.0, %v7237
  %v7239 = vmul.f32 %v7222, %v7203
  %v7240 = vmul.f32 %v7224, %v7208
  %v7241 = vadd.f32 %v7043, %v7239
  %v7242 = vadd.f32 %v7046, %v7240
  %v7243 = vtanh.pop %v7241
  %v7244 = vtanh.pop %v7242
  %v7245 = vsub.f32 1.0, %v7236
  %v7246 = vsub.f32 1.0, %v7238
  %v7247 = vmul.f32 %v7245, %v7243
  %v7248 = vmul.f32 %v7246, %v7244
  %v7249 = vmul.f32 %v7236, %v6473
  %v7250 = vmul.f32 %v7238, %v6474
  %v7251 = vadd.f32 %v7247, %v7249
  %v7252 = vadd.f32 %v7248, %v7250
  %v7253 = vld [vmem:[#allocation3] sm:$0xff]
  %v7254 = vld [vmem:[#allocation3 + $0x8] sm:$0xff]
  %v7255 = vld [vmem:[#allocation3 + $0x10] sm:$0xff]
  %v7256 = vld [vmem:[#allocation3 + $0x18] sm:$0xff]
  %v7257 = vld [vmem:[#allocation3 + $0x20] sm:$0xff]
  %v7258 = vld [vmem:[#allocation3 + $0x28] sm:$0xff]
  %v7259 = vld [vmem:[#allocation3 + $0x30] sm:$0xff]
  %v7260 = vld [vmem:[#allocation3 + $0x38] sm:$0xff]
  %v7261 = vld [vmem:[#allocation3 + $0x40] sm:$0xff]
  %v7262 = vld [vmem:[#allocation3 + $0x48] sm:$0xff]
  %v7263 = vld [vmem:[#allocation3 + $0x50] sm:$0xff]
  %v7264 = vld [vmem:[#allocation3 + $0x58] sm:$0xff]
  %v7265 = vld [vmem:[#allocation3 + $0x60] sm:$0xff]
  %v7266 = vld [vmem:[#allocation3 + $0x68] sm:$0xff]
  %v7267 = vld [vmem:[#allocation3 + $0x70] sm:$0xff]
  %v7268 = vld [vmem:[#allocation3 + $0x78] sm:$0xff]
  %v7269 = vld [vmem:[%s2] sm:$0xff]
  %v7270 = vld [vmem:[%s2 + $0x8] sm:$0xff]
  %v7272 = vsel %vm98, %v7251, 0
  %v7275 = vsel %vm98, %v7252, 0
  %v7278 = vsel %vm98, %v7253, 0
  %v7281 = vsel %vm98, %v7254, 0
  %v7284 = vsel %vm98, %v7255, 0
  %v7287 = vsel %vm98, %v7256, 0
  %v7290 = vsel %vm98, %v7257, 0
  %v7293 = vsel %vm98, %v7258, 0
  %v7296 = vsel %vm98, %v7259, 0
  %v7299 = vsel %vm98, %v7260, 0
  %v7302 = vsel %vm98, %v7261, 0
  %v7305 = vsel %vm98, %v7262, 0
  %v7308 = vsel %vm98, %v7263, 0
  %v7311 = vsel %vm98, %v7264, 0
  %v7314 = vsel %vm98, %v7265, 0
  %v7317 = vsel %vm98, %v7266, 0
  %v7320 = vsel %vm98, %v7267, 0
  %v7323 = vsel %vm98, %v7268, 0
  %7325 = vmatprep.subr.mxu0 0.0
  %7326 = vmatpush1.xpose.msra.mxu0 %v7278
  %7327 = vmatprep.subr.mxu0 0.0
  %7328 = vmatpush1.xpose.msra.mxu0 %v7281
  %7329 = vmatprep.subr.mxu0 0.0
  %7330 = vmatpush1.xpose.msra.mxu0 %v7284
  %7331 = vmatprep.subr.mxu0 0.0
  %7332 = vmatpush1.xpose.msra.mxu0 %v7287
  %7333 = vmatprep.subr.mxu0 0.0
  %7334 = vmatpush1.xpose.msra.mxu0 %v7290
  %7335 = vmatprep.subr.mxu0 0.0
  %7336 = vmatpush1.xpose.msra.mxu0 %v7293
  %7337 = vmatprep.subr.mxu0 0.0
  %7338 = vmatpush1.xpose.msra.mxu0 %v7296
  %7339 = vmatprep.subr.mxu0 0.0
  %7340 = vmatpush1.xpose.msra.mxu0 %v7299
  %7341 = vmatprep.subr.mxu0 0.0
  %7342 = vmatpush1.xpose.msra.mxu0 %v7302
  %7343 = vmatprep.subr.mxu0 0.0
  %7344 = vmatpush1.xpose.msra.mxu0 %v7305
  %7345 = vmatprep.subr.mxu0 0.0
  %7346 = vmatpush1.xpose.msra.mxu0 %v7308
  %7347 = vmatprep.subr.mxu0 0.0
  %7348 = vmatpush1.xpose.msra.mxu0 %v7311
  %7349 = vmatprep.subr.mxu0 0.0
  %7350 = vmatpush1.xpose.msra.mxu0 %v7314
  %7351 = vmatprep.subr.mxu0 0.0
  %7352 = vmatpush1.xpose.msra.mxu0 %v7317
  %7353 = vmatprep.subr.mxu0 0.0
  %7354 = vmatpush1.xpose.msra.mxu0 %v7320
  %7355 = vmatprep.subr.mxu0 0.0
  %7356 = vmatpush1.xpose.msra.mxu0 %v7323
  %7357 = vmatprep.subr.mxu0 0.0
  %7358 = vmatpush1.xpose.msra.mxu0 0.0
  %7359 = vmatprep.subr.mxu0 0.0
  %7360 = vmatpush1.xpose.msra.mxu0 0.0
  %7361 = vmatprep.subr.mxu0 0.0
  %7362 = vmatpush1.xpose.msra.mxu0 0.0
  %7363 = vmatprep.subr.mxu0 0.0
  %7364 = vmatpush1.xpose.msra.mxu0 0.0
  %7365 = vmatprep.subr.mxu0 0.0
  %7366 = vmatpush1.xpose.msra.mxu0 0.0
  %7367 = vmatprep.subr.mxu0 0.0
  %7368 = vmatpush1.xpose.msra.mxu0 0.0
  %7369 = vmatprep.subr.mxu0 0.0
  %7370 = vmatpush1.xpose.msra.mxu0 0.0
  %7371 = vmatprep.subr.mxu0 0.0
  %7372 = vmatpush1.xpose.msra.mxu0 0.0
  %7373 = vmatprep.subr.mxu0 0.0
  %7374 = vmatpush1.xpose.msra.mxu0 0.0
  %7375 = vmatprep.subr.mxu0 0.0
  %7376 = vmatpush1.xpose.msra.mxu0 0.0
  %7377 = vmatprep.subr.mxu0 0.0
  %7378 = vmatpush1.xpose.msra.mxu0 0.0
  %7379 = vmatprep.subr.mxu0 0.0
  %7380 = vmatpush1.xpose.msra.mxu0 0.0
  %7381 = vmatprep.subr.mxu0 0.0
  %7382 = vmatpush1.xpose.msra.mxu0 0.0
  %7383 = vmatprep.subr.mxu0 0.0
  %7384 = vmatpush1.xpose.msra.mxu0 0.0
  %7385 = vmatprep.subr.mxu0 0.0
  %7386 = vmatpush1.xpose.msra.mxu0 0.0
  %7387 = vmatprep.subr.mxu0 0.0
  %7388 = vmatpush1.xpose.msra.mxu0 0.0
  %7389 = vmatprep.mubr.f32.mxu0 0.0
  %7390 = vmatmul.mubr.f32.gmra.mrb[0].mxu0 %v7272
  %v7391 = vpop.f32.mrb[0].mxu0
  %v7392 = vadd.f32 %v7269, %v7391
  %v7393 = vpop.f32.mrb[0].mxu0
  %7394 = vmatprep.mubr.f32.mxu0 0.0
  %7395 = vmatmul.mubr.f32.gmra.mrb[0].mxu0 %v7275
  %v7396 = vpop.f32.mrb[0].mxu0
  %v7397 = vadd.f32 %v7270, %v7396
  %v7398 = vpop.f32.mrb[0].mxu0
  %7399 = vdwg.mxu0
  %7400 = vmax.xlane.f32.xlu0 %v7392
  %v7401 = vpop.xlane.xlu0 %7400
  %7402 = vmax.xlane.f32.xlu0 %v7397
  %v7403 = vpop.xlane.xlu0 %7402
  %v7404 = vsub.f32 %v7392, %v7401
  %v7405 = vsub.f32 %v7397, %v7403
  %v7406 = vmul.f32 %v7404, 1.442695
  %v7407 = vpow.pop %v7406
  %v7408 = vmul.f32 %v7405, 1.442695
  %v7409 = vpow.pop %v7408
  %7410 = vadd.xlane.f32.xlu0 %v7407
  %v7411 = vpop.xlane.xlu0 %7410
  %7412 = vadd.xlane.f32.xlu0 %v7409
  %v7413 = vpop.xlane.xlu0 %7412
  %v7414 = vrcp.pop %v7411
  %v7415 = vrcp.pop %v7413
  %v7416 = vmul.f32 %v7407, %v7414
  %v7417 = vmul.f32 %v7409, %v7415
  %v7418 = vld [vmem:[#allocation2] sm:$0xff]
  %v7419 = vld [vmem:[#allocation2 + $0x8] sm:$0xff]
  %v7420 = vld [vmem:[#allocation2 + $0x10] sm:$0xff]
  %v7421 = vld [vmem:[#allocation2 + $0x18] sm:$0xff]
  %v7422 = vld [vmem:[#allocation2 + $0x20] sm:$0xff]
  %v7423 = vld [vmem:[#allocation2 + $0x28] sm:$0xff]
  %v7424 = vld [vmem:[#allocation2 + $0x30] sm:$0xff]
  %v7425 = vld [vmem:[#allocation2 + $0x38] sm:$0xff]
  %v7426 = vld [vmem:[#allocation2 + $0x40] sm:$0xff]
  %v7427 = vld [vmem:[#allocation2 + $0x48] sm:$0xff]
  %v7428 = vld [vmem:[#allocation2 + $0x50] sm:$0xff]
  %v7429 = vld [vmem:[#allocation2 + $0x58] sm:$0xff]
  %v7430 = vld [vmem:[#allocation2 + $0x60] sm:$0xff]
  %v7431 = vld [vmem:[#allocation2 + $0x68] sm:$0xff]
  %v7432 = vld [vmem:[#allocation2 + $0x70] sm:$0xff]
  %v7433 = vld [vmem:[#allocation2 + $0x78] sm:$0xff]
  %7434 = vmatprep.subr.mxu0 0.0
  %7435 = vmatpush1.msra.mxu0 %v7418
  %7436 = vmatprep.subr.mxu0 0.0
  %7437 = vmatpush1.msra.mxu0 %v7419
  %7438 = vmatprep.subr.mxu0 0.0
  %7439 = vmatpush1.msra.mxu0 %v7420
  %7440 = vmatprep.subr.mxu0 0.0
  %7441 = vmatpush1.msra.mxu0 %v7421
  %7442 = vmatprep.subr.mxu0 0.0
  %7443 = vmatpush1.msra.mxu0 %v7422
  %7444 = vmatprep.subr.mxu0 0.0
  %7445 = vmatpush1.msra.mxu0 %v7423
  %7446 = vmatprep.subr.mxu0 0.0
  %7447 = vmatpush1.msra.mxu0 %v7424
  %7448 = vmatprep.subr.mxu0 0.0
  %7449 = vmatpush1.msra.mxu0 %v7425
  %7450 = vmatprep.subr.mxu0 0.0
  %7451 = vmatpush1.msra.mxu0 %v7426
  %7452 = vmatprep.subr.mxu0 0.0
  %7453 = vmatpush1.msra.mxu0 %v7427
  %7454 = vmatprep.subr.mxu0 0.0
  %7455 = vmatpush1.msra.mxu0 %v7428
  %7456 = vmatprep.subr.mxu0 0.0
  %7457 = vmatpush1.msra.mxu0 %v7429
  %7458 = vmatprep.subr.mxu0 0.0
  %7459 = vmatpush1.msra.mxu0 %v7430
  %7460 = vmatprep.subr.mxu0 0.0
  %7461 = vmatpush1.msra.mxu0 %v7431
  %7462 = vmatprep.subr.mxu0 0.0
  %7463 = vmatpush1.msra.mxu0 %v7432
  %7464 = vmatprep.subr.mxu0 0.0
  %7465 = vmatpush1.msra.mxu0 %v7433
  %7466 = vmatprep.subr.mxu0 0.0
  %7467 = vmatpush1.msra.mxu0 0.0
  %7468 = vmatprep.subr.mxu0 0.0
  %7469 = vmatpush1.msra.mxu0 0.0
  %7470 = vmatprep.subr.mxu0 0.0
  %7471 = vmatpush1.msra.mxu0 0.0
  %7472 = vmatprep.subr.mxu0 0.0
  %7473 = vmatpush1.msra.mxu0 0.0
  %7474 = vmatprep.subr.mxu0 0.0
  %7475 = vmatpush1.msra.mxu0 0.0
  %7476 = vmatprep.subr.mxu0 0.0
  %7477 = vmatpush1.msra.mxu0 0.0
  %7478 = vmatprep.subr.mxu0 0.0
  %7479 = vmatpush1.msra.mxu0 0.0
  %7480 = vmatprep.subr.mxu0 0.0
  %7481 = vmatpush1.msra.mxu0 0.0
  %7482 = vmatprep.subr.mxu0 0.0
  %7483 = vmatpush1.msra.mxu0 0.0
  %7484 = vmatprep.subr.mxu0 0.0
  %7485 = vmatpush1.msra.mxu0 0.0
  %7486 = vmatprep.subr.mxu0 0.0
  %7487 = vmatpush1.msra.mxu0 0.0
  %7488 = vmatprep.subr.mxu0 0.0
  %7489 = vmatpush1.msra.mxu0 0.0
  %7490 = vmatprep.subr.mxu0 0.0
  %7491 = vmatpush1.msra.mxu0 0.0
  %7492 = vmatprep.subr.mxu0 0.0
  %7493 = vmatpush1.msra.mxu0 0.0
  %7494 = vmatprep.subr.mxu0 0.0
  %7495 = vmatpush1.msra.mxu0 0.0
  %7496 = vmatprep.subr.mxu0 0.0
  %7497 = vmatpush1.msra.mxu0 0.0
  %7498 = vmatprep.mubr.f32.mxu0 0.0
  %7499 = vmatmul.mubr.f32.gmra.mrb[0].mxu0 %v7416
  %v7500 = vpop.f32.mrb[0].mxu0
  %v7501 = vadd.f32 0.0, %v7500
  %v7502 = vpop.f32.mrb[0].mxu0
  %7503 = vmatprep.mubr.f32.mxu0 0.0
  %7504 = vmatmul.mubr.f32.gmra.mrb[0].mxu0 %v7417
  %v7505 = vpop.f32.mrb[0].mxu0
  %v7506 = vadd.f32 0.0, %v7505
  %v7507 = vpop.f32.mrb[0].mxu0
  %7508 = vdwg.mxu0
  %7511 = vrot.lane.b32.xlu0 %v7501, 32
  %v7512 = vpop.permute.xlu0 %7511
  %7513 = vrot.lane.b32.xlu0 %v7506, 32
  %v7514 = vpop.permute.xlu0 %7513
  %v7517 = vsel %vm98, %v7251, %v7512
  %v7518 = vsel %vm98, %v7252, %v7514
  %v7519 = vld [vmem:[%s14] sm:$0xff]
  %v7520 = vld [vmem:[%s14 + $0x8] sm:$0xff]
  %v7521 = vld [vmem:[%s14 + $0x10] sm:$0xff]
  %v7522 = vld [vmem:[%s14 + $0x18] sm:$0xff]
  %v7523 = vld [vmem:[%s14 + $0x20] sm:$0xff]
  %v7524 = vld [vmem:[%s14 + $0x28] sm:$0xff]
  %v7525 = vld [vmem:[%s14 + $0x30] sm:$0xff]
  %v7526 = vld [vmem:[%s14 + $0x38] sm:$0xff]
  %v7528 = vsel %vm3644, %v7517, 0
  %v7531 = vsel %vm3644, %v7518, 0
  %7533 = vmatprep.subr.mxu0 0.0
  %7534 = vmatpush1.msra.mxu0 %v7519
  %7535 = vmatprep.subr.mxu0 0.0
  %7536 = vmatpush1.msra.mxu0 %v7520
  %7537 = vmatprep.subr.mxu0 0.0
  %7538 = vmatpush1.msra.mxu0 %v7521
  %7539 = vmatprep.subr.mxu0 0.0
  %7540 = vmatpush1.msra.mxu0 %v7522
  %7541 = vmatprep.subr.mxu0 0.0
  %7542 = vmatpush1.msra.mxu0 %v7523
  %7543 = vmatprep.subr.mxu0 0.0
  %7544 = vmatpush1.msra.mxu0 %v7524
  %7545 = vmatprep.subr.mxu0 0.0
  %7546 = vmatpush1.msra.mxu0 %v7525
  %7547 = vmatprep.subr.mxu0 0.0
  %7548 = vmatpush1.msra.mxu0 %v7526
  %7549 = vmatprep.subr.mxu0 0.0
  %7550 = vmatpush1.msra.mxu0 0.0
  %7551 = vmatprep.subr.mxu0 0.0
  %7552 = vmatpush1.msra.mxu0 0.0
  %7553 = vmatprep.subr.mxu0 0.0
  %7554 = vmatpush1.msra.mxu0 0.0
  %7555 = vmatprep.subr.mxu0 0.0
  %7556 = vmatpush1.msra.mxu0 0.0
  %7557 = vmatprep.subr.mxu0 0.0
  %7558 = vmatpush1.msra.mxu0 0.0
  %7559 = vmatprep.subr.mxu0 0.0
  %7560 = vmatpush1.msra.mxu0 0.0
  %7561 = vmatprep.subr.mxu0 0.0
  %7562 = vmatpush1.msra.mxu0 0.0
  %7563 = vmatprep.subr.mxu0 0.0
  %7564 = vmatpush1.msra.mxu0 0.0
  %7565 = vmatprep.subr.mxu0 0.0
  %7566 = vmatpush1.msra.mxu0 0.0
  %7567 = vmatprep.subr.mxu0 0.0
  %7568 = vmatpush1.msra.mxu0 0.0
  %7569 = vmatprep.subr.mxu0 0.0
  %7570 = vmatpush1.msra.mxu0 0.0
  %7571 = vmatprep.subr.mxu0 0.0
  %7572 = vmatpush1.msra.mxu0 0.0
  %7573 = vmatprep.subr.mxu0 0.0
  %7574 = vmatpush1.msra.mxu0 0.0
  %7575 = vmatprep.subr.mxu0 0.0
  %7576 = vmatpush1.msra.mxu0 0.0
  %7577 = vmatprep.subr.mxu0 0.0
  %7578 = vmatpush1.msra.mxu0 0.0
  %7579 = vmatprep.subr.mxu0 0.0
  %7580 = vmatpush1.msra.mxu0 0.0
  %7581 = vmatprep.subr.mxu0 0.0
  %7582 = vmatpush1.msra.mxu0 0.0
  %7583 = vmatprep.subr.mxu0 0.0
  %7584 = vmatpush1.msra.mxu0 0.0
  %7585 = vmatprep.subr.mxu0 0.0
  %7586 = vmatpush1.msra.mxu0 0.0
  %7587 = vmatprep.subr.mxu0 0.0
  %7588 = vmatpush1.msra.mxu0 0.0
  %7589 = vmatprep.subr.mxu0 0.0
  %7590 = vmatpush1.msra.mxu0 0.0
  %7591 = vmatprep.subr.mxu0 0.0
  %7592 = vmatpush1.msra.mxu0 0.0
  %7593 = vmatprep.subr.mxu0 0.0
  %7594 = vmatpush1.msra.mxu0 0.0
  %7595 = vmatprep.subr.mxu0 0.0
  %7596 = vmatpush1.msra.mxu0 0.0
  %7597 = vmatprep.mubr.f32.mxu0 0.0
  %7598 = vmatmul.mubr.f32.gmra.mrb[0].mxu0 %v7528
  %v7599 = vpop.f32.mrb[0].mxu0
  %v7600 = vadd.f32 %v2980, %v7599
  %v7601 = vpop.f32.mrb[0].mxu0
  %7602 = vmatprep.mubr.f32.mxu0 0.0
  %7603 = vmatmul.mubr.f32.gmra.mrb[0].mxu0 %v7531
  %v7604 = vpop.f32.mrb[0].mxu0
  %v7605 = vadd.f32 %v2980, %v7604
  %v7606 = vpop.f32.mrb[0].mxu0
  %7607 = vdwg.mxu0
  %v7608 = vsel %vm3726, %v7600, -inf
  %7609 = vmax.xlane.f32.xlu0 %v7608
  %v7610 = vpop.xlane.xlu0 %7609
  %v7611 = vsel %vm3726, %v7605, -inf
  %7612 = vmax.xlane.f32.xlu0 %v7611
  %v7613 = vpop.xlane.xlu0 %7612
  %v7614 = vsub.f32 %v7600, %v7610
  %v7615 = vsub.f32 %v7605, %v7613
  %v7616 = vmul.f32 %v7614, 1.442695
  %v7617 = vpow.pop %v7616
  %v7618 = vmul.f32 %v7615, 1.442695
  %v7619 = vpow.pop %v7618
  %v7620 = vsel %vm3726, %v7617, 0.0
  %7621 = vadd.xlane.f32.xlu0 %v7620
  %v7622 = vpop.xlane.xlu0 %7621
  %v7623 = vsel %vm3726, %v7619, 0.0
  %7624 = vadd.xlane.f32.xlu0 %v7623
  %v7625 = vpop.xlane.xlu0 %7624
  %v7626 = vlog2.pop %v7622
  %v7627 = vmul.f32 %v7626, 0.6931472
  %v7628 = vlog2.pop %v7625
  %v7629 = vmul.f32 %v7628, 0.6931472
  %v7630 = vadd.f32 %v7610, %v7627
  %v7631 = vadd.f32 %v7613, %v7629
  %v7632 = vsub.f32 %v7600, %v7630
  %v7633 = vsub.f32 %v7605, %v7631
  %7636 = vrot.lane.b32.xlu0 %v7632, 80
  %v7637 = vpop.permute.xlu0 %7636
  %7638 = vrot.lane.b32.xlu0 %v7633, 80
  %v7639 = vpop.permute.xlu0 %7638
  %vm7642 = vcmask 786048
  %7643 = vst.msk [vmem:[%s16] sm:$0xff] %vm7642, %v7637
  %7644 = vst.msk [vmem:[%s16 + $0x8] sm:$0xff] %vm7642, %v7639
  %v7645 = vld [vmem:[#allocation5 + $0x120] sm:$0xff]
  %v7646 = vld [vmem:[#allocation5 + $0x128] sm:$0xff]
  %v7647 = vld [vmem:[#allocation5 + $0x130] sm:$0xff]
  %v7648 = vld [vmem:[#allocation5 + $0x138] sm:$0xff]
  %v7649 = vld [vmem:[#allocation5 + $0x140] sm:$0xff]
  %v7650 = vld [vmem:[#allocation5 + $0x148] sm:$0xff]
  %v7651 = vld [vmem:[%s8] sm:$0xff]
  %v7652 = vld [vmem:[%s8 + $0x8] sm:$0xff]
  %v7653 = vld [vmem:[%s8 + $0x10] sm:$0xff]
  %v7654 = vld [vmem:[%s8 + $0x18] sm:$0xff]
  %v7655 = vld [vmem:[%s8 + $0x20] sm:$0xff]
  %v7656 = vld [vmem:[%s8 + $0x28] sm:$0xff]
  %v7657 = vld [vmem:[%s8 + $0x30] sm:$0xff]
  %v7658 = vld [vmem:[%s8 + $0x38] sm:$0xff]
  %v7659 = vld [vmem:[%s8 + $0x40] sm:$0xff]
  %v7660 = vld [vmem:[%s8 + $0x48] sm:$0xff]
  %v7661 = vld [vmem:[%s8 + $0x50] sm:$0xff]
  %v7662 = vld [vmem:[%s8 + $0x58] sm:$0xff]
  %v7663 = vsel %vm98, %v7501, 0
  %v7665 = vsel %vm98, %v7506, 0
  %7667 = vmatprep.subr.mxu0 %v7652
  %7668 = vmatpush1.msra.mxu0 %v7651
  %7669 = vmatprep.subr.mxu0 %v7655
  %7670 = vmatpush1.msra.mxu0 %v7654
  %7671 = vmatprep.subr.mxu0 %v7658
  %7672 = vmatpush1.msra.mxu0 %v7657
  %7673 = vmatprep.subr.mxu0 %v7661
  %7674 = vmatpush1.msra.mxu0 %v7660
  %7675 = vmatprep.subr.mxu0 0.0
  %7676 = vmatpush1.msra.mxu0 0.0
  %7677 = vmatprep.subr.mxu0 0.0
  %7678 = vmatpush1.msra.mxu0 0.0
  %7679 = vmatprep.subr.mxu0 0.0
  %7680 = vmatpush1.msra.mxu0 0.0
  %7681 = vmatprep.subr.mxu0 0.0
  %7682 = vmatpush1.msra.mxu0 0.0
  %7683 = vmatprep.subr.mxu0 0.0
  %7684 = vmatpush1.msra.mxu0 0.0
  %7685 = vmatprep.subr.mxu0 0.0
  %7686 = vmatpush1.msra.mxu0 0.0
  %7687 = vmatprep.subr.mxu0 0.0
  %7688 = vmatpush1.msra.mxu0 0.0
  %7689 = vmatprep.subr.mxu0 0.0
  %7690 = vmatpush1.msra.mxu0 0.0
  %7691 = vmatprep.subr.mxu0 0.0
  %7692 = vmatpush1.msra.mxu0 0.0
  %7693 = vmatprep.subr.mxu0 0.0
  %7694 = vmatpush1.msra.mxu0 0.0
  %7695 = vmatprep.subr.mxu0 0.0
  %7696 = vmatpush1.msra.mxu0 0.0
  %7697 = vmatprep.subr.mxu0 0.0
  %7698 = vmatpush1.msra.mxu0 0.0
  %7699 = vmatprep.subr.mxu0 0.0
  %7700 = vmatpush1.msra.mxu0 0.0
  %7701 = vmatprep.subr.mxu0 0.0
  %7702 = vmatpush1.msra.mxu0 0.0
  %7703 = vmatprep.subr.mxu0 0.0
  %7704 = vmatpush1.msra.mxu0 0.0
  %7705 = vmatprep.subr.mxu0 0.0
  %7706 = vmatpush1.msra.mxu0 0.0
  %7707 = vmatprep.subr.mxu0 0.0
  %7708 = vmatpush1.msra.mxu0 0.0
  %7709 = vmatprep.subr.mxu0 0.0
  %7710 = vmatpush1.msra.mxu0 0.0
  %7711 = vmatprep.subr.mxu0 0.0
  %7712 = vmatpush1.msra.mxu0 0.0
  %7713 = vmatprep.subr.mxu0 0.0
  %7714 = vmatpush1.msra.mxu0 0.0
  %7715 = vmatprep.subr.mxu0 0.0
  %7716 = vmatpush1.msra.mxu0 0.0
  %7717 = vmatprep.subr.mxu0 0.0
  %7718 = vmatpush1.msra.mxu0 0.0
  %7719 = vmatprep.subr.mxu0 0.0
  %7720 = vmatpush1.msra.mxu0 0.0
  %7721 = vmatprep.subr.mxu0 0.0
  %7722 = vmatpush1.msra.mxu0 0.0
  %7723 = vmatprep.subr.mxu0 0.0
  %7724 = vmatpush1.msra.mxu0 0.0
  %7725 = vmatprep.subr.mxu0 0.0
  %7726 = vmatpush1.msra.mxu0 0.0
  %7727 = vmatprep.subr.mxu0 0.0
  %7728 = vmatpush1.msra.mxu0 0.0
  %7729 = vmatprep.subr.mxu0 0.0
  %7730 = vmatpush1.msra.mxu0 0.0
  %7731 = vmatprep.mubr.f32.mxu0 0.0
  %7732 = vmatmul.mubr.f32.gmra.mrb[0].mxu0 %v7663
  %v7733 = vpop.f32.mrb[0].mxu0
  %v7734 = vadd.f32 0.0, %v7733
  %v7735 = vpop.f32.mrb[0].mxu0
  %v7736 = vadd.f32 0.0, %v7735
  %7737 = vmatprep.mubr.f32.mxu0 0.0
  %7738 = vmatmul.mubr.f32.gmra.mrb[0].mxu0 %v7665
  %v7739 = vpop.f32.mrb[0].mxu0
  %v7740 = vadd.f32 0.0, %v7739
  %v7741 = vpop.f32.mrb[0].mxu0
  %v7742 = vadd.f32 0.0, %v7741
  %7743 = vdwg.mxu0
  %7744 = vmatprep.subr.mxu0 0.0
  %7745 = vmatpush1.msra.mxu0 %v7653
  %7746 = vmatprep.subr.mxu0 0.0
  %7747 = vmatpush1.msra.mxu0 %v7656
  %7748 = vmatprep.subr.mxu0 0.0
  %7749 = vmatpush1.msra.mxu0 %v7659
  %7750 = vmatprep.subr.mxu0 0.0
  %7751 = vmatpush1.msra.mxu0 %v7662
  %7752 = vmatprep.subr.mxu0 0.0
  %7753 = vmatpush1.msra.mxu0 0.0
  %7754 = vmatprep.subr.mxu0 0.0
  %7755 = vmatpush1.msra.mxu0 0.0
  %7756 = vmatprep.subr.mxu0 0.0
  %7757 = vmatpush1.msra.mxu0 0.0
  %7758 = vmatprep.subr.mxu0 0.0
  %7759 = vmatpush1.msra.mxu0 0.0
  %7760 = vmatprep.subr.mxu0 0.0
  %7761 = vmatpush1.msra.mxu0 0.0
  %7762 = vmatprep.subr.mxu0 0.0
  %7763 = vmatpush1.msra.mxu0 0.0
  %7764 = vmatprep.subr.mxu0 0.0
  %7765 = vmatpush1.msra.mxu0 0.0
  %7766 = vmatprep.subr.mxu0 0.0
  %7767 = vmatpush1.msra.mxu0 0.0
  %7768 = vmatprep.subr.mxu0 0.0
  %7769 = vmatpush1.msra.mxu0 0.0
  %7770 = vmatprep.subr.mxu0 0.0
  %7771 = vmatpush1.msra.mxu0 0.0
  %7772 = vmatprep.subr.mxu0 0.0
  %7773 = vmatpush1.msra.mxu0 0.0
  %7774 = vmatprep.subr.mxu0 0.0
  %7775 = vmatpush1.msra.mxu0 0.0
  %7776 = vmatprep.subr.mxu0 0.0
  %7777 = vmatpush1.msra.mxu0 0.0
  %7778 = vmatprep.subr.mxu0 0.0
  %7779 = vmatpush1.msra.mxu0 0.0
  %7780 = vmatprep.subr.mxu0 0.0
  %7781 = vmatpush1.msra.mxu0 0.0
  %7782 = vmatprep.subr.mxu0 0.0
  %7783 = vmatpush1.msra.mxu0 0.0
  %7784 = vmatprep.subr.mxu0 0.0
  %7785 = vmatpush1.msra.mxu0 0.0
  %7786 = vmatprep.subr.mxu0 0.0
  %7787 = vmatpush1.msra.mxu0 0.0
  %7788 = vmatprep.subr.mxu0 0.0
  %7789 = vmatpush1.msra.mxu0 0.0
  %7790 = vmatprep.subr.mxu0 0.0
  %7791 = vmatpush1.msra.mxu0 0.0
  %7792 = vmatprep.subr.mxu0 0.0
  %7793 = vmatpush1.msra.mxu0 0.0
  %7794 = vmatprep.subr.mxu0 0.0
  %7795 = vmatpush1.msra.mxu0 0.0
  %7796 = vmatprep.subr.mxu0 0.0
  %7797 = vmatpush1.msra.mxu0 0.0
  %7798 = vmatprep.subr.mxu0 0.0
  %7799 = vmatpush1.msra.mxu0 0.0
  %7800 = vmatprep.subr.mxu0 0.0
  %7801 = vmatpush1.msra.mxu0 0.0
  %7802 = vmatprep.subr.mxu0 0.0
  %7803 = vmatpush1.msra.mxu0 0.0
  %7804 = vmatprep.subr.mxu0 0.0
  %7805 = vmatpush1.msra.mxu0 0.0
  %7806 = vmatprep.subr.mxu0 0.0
  %7807 = vmatpush1.msra.mxu0 0.0
  %7808 = vmatprep.mubr.f32.mxu0 0.0
  %7809 = vmatmul.mubr.f32.gmra.mrb[0].mxu0 %v7663
  %v7810 = vpop.f32.mrb[0].mxu0
  %v7811 = vadd.f32 0.0, %v7810
  %v7812 = vpop.f32.mrb[0].mxu0
  %7813 = vmatprep.mubr.f32.mxu0 0.0
  %7814 = vmatmul.mubr.f32.gmra.mrb[0].mxu0 %v7665
  %v7815 = vpop.f32.mrb[0].mxu0
  %v7816 = vadd.f32 0.0, %v7815
  %v7817 = vpop.f32.mrb[0].mxu0
  %7818 = vdwg.mxu0
  %v7819 = vadd.f32 %v7645, %v7734
  %v7820 = vadd.f32 %v7646, %v7736
  %v7821 = vadd.f32 %v7647, %v7811
  %v7822 = vadd.f32 %v7648, %v7740
  %v7823 = vadd.f32 %v7649, %v7742
  %v7824 = vadd.f32 %v7650, %v7816
  %v7825 = vld [vmem:[%s9] sm:$0xff]
  %v7826 = vld [vmem:[%s9 + $0x8] sm:$0xff]
  %v7827 = vld [vmem:[%s9 + $0x10] sm:$0xff]
  %v7828 = vld [vmem:[%s9 + $0x18] sm:$0xff]
  %v7829 = vld [vmem:[%s9 + $0x20] sm:$0xff]
  %v7830 = vld [vmem:[%s9 + $0x28] sm:$0xff]
  %v7831 = vld [vmem:[%s9 + $0x30] sm:$0xff]
  %v7832 = vld [vmem:[%s9 + $0x38] sm:$0xff]
  %v7833 = vld [vmem:[%s9 + $0x40] sm:$0xff]
  %v7834 = vld [vmem:[%s9 + $0x48] sm:$0xff]
  %v7835 = vld [vmem:[%s9 + $0x50] sm:$0xff]
  %v7836 = vld [vmem:[%s9 + $0x58] sm:$0xff]
  %7837 = vmatprep.subr.mxu0 %v7826
  %7838 = vmatpush1.msra.mxu0 %v7825
  %7839 = vmatprep.subr.mxu0 %v7829
  %7840 = vmatpush1.msra.mxu0 %v7828
  %7841 = vmatprep.subr.mxu0 %v7832
  %7842 = vmatpush1.msra.mxu0 %v7831
  %7843 = vmatprep.subr.mxu0 %v7835
  %7844 = vmatpush1.msra.mxu0 %v7834
  %7845 = vmatprep.subr.mxu0 0.0
  %7846 = vmatpush1.msra.mxu0 0.0
  %7847 = vmatprep.subr.mxu0 0.0
  %7848 = vmatpush1.msra.mxu0 0.0
  %7849 = vmatprep.subr.mxu0 0.0
  %7850 = vmatpush1.msra.mxu0 0.0
  %7851 = vmatprep.subr.mxu0 0.0
  %7852 = vmatpush1.msra.mxu0 0.0
  %7853 = vmatprep.subr.mxu0 0.0
  %7854 = vmatpush1.msra.mxu0 0.0
  %7855 = vmatprep.subr.mxu0 0.0
  %7856 = vmatpush1.msra.mxu0 0.0
  %7857 = vmatprep.subr.mxu0 0.0
  %7858 = vmatpush1.msra.mxu0 0.0
  %7859 = vmatprep.subr.mxu0 0.0
  %7860 = vmatpush1.msra.mxu0 0.0
  %7861 = vmatprep.subr.mxu0 0.0
  %7862 = vmatpush1.msra.mxu0 0.0
  %7863 = vmatprep.subr.mxu0 0.0
  %7864 = vmatpush1.msra.mxu0 0.0
  %7865 = vmatprep.subr.mxu0 0.0
  %7866 = vmatpush1.msra.mxu0 0.0
  %7867 = vmatprep.subr.mxu0 0.0
  %7868 = vmatpush1.msra.mxu0 0.0
  %7869 = vmatprep.subr.mxu0 0.0
  %7870 = vmatpush1.msra.mxu0 0.0
  %7871 = vmatprep.subr.mxu0 0.0
  %7872 = vmatpush1.msra.mxu0 0.0
  %7873 = vmatprep.subr.mxu0 0.0
  %7874 = vmatpush1.msra.mxu0 0.0
  %7875 = vmatprep.subr.mxu0 0.0
  %7876 = vmatpush1.msra.mxu0 0.0
  %7877 = vmatprep.subr.mxu0 0.0
  %7878 = vmatpush1.msra.mxu0 0.0
  %7879 = vmatprep.subr.mxu0 0.0
  %7880 = vmatpush1.msra.mxu0 0.0
  %7881 = vmatprep.subr.mxu0 0.0
  %7882 = vmatpush1.msra.mxu0 0.0
  %7883 = vmatprep.subr.mxu0 0.0
  %7884 = vmatpush1.msra.mxu0 0.0
  %7885 = vmatprep.subr.mxu0 0.0
  %7886 = vmatpush1.msra.mxu0 0.0
  %7887 = vmatprep.subr.mxu0 0.0
  %7888 = vmatpush1.msra.mxu0 0.0
  %7889 = vmatprep.subr.mxu0 0.0
  %7890 = vmatpush1.msra.mxu0 0.0
  %7891 = vmatprep.subr.mxu0 0.0
  %7892 = vmatpush1.msra.mxu0 0.0
  %7893 = vmatprep.subr.mxu0 0.0
  %7894 = vmatpush1.msra.mxu0 0.0
  %7895 = vmatprep.subr.mxu0 0.0
  %7896 = vmatpush1.msra.mxu0 0.0
  %7897 = vmatprep.subr.mxu0 0.0
  %7898 = vmatpush1.msra.mxu0 0.0
  %7899 = vmatprep.subr.mxu0 0.0
  %7900 = vmatpush1.msra.mxu0 0.0
  %7901 = vmatprep.mubr.f32.mxu0 0.0
  %7902 = vmatmul.mubr.f32.gmra.mrb[0].mxu0 %v7272
  %v7903 = vpop.f32.mrb[0].mxu0
  %v7904 = vadd.f32 %v2963, %v7903
  %v7905 = vpop.f32.mrb[0].mxu0
  %v7906 = vadd.f32 %v2967, %v7905
  %7907 = vmatprep.mubr.f32.mxu0 0.0
  %7908 = vmatmul.mubr.f32.gmra.mrb[0].mxu0 %v7275
  %v7909 = vpop.f32.mrb[0].mxu0
  %v7910 = vadd.f32 %v2963, %v7909
  %v7911 = vpop.f32.mrb[0].mxu0
  %v7912 = vadd.f32 %v2967, %v7911
  %7913 = vdwg.mxu0
  %7914 = vmatprep.subr.mxu0 0.0
  %7915 = vmatpush1.msra.mxu0 %v7827
  %7916 = vmatprep.subr.mxu0 0.0
  %7917 = vmatpush1.msra.mxu0 %v7830
  %7918 = vmatprep.subr.mxu0 0.0
  %7919 = vmatpush1.msra.mxu0 %v7833
  %7920 = vmatprep.subr.mxu0 0.0
  %7921 = vmatpush1.msra.mxu0 %v7836
  %7922 = vmatprep.subr.mxu0 0.0
  %7923 = vmatpush1.msra.mxu0 0.0
  %7924 = vmatprep.subr.mxu0 0.0
  %7925 = vmatpush1.msra.mxu0 0.0
  %7926 = vmatprep.subr.mxu0 0.0
  %7927 = vmatpush1.msra.mxu0 0.0
  %7928 = vmatprep.subr.mxu0 0.0
  %7929 = vmatpush1.msra.mxu0 0.0
  %7930 = vmatprep.subr.mxu0 0.0
  %7931 = vmatpush1.msra.mxu0 0.0
  %7932 = vmatprep.subr.mxu0 0.0
  %7933 = vmatpush1.msra.mxu0 0.0
  %7934 = vmatprep.subr.mxu0 0.0
  %7935 = vmatpush1.msra.mxu0 0.0
  %7936 = vmatprep.subr.mxu0 0.0
  %7937 = vmatpush1.msra.mxu0 0.0
  %7938 = vmatprep.subr.mxu0 0.0
  %7939 = vmatpush1.msra.mxu0 0.0
  %7940 = vmatprep.subr.mxu0 0.0
  %7941 = vmatpush1.msra.mxu0 0.0
  %7942 = vmatprep.subr.mxu0 0.0
  %7943 = vmatpush1.msra.mxu0 0.0
  %7944 = vmatprep.subr.mxu0 0.0
  %7945 = vmatpush1.msra.mxu0 0.0
  %7946 = vmatprep.subr.mxu0 0.0
  %7947 = vmatpush1.msra.mxu0 0.0
  %7948 = vmatprep.subr.mxu0 0.0
  %7949 = vmatpush1.msra.mxu0 0.0
  %7950 = vmatprep.subr.mxu0 0.0
  %7951 = vmatpush1.msra.mxu0 0.0
  %7952 = vmatprep.subr.mxu0 0.0
  %7953 = vmatpush1.msra.mxu0 0.0
  %7954 = vmatprep.subr.mxu0 0.0
  %7955 = vmatpush1.msra.mxu0 0.0
  %7956 = vmatprep.subr.mxu0 0.0
  %7957 = vmatpush1.msra.mxu0 0.0
  %7958 = vmatprep.subr.mxu0 0.0
  %7959 = vmatpush1.msra.mxu0 0.0
  %7960 = vmatprep.subr.mxu0 0.0
  %7961 = vmatpush1.msra.mxu0 0.0
  %7962 = vmatprep.subr.mxu0 0.0
  %7963 = vmatpush1.msra.mxu0 0.0
  %7964 = vmatprep.subr.mxu0 0.0
  %7965 = vmatpush1.msra.mxu0 0.0
  %7966 = vmatprep.subr.mxu0 0.0
  %7967 = vmatpush1.msra.mxu0 0.0
  %7968 = vmatprep.subr.mxu0 0.0
  %7969 = vmatpush1.msra.mxu0 0.0
  %7970 = vmatprep.subr.mxu0 0.0
  %7971 = vmatpush1.msra.mxu0 0.0
  %7972 = vmatprep.subr.mxu0 0.0
  %7973 = vmatpush1.msra.mxu0 0.0
  %7974 = vmatprep.subr.mxu0 0.0
  %7975 = vmatpush1.msra.mxu0 0.0
  %7976 = vmatprep.subr.mxu0 0.0
  %7977 = vmatpush1.msra.mxu0 0.0
  %7978 = vmatprep.mubr.f32.mxu0 0.0
  %7979 = vmatmul.mubr.f32.gmra.mrb[0].mxu0 %v7272
  %v7980 = vpop.f32.mrb[0].mxu0
  %v7981 = vadd.f32 %v2971, %v7980
  %v7982 = vpop.f32.mrb[0].mxu0
  %7983 = vmatprep.mubr.f32.mxu0 0.0
  %7984 = vmatmul.mubr.f32.gmra.mrb[0].mxu0 %v7275
  %v7985 = vpop.f32.mrb[0].mxu0
  %v7986 = vadd.f32 %v2971, %v7985
  %v7987 = vpop.f32.mrb[0].mxu0
  %7988 = vdwg.mxu0
  %v7989 = vadd.f32 %v7819, %v7904
  %v7990 = vadd.f32 %v7822, %v7910
  %v7991 = vxor.u32 %v7989, 2147483648
  %v7992 = vxor.u32 %v7990, 2147483648
  %v7993 = vmul.f32 %v7991, 1.442695
  %v7994 = vpow.pop %v7993
  %v7995 = vmul.f32 %v7992, 1.442695
  %v7996 = vpow.pop %v7995
  %v7997 = vadd.f32 %v7994, 1.0
  %v7998 = vadd.f32 %v7996, 1.0
  %v7999 = vrcp.pop %v7997
  %v8000 = vmul.f32 1.0, %v7999
  %v8001 = vrcp.pop %v7998
  %v8002 = vmul.f32 1.0, %v8001
  %v8003 = vadd.f32 %v7820, %v7906
  %v8004 = vadd.f32 %v7823, %v7912
  %v8005 = vxor.u32 %v8003, 2147483648
  %v8006 = vxor.u32 %v8004, 2147483648
  %v8007 = vmul.f32 %v8005, 1.442695
  %v8008 = vpow.pop %v8007
  %v8009 = vmul.f32 %v8006, 1.442695
  %v8010 = vpow.pop %v8009
  %v8011 = vadd.f32 %v8008, 1.0
  %v8012 = vadd.f32 %v8010, 1.0
  %v8013 = vrcp.pop %v8011
  %v8014 = vmul.f32 1.0, %v8013
  %v8015 = vrcp.pop %v8012
  %v8016 = vmul.f32 1.0, %v8015
  %v8017 = vmul.f32 %v8000, %v7981
  %v8018 = vmul.f32 %v8002, %v7986
  %v8019 = vadd.f32 %v7821, %v8017
  %v8020 = vadd.f32 %v7824, %v8018
  %v8021 = vtanh.pop %v8019
  %v8022 = vtanh.pop %v8020
  %v8023 = vsub.f32 1.0, %v8014
  %v8024 = vsub.f32 1.0, %v8016
  %v8025 = vmul.f32 %v8023, %v8021
  %v8026 = vmul.f32 %v8024, %v8022
  %v8027 = vmul.f32 %v8014, %v7251
  %v8028 = vmul.f32 %v8016, %v7252
  %v8029 = vadd.f32 %v8025, %v8027
  %v8030 = vadd.f32 %v8026, %v8028
  %v8031 = vld [vmem:[#allocation3] sm:$0xff]
  %v8032 = vld [vmem:[#allocation3 + $0x8] sm:$0xff]
  %v8033 = vld [vmem:[#allocation3 + $0x10] sm:$0xff]
  %v8034 = vld [vmem:[#allocation3 + $0x18] sm:$0xff]
  %v8035 = vld [vmem:[#allocation3 + $0x20] sm:$0xff]
  %v8036 = vld [vmem:[#allocation3 + $0x28] sm:$0xff]
  %v8037 = vld [vmem:[#allocation3 + $0x30] sm:$0xff]
  %v8038 = vld [vmem:[#allocation3 + $0x38] sm:$0xff]
  %v8039 = vld [vmem:[#allocation3 + $0x40] sm:$0xff]
  %v8040 = vld [vmem:[#allocation3 + $0x48] sm:$0xff]
  %v8041 = vld [vmem:[#allocation3 + $0x50] sm:$0xff]
  %v8042 = vld [vmem:[#allocation3 + $0x58] sm:$0xff]
  %v8043 = vld [vmem:[#allocation3 + $0x60] sm:$0xff]
  %v8044 = vld [vmem:[#allocation3 + $0x68] sm:$0xff]
  %v8045 = vld [vmem:[#allocation3 + $0x70] sm:$0xff]
  %v8046 = vld [vmem:[#allocation3 + $0x78] sm:$0xff]
  %v8047 = vld [vmem:[%s2] sm:$0xff]
  %v8048 = vld [vmem:[%s2 + $0x8] sm:$0xff]
  %v8050 = vsel %vm98, %v8029, 0
  %v8053 = vsel %vm98, %v8030, 0
  %v8056 = vsel %vm98, %v8031, 0
  %v8059 = vsel %vm98, %v8032, 0
  %v8062 = vsel %vm98, %v8033, 0
  %v8065 = vsel %vm98, %v8034, 0
  %v8068 = vsel %vm98, %v8035, 0
  %v8071 = vsel %vm98, %v8036, 0
  %v8074 = vsel %vm98, %v8037, 0
  %v8077 = vsel %vm98, %v8038, 0
  %v8080 = vsel %vm98, %v8039, 0
  %v8083 = vsel %vm98, %v8040, 0
  %v8086 = vsel %vm98, %v8041, 0
  %v8089 = vsel %vm98, %v8042, 0
  %v8092 = vsel %vm98, %v8043, 0
  %v8095 = vsel %vm98, %v8044, 0
  %v8098 = vsel %vm98, %v8045, 0
  %v8101 = vsel %vm98, %v8046, 0
  %8103 = vmatprep.subr.mxu0 0.0
  %8104 = vmatpush1.xpose.msra.mxu0 %v8056
  %8105 = vmatprep.subr.mxu0 0.0
  %8106 = vmatpush1.xpose.msra.mxu0 %v8059
  %8107 = vmatprep.subr.mxu0 0.0
  %8108 = vmatpush1.xpose.msra.mxu0 %v8062
  %8109 = vmatprep.subr.mxu0 0.0
  %8110 = vmatpush1.xpose.msra.mxu0 %v8065
  %8111 = vmatprep.subr.mxu0 0.0
  %8112 = vmatpush1.xpose.msra.mxu0 %v8068
  %8113 = vmatprep.subr.mxu0 0.0
  %8114 = vmatpush1.xpose.msra.mxu0 %v8071
  %8115 = vmatprep.subr.mxu0 0.0
  %8116 = vmatpush1.xpose.msra.mxu0 %v8074
  %8117 = vmatprep.subr.mxu0 0.0
  %8118 = vmatpush1.xpose.msra.mxu0 %v8077
  %8119 = vmatprep.subr.mxu0 0.0
  %8120 = vmatpush1.xpose.msra.mxu0 %v8080
  %8121 = vmatprep.subr.mxu0 0.0
  %8122 = vmatpush1.xpose.msra.mxu0 %v8083
  %8123 = vmatprep.subr.mxu0 0.0
  %8124 = vmatpush1.xpose.msra.mxu0 %v8086
  %8125 = vmatprep.subr.mxu0 0.0
  %8126 = vmatpush1.xpose.msra.mxu0 %v8089
  %8127 = vmatprep.subr.mxu0 0.0
  %8128 = vmatpush1.xpose.msra.mxu0 %v8092
  %8129 = vmatprep.subr.mxu0 0.0
  %8130 = vmatpush1.xpose.msra.mxu0 %v8095
  %8131 = vmatprep.subr.mxu0 0.0
  %8132 = vmatpush1.xpose.msra.mxu0 %v8098
  %8133 = vmatprep.subr.mxu0 0.0
  %8134 = vmatpush1.xpose.msra.mxu0 %v8101
  %8135 = vmatprep.subr.mxu0 0.0
  %8136 = vmatpush1.xpose.msra.mxu0 0.0
  %8137 = vmatprep.subr.mxu0 0.0
  %8138 = vmatpush1.xpose.msra.mxu0 0.0
  %8139 = vmatprep.subr.mxu0 0.0
  %8140 = vmatpush1.xpose.msra.mxu0 0.0
  %8141 = vmatprep.subr.mxu0 0.0
  %8142 = vmatpush1.xpose.msra.mxu0 0.0
  %8143 = vmatprep.subr.mxu0 0.0
  %8144 = vmatpush1.xpose.msra.mxu0 0.0
  %8145 = vmatprep.subr.mxu0 0.0
  %8146 = vmatpush1.xpose.msra.mxu0 0.0
  %8147 = vmatprep.subr.mxu0 0.0
  %8148 = vmatpush1.xpose.msra.mxu0 0.0
  %8149 = vmatprep.subr.mxu0 0.0
  %8150 = vmatpush1.xpose.msra.mxu0 0.0
  %8151 = vmatprep.subr.mxu0 0.0
  %8152 = vmatpush1.xpose.msra.mxu0 0.0
  %8153 = vmatprep.subr.mxu0 0.0
  %8154 = vmatpush1.xpose.msra.mxu0 0.0
  %8155 = vmatprep.subr.mxu0 0.0
  %8156 = vmatpush1.xpose.msra.mxu0 0.0
  %8157 = vmatprep.subr.mxu0 0.0
  %8158 = vmatpush1.xpose.msra.mxu0 0.0
  %8159 = vmatprep.subr.mxu0 0.0
  %8160 = vmatpush1.xpose.msra.mxu0 0.0
  %8161 = vmatprep.subr.mxu0 0.0
  %8162 = vmatpush1.xpose.msra.mxu0 0.0
  %8163 = vmatprep.subr.mxu0 0.0
  %8164 = vmatpush1.xpose.msra.mxu0 0.0
  %8165 = vmatprep.subr.mxu0 0.0
  %8166 = vmatpush1.xpose.msra.mxu0 0.0
  %8167 = vmatprep.mubr.f32.mxu0 0.0
  %8168 = vmatmul.mubr.f32.gmra.mrb[0].mxu0 %v8050
  %v8169 = vpop.f32.mrb[0].mxu0
  %v8170 = vadd.f32 %v8047, %v8169
  %v8171 = vpop.f32.mrb[0].mxu0
  %8172 = vmatprep.mubr.f32.mxu0 0.0
  %8173 = vmatmul.mubr.f32.gmra.mrb[0].mxu0 %v8053
  %v8174 = vpop.f32.mrb[0].mxu0
  %v8175 = vadd.f32 %v8048, %v8174
  %v8176 = vpop.f32.mrb[0].mxu0
  %8177 = vdwg.mxu0
  %8178 = vmax.xlane.f32.xlu0 %v8170
  %v8179 = vpop.xlane.xlu0 %8178
  %8180 = vmax.xlane.f32.xlu0 %v8175
  %v8181 = vpop.xlane.xlu0 %8180
  %v8182 = vsub.f32 %v8170, %v8179
  %v8183 = vsub.f32 %v8175, %v8181
  %v8184 = vmul.f32 %v8182, 1.442695
  %v8185 = vpow.pop %v8184
  %v8186 = vmul.f32 %v8183, 1.442695
  %v8187 = vpow.pop %v8186
  %8188 = vadd.xlane.f32.xlu0 %v8185
  %v8189 = vpop.xlane.xlu0 %8188
  %8190 = vadd.xlane.f32.xlu0 %v8187
  %v8191 = vpop.xlane.xlu0 %8190
  %v8192 = vrcp.pop %v8189
  %v8193 = vrcp.pop %v8191
  %v8194 = vmul.f32 %v8185, %v8192
  %v8195 = vmul.f32 %v8187, %v8193
  %v8196 = vld [vmem:[#allocation2] sm:$0xff]
  %v8197 = vld [vmem:[#allocation2 + $0x8] sm:$0xff]
  %v8198 = vld [vmem:[#allocation2 + $0x10] sm:$0xff]
  %v8199 = vld [vmem:[#allocation2 + $0x18] sm:$0xff]
  %v8200 = vld [vmem:[#allocation2 + $0x20] sm:$0xff]
  %v8201 = vld [vmem:[#allocation2 + $0x28] sm:$0xff]
  %v8202 = vld [vmem:[#allocation2 + $0x30] sm:$0xff]
  %v8203 = vld [vmem:[#allocation2 + $0x38] sm:$0xff]
  %v8204 = vld [vmem:[#allocation2 + $0x40] sm:$0xff]
  %v8205 = vld [vmem:[#allocation2 + $0x48] sm:$0xff]
  %v8206 = vld [vmem:[#allocation2 + $0x50] sm:$0xff]
  %v8207 = vld [vmem:[#allocation2 + $0x58] sm:$0xff]
  %v8208 = vld [vmem:[#allocation2 + $0x60] sm:$0xff]
  %v8209 = vld [vmem:[#allocation2 + $0x68] sm:$0xff]
  %v8210 = vld [vmem:[#allocation2 + $0x70] sm:$0xff]
  %v8211 = vld [vmem:[#allocation2 + $0x78] sm:$0xff]
  %8212 = vmatprep.subr.mxu0 0.0
  %8213 = vmatpush1.msra.mxu0 %v8196
  %8214 = vmatprep.subr.mxu0 0.0
  %8215 = vmatpush1.msra.mxu0 %v8197
  %8216 = vmatprep.subr.mxu0 0.0
  %8217 = vmatpush1.msra.mxu0 %v8198
  %8218 = vmatprep.subr.mxu0 0.0
  %8219 = vmatpush1.msra.mxu0 %v8199
  %8220 = vmatprep.subr.mxu0 0.0
  %8221 = vmatpush1.msra.mxu0 %v8200
  %8222 = vmatprep.subr.mxu0 0.0
  %8223 = vmatpush1.msra.mxu0 %v8201
  %8224 = vmatprep.subr.mxu0 0.0
  %8225 = vmatpush1.msra.mxu0 %v8202
  %8226 = vmatprep.subr.mxu0 0.0
  %8227 = vmatpush1.msra.mxu0 %v8203
  %8228 = vmatprep.subr.mxu0 0.0
  %8229 = vmatpush1.msra.mxu0 %v8204
  %8230 = vmatprep.subr.mxu0 0.0
  %8231 = vmatpush1.msra.mxu0 %v8205
  %8232 = vmatprep.subr.mxu0 0.0
  %8233 = vmatpush1.msra.mxu0 %v8206
  %8234 = vmatprep.subr.mxu0 0.0
  %8235 = vmatpush1.msra.mxu0 %v8207
  %8236 = vmatprep.subr.mxu0 0.0
  %8237 = vmatpush1.msra.mxu0 %v8208
  %8238 = vmatprep.subr.mxu0 0.0
  %8239 = vmatpush1.msra.mxu0 %v8209
  %8240 = vmatprep.subr.mxu0 0.0
  %8241 = vmatpush1.msra.mxu0 %v8210
  %8242 = vmatprep.subr.mxu0 0.0
  %8243 = vmatpush1.msra.mxu0 %v8211
  %8244 = vmatprep.subr.mxu0 0.0
  %8245 = vmatpush1.msra.mxu0 0.0
  %8246 = vmatprep.subr.mxu0 0.0
  %8247 = vmatpush1.msra.mxu0 0.0
  %8248 = vmatprep.subr.mxu0 0.0
  %8249 = vmatpush1.msra.mxu0 0.0
  %8250 = vmatprep.subr.mxu0 0.0
  %8251 = vmatpush1.msra.mxu0 0.0
  %8252 = vmatprep.subr.mxu0 0.0
  %8253 = vmatpush1.msra.mxu0 0.0
  %8254 = vmatprep.subr.mxu0 0.0
  %8255 = vmatpush1.msra.mxu0 0.0
  %8256 = vmatprep.subr.mxu0 0.0
  %8257 = vmatpush1.msra.mxu0 0.0
  %8258 = vmatprep.subr.mxu0 0.0
  %8259 = vmatpush1.msra.mxu0 0.0
  %8260 = vmatprep.subr.mxu0 0.0
  %8261 = vmatpush1.msra.mxu0 0.0
  %8262 = vmatprep.subr.mxu0 0.0
  %8263 = vmatpush1.msra.mxu0 0.0
  %8264 = vmatprep.subr.mxu0 0.0
  %8265 = vmatpush1.msra.mxu0 0.0
  %8266 = vmatprep.subr.mxu0 0.0
  %8267 = vmatpush1.msra.mxu0 0.0
  %8268 = vmatprep.subr.mxu0 0.0
  %8269 = vmatpush1.msra.mxu0 0.0
  %8270 = vmatprep.subr.mxu0 0.0
  %8271 = vmatpush1.msra.mxu0 0.0
  %8272 = vmatprep.subr.mxu0 0.0
  %8273 = vmatpush1.msra.mxu0 0.0
  %8274 = vmatprep.subr.mxu0 0.0
  %8275 = vmatpush1.msra.mxu0 0.0
  %8276 = vmatprep.mubr.f32.mxu0 0.0
  %8277 = vmatmul.mubr.f32.gmra.mrb[0].mxu0 %v8194
  %v8278 = vpop.f32.mrb[0].mxu0
  %v8279 = vadd.f32 0.0, %v8278
  %v8280 = vpop.f32.mrb[0].mxu0
  %8281 = vmatprep.mubr.f32.mxu0 0.0
  %8282 = vmatmul.mubr.f32.gmra.mrb[0].mxu0 %v8195
  %v8283 = vpop.f32.mrb[0].mxu0
  %v8284 = vadd.f32 0.0, %v8283
  %v8285 = vpop.f32.mrb[0].mxu0
  %8286 = vdwg.mxu0
  %8289 = vrot.lane.b32.xlu0 %v8279, 32
  %v8290 = vpop.permute.xlu0 %8289
  %8291 = vrot.lane.b32.xlu0 %v8284, 32
  %v8292 = vpop.permute.xlu0 %8291
  %v8295 = vsel %vm98, %v8029, %v8290
  %v8296 = vsel %vm98, %v8030, %v8292
  %v8297 = vld [vmem:[%s14] sm:$0xff]
  %v8298 = vld [vmem:[%s14 + $0x8] sm:$0xff]
  %v8299 = vld [vmem:[%s14 + $0x10] sm:$0xff]
  %v8300 = vld [vmem:[%s14 + $0x18] sm:$0xff]
  %v8301 = vld [vmem:[%s14 + $0x20] sm:$0xff]
  %v8302 = vld [vmem:[%s14 + $0x28] sm:$0xff]
  %v8303 = vld [vmem:[%s14 + $0x30] sm:$0xff]
  %v8304 = vld [vmem:[%s14 + $0x38] sm:$0xff]
  %v8306 = vsel %vm3644, %v8295, 0
  %v8309 = vsel %vm3644, %v8296, 0
  %8311 = vmatprep.subr.mxu0 0.0
  %8312 = vmatpush1.msra.mxu0 %v8297
  %8313 = vmatprep.subr.mxu0 0.0
  %8314 = vmatpush1.msra.mxu0 %v8298
  %8315 = vmatprep.subr.mxu0 0.0
  %8316 = vmatpush1.msra.mxu0 %v8299
  %8317 = vmatprep.subr.mxu0 0.0
  %8318 = vmatpush1.msra.mxu0 %v8300
  %8319 = vmatprep.subr.mxu0 0.0
  %8320 = vmatpush1.msra.mxu0 %v8301
  %8321 = vmatprep.subr.mxu0 0.0
  %8322 = vmatpush1.msra.mxu0 %v8302
  %8323 = vmatprep.subr.mxu0 0.0
  %8324 = vmatpush1.msra.mxu0 %v8303
  %8325 = vmatprep.subr.mxu0 0.0
  %8326 = vmatpush1.msra.mxu0 %v8304
  %8327 = vmatprep.subr.mxu0 0.0
  %8328 = vmatpush1.msra.mxu0 0.0
  %8329 = vmatprep.subr.mxu0 0.0
  %8330 = vmatpush1.msra.mxu0 0.0
  %8331 = vmatprep.subr.mxu0 0.0
  %8332 = vmatpush1.msra.mxu0 0.0
  %8333 = vmatprep.subr.mxu0 0.0
  %8334 = vmatpush1.msra.mxu0 0.0
  %8335 = vmatprep.subr.mxu0 0.0
  %8336 = vmatpush1.msra.mxu0 0.0
  %8337 = vmatprep.subr.mxu0 0.0
  %8338 = vmatpush1.msra.mxu0 0.0
  %8339 = vmatprep.subr.mxu0 0.0
  %8340 = vmatpush1.msra.mxu0 0.0
  %8341 = vmatprep.subr.mxu0 0.0
  %8342 = vmatpush1.msra.mxu0 0.0
  %8343 = vmatprep.subr.mxu0 0.0
  %8344 = vmatpush1.msra.mxu0 0.0
  %8345 = vmatprep.subr.mxu0 0.0
  %8346 = vmatpush1.msra.mxu0 0.0
  %8347 = vmatprep.subr.mxu0 0.0
  %8348 = vmatpush1.msra.mxu0 0.0
  %8349 = vmatprep.subr.mxu0 0.0
  %8350 = vmatpush1.msra.mxu0 0.0
  %8351 = vmatprep.subr.mxu0 0.0
  %8352 = vmatpush1.msra.mxu0 0.0
  %8353 = vmatprep.subr.mxu0 0.0
  %8354 = vmatpush1.msra.mxu0 0.0
  %8355 = vmatprep.subr.mxu0 0.0
  %8356 = vmatpush1.msra.mxu0 0.0
  %8357 = vmatprep.subr.mxu0 0.0
  %8358 = vmatpush1.msra.mxu0 0.0
  %8359 = vmatprep.subr.mxu0 0.0
  %8360 = vmatpush1.msra.mxu0 0.0
  %8361 = vmatprep.subr.mxu0 0.0
  %8362 = vmatpush1.msra.mxu0 0.0
  %8363 = vmatprep.subr.mxu0 0.0
  %8364 = vmatpush1.msra.mxu0 0.0
  %8365 = vmatprep.subr.mxu0 0.0
  %8366 = vmatpush1.msra.mxu0 0.0
  %8367 = vmatprep.subr.mxu0 0.0
  %8368 = vmatpush1.msra.mxu0 0.0
  %8369 = vmatprep.subr.mxu0 0.0
  %8370 = vmatpush1.msra.mxu0 0.0
  %8371 = vmatprep.subr.mxu0 0.0
  %8372 = vmatpush1.msra.mxu0 0.0
  %8373 = vmatprep.subr.mxu0 0.0
  %8374 = vmatpush1.msra.mxu0 0.0
  %8375 = vmatprep.mubr.f32.mxu0 0.0
  %8376 = vmatmul.mubr.f32.gmra.mrb[0].mxu0 %v8306
  %v8377 = vpop.f32.mrb[0].mxu0
  %v8378 = vadd.f32 %v2980, %v8377
  %v8379 = vpop.f32.mrb[0].mxu0
  %8380 = vmatprep.mubr.f32.mxu0 0.0
  %8381 = vmatmul.mubr.f32.gmra.mrb[0].mxu0 %v8309
  %v8382 = vpop.f32.mrb[0].mxu0
  %v8383 = vadd.f32 %v2980, %v8382
  %v8384 = vpop.f32.mrb[0].mxu0
  %8385 = vdwg.mxu0
  %v8386 = vsel %vm3726, %v8378, -inf
  %8387 = vmax.xlane.f32.xlu0 %v8386
  %v8388 = vpop.xlane.xlu0 %8387
  %v8389 = vsel %vm3726, %v8383, -inf
  %8390 = vmax.xlane.f32.xlu0 %v8389
  %v8391 = vpop.xlane.xlu0 %8390
  %v8392 = vsub.f32 %v8378, %v8388
  %v8393 = vsub.f32 %v8383, %v8391
  %v8394 = vmul.f32 %v8392, 1.442695
  %v8395 = vpow.pop %v8394
  %v8396 = vmul.f32 %v8393, 1.442695
  %v8397 = vpow.pop %v8396
  %v8398 = vsel %vm3726, %v8395, 0.0
  %8399 = vadd.xlane.f32.xlu0 %v8398
  %v8400 = vpop.xlane.xlu0 %8399
  %v8401 = vsel %vm3726, %v8397, 0.0
  %8402 = vadd.xlane.f32.xlu0 %v8401
  %v8403 = vpop.xlane.xlu0 %8402
  %v8404 = vlog2.pop %v8400
  %v8405 = vmul.f32 %v8404, 0.6931472
  %v8406 = vlog2.pop %v8403
  %v8407 = vmul.f32 %v8406, 0.6931472
  %v8408 = vadd.f32 %v8388, %v8405
  %v8409 = vadd.f32 %v8391, %v8407
  %v8410 = vsub.f32 %v8378, %v8408
  %v8411 = vsub.f32 %v8383, %v8409
  %8414 = vrot.lane.b32.xlu0 %v8410, 96
  %v8415 = vpop.permute.xlu0 %8414
  %8416 = vrot.lane.b32.xlu0 %v8411, 96
  %v8417 = vpop.permute.xlu0 %8416
  %vm8420 = vcmask 917248
  %8421 = vst.msk [vmem:[%s16] sm:$0xff] %vm8420, %v8415
  %8422 = vst.msk [vmem:[%s16 + $0x8] sm:$0xff] %vm8420, %v8417
  %v8423 = vld [vmem:[#allocation5 + $0x150] sm:$0xff]
  %v8424 = vld [vmem:[#allocation5 + $0x158] sm:$0xff]
  %v8425 = vld [vmem:[#allocation5 + $0x160] sm:$0xff]
  %v8426 = vld [vmem:[#allocation5 + $0x168] sm:$0xff]
  %v8427 = vld [vmem:[#allocation5 + $0x170] sm:$0xff]
  %v8428 = vld [vmem:[#allocation5 + $0x178] sm:$0xff]
  %v8429 = vld [vmem:[%s8] sm:$0xff]
  %v8430 = vld [vmem:[%s8 + $0x8] sm:$0xff]
  %v8431 = vld [vmem:[%s8 + $0x10] sm:$0xff]
  %v8432 = vld [vmem:[%s8 + $0x18] sm:$0xff]
  %v8433 = vld [vmem:[%s8 + $0x20] sm:$0xff]
  %v8434 = vld [vmem:[%s8 + $0x28] sm:$0xff]
  %v8435 = vld [vmem:[%s8 + $0x30] sm:$0xff]
  %v8436 = vld [vmem:[%s8 + $0x38] sm:$0xff]
  %v8437 = vld [vmem:[%s8 + $0x40] sm:$0xff]
  %v8438 = vld [vmem:[%s8 + $0x48] sm:$0xff]
  %v8439 = vld [vmem:[%s8 + $0x50] sm:$0xff]
  %v8440 = vld [vmem:[%s8 + $0x58] sm:$0xff]
  %v8441 = vsel %vm98, %v8279, 0
  %v8443 = vsel %vm98, %v8284, 0
  %8445 = vmatprep.subr.mxu0 %v8430
  %8446 = vmatpush1.msra.mxu0 %v8429
  %8447 = vmatprep.subr.mxu0 %v8433
  %8448 = vmatpush1.msra.mxu0 %v8432
  %8449 = vmatprep.subr.mxu0 %v8436
  %8450 = vmatpush1.msra.mxu0 %v8435
  %8451 = vmatprep.subr.mxu0 %v8439
  %8452 = vmatpush1.msra.mxu0 %v8438
  %8453 = vmatprep.subr.mxu0 0.0
  %8454 = vmatpush1.msra.mxu0 0.0
  %8455 = vmatprep.subr.mxu0 0.0
  %8456 = vmatpush1.msra.mxu0 0.0
  %8457 = vmatprep.subr.mxu0 0.0
  %8458 = vmatpush1.msra.mxu0 0.0
  %8459 = vmatprep.subr.mxu0 0.0
  %8460 = vmatpush1.msra.mxu0 0.0
  %8461 = vmatprep.subr.mxu0 0.0
  %8462 = vmatpush1.msra.mxu0 0.0
  %8463 = vmatprep.subr.mxu0 0.0
  %8464 = vmatpush1.msra.mxu0 0.0
  %8465 = vmatprep.subr.mxu0 0.0
  %8466 = vmatpush1.msra.mxu0 0.0
  %8467 = vmatprep.subr.mxu0 0.0
  %8468 = vmatpush1.msra.mxu0 0.0
  %8469 = vmatprep.subr.mxu0 0.0
  %8470 = vmatpush1.msra.mxu0 0.0
  %8471 = vmatprep.subr.mxu0 0.0
  %8472 = vmatpush1.msra.mxu0 0.0
  %8473 = vmatprep.subr.mxu0 0.0
  %8474 = vmatpush1.msra.mxu0 0.0
  %8475 = vmatprep.subr.mxu0 0.0
  %8476 = vmatpush1.msra.mxu0 0.0
  %8477 = vmatprep.subr.mxu0 0.0
  %8478 = vmatpush1.msra.mxu0 0.0
  %8479 = vmatprep.subr.mxu0 0.0
  %8480 = vmatpush1.msra.mxu0 0.0
  %8481 = vmatprep.subr.mxu0 0.0
  %8482 = vmatpush1.msra.mxu0 0.0
  %8483 = vmatprep.subr.mxu0 0.0
  %8484 = vmatpush1.msra.mxu0 0.0
  %8485 = vmatprep.subr.mxu0 0.0
  %8486 = vmatpush1.msra.mxu0 0.0
  %8487 = vmatprep.subr.mxu0 0.0
  %8488 = vmatpush1.msra.mxu0 0.0
  %8489 = vmatprep.subr.mxu0 0.0
  %8490 = vmatpush1.msra.mxu0 0.0
  %8491 = vmatprep.subr.mxu0 0.0
  %8492 = vmatpush1.msra.mxu0 0.0
  %8493 = vmatprep.subr.mxu0 0.0
  %8494 = vmatpush1.msra.mxu0 0.0
  %8495 = vmatprep.subr.mxu0 0.0
  %8496 = vmatpush1.msra.mxu0 0.0
  %8497 = vmatprep.subr.mxu0 0.0
  %8498 = vmatpush1.msra.mxu0 0.0
  %8499 = vmatprep.subr.mxu0 0.0
  %8500 = vmatpush1.msra.mxu0 0.0
  %8501 = vmatprep.subr.mxu0 0.0
  %8502 = vmatpush1.msra.mxu0 0.0
  %8503 = vmatprep.subr.mxu0 0.0
  %8504 = vmatpush1.msra.mxu0 0.0
  %8505 = vmatprep.subr.mxu0 0.0
  %8506 = vmatpush1.msra.mxu0 0.0
  %8507 = vmatprep.subr.mxu0 0.0
  %8508 = vmatpush1.msra.mxu0 0.0
  %8509 = vmatprep.mubr.f32.mxu0 0.0
  %8510 = vmatmul.mubr.f32.gmra.mrb[0].mxu0 %v8441
  %v8511 = vpop.f32.mrb[0].mxu0
  %v8512 = vadd.f32 0.0, %v8511
  %v8513 = vpop.f32.mrb[0].mxu0
  %v8514 = vadd.f32 0.0, %v8513
  %8515 = vmatprep.mubr.f32.mxu0 0.0
  %8516 = vmatmul.mubr.f32.gmra.mrb[0].mxu0 %v8443
  %v8517 = vpop.f32.mrb[0].mxu0
  %v8518 = vadd.f32 0.0, %v8517
  %v8519 = vpop.f32.mrb[0].mxu0
  %v8520 = vadd.f32 0.0, %v8519
  %8521 = vdwg.mxu0
  %8522 = vmatprep.subr.mxu0 0.0
  %8523 = vmatpush1.msra.mxu0 %v8431
  %8524 = vmatprep.subr.mxu0 0.0
  %8525 = vmatpush1.msra.mxu0 %v8434
  %8526 = vmatprep.subr.mxu0 0.0
  %8527 = vmatpush1.msra.mxu0 %v8437
  %8528 = vmatprep.subr.mxu0 0.0
  %8529 = vmatpush1.msra.mxu0 %v8440
  %8530 = vmatprep.subr.mxu0 0.0
  %8531 = vmatpush1.msra.mxu0 0.0
  %8532 = vmatprep.subr.mxu0 0.0
  %8533 = vmatpush1.msra.mxu0 0.0
  %8534 = vmatprep.subr.mxu0 0.0
  %8535 = vmatpush1.msra.mxu0 0.0
  %8536 = vmatprep.subr.mxu0 0.0
  %8537 = vmatpush1.msra.mxu0 0.0
  %8538 = vmatprep.subr.mxu0 0.0
  %8539 = vmatpush1.msra.mxu0 0.0
  %8540 = vmatprep.subr.mxu0 0.0
  %8541 = vmatpush1.msra.mxu0 0.0
  %8542 = vmatprep.subr.mxu0 0.0
  %8543 = vmatpush1.msra.mxu0 0.0
  %8544 = vmatprep.subr.mxu0 0.0
  %8545 = vmatpush1.msra.mxu0 0.0
  %8546 = vmatprep.subr.mxu0 0.0
  %8547 = vmatpush1.msra.mxu0 0.0
  %8548 = vmatprep.subr.mxu0 0.0
  %8549 = vmatpush1.msra.mxu0 0.0
  %8550 = vmatprep.subr.mxu0 0.0
  %8551 = vmatpush1.msra.mxu0 0.0
  %8552 = vmatprep.subr.mxu0 0.0
  %8553 = vmatpush1.msra.mxu0 0.0
  %8554 = vmatprep.subr.mxu0 0.0
  %8555 = vmatpush1.msra.mxu0 0.0
  %8556 = vmatprep.subr.mxu0 0.0
  %8557 = vmatpush1.msra.mxu0 0.0
  %8558 = vmatprep.subr.mxu0 0.0
  %8559 = vmatpush1.msra.mxu0 0.0
  %8560 = vmatprep.subr.mxu0 0.0
  %8561 = vmatpush1.msra.mxu0 0.0
  %8562 = vmatprep.subr.mxu0 0.0
  %8563 = vmatpush1.msra.mxu0 0.0
  %8564 = vmatprep.subr.mxu0 0.0
  %8565 = vmatpush1.msra.mxu0 0.0
  %8566 = vmatprep.subr.mxu0 0.0
  %8567 = vmatpush1.msra.mxu0 0.0
  %8568 = vmatprep.subr.mxu0 0.0
  %8569 = vmatpush1.msra.mxu0 0.0
  %8570 = vmatprep.subr.mxu0 0.0
  %8571 = vmatpush1.msra.mxu0 0.0
  %8572 = vmatprep.subr.mxu0 0.0
  %8573 = vmatpush1.msra.mxu0 0.0
  %8574 = vmatprep.subr.mxu0 0.0
  %8575 = vmatpush1.msra.mxu0 0.0
  %8576 = vmatprep.subr.mxu0 0.0
  %8577 = vmatpush1.msra.mxu0 0.0
  %8578 = vmatprep.subr.mxu0 0.0
  %8579 = vmatpush1.msra.mxu0 0.0
  %8580 = vmatprep.subr.mxu0 0.0
  %8581 = vmatpush1.msra.mxu0 0.0
  %8582 = vmatprep.subr.mxu0 0.0
  %8583 = vmatpush1.msra.mxu0 0.0
  %8584 = vmatprep.subr.mxu0 0.0
  %8585 = vmatpush1.msra.mxu0 0.0
  %8586 = vmatprep.mubr.f32.mxu0 0.0
  %8587 = vmatmul.mubr.f32.gmra.mrb[0].mxu0 %v8441
  %v8588 = vpop.f32.mrb[0].mxu0
  %v8589 = vadd.f32 0.0, %v8588
  %v8590 = vpop.f32.mrb[0].mxu0
  %8591 = vmatprep.mubr.f32.mxu0 0.0
  %8592 = vmatmul.mubr.f32.gmra.mrb[0].mxu0 %v8443
  %v8593 = vpop.f32.mrb[0].mxu0
  %v8594 = vadd.f32 0.0, %v8593
  %v8595 = vpop.f32.mrb[0].mxu0
  %8596 = vdwg.mxu0
  %v8597 = vadd.f32 %v8423, %v8512
  %v8598 = vadd.f32 %v8424, %v8514
  %v8599 = vadd.f32 %v8425, %v8589
  %v8600 = vadd.f32 %v8426, %v8518
  %v8601 = vadd.f32 %v8427, %v8520
  %v8602 = vadd.f32 %v8428, %v8594
  %v8603 = vld [vmem:[%s9] sm:$0xff]
  %v8604 = vld [vmem:[%s9 + $0x8] sm:$0xff]
  %v8605 = vld [vmem:[%s9 + $0x10] sm:$0xff]
  %v8606 = vld [vmem:[%s9 + $0x18] sm:$0xff]
  %v8607 = vld [vmem:[%s9 + $0x20] sm:$0xff]
  %v8608 = vld [vmem:[%s9 + $0x28] sm:$0xff]
  %v8609 = vld [vmem:[%s9 + $0x30] sm:$0xff]
  %v8610 = vld [vmem:[%s9 + $0x38] sm:$0xff]
  %v8611 = vld [vmem:[%s9 + $0x40] sm:$0xff]
  %v8612 = vld [vmem:[%s9 + $0x48] sm:$0xff]
  %v8613 = vld [vmem:[%s9 + $0x50] sm:$0xff]
  %v8614 = vld [vmem:[%s9 + $0x58] sm:$0xff]
  %8615 = vmatprep.subr.mxu0 %v8604
  %8616 = vmatpush1.msra.mxu0 %v8603
  %8617 = vmatprep.subr.mxu0 %v8607
  %8618 = vmatpush1.msra.mxu0 %v8606
  %8619 = vmatprep.subr.mxu0 %v8610
  %8620 = vmatpush1.msra.mxu0 %v8609
  %8621 = vmatprep.subr.mxu0 %v8613
  %8622 = vmatpush1.msra.mxu0 %v8612
  %8623 = vmatprep.subr.mxu0 0.0
  %8624 = vmatpush1.msra.mxu0 0.0
  %8625 = vmatprep.subr.mxu0 0.0
  %8626 = vmatpush1.msra.mxu0 0.0
  %8627 = vmatprep.subr.mxu0 0.0
  %8628 = vmatpush1.msra.mxu0 0.0
  %8629 = vmatprep.subr.mxu0 0.0
  %8630 = vmatpush1.msra.mxu0 0.0
  %8631 = vmatprep.subr.mxu0 0.0
  %8632 = vmatpush1.msra.mxu0 0.0
  %8633 = vmatprep.subr.mxu0 0.0
  %8634 = vmatpush1.msra.mxu0 0.0
  %8635 = vmatprep.subr.mxu0 0.0
  %8636 = vmatpush1.msra.mxu0 0.0
  %8637 = vmatprep.subr.mxu0 0.0
  %8638 = vmatpush1.msra.mxu0 0.0
  %8639 = vmatprep.subr.mxu0 0.0
  %8640 = vmatpush1.msra.mxu0 0.0
  %8641 = vmatprep.subr.mxu0 0.0
  %8642 = vmatpush1.msra.mxu0 0.0
  %8643 = vmatprep.subr.mxu0 0.0
  %8644 = vmatpush1.msra.mxu0 0.0
  %8645 = vmatprep.subr.mxu0 0.0
  %8646 = vmatpush1.msra.mxu0 0.0
  %8647 = vmatprep.subr.mxu0 0.0
  %8648 = vmatpush1.msra.mxu0 0.0
  %8649 = vmatprep.subr.mxu0 0.0
  %8650 = vmatpush1.msra.mxu0 0.0
  %8651 = vmatprep.subr.mxu0 0.0
  %8652 = vmatpush1.msra.mxu0 0.0
  %8653 = vmatprep.subr.mxu0 0.0
  %8654 = vmatpush1.msra.mxu0 0.0
  %8655 = vmatprep.subr.mxu0 0.0
  %8656 = vmatpush1.msra.mxu0 0.0
  %8657 = vmatprep.subr.mxu0 0.0
  %8658 = vmatpush1.msra.mxu0 0.0
  %8659 = vmatprep.subr.mxu0 0.0
  %8660 = vmatpush1.msra.mxu0 0.0
  %8661 = vmatprep.subr.mxu0 0.0
  %8662 = vmatpush1.msra.mxu0 0.0
  %8663 = vmatprep.subr.mxu0 0.0
  %8664 = vmatpush1.msra.mxu0 0.0
  %8665 = vmatprep.subr.mxu0 0.0
  %8666 = vmatpush1.msra.mxu0 0.0
  %8667 = vmatprep.subr.mxu0 0.0
  %8668 = vmatpush1.msra.mxu0 0.0
  %8669 = vmatprep.subr.mxu0 0.0
  %8670 = vmatpush1.msra.mxu0 0.0
  %8671 = vmatprep.subr.mxu0 0.0
  %8672 = vmatpush1.msra.mxu0 0.0
  %8673 = vmatprep.subr.mxu0 0.0
  %8674 = vmatpush1.msra.mxu0 0.0
  %8675 = vmatprep.subr.mxu0 0.0
  %8676 = vmatpush1.msra.mxu0 0.0
  %8677 = vmatprep.subr.mxu0 0.0
  %8678 = vmatpush1.msra.mxu0 0.0
  %8679 = vmatprep.mubr.f32.mxu0 0.0
  %8680 = vmatmul.mubr.f32.gmra.mrb[0].mxu0 %v8050
  %v8681 = vpop.f32.mrb[0].mxu0
  %v8682 = vadd.f32 %v2963, %v8681
  %v8683 = vpop.f32.mrb[0].mxu0
  %v8684 = vadd.f32 %v2967, %v8683
  %8685 = vmatprep.mubr.f32.mxu0 0.0
  %8686 = vmatmul.mubr.f32.gmra.mrb[0].mxu0 %v8053
  %v8687 = vpop.f32.mrb[0].mxu0
  %v8688 = vadd.f32 %v2963, %v8687
  %v8689 = vpop.f32.mrb[0].mxu0
  %v8690 = vadd.f32 %v2967, %v8689
  %8691 = vdwg.mxu0
  %8692 = vmatprep.subr.mxu0 0.0
  %8693 = vmatpush1.msra.mxu0 %v8605
  %8694 = vmatprep.subr.mxu0 0.0
  %8695 = vmatpush1.msra.mxu0 %v8608
  %8696 = vmatprep.subr.mxu0 0.0
  %8697 = vmatpush1.msra.mxu0 %v8611
  %8698 = vmatprep.subr.mxu0 0.0
  %8699 = vmatpush1.msra.mxu0 %v8614
  %8700 = vmatprep.subr.mxu0 0.0
  %8701 = vmatpush1.msra.mxu0 0.0
  %8702 = vmatprep.subr.mxu0 0.0
  %8703 = vmatpush1.msra.mxu0 0.0
  %8704 = vmatprep.subr.mxu0 0.0
  %8705 = vmatpush1.msra.mxu0 0.0
  %8706 = vmatprep.subr.mxu0 0.0
  %8707 = vmatpush1.msra.mxu0 0.0
  %8708 = vmatprep.subr.mxu0 0.0
  %8709 = vmatpush1.msra.mxu0 0.0
  %8710 = vmatprep.subr.mxu0 0.0
  %8711 = vmatpush1.msra.mxu0 0.0
  %8712 = vmatprep.subr.mxu0 0.0
  %8713 = vmatpush1.msra.mxu0 0.0
  %8714 = vmatprep.subr.mxu0 0.0
  %8715 = vmatpush1.msra.mxu0 0.0
  %8716 = vmatprep.subr.mxu0 0.0
  %8717 = vmatpush1.msra.mxu0 0.0
  %8718 = vmatprep.subr.mxu0 0.0
  %8719 = vmatpush1.msra.mxu0 0.0
  %8720 = vmatprep.subr.mxu0 0.0
  %8721 = vmatpush1.msra.mxu0 0.0
  %8722 = vmatprep.subr.mxu0 0.0
  %8723 = vmatpush1.msra.mxu0 0.0
  %8724 = vmatprep.subr.mxu0 0.0
  %8725 = vmatpush1.msra.mxu0 0.0
  %8726 = vmatprep.subr.mxu0 0.0
  %8727 = vmatpush1.msra.mxu0 0.0
  %8728 = vmatprep.subr.mxu0 0.0
  %8729 = vmatpush1.msra.mxu0 0.0
  %8730 = vmatprep.subr.mxu0 0.0
  %8731 = vmatpush1.msra.mxu0 0.0
  %8732 = vmatprep.subr.mxu0 0.0
  %8733 = vmatpush1.msra.mxu0 0.0
  %8734 = vmatprep.subr.mxu0 0.0
  %8735 = vmatpush1.msra.mxu0 0.0
  %8736 = vmatprep.subr.mxu0 0.0
  %8737 = vmatpush1.msra.mxu0 0.0
  %8738 = vmatprep.subr.mxu0 0.0
  %8739 = vmatpush1.msra.mxu0 0.0
  %8740 = vmatprep.subr.mxu0 0.0
  %8741 = vmatpush1.msra.mxu0 0.0
  %8742 = vmatprep.subr.mxu0 0.0
  %8743 = vmatpush1.msra.mxu0 0.0
  %8744 = vmatprep.subr.mxu0 0.0
  %8745 = vmatpush1.msra.mxu0 0.0
  %8746 = vmatprep.subr.mxu0 0.0
  %8747 = vmatpush1.msra.mxu0 0.0
  %8748 = vmatprep.subr.mxu0 0.0
  %8749 = vmatpush1.msra.mxu0 0.0
  %8750 = vmatprep.subr.mxu0 0.0
  %8751 = vmatpush1.msra.mxu0 0.0
  %8752 = vmatprep.subr.mxu0 0.0
  %8753 = vmatpush1.msra.mxu0 0.0
  %8754 = vmatprep.subr.mxu0 0.0
  %8755 = vmatpush1.msra.mxu0 0.0
  %8756 = vmatprep.mubr.f32.mxu0 0.0
  %8757 = vmatmul.mubr.f32.gmra.mrb[0].mxu0 %v8050
  %v8758 = vpop.f32.mrb[0].mxu0
  %v8759 = vadd.f32 %v2971, %v8758
  %v8760 = vpop.f32.mrb[0].mxu0
  %8761 = vmatprep.mubr.f32.mxu0 0.0
  %8762 = vmatmul.mubr.f32.gmra.mrb[0].mxu0 %v8053
  %v8763 = vpop.f32.mrb[0].mxu0
  %v8764 = vadd.f32 %v2971, %v8763
  %v8765 = vpop.f32.mrb[0].mxu0
  %8766 = vdwg.mxu0
  %v8767 = vadd.f32 %v8597, %v8682
  %v8768 = vadd.f32 %v8600, %v8688
  %v8769 = vxor.u32 %v8767, 2147483648
  %v8770 = vxor.u32 %v8768, 2147483648
  %v8771 = vmul.f32 %v8769, 1.442695
  %v8772 = vpow.pop %v8771
  %v8773 = vmul.f32 %v8770, 1.442695
  %v8774 = vpow.pop %v8773
  %v8775 = vadd.f32 %v8772, 1.0
  %v8776 = vadd.f32 %v8774, 1.0
  %v8777 = vrcp.pop %v8775
  %v8778 = vmul.f32 1.0, %v8777
  %v8779 = vrcp.pop %v8776
  %v8780 = vmul.f32 1.0, %v8779
  %v8781 = vadd.f32 %v8598, %v8684
  %v8782 = vadd.f32 %v8601, %v8690
  %v8783 = vxor.u32 %v8781, 2147483648
  %v8784 = vxor.u32 %v8782, 2147483648
  %v8785 = vmul.f32 %v8783, 1.442695
  %v8786 = vpow.pop %v8785
  %v8787 = vmul.f32 %v8784, 1.442695
  %v8788 = vpow.pop %v8787
  %v8789 = vadd.f32 %v8786, 1.0
  %v8790 = vadd.f32 %v8788, 1.0
  %v8791 = vrcp.pop %v8789
  %v8792 = vmul.f32 1.0, %v8791
  %v8793 = vrcp.pop %v8790
  %v8794 = vmul.f32 1.0, %v8793
  %v8795 = vmul.f32 %v8778, %v8759
  %v8796 = vmul.f32 %v8780, %v8764
  %v8797 = vadd.f32 %v8599, %v8795
  %v8798 = vadd.f32 %v8602, %v8796
  %v8799 = vtanh.pop %v8797
  %v8800 = vtanh.pop %v8798
  %v8801 = vsub.f32 1.0, %v8792
  %v8802 = vsub.f32 1.0, %v8794
  %v8803 = vmul.f32 %v8801, %v8799
  %v8804 = vmul.f32 %v8802, %v8800
  %v8805 = vmul.f32 %v8792, %v8029
  %v8806 = vmul.f32 %v8794, %v8030
  %v8807 = vadd.f32 %v8803, %v8805
  %v8808 = vadd.f32 %v8804, %v8806
  %v8809 = vld [vmem:[#allocation3] sm:$0xff]
  %v8810 = vld [vmem:[#allocation3 + $0x8] sm:$0xff]
  %v8811 = vld [vmem:[#allocation3 + $0x10] sm:$0xff]
  %v8812 = vld [vmem:[#allocation3 + $0x18] sm:$0xff]
  %v8813 = vld [vmem:[#allocation3 + $0x20] sm:$0xff]
  %v8814 = vld [vmem:[#allocation3 + $0x28] sm:$0xff]
  %v8815 = vld [vmem:[#allocation3 + $0x30] sm:$0xff]
  %v8816 = vld [vmem:[#allocation3 + $0x38] sm:$0xff]
  %v8817 = vld [vmem:[#allocation3 + $0x40] sm:$0xff]
  %v8818 = vld [vmem:[#allocation3 + $0x48] sm:$0xff]
  %v8819 = vld [vmem:[#allocation3 + $0x50] sm:$0xff]
  %v8820 = vld [vmem:[#allocation3 + $0x58] sm:$0xff]
  %v8821 = vld [vmem:[#allocation3 + $0x60] sm:$0xff]
  %v8822 = vld [vmem:[#allocation3 + $0x68] sm:$0xff]
  %v8823 = vld [vmem:[#allocation3 + $0x70] sm:$0xff]
  %v8824 = vld [vmem:[#allocation3 + $0x78] sm:$0xff]
  %v8825 = vld [vmem:[%s2] sm:$0xff]
  %v8826 = vld [vmem:[%s2 + $0x8] sm:$0xff]
  %v8828 = vsel %vm98, %v8807, 0
  %v8831 = vsel %vm98, %v8808, 0
  %v8834 = vsel %vm98, %v8809, 0
  %v8837 = vsel %vm98, %v8810, 0
  %v8840 = vsel %vm98, %v8811, 0
  %v8843 = vsel %vm98, %v8812, 0
  %v8846 = vsel %vm98, %v8813, 0
  %v8849 = vsel %vm98, %v8814, 0
  %v8852 = vsel %vm98, %v8815, 0
  %v8855 = vsel %vm98, %v8816, 0
  %v8858 = vsel %vm98, %v8817, 0
  %v8861 = vsel %vm98, %v8818, 0
  %v8864 = vsel %vm98, %v8819, 0
  %v8867 = vsel %vm98, %v8820, 0
  %v8870 = vsel %vm98, %v8821, 0
  %v8873 = vsel %vm98, %v8822, 0
  %v8876 = vsel %vm98, %v8823, 0
  %v8879 = vsel %vm98, %v8824, 0
  %8881 = vmatprep.subr.mxu0 0.0
  %8882 = vmatpush1.xpose.msra.mxu0 %v8834
  %8883 = vmatprep.subr.mxu0 0.0
  %8884 = vmatpush1.xpose.msra.mxu0 %v8837
  %8885 = vmatprep.subr.mxu0 0.0
  %8886 = vmatpush1.xpose.msra.mxu0 %v8840
  %8887 = vmatprep.subr.mxu0 0.0
  %8888 = vmatpush1.xpose.msra.mxu0 %v8843
  %8889 = vmatprep.subr.mxu0 0.0
  %8890 = vmatpush1.xpose.msra.mxu0 %v8846
  %8891 = vmatprep.subr.mxu0 0.0
  %8892 = vmatpush1.xpose.msra.mxu0 %v8849
  %8893 = vmatprep.subr.mxu0 0.0
  %8894 = vmatpush1.xpose.msra.mxu0 %v8852
  %8895 = vmatprep.subr.mxu0 0.0
  %8896 = vmatpush1.xpose.msra.mxu0 %v8855
  %8897 = vmatprep.subr.mxu0 0.0
  %8898 = vmatpush1.xpose.msra.mxu0 %v8858
  %8899 = vmatprep.subr.mxu0 0.0
  %8900 = vmatpush1.xpose.msra.mxu0 %v8861
  %8901 = vmatprep.subr.mxu0 0.0
  %8902 = vmatpush1.xpose.msra.mxu0 %v8864
  %8903 = vmatprep.subr.mxu0 0.0
  %8904 = vmatpush1.xpose.msra.mxu0 %v8867
  %8905 = vmatprep.subr.mxu0 0.0
  %8906 = vmatpush1.xpose.msra.mxu0 %v8870
  %8907 = vmatprep.subr.mxu0 0.0
  %8908 = vmatpush1.xpose.msra.mxu0 %v8873
  %8909 = vmatprep.subr.mxu0 0.0
  %8910 = vmatpush1.xpose.msra.mxu0 %v8876
  %8911 = vmatprep.subr.mxu0 0.0
  %8912 = vmatpush1.xpose.msra.mxu0 %v8879
  %8913 = vmatprep.subr.mxu0 0.0
  %8914 = vmatpush1.xpose.msra.mxu0 0.0
  %8915 = vmatprep.subr.mxu0 0.0
  %8916 = vmatpush1.xpose.msra.mxu0 0.0
  %8917 = vmatprep.subr.mxu0 0.0
  %8918 = vmatpush1.xpose.msra.mxu0 0.0
  %8919 = vmatprep.subr.mxu0 0.0
  %8920 = vmatpush1.xpose.msra.mxu0 0.0
  %8921 = vmatprep.subr.mxu0 0.0
  %8922 = vmatpush1.xpose.msra.mxu0 0.0
  %8923 = vmatprep.subr.mxu0 0.0
  %8924 = vmatpush1.xpose.msra.mxu0 0.0
  %8925 = vmatprep.subr.mxu0 0.0
  %8926 = vmatpush1.xpose.msra.mxu0 0.0
  %8927 = vmatprep.subr.mxu0 0.0
  %8928 = vmatpush1.xpose.msra.mxu0 0.0
  %8929 = vmatprep.subr.mxu0 0.0
  %8930 = vmatpush1.xpose.msra.mxu0 0.0
  %8931 = vmatprep.subr.mxu0 0.0
  %8932 = vmatpush1.xpose.msra.mxu0 0.0
  %8933 = vmatprep.subr.mxu0 0.0
  %8934 = vmatpush1.xpose.msra.mxu0 0.0
  %8935 = vmatprep.subr.mxu0 0.0
  %8936 = vmatpush1.xpose.msra.mxu0 0.0
  %8937 = vmatprep.subr.mxu0 0.0
  %8938 = vmatpush1.xpose.msra.mxu0 0.0
  %8939 = vmatprep.subr.mxu0 0.0
  %8940 = vmatpush1.xpose.msra.mxu0 0.0
  %8941 = vmatprep.subr.mxu0 0.0
  %8942 = vmatpush1.xpose.msra.mxu0 0.0
  %8943 = vmatprep.subr.mxu0 0.0
  %8944 = vmatpush1.xpose.msra.mxu0 0.0
  %8945 = vmatprep.mubr.f32.mxu0 0.0
  %8946 = vmatmul.mubr.f32.gmra.mrb[0].mxu0 %v8828
  %v8947 = vpop.f32.mrb[0].mxu0
  %v8948 = vadd.f32 %v8825, %v8947
  %v8949 = vpop.f32.mrb[0].mxu0
  %8950 = vmatprep.mubr.f32.mxu0 0.0
  %8951 = vmatmul.mubr.f32.gmra.mrb[0].mxu0 %v8831
  %v8952 = vpop.f32.mrb[0].mxu0
  %v8953 = vadd.f32 %v8826, %v8952
  %v8954 = vpop.f32.mrb[0].mxu0
  %8955 = vdwg.mxu0
  %8956 = vmax.xlane.f32.xlu0 %v8948
  %v8957 = vpop.xlane.xlu0 %8956
  %8958 = vmax.xlane.f32.xlu0 %v8953
  %v8959 = vpop.xlane.xlu0 %8958
  %v8960 = vsub.f32 %v8948, %v8957
  %v8961 = vsub.f32 %v8953, %v8959
  %v8962 = vmul.f32 %v8960, 1.442695
  %v8963 = vpow.pop %v8962
  %v8964 = vmul.f32 %v8961, 1.442695
  %v8965 = vpow.pop %v8964
  %8966 = vadd.xlane.f32.xlu0 %v8963
  %v8967 = vpop.xlane.xlu0 %8966
  %8968 = vadd.xlane.f32.xlu0 %v8965
  %v8969 = vpop.xlane.xlu0 %8968
  %v8970 = vrcp.pop %v8967
  %v8971 = vrcp.pop %v8969
  %v8972 = vmul.f32 %v8963, %v8970
  %v8973 = vmul.f32 %v8965, %v8971
  %v8974 = vld [vmem:[#allocation2] sm:$0xff]
  %v8975 = vld [vmem:[#allocation2 + $0x8] sm:$0xff]
  %v8976 = vld [vmem:[#allocation2 + $0x10] sm:$0xff]
  %v8977 = vld [vmem:[#allocation2 + $0x18] sm:$0xff]
  %v8978 = vld [vmem:[#allocation2 + $0x20] sm:$0xff]
  %v8979 = vld [vmem:[#allocation2 + $0x28] sm:$0xff]
  %v8980 = vld [vmem:[#allocation2 + $0x30] sm:$0xff]
  %v8981 = vld [vmem:[#allocation2 + $0x38] sm:$0xff]
  %v8982 = vld [vmem:[#allocation2 + $0x40] sm:$0xff]
  %v8983 = vld [vmem:[#allocation2 + $0x48] sm:$0xff]
  %v8984 = vld [vmem:[#allocation2 + $0x50] sm:$0xff]
  %v8985 = vld [vmem:[#allocation2 + $0x58] sm:$0xff]
  %v8986 = vld [vmem:[#allocation2 + $0x60] sm:$0xff]
  %v8987 = vld [vmem:[#allocation2 + $0x68] sm:$0xff]
  %v8988 = vld [vmem:[#allocation2 + $0x70] sm:$0xff]
  %v8989 = vld [vmem:[#allocation2 + $0x78] sm:$0xff]
  %8990 = vmatprep.subr.mxu0 0.0
  %8991 = vmatpush1.msra.mxu0 %v8974
  %8992 = vmatprep.subr.mxu0 0.0
  %8993 = vmatpush1.msra.mxu0 %v8975
  %8994 = vmatprep.subr.mxu0 0.0
  %8995 = vmatpush1.msra.mxu0 %v8976
  %8996 = vmatprep.subr.mxu0 0.0
  %8997 = vmatpush1.msra.mxu0 %v8977
  %8998 = vmatprep.subr.mxu0 0.0
  %8999 = vmatpush1.msra.mxu0 %v8978
  %9000 = vmatprep.subr.mxu0 0.0
  %9001 = vmatpush1.msra.mxu0 %v8979
  %9002 = vmatprep.subr.mxu0 0.0
  %9003 = vmatpush1.msra.mxu0 %v8980
  %9004 = vmatprep.subr.mxu0 0.0
  %9005 = vmatpush1.msra.mxu0 %v8981
  %9006 = vmatprep.subr.mxu0 0.0
  %9007 = vmatpush1.msra.mxu0 %v8982
  %9008 = vmatprep.subr.mxu0 0.0
  %9009 = vmatpush1.msra.mxu0 %v8983
  %9010 = vmatprep.subr.mxu0 0.0
  %9011 = vmatpush1.msra.mxu0 %v8984
  %9012 = vmatprep.subr.mxu0 0.0
  %9013 = vmatpush1.msra.mxu0 %v8985
  %9014 = vmatprep.subr.mxu0 0.0
  %9015 = vmatpush1.msra.mxu0 %v8986
  %9016 = vmatprep.subr.mxu0 0.0
  %9017 = vmatpush1.msra.mxu0 %v8987
  %9018 = vmatprep.subr.mxu0 0.0
  %9019 = vmatpush1.msra.mxu0 %v8988
  %9020 = vmatprep.subr.mxu0 0.0
  %9021 = vmatpush1.msra.mxu0 %v8989
  %9022 = vmatprep.subr.mxu0 0.0
  %9023 = vmatpush1.msra.mxu0 0.0
  %9024 = vmatprep.subr.mxu0 0.0
  %9025 = vmatpush1.msra.mxu0 0.0
  %9026 = vmatprep.subr.mxu0 0.0
  %9027 = vmatpush1.msra.mxu0 0.0
  %9028 = vmatprep.subr.mxu0 0.0
  %9029 = vmatpush1.msra.mxu0 0.0
  %9030 = vmatprep.subr.mxu0 0.0
  %9031 = vmatpush1.msra.mxu0 0.0
  %9032 = vmatprep.subr.mxu0 0.0
  %9033 = vmatpush1.msra.mxu0 0.0
  %9034 = vmatprep.subr.mxu0 0.0
  %9035 = vmatpush1.msra.mxu0 0.0
  %9036 = vmatprep.subr.mxu0 0.0
  %9037 = vmatpush1.msra.mxu0 0.0
  %9038 = vmatprep.subr.mxu0 0.0
  %9039 = vmatpush1.msra.mxu0 0.0
  %9040 = vmatprep.subr.mxu0 0.0
  %9041 = vmatpush1.msra.mxu0 0.0
  %9042 = vmatprep.subr.mxu0 0.0
  %9043 = vmatpush1.msra.mxu0 0.0
  %9044 = vmatprep.subr.mxu0 0.0
  %9045 = vmatpush1.msra.mxu0 0.0
  %9046 = vmatprep.subr.mxu0 0.0
  %9047 = vmatpush1.msra.mxu0 0.0
  %9048 = vmatprep.subr.mxu0 0.0
  %9049 = vmatpush1.msra.mxu0 0.0
  %9050 = vmatprep.subr.mxu0 0.0
  %9051 = vmatpush1.msra.mxu0 0.0
  %9052 = vmatprep.subr.mxu0 0.0
  %9053 = vmatpush1.msra.mxu0 0.0
  %9054 = vmatprep.mubr.f32.mxu0 0.0
  %9055 = vmatmul.mubr.f32.gmra.mrb[0].mxu0 %v8972
  %v9056 = vpop.f32.mrb[0].mxu0
  %v9057 = vadd.f32 0.0, %v9056
  %v9058 = vpop.f32.mrb[0].mxu0
  %9059 = vmatprep.mubr.f32.mxu0 0.0
  %9060 = vmatmul.mubr.f32.gmra.mrb[0].mxu0 %v8973
  %v9061 = vpop.f32.mrb[0].mxu0
  %v9062 = vadd.f32 0.0, %v9061
  %v9063 = vpop.f32.mrb[0].mxu0
  %9064 = vdwg.mxu0
  %9067 = vrot.lane.b32.xlu0 %v9057, 32
  %v9068 = vpop.permute.xlu0 %9067
  %9069 = vrot.lane.b32.xlu0 %v9062, 32
  %v9070 = vpop.permute.xlu0 %9069
  %v9073 = vsel %vm98, %v8807, %v9068
  %v9074 = vsel %vm98, %v8808, %v9070
  %v9075 = vld [vmem:[%s14] sm:$0xff]
  %v9076 = vld [vmem:[%s14 + $0x8] sm:$0xff]
  %v9077 = vld [vmem:[%s14 + $0x10] sm:$0xff]
  %v9078 = vld [vmem:[%s14 + $0x18] sm:$0xff]
  %v9079 = vld [vmem:[%s14 + $0x20] sm:$0xff]
  %v9080 = vld [vmem:[%s14 + $0x28] sm:$0xff]
  %v9081 = vld [vmem:[%s14 + $0x30] sm:$0xff]
  %v9082 = vld [vmem:[%s14 + $0x38] sm:$0xff]
  %v9084 = vsel %vm3644, %v9073, 0
  %v9087 = vsel %vm3644, %v9074, 0
  %9089 = vmatprep.subr.mxu0 0.0
  %9090 = vmatpush1.msra.mxu0 %v9075
  %9091 = vmatprep.subr.mxu0 0.0
  %9092 = vmatpush1.msra.mxu0 %v9076
  %9093 = vmatprep.subr.mxu0 0.0
  %9094 = vmatpush1.msra.mxu0 %v9077
  %9095 = vmatprep.subr.mxu0 0.0
  %9096 = vmatpush1.msra.mxu0 %v9078
  %9097 = vmatprep.subr.mxu0 0.0
  %9098 = vmatpush1.msra.mxu0 %v9079
  %9099 = vmatprep.subr.mxu0 0.0
  %9100 = vmatpush1.msra.mxu0 %v9080
  %9101 = vmatprep.subr.mxu0 0.0
  %9102 = vmatpush1.msra.mxu0 %v9081
  %9103 = vmatprep.subr.mxu0 0.0
  %9104 = vmatpush1.msra.mxu0 %v9082
  %9105 = vmatprep.subr.mxu0 0.0
  %9106 = vmatpush1.msra.mxu0 0.0
  %9107 = vmatprep.subr.mxu0 0.0
  %9108 = vmatpush1.msra.mxu0 0.0
  %9109 = vmatprep.subr.mxu0 0.0
  %9110 = vmatpush1.msra.mxu0 0.0
  %9111 = vmatprep.subr.mxu0 0.0
  %9112 = vmatpush1.msra.mxu0 0.0
  %9113 = vmatprep.subr.mxu0 0.0
  %9114 = vmatpush1.msra.mxu0 0.0
  %9115 = vmatprep.subr.mxu0 0.0
  %9116 = vmatpush1.msra.mxu0 0.0
  %9117 = vmatprep.subr.mxu0 0.0
  %9118 = vmatpush1.msra.mxu0 0.0
  %9119 = vmatprep.subr.mxu0 0.0
  %9120 = vmatpush1.msra.mxu0 0.0
  %9121 = vmatprep.subr.mxu0 0.0
  %9122 = vmatpush1.msra.mxu0 0.0
  %9123 = vmatprep.subr.mxu0 0.0
  %9124 = vmatpush1.msra.mxu0 0.0
  %9125 = vmatprep.subr.mxu0 0.0
  %9126 = vmatpush1.msra.mxu0 0.0
  %9127 = vmatprep.subr.mxu0 0.0
  %9128 = vmatpush1.msra.mxu0 0.0
  %9129 = vmatprep.subr.mxu0 0.0
  %9130 = vmatpush1.msra.mxu0 0.0
  %9131 = vmatprep.subr.mxu0 0.0
  %9132 = vmatpush1.msra.mxu0 0.0
  %9133 = vmatprep.subr.mxu0 0.0
  %9134 = vmatpush1.msra.mxu0 0.0
  %9135 = vmatprep.subr.mxu0 0.0
  %9136 = vmatpush1.msra.mxu0 0.0
  %9137 = vmatprep.subr.mxu0 0.0
  %9138 = vmatpush1.msra.mxu0 0.0
  %9139 = vmatprep.subr.mxu0 0.0
  %9140 = vmatpush1.msra.mxu0 0.0
  %9141 = vmatprep.subr.mxu0 0.0
  %9142 = vmatpush1.msra.mxu0 0.0
  %9143 = vmatprep.subr.mxu0 0.0
  %9144 = vmatpush1.msra.mxu0 0.0
  %9145 = vmatprep.subr.mxu0 0.0
  %9146 = vmatpush1.msra.mxu0 0.0
  %9147 = vmatprep.subr.mxu0 0.0
  %9148 = vmatpush1.msra.mxu0 0.0
  %9149 = vmatprep.subr.mxu0 0.0
  %9150 = vmatpush1.msra.mxu0 0.0
  %9151 = vmatprep.subr.mxu0 0.0
  %9152 = vmatpush1.msra.mxu0 0.0
  %9153 = vmatprep.mubr.f32.mxu0 0.0
  %9154 = vmatmul.mubr.f32.gmra.mrb[0].mxu0 %v9084
  %v9155 = vpop.f32.mrb[0].mxu0
  %v9156 = vadd.f32 %v2980, %v9155
  %v9157 = vpop.f32.mrb[0].mxu0
  %9158 = vmatprep.mubr.f32.mxu0 0.0
  %9159 = vmatmul.mubr.f32.gmra.mrb[0].mxu0 %v9087
  %v9160 = vpop.f32.mrb[0].mxu0
  %v9161 = vadd.f32 %v2980, %v9160
  %v9162 = vpop.f32.mrb[0].mxu0
  %9163 = vdwg.mxu0
  %v9164 = vsel %vm3726, %v9156, -inf
  %9165 = vmax.xlane.f32.xlu0 %v9164
  %v9166 = vpop.xlane.xlu0 %9165
  %v9167 = vsel %vm3726, %v9161, -inf
  %9168 = vmax.xlane.f32.xlu0 %v9167
  %v9169 = vpop.xlane.xlu0 %9168
  %v9170 = vsub.f32 %v9156, %v9166
  %v9171 = vsub.f32 %v9161, %v9169
  %v9172 = vmul.f32 %v9170, 1.442695
  %v9173 = vpow.pop %v9172
  %v9174 = vmul.f32 %v9171, 1.442695
  %v9175 = vpow.pop %v9174
  %v9176 = vsel %vm3726, %v9173, 0.0
  %9177 = vadd.xlane.f32.xlu0 %v9176
  %v9178 = vpop.xlane.xlu0 %9177
  %v9179 = vsel %vm3726, %v9175, 0.0
  %9180 = vadd.xlane.f32.xlu0 %v9179
  %v9181 = vpop.xlane.xlu0 %9180
  %v9182 = vlog2.pop %v9178
  %v9183 = vmul.f32 %v9182, 0.6931472
  %v9184 = vlog2.pop %v9181
  %v9185 = vmul.f32 %v9184, 0.6931472
  %v9186 = vadd.f32 %v9166, %v9183
  %v9187 = vadd.f32 %v9169, %v9185
  %v9188 = vsub.f32 %v9156, %v9186
  %v9189 = vsub.f32 %v9161, %v9187
  %9192 = vrot.lane.b32.xlu0 %v9188, 112
  %v9193 = vpop.permute.xlu0 %9192
  %9194 = vrot.lane.b32.xlu0 %v9189, 112
  %v9195 = vpop.permute.xlu0 %9194
  %vm9198 = vcmask 1048448
  %9199 = vst.msk [vmem:[%s16] sm:$0xff] %vm9198, %v9193
  %9200 = vst.msk [vmem:[%s16 + $0x8] sm:$0xff] %vm9198, %v9195
  // Predicated region
  $region66: #{copynet_run.1} parent=0 // pred_check
    _
  $region67: #{copynet_run.1} parent=0 // pred_check_branch
    %9202 = sbr.rel (0) target = $region69
  $region68: #{copynet_run.1} parent=0 // pred_region
    _
  $region69: #{copynet_run.1} parent=0 // pred_fallthru
    _
  // Predicated region
  $region70: #{copynet_run.1} parent=0 // pred_check
    _
  $region71: #{copynet_run.1} parent=0 // pred_check_branch
    %9204 = sbr.rel (0) target = $region73
  $region72: #{copynet_run.1} parent=0 // pred_region
    _
  $region73: #{copynet_run.1} parent=0 // pred_fallthru
    _

</llo_original>
